<compile_context>
chip_gen: v5e
topology: v5e:2x2
jax: 0.10.0
libtpu: 0.0.40
codegen_flags: <defaults>
</compile_context>

<pallas_src>
import functools

import numpy as np
import jax
import jax.numpy as jnp
from jax import lax
from jax.experimental import pallas as pl
from jax.experimental.pallas import tpu as pltpu


_GN_EPS = 1e-5        # nn.GroupNorm default eps
_L2_EPS = 1e-12       # F.normalize default eps
_L2_EPS2 = _L2_EPS * _L2_EPS
_INV_SQRT2 = 0.7071067811865476


# ----------------------------- in-kernel helpers -----------------------------

def _erf(x):
    # Abramowitz & Stegun 7.1.26 polynomial (|err| < 1.5e-7 ~= f32 eps).
    # TODO(synk): try the native lax.erf lowering (EUP) and drop the polynomial.
    a1, a2, a3, a4, a5 = 0.254829592, -0.284496736, 1.421413741, -1.453152027, 1.061405429
    p = 0.3275911
    s = jnp.where(x >= 0.0, 1.0, -1.0)
    ax = jnp.abs(x)
    t = 1.0 / (1.0 + p * ax)
    poly = ((((a5 * t + a4) * t + a3) * t + a2) * t + a1) * t
    return s * (1.0 - poly * jnp.exp(-ax * ax))


def _gelu_exact(x):
    # PyTorch nn.GELU() (erf-exact) semantics.
    return 0.5 * x * (1.0 + _erf(x * _INV_SQRT2))


# ----------------------------- the fused kernel -----------------------------

def _cluster_block_kernel(alpha_ref, beta_ref, x_ref,
                          g1_ref, b1_ref, wfv_ref, bfv_ref,
                          pmat_ref, hm_ref, hmt_ref, mhm_ref,
                          wp_ref, bp_ref, ls1_ref,
                          g2_ref, bt2_ref, w1_ref, b1f_ref, w2_ref, b2f_ref,
                          ls2_ref,
                          o_ref, xfv_s, y_s, *,
                          heads, head_dim, fold_w, fold_h, p0, q0, n_ctr):
    D = heads * head_dim
    n = p0 * q0
    M = n_ctr
    P = fold_w * p0
    Q = fold_h * q0
    HW = P * Q

    x0 = x_ref[0].astype(jnp.float32)                         # (HW, C)

    # ---------------- GroupNorm(1 group) ----------------
    mu = jnp.mean(x0, keepdims=True)
    xc = x0 - mu
    var = jnp.mean(xc * xc, keepdims=True)
    n1 = xc * lax.rsqrt(var + _GN_EPS) * g1_ref[...] + b1_ref[...]

    # ---------------- fused f || v 1x1 convs (one MXU pass) ----------------
    xfv = (jnp.dot(n1, wfv_ref[...], preferred_element_type=jnp.float32)
           + bfv_ref[...])                                     # (HW, 2D)
    xfv_s[...] = xfv.reshape(P, Q, 2 * D)

    alpha = alpha_ref[0]
    beta = beta_ref[0]
    pmat = pmat_ref[...]                                       # (M, n)
    hm = hm_ref[...]                                           # (D, heads) head indicator
    hmt = hmt_ref[...]                                         # (heads, D)
    mhm = mhm_ref[...]                                         # (heads*M, D) stacked head mask
    cid = lax.broadcasted_iota(jnp.int32, (M, n), 0)

    # ---------------- context clustering: static loop over fold regions ----------------
    for fi in range(fold_w):
        for fj in range(fold_h):
            r = xfv_s[pl.ds(fi * p0, p0), pl.ds(fj * q0, q0), :].reshape(n, 2 * D)
            xf = r[:, :D]                                      # (n, D) feature points
            xv = r[:, D:]                                      # (n, D) value points

            # proposal centers (adaptive avg-pool) for f and v in one matmul
            cent = jnp.dot(pmat, r, preferred_element_type=jnp.float32)   # (M, 2D)
            cf = cent[:, :D]
            cv = cent[:, D:]

            # per-head L2 normalization (F.normalize semantics), rsqrt on the EUP
            c_inv = lax.rsqrt(jnp.maximum(
                jnp.dot(cf * cf, hm, preferred_element_type=jnp.float32), _L2_EPS2))
            p_inv = lax.rsqrt(jnp.maximum(
                jnp.dot(xf * xf, hm, preferred_element_type=jnp.float32), _L2_EPS2))
            cn = cf * jnp.dot(c_inv, hmt, preferred_element_type=jnp.float32)  # (M, D)
            xn = xf * jnp.dot(p_inv, hmt, preferred_element_type=jnp.float32)  # (n, D)

            # per-head cosine similarity: one block-diagonal MXU matmul
            cn_stack = jnp.concatenate([cn] * heads, axis=0) * mhm             # (HM, D)
            cos = lax.dot_general(cn_stack, xn, (((1,), (1,)), ((), ())),
                                  preferred_element_type=jnp.float32)          # (HM, n)
            sim = jax.nn.sigmoid(beta + alpha * cos)

            # hard assignment: first max center per (head, point)  (tiny per-head work)
            parts = []
            for h in range(heads):
                sh = sim[h * M:(h + 1) * M, :]                                 # (M, n)
                smax = jnp.max(sh, axis=0, keepdims=True)
                first = jnp.min(jnp.where(sh >= smax, cid, M), axis=0, keepdims=True)
                parts.append(jnp.where(cid == first, sh, 0.0))
            simm = jnp.concatenate(parts, axis=0)                              # (HM, n)

            # aggregate values onto centers (head-blocked, masked MXU matmul)
            tmp = jnp.dot(simm, xv, preferred_element_type=jnp.float32) * mhm  # (HM, D)
            ssum = jnp.sum(simm, axis=-1, keepdims=True)                       # (HM, 1)
            agg = cv
            den = None
            for h in range(heads):
                agg = agg + tmp[h * M:(h + 1) * M, :]
                d_h = ssum[h * M:(h + 1) * M, :] * hmt[h:h + 1, :]
                den = d_h if den is None else den + d_h
            outc = agg * pl.reciprocal(den + 1.0, approx=True)                 # (M, D)

            # dispatch back to points: one block-diagonal MXU matmul
            outc_stack = jnp.concatenate([outc] * heads, axis=0) * mhm         # (HM, D)
            disp = lax.dot_general(simm, outc_stack, (((0,), (0,)), ((), ())),
                                   preferred_element_type=jnp.float32)         # (n, D)
            y_s[pl.ds(fi * p0, p0), pl.ds(fj * q0, q0), :] = disp.reshape(p0, q0, D)

    # ---------------- proj 1x1 conv + layer_scale_1 + residual ----------------
    y = y_s[...].reshape(HW, D)
    t = jnp.dot(y, wp_ref[...], preferred_element_type=jnp.float32) + bp_ref[...]
    x1 = x0 + ls1_ref[...] * t

    # ---------------- GroupNorm2 + MLP(GELU) + layer_scale_2 + residual ----------------
    mu2 = jnp.mean(x1, keepdims=True)
    xc2 = x1 - mu2
    var2 = jnp.mean(xc2 * xc2, keepdims=True)
    n2 = xc2 * lax.rsqrt(var2 + _GN_EPS) * g2_ref[...] + bt2_ref[...]

    h1 = _gelu_exact(jnp.dot(n2, w1_ref[...], preferred_element_type=jnp.float32)
                     + b1f_ref[...])                                            # (HW, hidden)
    mlp = jnp.dot(h1, w2_ref[...], preferred_element_type=jnp.float32) + b2f_ref[...]

    o_ref[0] = (x1 + ls2_ref[...] * mlp).astype(o_ref.dtype)


# ----------------------------- host-side helpers -----------------------------

def _pool_matrix(p0, q0, pw, ph):
    """(M, N) adaptive-avg-pool weights for an exactly divisible (p0,q0) region."""
    hp, hq = p0 // pw, q0 // ph
    mat = np.zeros((pw * ph, p0 * q0), dtype=np.float32)
    for mi in range(pw):
        for mj in range(ph):
            m = mi * ph + mj
            for pi in range(mi * hp, (mi + 1) * hp):
                for qi in range(mj * hq, (mj + 1) * hq):
                    mat[m, pi * q0 + qi] = 1.0 / (hp * hq)
    return jnp.asarray(mat)


def _head_masks(heads, head_dim, n_ctr):
    D = heads * head_dim
    hm = np.zeros((D, heads), np.float32)
    for h in range(heads):
        hm[h * head_dim:(h + 1) * head_dim, h] = 1.0
    hmt = hm.T.copy()                                  # (heads, D)
    mhm = np.repeat(hmt, n_ctr, axis=0)                # (heads*M, D), row h*M+m = head h mask
    return jnp.asarray(hm), jnp.asarray(hmt), jnp.asarray(mhm)


def cluster_block_forward(x_nchw, params, *, heads, head_dim,
                          fold_w, fold_h, proposal_w, proposal_h):
    """Mirrors ClusterBlock.forward (use_layer_scale=True, drop=0)."""
    B, C, P, Q = x_nchw.shape
    D = heads * head_dim
    HW = P * Q
    if not (fold_w > 1 and fold_h > 1):   # PyTorch only folds when both > 1
        fold_w = fold_h = 1
    assert P % fold_w == 0 and Q % fold_h == 0
    p0, q0 = P // fold_w, Q // fold_h
    assert p0 % proposal_w == 0 and q0 % proposal_h == 0  # exactly-divisible adaptive pool only
    n_pts = p0 * q0
    M = proposal_w * proposal_h
    hidden = params["fc1_w"].shape[1]

    # single transpose to channels-last at the module boundary
    x_nhwc = jnp.transpose(x_nchw, (0, 2, 3, 1)).reshape(B, HW, C)

    # fused f||v conv weights and constant masks
    wfv = jnp.concatenate([params["f_w"], params["v_w"]], axis=1)    # (C, 2D)
    bfv = jnp.concatenate([params["f_b"], params["v_b"]], axis=1)    # (1, 2D)
    pmat = _pool_matrix(p0, q0, proposal_w, proposal_h)              # (M, n)
    hm, hmt, mhm = _head_masks(heads, head_dim, M)

    kernel = functools.partial(
        _cluster_block_kernel, heads=heads, head_dim=head_dim,
        fold_w=fold_w, fold_h=fold_h, p0=p0, q0=q0, n_ctr=M)

    const = lambda b: (0, 0)
    out_nhwc = pl.pallas_call(
        kernel,
        out_shape=jax.ShapeDtypeStruct((B, HW, C), x_nchw.dtype),
        grid_spec=pltpu.PrefetchScalarGridSpec(
            num_scalar_prefetch=0,
            grid=(B,),
            in_specs=[
                pl.BlockSpec(memory_space=pltpu.MemorySpace.SMEM),   # sim_alpha (1,)
                pl.BlockSpec(memory_space=pltpu.MemorySpace.SMEM),   # sim_beta  (1,)
                pl.BlockSpec((1, HW, C), lambda b: (b, 0, 0)),       # x (channels-last)
                pl.BlockSpec((1, C), const),                         # norm1 gamma
                pl.BlockSpec((1, C), const),                         # norm1 beta
                pl.BlockSpec((C, 2 * D), const),                     # fused f||v weight
                pl.BlockSpec((1, 2 * D), const),                     # fused f||v bias
                pl.BlockSpec((M, n_pts), const),                     # pooling weights
                pl.BlockSpec((D, heads), const),                     # head mask
                pl.BlockSpec((heads, D), const),                     # head mask^T
                pl.BlockSpec((heads * M, D), const),                 # stacked head mask
                pl.BlockSpec((D, C), const),                         # proj weight
                pl.BlockSpec((1, C), const),                         # proj bias
                pl.BlockSpec((1, C), const),                         # layer_scale_1
                pl.BlockSpec((1, C), const),                         # norm2 gamma
                pl.BlockSpec((1, C), const),                         # norm2 beta
                pl.BlockSpec((C, hidden), const),                    # fc1 weight
                pl.BlockSpec((1, hidden), const),                    # fc1 bias
                pl.BlockSpec((hidden, C), const),                    # fc2 weight
                pl.BlockSpec((1, C), const),                         # fc2 bias
                pl.BlockSpec((1, C), const),                         # layer_scale_2
            ],
            out_specs=pl.BlockSpec((1, HW, C), lambda b: (b, 0, 0)),
            scratch_shapes=[
                pltpu.VMEM((P, Q, 2 * D), jnp.float32),              # xf||xv
                pltpu.VMEM((P, Q, D), jnp.float32),                  # cluster output
            ],
        ),
        compiler_params=pltpu.CompilerParams(dimension_semantics=("parallel",)),
    )(params["sim_alpha"], params["sim_beta"], x_nhwc,
      params["norm1_g"], params["norm1_b"], wfv, bfv,
      pmat, hm, hmt, mhm,
      params["proj_w"], params["proj_b"], params["ls1"],
      params["norm2_g"], params["norm2_b"],
      params["fc1_w"], params["fc1_b"], params["fc2_w"], params["fc2_b"],
      params["ls2"])

    return out_nhwc.reshape(B, P, Q, C).transpose(0, 3, 1, 2)


# ----------------------------- pure-JAX reference (mirrors PyTorch) -----------------------------

_HI = jax.lax.Precision.HIGHEST


def _ref_groupnorm(x, g, b, eps=_GN_EPS):
    B = x.shape[0]
    xf = x.reshape(B, -1)
    mu = xf.mean(axis=1)
    var = ((xf - mu[:, None]) ** 2).mean(axis=1)
    xn = (x - mu[:, None, None, None]) / jnp.sqrt(var[:, None, None, None] + eps)
    return xn * g[None, :, None, None] + b[None, :, None, None]


def _ref_cluster(xn, params, heads, head_dim, fold_w, fold_h, pw, ph):
    value = (jnp.einsum('bcpq,cd->bdpq', xn, params["v_w"], precision=_HI)
             + params["v_b"].reshape(-1)[None, :, None, None])
    feat = (jnp.einsum('bcpq,cd->bdpq', xn, params["f_w"], precision=_HI)
            + params["f_b"].reshape(-1)[None, :, None, None])
    B, D, P, Q = feat.shape
    c = head_dim
    feat = feat.reshape(B * heads, c, P, Q)                 # 'b (e c) w h -> (b e) c w h'
    value = value.reshape(B * heads, c, P, Q)
    b0 = B * heads
    p0, q0 = P // fold_w, Q // fold_h

    def fold(t):                                            # 'b c (f1 w) (f2 h) -> (b f1 f2) c w h'
        t = t.reshape(b0, c, fold_w, p0, fold_h, q0)
        return jnp.transpose(t, (0, 2, 4, 1, 3, 5)).reshape(b0 * fold_w * fold_h, c, p0, q0)

    feat, value = fold(feat), fold(value)
    b = feat.shape[0]

    def pool(t):                                            # AdaptiveAvgPool2d((pw, ph))
        t = t.reshape(b, c, pw, p0 // pw, ph, q0 // ph)
        return t.mean(axis=(3, 5))

    centers = pool(feat).reshape(b, c, pw * ph).transpose(0, 2, 1)          # (b, M, c)
    value_centers = pool(value).reshape(b, c, pw * ph).transpose(0, 2, 1)   # (b, M, c)
    feat_pts = feat.reshape(b, c, -1).transpose(0, 2, 1)                    # (b, N, c)
    val_pts = value.reshape(b, c, -1).transpose(0, 2, 1)                    # (b, N, c)

    def l2n(t):
        return t / jnp.maximum(jnp.sqrt(jnp.sum(t * t, axis=-1, keepdims=True)), _L2_EPS)

    sim = jax.nn.sigmoid(params["sim_beta"][0] + params["sim_alpha"][0] *
                         jnp.einsum('bmc,bnc->bmn', l2n(centers), l2n(feat_pts), precision=_HI))
    idx = jnp.argmax(sim, axis=1)
    mask = jax.nn.one_hot(idx, sim.shape[1], axis=1, dtype=sim.dtype)
    sim = sim * mask
    out = (jnp.einsum('bmn,bnc->bmc', sim, val_pts, precision=_HI) + value_centers) / (
        jnp.sum(sim, axis=-1, keepdims=True) + 1.0)
    out = jnp.einsum('bmn,bmc->bnc', sim, out, precision=_HI)
    out = out.transpose(0, 2, 1).reshape(b, c, p0, q0)
    out = out.reshape(b0, fold_w, fold_h, c, p0, q0)        # '(b f1 f2) c w h -> b c (f1 w) (f2 h)'
    out = jnp.transpose(out, (0, 3, 1, 4, 2, 5)).reshape(b0, c, P, Q)
    out = out.reshape(B, D, P, Q)                           # '(b e) c w h -> b (e c) w h'
    out = (jnp.einsum('bdpq,dc->bcpq', out, params["proj_w"], precision=_HI)
           + params["proj_b"].reshape(-1)[None, :, None, None])
    return out


def ref_cluster_block(x, params, heads, head_dim, fold_w, fold_h, pw, ph):
    y = _ref_cluster(_ref_groupnorm(x, params["norm1_g"].reshape(-1), params["norm1_b"].reshape(-1)),
                     params, heads, head_dim, fold_w, fold_h, pw, ph)
    x = x + params["ls1"].reshape(-1)[None, :, None, None] * y
    n2 = _ref_groupnorm(x, params["norm2_g"].reshape(-1), params["norm2_b"].reshape(-1))
    h = jnp.einsum('bcpq,ch->bpqh', n2, params["fc1_w"], precision=_HI) + params["fc1_b"].reshape(-1)
    h = jax.nn.gelu(h, approximate=False)
    mo = jnp.einsum('bpqh,hc->bpqc', h, params["fc2_w"], precision=_HI) + params["fc2_b"].reshape(-1)
    mo = jnp.transpose(mo, (0, 3, 1, 2))
    return x + params["ls2"].reshape(-1)[None, :, None, None] * mo


# ----------------------------- demo / check -----------------------------

if __name__ == "__main__":
    B, C, P, Q = 2, 32, 16, 16
    HEADS, HEAD_DIM = 4, 8
    FOLD_W = FOLD_H = 2
    PROP_W = PROP_H = 2
    MLP_RATIO = 4
    D = HEADS * HEAD_DIM
    HIDDEN = C * MLP_RATIO

    key = jax.random.PRNGKey(0)
    key, kx = jax.random.split(key)
    x = jax.random.normal(kx, (B, C, P, Q), jnp.float32)

    def rnd(k, shape, scale=0.1):
        return scale * jax.random.normal(k, shape, jnp.float32)

    keys = jax.random.split(key, 20)
    params = {
        "norm1_g": 1.0 + rnd(keys[0], (1, C)),
        "norm1_b": rnd(keys[1], (1, C)),
        "f_w": rnd(keys[2], (C, D)),
        "f_b": rnd(keys[3], (1, D)),
        "v_w": rnd(keys[4], (C, D)),
        "v_b": rnd(keys[5], (1, D)),
        "sim_alpha": 1.0 + rnd(keys[6], (1,)),
        "sim_beta": rnd(keys[7], (1,)),
        "proj_w": rnd(keys[8], (D, C)),
        "proj_b": rnd(keys[9], (1, C)),
        "ls1": 0.5 + rnd(keys[10], (1, C)),
        "norm2_g": 1.0 + rnd(keys[11], (1, C)),
        "norm2_b": rnd(keys[12], (1, C)),
        "fc1_w": rnd(keys[13], (C, HIDDEN)),
        "fc1_b": rnd(keys[14], (1, HIDDEN)),
        "fc2_w": rnd(keys[15], (HIDDEN, C)),
        "fc2_b": rnd(keys[16], (1, C)),
        "ls2": 0.5 + rnd(keys[17], (1, C)),
    }

    fwd = jax.jit(functools.partial(
        cluster_block_forward, heads=HEADS, head_dim=HEAD_DIM,
        fold_w=FOLD_W, fold_h=FOLD_H, proposal_w=PROP_W, proposal_h=PROP_H))

    out = fwd(x, params)
    jax.block_until_ready(out)
    assert out.shape == (B, C, P, Q)

    ref = ref_cluster_block(x, params, HEADS, HEAD_DIM, FOLD_W, FOLD_H, PROP_W, PROP_H)
    # tolerance covers MXU multi-pass f32 rounding + the approximate reciprocal
    # vs. the HIGHEST-precision XLA reference; structural bugs give O(0.1..1) errors.
    np.testing.assert_allclose(np.asarray(out), np.asarray(ref), rtol=5e-3, atol=5e-3)

    print("KERNEL_OK")
</pallas_src>

<mosaic_0001>
module attributes {stable_mosaic.version = 11 : i64} {
  func.func @_cluster_block_kernel(%arg0: i32, %arg1: memref<1xf32, #tpu.memory_space<smem>>, %arg2: memref<1xf32, #tpu.memory_space<smem>>, %arg3: memref<1x256x32xf32, #tpu.memory_space<vmem>>, %arg4: memref<1x32xf32, #tpu.memory_space<vmem>>, %arg5: memref<1x32xf32, #tpu.memory_space<vmem>>, %arg6: memref<32x64xf32, #tpu.memory_space<vmem>>, %arg7: memref<1x64xf32, #tpu.memory_space<vmem>>, %arg8: memref<4x64xf32, #tpu.memory_space<vmem>>, %arg9: memref<32x4xf32, #tpu.memory_space<vmem>>, %arg10: memref<4x32xf32, #tpu.memory_space<vmem>>, %arg11: memref<16x32xf32, #tpu.memory_space<vmem>>, %arg12: memref<32x32xf32, #tpu.memory_space<vmem>>, %arg13: memref<1x32xf32, #tpu.memory_space<vmem>>, %arg14: memref<1x32xf32, #tpu.memory_space<vmem>>, %arg15: memref<1x32xf32, #tpu.memory_space<vmem>>, %arg16: memref<1x32xf32, #tpu.memory_space<vmem>>, %arg17: memref<32x128xf32, #tpu.memory_space<vmem>>, %arg18: memref<1x128xf32, #tpu.memory_space<vmem>>, %arg19: memref<128x32xf32, #tpu.memory_space<vmem>>, %arg20: memref<1x32xf32, #tpu.memory_space<vmem>>, %arg21: memref<1x32xf32, #tpu.memory_space<vmem>>, %arg22: memref<1x256x32xf32, #tpu.memory_space<vmem>>, %arg23: memref<16x16x64xf32, #tpu.memory_space<vmem>>, %arg24: memref<16x16x32xf32, #tpu.memory_space<vmem>>) attributes {dimension_semantics = [#tpu.dimension_semantics<parallel>], iteration_bounds = array<i64: 2>, scalar_prefetch = 0 : i64, scratch_operands = 2 : i64, tpu.core_type = #tpu.core_type<tc>, window_params = [{transform_indices = @transform_0, window_bounds = array<i64: 1>}, {transform_indices = @transform_1, window_bounds = array<i64: 1>}, {transform_indices = @transform_2, window_bounds = array<i64: 1, 256, 32>}, {pipeline_mode = #tpu.pipeline_mode<synchronous>, transform_indices = @transform_3, window_bounds = array<i64: 1, 32>}, {pipeline_mode = #tpu.pipeline_mode<synchronous>, transform_indices = @transform_4, window_bounds = array<i64: 1, 32>}, {pipeline_mode = #tpu.pipeline_mode<synchronous>, transform_indices = @transform_5, window_bounds = array<i64: 32, 64>}, {pipeline_mode = #tpu.pipeline_mode<synchronous>, transform_indices = @transform_6, window_bounds = array<i64: 1, 64>}, {pipeline_mode = #tpu.pipeline_mode<synchronous>, transform_indices = @transform_7, window_bounds = array<i64: 4, 64>}, {pipeline_mode = #tpu.pipeline_mode<synchronous>, transform_indices = @transform_8, window_bounds = array<i64: 32, 4>}, {pipeline_mode = #tpu.pipeline_mode<synchronous>, transform_indices = @transform_9, window_bounds = array<i64: 4, 32>}, {pipeline_mode = #tpu.pipeline_mode<synchronous>, transform_indices = @transform_10, window_bounds = array<i64: 16, 32>}, {pipeline_mode = #tpu.pipeline_mode<synchronous>, transform_indices = @transform_11, window_bounds = array<i64: 32, 32>}, {pipeline_mode = #tpu.pipeline_mode<synchronous>, transform_indices = @transform_12, window_bounds = array<i64: 1, 32>}, {pipeline_mode = #tpu.pipeline_mode<synchronous>, transform_indices = @transform_13, window_bounds = array<i64: 1, 32>}, {pipeline_mode = #tpu.pipeline_mode<synchronous>, transform_indices = @transform_14, window_bounds = array<i64: 1, 32>}, {pipeline_mode = #tpu.pipeline_mode<synchronous>, transform_indices = @transform_15, window_bounds = array<i64: 1, 32>}, {pipeline_mode = #tpu.pipeline_mode<synchronous>, transform_indices = @transform_16, window_bounds = array<i64: 32, 128>}, {pipeline_mode = #tpu.pipeline_mode<synchronous>, transform_indices = @transform_17, window_bounds = array<i64: 1, 128>}, {pipeline_mode = #tpu.pipeline_mode<synchronous>, transform_indices = @transform_18, window_bounds = array<i64: 128, 32>}, {pipeline_mode = #tpu.pipeline_mode<synchronous>, transform_indices = @transform_19, window_bounds = array<i64: 1, 32>}, {pipeline_mode = #tpu.pipeline_mode<synchronous>, transform_indices = @transform_20, window_bounds = array<i64: 1, 32>}, {transform_indices = @transform_21, window_bounds = array<i64: 1, 256, 32>}]} {
    %c0 = arith.constant 0 : index
    %c0_0 = arith.constant 0 : index
    %c0_1 = arith.constant 0 : index
    %0 = vector.load %arg3[%c0, %c0_0, %c0_1] : memref<1x256x32xf32, #tpu.memory_space<vmem>>, vector<1x256x32xf32>
    %1 = vector.shape_cast %0 : vector<1x256x32xf32> to vector<256x32xf32>
    %2 = vector.shape_cast %1 : vector<256x32xf32> to vector<1x256x32xf32>
    %cst = arith.constant dense<0.000000e+00> : vector<1xf32>
    %3 = vector.multi_reduction <add>, %2, %cst [1, 2] : vector<1x256x32xf32> to vector<1xf32>
    %4 = vector.shape_cast %3 : vector<1xf32> to vector<1x1x1xf32>
    %5 = vector.extract %4[0, 0, 0] : f32 from vector<1x1x1xf32>
    %6 = vector.broadcast %5 : f32 to vector<1x1xf32>
    %cst_2 = arith.constant 8.192000e+03 : f32
    %7 = vector.broadcast %cst_2 : f32 to vector<1x1xf32>
    %8 = arith.divf %6, %7 : vector<1x1xf32>
    %9 = vector.broadcast %8 : vector<1x1xf32> to vector<256x32xf32>
    %10 = arith.subf %1, %9 : vector<256x32xf32>
    %11 = arith.mulf %10, %10 : vector<256x32xf32>
    %12 = vector.shape_cast %11 : vector<256x32xf32> to vector<1x256x32xf32>
    %cst_3 = arith.constant dense<0.000000e+00> : vector<1xf32>
    %13 = vector.multi_reduction <add>, %12, %cst_3 [1, 2] : vector<1x256x32xf32> to vector<1xf32>
    %14 = vector.shape_cast %13 : vector<1xf32> to vector<1x1x1xf32>
    %15 = vector.extract %14[0, 0, 0] : f32 from vector<1x1x1xf32>
    %16 = vector.broadcast %15 : f32 to vector<1x1xf32>
    %cst_4 = arith.constant 8.192000e+03 : f32
    %17 = vector.broadcast %cst_4 : f32 to vector<1x1xf32>
    %18 = arith.divf %16, %17 : vector<1x1xf32>
    %cst_5 = arith.constant 9.99999974E-6 : f32
    %19 = vector.broadcast %cst_5 : f32 to vector<1x1xf32>
    %20 = arith.addf %18, %19 : vector<1x1xf32>
    %21 = math.rsqrt %20 : vector<1x1xf32>
    %22 = vector.broadcast %21 : vector<1x1xf32> to vector<256x32xf32>
    %23 = arith.mulf %10, %22 : vector<256x32xf32>
    %c0_6 = arith.constant 0 : index
    %c0_7 = arith.constant 0 : index
    %24 = vector.load %arg4[%c0_6, %c0_7] : memref<1x32xf32, #tpu.memory_space<vmem>>, vector<1x32xf32>
    %25 = vector.broadcast %24 : vector<1x32xf32> to vector<256x32xf32>
    %26 = arith.mulf %23, %25 : vector<256x32xf32>
    %c0_8 = arith.constant 0 : index
    %c0_9 = arith.constant 0 : index
    %27 = vector.load %arg5[%c0_8, %c0_9] : memref<1x32xf32, #tpu.memory_space<vmem>>, vector<1x32xf32>
    %28 = vector.broadcast %27 : vector<1x32xf32> to vector<256x32xf32>
    %29 = arith.addf %26, %28 : vector<256x32xf32>
    %c0_10 = arith.constant 0 : index
    %c0_11 = arith.constant 0 : index
    %30 = vector.load %arg6[%c0_10, %c0_11] : memref<32x64xf32, #tpu.memory_space<vmem>>, vector<32x64xf32>
    %cst_12 = arith.constant dense<0.000000e+00> : vector<256x64xf32>
    %31 = tpu.matmul %29, %30, %cst_12 {dimension_numbers = #tpu.dot_dimension_numbers<[1], [0], [0], [1], [0, 0, 1, 1], [], []>} : vector<256x32xf32>, vector<32x64xf32>, vector<256x64xf32> -> vector<256x64xf32>
    %c0_13 = arith.constant 0 : index
    %c0_14 = arith.constant 0 : index
    %32 = vector.load %arg7[%c0_13, %c0_14] : memref<1x64xf32, #tpu.memory_space<vmem>>, vector<1x64xf32>
    %33 = vector.broadcast %32 : vector<1x64xf32> to vector<256x64xf32>
    %34 = arith.addf %31, %33 : vector<256x64xf32>
    %35 = vector.shape_cast %34 : vector<256x64xf32> to vector<16x16x64xf32>
    %c0_15 = arith.constant 0 : index
    %c0_16 = arith.constant 0 : index
    %c0_17 = arith.constant 0 : index
    %36 = vector.load %arg23[%c0_15, %c0_16, %c0_17] : memref<16x16x64xf32, #tpu.memory_space<vmem>>, vector<16x16x64xf32>
    tpu.vector_store %arg23[%c0_15, %c0_16, %c0_17], %35 {strides = array<i32>} : memref<16x16x64xf32, #tpu.memory_space<vmem>>, vector<16x16x64xf32>,
    %c0_18 = arith.constant 0 : index
    %37 = memref.load %arg1[%c0_18] : memref<1xf32, #tpu.memory_space<smem>>
    %c0_19 = arith.constant 0 : index
    %38 = memref.load %arg2[%c0_19] : memref<1xf32, #tpu.memory_space<smem>>
    %c0_20 = arith.constant 0 : index
    %c0_21 = arith.constant 0 : index
    %39 = vector.load %arg8[%c0_20, %c0_21] : memref<4x64xf32, #tpu.memory_space<vmem>>, vector<4x64xf32>
    %c0_22 = arith.constant 0 : index
    %c0_23 = arith.constant 0 : index
    %40 = vector.load %arg9[%c0_22, %c0_23] : memref<32x4xf32, #tpu.memory_space<vmem>>, vector<32x4xf32>
    %c0_24 = arith.constant 0 : index
    %c0_25 = arith.constant 0 : index
    %41 = vector.load %arg10[%c0_24, %c0_25] : memref<4x32xf32, #tpu.memory_space<vmem>>, vector<4x32xf32>
    %c0_26 = arith.constant 0 : index
    %c0_27 = arith.constant 0 : index
    %42 = vector.load %arg11[%c0_26, %c0_27] : memref<16x32xf32, #tpu.memory_space<vmem>>, vector<16x32xf32>
    %43 = tpu.iota {dimensions = array<i32: 0>} : vector<4x64xi32>
    %c0_28 = arith.constant 0 : index
    %c0_29 = arith.constant 0 : index
    %c0_30 = arith.constant 0 : index
    %44 = vector.load %arg23[%c0_28, %c0_29, %c0_30] : memref<16x16x64xf32, #tpu.memory_space<vmem>>, vector<8x8x64xf32>
    %45 = vector.shape_cast %44 : vector<8x8x64xf32> to vector<64x64xf32>
    %46 = vector.extract_strided_slice %45 {offsets = [0, 0], sizes = [64, 32], strides = [1, 1]} : vector<64x64xf32> to vector<64x32xf32>
    %47 = vector.extract_strided_slice %45 {offsets = [0, 32], sizes = [64, 32], strides = [1, 1]} : vector<64x64xf32> to vector<64x32xf32>
    %cst_31 = arith.constant dense<0.000000e+00> : vector<4x64xf32>
    %48 = tpu.matmul %39, %45, %cst_31 {dimension_numbers = #tpu.dot_dimension_numbers<[1], [0], [0], [1], [0, 0, 1, 1], [], []>} : vector<4x64xf32>, vector<64x64xf32>, vector<4x64xf32> -> vector<4x64xf32>
    %49 = vector.extract_strided_slice %48 {offsets = [0, 0], sizes = [4, 32], strides = [1, 1]} : vector<4x64xf32> to vector<4x32xf32>
    %50 = vector.extract_strided_slice %48 {offsets = [0, 32], sizes = [4, 32], strides = [1, 1]} : vector<4x64xf32> to vector<4x32xf32>
    %51 = arith.mulf %49, %49 : vector<4x32xf32>
    %cst_32 = arith.constant dense<0.000000e+00> : vector<4x4xf32>
    %52 = tpu.matmul %51, %40, %cst_32 {dimension_numbers = #tpu.dot_dimension_numbers<[1], [0], [0], [1], [0, 0, 1, 1], [], []>} : vector<4x32xf32>, vector<32x4xf32>, vector<4x4xf32> -> vector<4x4xf32>
    %cst_33 = arith.constant 1.000000e-24 : f32
    %53 = vector.broadcast %cst_33 : f32 to vector<4x4xf32>
    %54 = arith.maximumf %52, %53 : vector<4x4xf32>
    %55 = math.rsqrt %54 : vector<4x4xf32>
    %56 = arith.mulf %46, %46 : vector<64x32xf32>
    %cst_34 = arith.constant dense<0.000000e+00> : vector<64x4xf32>
    %57 = tpu.matmul %56, %40, %cst_34 {dimension_numbers = #tpu.dot_dimension_numbers<[1], [0], [0], [1], [0, 0, 1, 1], [], []>} : vector<64x32xf32>, vector<32x4xf32>, vector<64x4xf32> -> vector<64x4xf32>
    %cst_35 = arith.constant 1.000000e-24 : f32
    %58 = vector.broadcast %cst_35 : f32 to vector<64x4xf32>
    %59 = arith.maximumf %57, %58 : vector<64x4xf32>
    %60 = math.rsqrt %59 : vector<64x4xf32>
    %cst_36 = arith.constant dense<0.000000e+00> : vector<4x32xf32>
    %61 = tpu.matmul %55, %41, %cst_36 {dimension_numbers = #tpu.dot_dimension_numbers<[1], [0], [0], [1], [0, 0, 1, 1], [], []>} : vector<4x4xf32>, vector<4x32xf32>, vector<4x32xf32> -> vector<4x32xf32>
    %62 = arith.mulf %49, %61 : vector<4x32xf32>
    %cst_37 = arith.constant dense<0.000000e+00> : vector<64x32xf32>
    %63 = tpu.matmul %60, %41, %cst_37 {dimension_numbers = #tpu.dot_dimension_numbers<[1], [0], [0], [1], [0, 0, 1, 1], [], []>} : vector<64x4xf32>, vector<4x32xf32>, vector<64x32xf32> -> vector<64x32xf32>
    %64 = arith.mulf %46, %63 : vector<64x32xf32>
    %65 = tpu.concatenate %62, %62, %62, %62 in 0 : vector<4x32xf32>, vector<4x32xf32>, vector<4x32xf32>, vector<4x32xf32> -> vector<16x32xf32>
    %66 = arith.mulf %65, %42 : vector<16x32xf32>
    %cst_38 = arith.constant dense<0.000000e+00> : vector<16x64xf32>
    %67 = tpu.matmul %66, %64, %cst_38 {dimension_numbers = #tpu.dot_dimension_numbers<[1], [1], [0], [0], [0, 0, 1, 0], [], []>} : vector<16x32xf32>, vector<64x32xf32>, vector<16x64xf32> -> vector<16x64xf32>
    %68 = vector.broadcast %37 : f32 to vector<16x64xf32>
    %69 = arith.mulf %68, %67 : vector<16x64xf32>
    %70 = vector.broadcast %38 : f32 to vector<16x64xf32>
    %71 = arith.addf %70, %69 : vector<16x64xf32>
    %72 = arith.negf %71 : vector<16x64xf32>
    %73 = math.exp %72 : vector<16x64xf32>
    %cst_39 = arith.constant 1.000000e+00 : f32
    %74 = vector.broadcast %cst_39 : f32 to vector<16x64xf32>
    %75 = arith.addf %74, %73 : vector<16x64xf32>
    %76 = arith.divf %74, %75 : vector<16x64xf32>
    %77 = vector.extract_strided_slice %76 {offsets = [0, 0], sizes = [4, 64], strides = [1, 1]} : vector<16x64xf32> to vector<4x64xf32>
    %cst_40 = arith.constant dense<0xFF800000> : vector<64xf32>
    %78 = vector.multi_reduction <maximumf>, %77, %cst_40 [0] : vector<4x64xf32> to vector<64xf32>
    %79 = vector.shape_cast %78 : vector<64xf32> to vector<1x64xf32>
    %80 = vector.broadcast %79 : vector<1x64xf32> to vector<4x64xf32>
    %81 = arith.cmpf oge, %77, %80 : vector<4x64xf32>
    %c4_i32 = arith.constant 4 : i32
    %82 = vector.broadcast %c4_i32 : i32 to vector<4x64xi32>
    %83 = arith.select %81, %43, %82 : vector<4x64xi1>, vector<4x64xi32>
    %cst_41 = arith.constant dense<2147483647> : vector<64xi32>
    %84 = vector.multi_reduction <minsi>, %83, %cst_41 [0] : vector<4x64xi32> to vector<64xi32>
    %85 = vector.shape_cast %84 : vector<64xi32> to vector<1x64xi32>
    %86 = vector.broadcast %85 : vector<1x64xi32> to vector<4x64xi32>
    %87 = arith.cmpi eq, %43, %86 : vector<4x64xi32>
    %cst_42 = arith.constant 0.000000e+00 : f32
    %88 = vector.broadcast %cst_42 : f32 to vector<4x64xf32>
    %89 = arith.select %87, %77, %88 : vector<4x64xi1>, vector<4x64xf32>
    %90 = vector.extract_strided_slice %76 {offsets = [4, 0], sizes = [4, 64], strides = [1, 1]} : vector<16x64xf32> to vector<4x64xf32>
    %cst_43 = arith.constant dense<0xFF800000> : vector<64xf32>
    %91 = vector.multi_reduction <maximumf>, %90, %cst_43 [0] : vector<4x64xf32> to vector<64xf32>
    %92 = vector.shape_cast %91 : vector<64xf32> to vector<1x64xf32>
    %93 = vector.broadcast %92 : vector<1x64xf32> to vector<4x64xf32>
    %94 = arith.cmpf oge, %90, %93 : vector<4x64xf32>
    %c4_i32_44 = arith.constant 4 : i32
    %95 = vector.broadcast %c4_i32_44 : i32 to vector<4x64xi32>
    %96 = arith.select %94, %43, %95 : vector<4x64xi1>, vector<4x64xi32>
    %cst_45 = arith.constant dense<2147483647> : vector<64xi32>
    %97 = vector.multi_reduction <minsi>, %96, %cst_45 [0] : vector<4x64xi32> to vector<64xi32>
    %98 = vector.shape_cast %97 : vector<64xi32> to vector<1x64xi32>
    %99 = vector.broadcast %98 : vector<1x64xi32> to vector<4x64xi32>
    %100 = arith.cmpi eq, %43, %99 : vector<4x64xi32>
    %cst_46 = arith.constant 0.000000e+00 : f32
    %101 = vector.broadcast %cst_46 : f32 to vector<4x64xf32>
    %102 = arith.select %100, %90, %101 : vector<4x64xi1>, vector<4x64xf32>
    %103 = vector.extract_strided_slice %76 {offsets = [8, 0], sizes = [4, 64], strides = [1, 1]} : vector<16x64xf32> to vector<4x64xf32>
    %cst_47 = arith.constant dense<0xFF800000> : vector<64xf32>
    %104 = vector.multi_reduction <maximumf>, %103, %cst_47 [0] : vector<4x64xf32> to vector<64xf32>
    %105 = vector.shape_cast %104 : vector<64xf32> to vector<1x64xf32>
    %106 = vector.broadcast %105 : vector<1x64xf32> to vector<4x64xf32>
    %107 = arith.cmpf oge, %103, %106 : vector<4x64xf32>
    %c4_i32_48 = arith.constant 4 : i32
    %108 = vector.broadcast %c4_i32_48 : i32 to vector<4x64xi32>
    %109 = arith.select %107, %43, %108 : vector<4x64xi1>, vector<4x64xi32>
    %cst_49 = arith.constant dense<2147483647> : vector<64xi32>
    %110 = vector.multi_reduction <minsi>, %109, %cst_49 [0] : vector<4x64xi32> to vector<64xi32>
    %111 = vector.shape_cast %110 : vector<64xi32> to vector<1x64xi32>
    %112 = vector.broadcast %111 : vector<1x64xi32> to vector<4x64xi32>
    %113 = arith.cmpi eq, %43, %112 : vector<4x64xi32>
    %cst_50 = arith.constant 0.000000e+00 : f32
    %114 = vector.broadcast %cst_50 : f32 to vector<4x64xf32>
    %115 = arith.select %113, %103, %114 : vector<4x64xi1>, vector<4x64xf32>
    %116 = vector.extract_strided_slice %76 {offsets = [12, 0], sizes = [4, 64], strides = [1, 1]} : vector<16x64xf32> to vector<4x64xf32>
    %cst_51 = arith.constant dense<0xFF800000> : vector<64xf32>
    %117 = vector.multi_reduction <maximumf>, %116, %cst_51 [0] : vector<4x64xf32> to vector<64xf32>
    %118 = vector.shape_cast %117 : vector<64xf32> to vector<1x64xf32>
    %119 = vector.broadcast %118 : vector<1x64xf32> to vector<4x64xf32>
    %120 = arith.cmpf oge, %116, %119 : vector<4x64xf32>
    %c4_i32_52 = arith.constant 4 : i32
    %121 = vector.broadcast %c4_i32_52 : i32 to vector<4x64xi32>
    %122 = arith.select %120, %43, %121 : vector<4x64xi1>, vector<4x64xi32>
    %cst_53 = arith.constant dense<2147483647> : vector<64xi32>
    %123 = vector.multi_reduction <minsi>, %122, %cst_53 [0] : vector<4x64xi32> to vector<64xi32>
    %124 = vector.shape_cast %123 : vector<64xi32> to vector<1x64xi32>
    %125 = vector.broadcast %124 : vector<1x64xi32> to vector<4x64xi32>
    %126 = arith.cmpi eq, %43, %125 : vector<4x64xi32>
    %cst_54 = arith.constant 0.000000e+00 : f32
    %127 = vector.broadcast %cst_54 : f32 to vector<4x64xf32>
    %128 = arith.select %126, %116, %127 : vector<4x64xi1>, vector<4x64xf32>
    %129 = tpu.concatenate %89, %102, %115, %128 in 0 : vector<4x64xf32>, vector<4x64xf32>, vector<4x64xf32>, vector<4x64xf32> -> vector<16x64xf32>
    %cst_55 = arith.constant dense<0.000000e+00> : vector<16x32xf32>
    %130 = tpu.matmul %129, %47, %cst_55 {dimension_numbers = #tpu.dot_dimension_numbers<[1], [0], [0], [1], [0, 0, 1, 1], [], []>} : vector<16x64xf32>, vector<64x32xf32>, vector<16x32xf32> -> vector<16x32xf32>
    %131 = arith.mulf %130, %42 : vector<16x32xf32>
    %cst_56 = arith.constant dense<0.000000e+00> : vector<16xf32>
    %132 = vector.multi_reduction <add>, %129, %cst_56 [1] : vector<16x64xf32> to vector<16xf32>
    %133 = vector.shape_cast %132 : vector<16xf32> to vector<16x1xf32>
    %134 = vector.extract_strided_slice %131 {offsets = [0, 0], sizes = [4, 32], strides = [1, 1]} : vector<16x32xf32> to vector<4x32xf32>
    %135 = arith.addf %50, %134 : vector<4x32xf32>
    %136 = vector.extract_strided_slice %133 {offsets = [0, 0], sizes = [4, 1], strides = [1, 1]} : vector<16x1xf32> to vector<4x1xf32>
    %137 = vector.extract_strided_slice %41 {offsets = [0, 0], sizes = [1, 32], strides = [1, 1]} : vector<4x32xf32> to vector<1x32xf32>
    %138 = vector.broadcast %136 : vector<4x1xf32> to vector<4x32xf32>
    %139 = vector.broadcast %137 : vector<1x32xf32> to vector<4x32xf32>
    %140 = arith.mulf %138, %139 : vector<4x32xf32>
    %141 = vector.extract_strided_slice %131 {offsets = [4, 0], sizes = [4, 32], strides = [1, 1]} : vector<16x32xf32> to vector<4x32xf32>
    %142 = arith.addf %135, %141 : vector<4x32xf32>
    %143 = vector.extract_strided_slice %133 {offsets = [4, 0], sizes = [4, 1], strides = [1, 1]} : vector<16x1xf32> to vector<4x1xf32>
    %144 = vector.extract_strided_slice %41 {offsets = [1, 0], sizes = [1, 32], strides = [1, 1]} : vector<4x32xf32> to vector<1x32xf32>
    %145 = vector.broadcast %143 : vector<4x1xf32> to vector<4x32xf32>
    %146 = vector.broadcast %144 : vector<1x32xf32> to vector<4x32xf32>
    %147 = arith.mulf %145, %146 : vector<4x32xf32>
    %148 = arith.addf %140, %147 : vector<4x32xf32>
    %149 = vector.extract_strided_slice %131 {offsets = [8, 0], sizes = [4, 32], strides = [1, 1]} : vector<16x32xf32> to vector<4x32xf32>
    %150 = arith.addf %142, %149 : vector<4x32xf32>
    %151 = vector.extract_strided_slice %133 {offsets = [8, 0], sizes = [4, 1], strides = [1, 1]} : vector<16x1xf32> to vector<4x1xf32>
    %152 = vector.extract_strided_slice %41 {offsets = [2, 0], sizes = [1, 32], strides = [1, 1]} : vector<4x32xf32> to vector<1x32xf32>
    %153 = vector.broadcast %151 : vector<4x1xf32> to vector<4x32xf32>
    %154 = vector.broadcast %152 : vector<1x32xf32> to vector<4x32xf32>
    %155 = arith.mulf %153, %154 : vector<4x32xf32>
    %156 = arith.addf %148, %155 : vector<4x32xf32>
    %157 = vector.extract_strided_slice %131 {offsets = [12, 0], sizes = [4, 32], strides = [1, 1]} : vector<16x32xf32> to vector<4x32xf32>
    %158 = arith.addf %150, %157 : vector<4x32xf32>
    %159 = vector.extract_strided_slice %133 {offsets = [12, 0], sizes = [4, 1], strides = [1, 1]} : vector<16x1xf32> to vector<4x1xf32>
    %160 = vector.extract_strided_slice %41 {offsets = [3, 0], sizes = [1, 32], strides = [1, 1]} : vector<4x32xf32> to vector<1x32xf32>
    %161 = vector.broadcast %159 : vector<4x1xf32> to vector<4x32xf32>
    %162 = vector.broadcast %160 : vector<1x32xf32> to vector<4x32xf32>
    %163 = arith.mulf %161, %162 : vector<4x32xf32>
    %164 = arith.addf %156, %163 : vector<4x32xf32>
    %cst_57 = arith.constant 1.000000e+00 : f32
    %165 = vector.broadcast %cst_57 : f32 to vector<4x32xf32>
    %166 = arith.addf %164, %165 : vector<4x32xf32>
    %167 = tpu.reciprocal %166 {approx = true} : vector<4x32xf32> -> vector<4x32xf32>
    %168 = arith.mulf %158, %167 : vector<4x32xf32>
    %169 = tpu.concatenate %168, %168, %168, %168 in 0 : vector<4x32xf32>, vector<4x32xf32>, vector<4x32xf32>, vector<4x32xf32> -> vector<16x32xf32>
    %170 = arith.mulf %169, %42 : vector<16x32xf32>
    %cst_58 = arith.constant dense<0.000000e+00> : vector<64x32xf32>
    %171 = tpu.matmul %129, %170, %cst_58 {dimension_numbers = #tpu.dot_dimension_numbers<[0], [0], [1], [1], [0, 1, 1, 1], [], []>} : vector<16x64xf32>, vector<16x32xf32>, vector<64x32xf32> -> vector<64x32xf32>
    %172 = vector.shape_cast %171 : vector<64x32xf32> to vector<8x8x32xf32>
    %c0_59 = arith.constant 0 : index
    %c0_60 = arith.constant 0 : index
    %c0_61 = arith.constant 0 : index
    %173 = vector.load %arg24[%c0_59, %c0_60, %c0_61] : memref<16x16x32xf32, #tpu.memory_space<vmem>>, vector<8x8x32xf32>
    tpu.vector_store %arg24[%c0_59, %c0_60, %c0_61], %172 {strides = array<i32>} : memref<16x16x32xf32, #tpu.memory_space<vmem>>, vector<8x8x32xf32>,
    %c0_62 = arith.constant 0 : index
    %c8 = arith.constant 8 : index
    %c0_63 = arith.constant 0 : index
    %174 = vector.load %arg23[%c0_62, %c8, %c0_63] : memref<16x16x64xf32, #tpu.memory_space<vmem>>, vector<8x8x64xf32>
    %175 = vector.shape_cast %174 : vector<8x8x64xf32> to vector<64x64xf32>
    %176 = vector.extract_strided_slice %175 {offsets = [0, 0], sizes = [64, 32], strides = [1, 1]} : vector<64x64xf32> to vector<64x32xf32>
    %177 = vector.extract_strided_slice %175 {offsets = [0, 32], sizes = [64, 32], strides = [1, 1]} : vector<64x64xf32> to vector<64x32xf32>
    %cst_64 = arith.constant dense<0.000000e+00> : vector<4x64xf32>
    %178 = tpu.matmul %39, %175, %cst_64 {dimension_numbers = #tpu.dot_dimension_numbers<[1], [0], [0], [1], [0, 0, 1, 1], [], []>} : vector<4x64xf32>, vector<64x64xf32>, vector<4x64xf32> -> vector<4x64xf32>
    %179 = vector.extract_strided_slice %178 {offsets = [0, 0], sizes = [4, 32], strides = [1, 1]} : vector<4x64xf32> to vector<4x32xf32>
    %180 = vector.extract_strided_slice %178 {offsets = [0, 32], sizes = [4, 32], strides = [1, 1]} : vector<4x64xf32> to vector<4x32xf32>
    %181 = arith.mulf %179, %179 : vector<4x32xf32>
    %cst_65 = arith.constant dense<0.000000e+00> : vector<4x4xf32>
    %182 = tpu.matmul %181, %40, %cst_65 {dimension_numbers = #tpu.dot_dimension_numbers<[1], [0], [0], [1], [0, 0, 1, 1], [], []>} : vector<4x32xf32>, vector<32x4xf32>, vector<4x4xf32> -> vector<4x4xf32>
    %cst_66 = arith.constant 1.000000e-24 : f32
    %183 = vector.broadcast %cst_66 : f32 to vector<4x4xf32>
    %184 = arith.maximumf %182, %183 : vector<4x4xf32>
    %185 = math.rsqrt %184 : vector<4x4xf32>
    %186 = arith.mulf %176, %176 : vector<64x32xf32>
    %cst_67 = arith.constant dense<0.000000e+00> : vector<64x4xf32>
    %187 = tpu.matmul %186, %40, %cst_67 {dimension_numbers = #tpu.dot_dimension_numbers<[1], [0], [0], [1], [0, 0, 1, 1], [], []>} : vector<64x32xf32>, vector<32x4xf32>, vector<64x4xf32> -> vector<64x4xf32>
    %cst_68 = arith.constant 1.000000e-24 : f32
    %188 = vector.broadcast %cst_68 : f32 to vector<64x4xf32>
    %189 = arith.maximumf %187, %188 : vector<64x4xf32>
    %190 = math.rsqrt %189 : vector<64x4xf32>
    %cst_69 = arith.constant dense<0.000000e+00> : vector<4x32xf32>
    %191 = tpu.matmul %185, %41, %cst_69 {dimension_numbers = #tpu.dot_dimension_numbers<[1], [0], [0], [1], [0, 0, 1, 1], [], []>} : vector<4x4xf32>, vector<4x32xf32>, vector<4x32xf32> -> vector<4x32xf32>
    %192 = arith.mulf %179, %191 : vector<4x32xf32>
    %cst_70 = arith.constant dense<0.000000e+00> : vector<64x32xf32>
    %193 = tpu.matmul %190, %41, %cst_70 {dimension_numbers = #tpu.dot_dimension_numbers<[1], [0], [0], [1], [0, 0, 1, 1], [], []>} : vector<64x4xf32>, vector<4x32xf32>, vector<64x32xf32> -> vector<64x32xf32>
    %194 = arith.mulf %176, %193 : vector<64x32xf32>
    %195 = tpu.concatenate %192, %192, %192, %192 in 0 : vector<4x32xf32>, vector<4x32xf32>, vector<4x32xf32>, vector<4x32xf32> -> vector<16x32xf32>
    %196 = arith.mulf %195, %42 : vector<16x32xf32>
    %cst_71 = arith.constant dense<0.000000e+00> : vector<16x64xf32>
    %197 = tpu.matmul %196, %194, %cst_71 {dimension_numbers = #tpu.dot_dimension_numbers<[1], [1], [0], [0], [0, 0, 1, 0], [], []>} : vector<16x32xf32>, vector<64x32xf32>, vector<16x64xf32> -> vector<16x64xf32>
    %198 = vector.broadcast %37 : f32 to vector<16x64xf32>
    %199 = arith.mulf %198, %197 : vector<16x64xf32>
    %200 = vector.broadcast %38 : f32 to vector<16x64xf32>
    %201 = arith.addf %200, %199 : vector<16x64xf32>
    %202 = arith.negf %201 : vector<16x64xf32>
    %203 = math.exp %202 : vector<16x64xf32>
    %cst_72 = arith.constant 1.000000e+00 : f32
    %204 = vector.broadcast %cst_72 : f32 to vector<16x64xf32>
    %205 = arith.addf %204, %203 : vector<16x64xf32>
    %206 = arith.divf %204, %205 : vector<16x64xf32>
    %207 = vector.extract_strided_slice %206 {offsets = [0, 0], sizes = [4, 64], strides = [1, 1]} : vector<16x64xf32> to vector<4x64xf32>
    %cst_73 = arith.constant dense<0xFF800000> : vector<64xf32>
    %208 = vector.multi_reduction <maximumf>, %207, %cst_73 [0] : vector<4x64xf32> to vector<64xf32>
    %209 = vector.shape_cast %208 : vector<64xf32> to vector<1x64xf32>
    %210 = vector.broadcast %209 : vector<1x64xf32> to vector<4x64xf32>
    %211 = arith.cmpf oge, %207, %210 : vector<4x64xf32>
    %c4_i32_74 = arith.constant 4 : i32
    %212 = vector.broadcast %c4_i32_74 : i32 to vector<4x64xi32>
    %213 = arith.select %211, %43, %212 : vector<4x64xi1>, vector<4x64xi32>
    %cst_75 = arith.constant dense<2147483647> : vector<64xi32>
    %214 = vector.multi_reduction <minsi>, %213, %cst_75 [0] : vector<4x64xi32> to vector<64xi32>
    %215 = vector.shape_cast %214 : vector<64xi32> to vector<1x64xi32>
    %216 = vector.broadcast %215 : vector<1x64xi32> to vector<4x64xi32>
    %217 = arith.cmpi eq, %43, %216 : vector<4x64xi32>
    %cst_76 = arith.constant 0.000000e+00 : f32
    %218 = vector.broadcast %cst_76 : f32 to vector<4x64xf32>
    %219 = arith.select %217, %207, %218 : vector<4x64xi1>, vector<4x64xf32>
    %220 = vector.extract_strided_slice %206 {offsets = [4, 0], sizes = [4, 64], strides = [1, 1]} : vector<16x64xf32> to vector<4x64xf32>
    %cst_77 = arith.constant dense<0xFF800000> : vector<64xf32>
    %221 = vector.multi_reduction <maximumf>, %220, %cst_77 [0] : vector<4x64xf32> to vector<64xf32>
    %222 = vector.shape_cast %221 : vector<64xf32> to vector<1x64xf32>
    %223 = vector.broadcast %222 : vector<1x64xf32> to vector<4x64xf32>
    %224 = arith.cmpf oge, %220, %223 : vector<4x64xf32>
    %c4_i32_78 = arith.constant 4 : i32
    %225 = vector.broadcast %c4_i32_78 : i32 to vector<4x64xi32>
    %226 = arith.select %224, %43, %225 : vector<4x64xi1>, vector<4x64xi32>
    %cst_79 = arith.constant dense<2147483647> : vector<64xi32>
    %227 = vector.multi_reduction <minsi>, %226, %cst_79 [0] : vector<4x64xi32> to vector<64xi32>
    %228 = vector.shape_cast %227 : vector<64xi32> to vector<1x64xi32>
    %229 = vector.broadcast %228 : vector<1x64xi32> to vector<4x64xi32>
    %230 = arith.cmpi eq, %43, %229 : vector<4x64xi32>
    %cst_80 = arith.constant 0.000000e+00 : f32
    %231 = vector.broadcast %cst_80 : f32 to vector<4x64xf32>
    %232 = arith.select %230, %220, %231 : vector<4x64xi1>, vector<4x64xf32>
    %233 = vector.extract_strided_slice %206 {offsets = [8, 0], sizes = [4, 64], strides = [1, 1]} : vector<16x64xf32> to vector<4x64xf32>
    %cst_81 = arith.constant dense<0xFF800000> : vector<64xf32>
    %234 = vector.multi_reduction <maximumf>, %233, %cst_81 [0] : vector<4x64xf32> to vector<64xf32>
    %235 = vector.shape_cast %234 : vector<64xf32> to vector<1x64xf32>
    %236 = vector.broadcast %235 : vector<1x64xf32> to vector<4x64xf32>
    %237 = arith.cmpf oge, %233, %236 : vector<4x64xf32>
    %c4_i32_82 = arith.constant 4 : i32
    %238 = vector.broadcast %c4_i32_82 : i32 to vector<4x64xi32>
    %239 = arith.select %237, %43, %238 : vector<4x64xi1>, vector<4x64xi32>
    %cst_83 = arith.constant dense<2147483647> : vector<64xi32>
    %240 = vector.multi_reduction <minsi>, %239, %cst_83 [0] : vector<4x64xi32> to vector<64xi32>
    %241 = vector.shape_cast %240 : vector<64xi32> to vector<1x64xi32>
    %242 = vector.broadcast %241 : vector<1x64xi32> to vector<4x64xi32>
    %243 = arith.cmpi eq, %43, %242 : vector<4x64xi32>
    %cst_84 = arith.constant 0.000000e+00 : f32
    %244 = vector.broadcast %cst_84 : f32 to vector<4x64xf32>
    %245 = arith.select %243, %233, %244 : vector<4x64xi1>, vector<4x64xf32>
    %246 = vector.extract_strided_slice %206 {offsets = [12, 0], sizes = [4, 64], strides = [1, 1]} : vector<16x64xf32> to vector<4x64xf32>
    %cst_85 = arith.constant dense<0xFF800000> : vector<64xf32>
    %247 = vector.multi_reduction <maximumf>, %246, %cst_85 [0] : vector<4x64xf32> to vector<64xf32>
    %248 = vector.shape_cast %247 : vector<64xf32> to vector<1x64xf32>
    %249 = vector.broadcast %248 : vector<1x64xf32> to vector<4x64xf32>
    %250 = arith.cmpf oge, %246, %249 : vector<4x64xf32>
    %c4_i32_86 = arith.constant 4 : i32
    %251 = vector.broadcast %c4_i32_86 : i32 to vector<4x64xi32>
    %252 = arith.select %250, %43, %251 : vector<4x64xi1>, vector<4x64xi32>
    %cst_87 = arith.constant dense<2147483647> : vector<64xi32>
    %253 = vector.multi_reduction <minsi>, %252, %cst_87 [0] : vector<4x64xi32> to vector<64xi32>
    %254 = vector.shape_cast %253 : vector<64xi32> to vector<1x64xi32>
    %255 = vector.broadcast %254 : vector<1x64xi32> to vector<4x64xi32>
    %256 = arith.cmpi eq, %43, %255 : vector<4x64xi32>
    %cst_88 = arith.constant 0.000000e+00 : f32
    %257 = vector.broadcast %cst_88 : f32 to vector<4x64xf32>
    %258 = arith.select %256, %246, %257 : vector<4x64xi1>, vector<4x64xf32>
    %259 = tpu.concatenate %219, %232, %245, %258 in 0 : vector<4x64xf32>, vector<4x64xf32>, vector<4x64xf32>, vector<4x64xf32> -> vector<16x64xf32>
    %cst_89 = arith.constant dense<0.000000e+00> : vector<16x32xf32>
    %260 = tpu.matmul %259, %177, %cst_89 {dimension_numbers = #tpu.dot_dimension_numbers<[1], [0], [0], [1], [0, 0, 1, 1], [], []>} : vector<16x64xf32>, vector<64x32xf32>, vector<16x32xf32> -> vector<16x32xf32>
    %261 = arith.mulf %260, %42 : vector<16x32xf32>
    %cst_90 = arith.constant dense<0.000000e+00> : vector<16xf32>
    %262 = vector.multi_reduction <add>, %259, %cst_90 [1] : vector<16x64xf32> to vector<16xf32>
    %263 = vector.shape_cast %262 : vector<16xf32> to vector<16x1xf32>
    %264 = vector.extract_strided_slice %261 {offsets = [0, 0], sizes = [4, 32], strides = [1, 1]} : vector<16x32xf32> to vector<4x32xf32>
    %265 = arith.addf %180, %264 : vector<4x32xf32>
    %266 = vector.extract_strided_slice %263 {offsets = [0, 0], sizes = [4, 1], strides = [1, 1]} : vector<16x1xf32> to vector<4x1xf32>
    %267 = vector.extract_strided_slice %41 {offsets = [0, 0], sizes = [1, 32], strides = [1, 1]} : vector<4x32xf32> to vector<1x32xf32>
    %268 = vector.broadcast %266 : vector<4x1xf32> to vector<4x32xf32>
    %269 = vector.broadcast %267 : vector<1x32xf32> to vector<4x32xf32>
    %270 = arith.mulf %268, %269 : vector<4x32xf32>
    %271 = vector.extract_strided_slice %261 {offsets = [4, 0], sizes = [4, 32], strides = [1, 1]} : vector<16x32xf32> to vector<4x32xf32>
    %272 = arith.addf %265, %271 : vector<4x32xf32>
    %273 = vector.extract_strided_slice %263 {offsets = [4, 0], sizes = [4, 1], strides = [1, 1]} : vector<16x1xf32> to vector<4x1xf32>
    %274 = vector.extract_strided_slice %41 {offsets = [1, 0], sizes = [1, 32], strides = [1, 1]} : vector<4x32xf32> to vector<1x32xf32>
    %275 = vector.broadcast %273 : vector<4x1xf32> to vector<4x32xf32>
    %276 = vector.broadcast %274 : vector<1x32xf32> to vector<4x32xf32>
    %277 = arith.mulf %275, %276 : vector<4x32xf32>
    %278 = arith.addf %270, %277 : vector<4x32xf32>
    %279 = vector.extract_strided_slice %261 {offsets = [8, 0], sizes = [4, 32], strides = [1, 1]} : vector<16x32xf32> to vector<4x32xf32>
    %280 = arith.addf %272, %279 : vector<4x32xf32>
    %281 = vector.extract_strided_slice %263 {offsets = [8, 0], sizes = [4, 1], strides = [1, 1]} : vector<16x1xf32> to vector<4x1xf32>
    %282 = vector.extract_strided_slice %41 {offsets = [2, 0], sizes = [1, 32], strides = [1, 1]} : vector<4x32xf32> to vector<1x32xf32>
    %283 = vector.broadcast %281 : vector<4x1xf32> to vector<4x32xf32>
    %284 = vector.broadcast %282 : vector<1x32xf32> to vector<4x32xf32>
    %285 = arith.mulf %283, %284 : vector<4x32xf32>
    %286 = arith.addf %278, %285 : vector<4x32xf32>
    %287 = vector.extract_strided_slice %261 {offsets = [12, 0], sizes = [4, 32], strides = [1, 1]} : vector<16x32xf32> to vector<4x32xf32>
    %288 = arith.addf %280, %287 : vector<4x32xf32>
    %289 = vector.extract_strided_slice %263 {offsets = [12, 0], sizes = [4, 1], strides = [1, 1]} : vector<16x1xf32> to vector<4x1xf32>
    %290 = vector.extract_strided_slice %41 {offsets = [3, 0], sizes = [1, 32], strides = [1, 1]} : vector<4x32xf32> to vector<1x32xf32>
    %291 = vector.broadcast %289 : vector<4x1xf32> to vector<4x32xf32>
    %292 = vector.broadcast %290 : vector<1x32xf32> to vector<4x32xf32>
    %293 = arith.mulf %291, %292 : vector<4x32xf32>
    %294 = arith.addf %286, %293 : vector<4x32xf32>
    %cst_91 = arith.constant 1.000000e+00 : f32
    %295 = vector.broadcast %cst_91 : f32 to vector<4x32xf32>
    %296 = arith.addf %294, %295 : vector<4x32xf32>
    %297 = tpu.reciprocal %296 {approx = true} : vector<4x32xf32> -> vector<4x32xf32>
    %298 = arith.mulf %288, %297 : vector<4x32xf32>
    %299 = tpu.concatenate %298, %298, %298, %298 in 0 : vector<4x32xf32>, vector<4x32xf32>, vector<4x32xf32>, vector<4x32xf32> -> vector<16x32xf32>
    %300 = arith.mulf %299, %42 : vector<16x32xf32>
    %cst_92 = arith.constant dense<0.000000e+00> : vector<64x32xf32>
    %301 = tpu.matmul %259, %300, %cst_92 {dimension_numbers = #tpu.dot_dimension_numbers<[0], [0], [1], [1], [0, 1, 1, 1], [], []>} : vector<16x64xf32>, vector<16x32xf32>, vector<64x32xf32> -> vector<64x32xf32>
    %302 = vector.shape_cast %301 : vector<64x32xf32> to vector<8x8x32xf32>
    %c0_93 = arith.constant 0 : index
    %c8_94 = arith.constant 8 : index
    %c0_95 = arith.constant 0 : index
    %303 = vector.load %arg24[%c0_93, %c8_94, %c0_95] : memref<16x16x32xf32, #tpu.memory_space<vmem>>, vector<8x8x32xf32>
    tpu.vector_store %arg24[%c0_93, %c8_94, %c0_95], %302 {strides = array<i32>} : memref<16x16x32xf32, #tpu.memory_space<vmem>>, vector<8x8x32xf32>,
    %c8_96 = arith.constant 8 : index
    %c0_97 = arith.constant 0 : index
    %c0_98 = arith.constant 0 : index
    %304 = vector.load %arg23[%c8_96, %c0_97, %c0_98] : memref<16x16x64xf32, #tpu.memory_space<vmem>>, vector<8x8x64xf32>
    %305 = vector.shape_cast %304 : vector<8x8x64xf32> to vector<64x64xf32>
    %306 = vector.extract_strided_slice %305 {offsets = [0, 0], sizes = [64, 32], strides = [1, 1]} : vector<64x64xf32> to vector<64x32xf32>
    %307 = vector.extract_strided_slice %305 {offsets = [0, 32], sizes = [64, 32], strides = [1, 1]} : vector<64x64xf32> to vector<64x32xf32>
    %cst_99 = arith.constant dense<0.000000e+00> : vector<4x64xf32>
    %308 = tpu.matmul %39, %305, %cst_99 {dimension_numbers = #tpu.dot_dimension_numbers<[1], [0], [0], [1], [0, 0, 1, 1], [], []>} : vector<4x64xf32>, vector<64x64xf32>, vector<4x64xf32> -> vector<4x64xf32>
    %309 = vector.extract_strided_slice %308 {offsets = [0, 0], sizes = [4, 32], strides = [1, 1]} : vector<4x64xf32> to vector<4x32xf32>
    %310 = vector.extract_strided_slice %308 {offsets = [0, 32], sizes = [4, 32], strides = [1, 1]} : vector<4x64xf32> to vector<4x32xf32>
    %311 = arith.mulf %309, %309 : vector<4x32xf32>
    %cst_100 = arith.constant dense<0.000000e+00> : vector<4x4xf32>
    %312 = tpu.matmul %311, %40, %cst_100 {dimension_numbers = #tpu.dot_dimension_numbers<[1], [0], [0], [1], [0, 0, 1, 1], [], []>} : vector<4x32xf32>, vector<32x4xf32>, vector<4x4xf32> -> vector<4x4xf32>
    %cst_101 = arith.constant 1.000000e-24 : f32
    %313 = vector.broadcast %cst_101 : f32 to vector<4x4xf32>
    %314 = arith.maximumf %312, %313 : vector<4x4xf32>
    %315 = math.rsqrt %314 : vector<4x4xf32>
    %316 = arith.mulf %306, %306 : vector<64x32xf32>
    %cst_102 = arith.constant dense<0.000000e+00> : vector<64x4xf32>
    %317 = tpu.matmul %316, %40, %cst_102 {dimension_numbers = #tpu.dot_dimension_numbers<[1], [0], [0], [1], [0, 0, 1, 1], [], []>} : vector<64x32xf32>, vector<32x4xf32>, vector<64x4xf32> -> vector<64x4xf32>
    %cst_103 = arith.constant 1.000000e-24 : f32
    %318 = vector.broadcast %cst_103 : f32 to vector<64x4xf32>
    %319 = arith.maximumf %317, %318 : vector<64x4xf32>
    %320 = math.rsqrt %319 : vector<64x4xf32>
    %cst_104 = arith.constant dense<0.000000e+00> : vector<4x32xf32>
    %321 = tpu.matmul %315, %41, %cst_104 {dimension_numbers = #tpu.dot_dimension_numbers<[1], [0], [0], [1], [0, 0, 1, 1], [], []>} : vector<4x4xf32>, vector<4x32xf32>, vector<4x32xf32> -> vector<4x32xf32>
    %322 = arith.mulf %309, %321 : vector<4x32xf32>
    %cst_105 = arith.constant dense<0.000000e+00> : vector<64x32xf32>
    %323 = tpu.matmul %320, %41, %cst_105 {dimension_numbers = #tpu.dot_dimension_numbers<[1], [0], [0], [1], [0, 0, 1, 1], [], []>} : vector<64x4xf32>, vector<4x32xf32>, vector<64x32xf32> -> vector<64x32xf32>
    %324 = arith.mulf %306, %323 : vector<64x32xf32>
    %325 = tpu.concatenate %322, %322, %322, %322 in 0 : vector<4x32xf32>, vector<4x32xf32>, vector<4x32xf32>, vector<4x32xf32> -> vector<16x32xf32>
    %326 = arith.mulf %325, %42 : vector<16x32xf32>
    %cst_106 = arith.constant dense<0.000000e+00> : vector<16x64xf32>
    %327 = tpu.matmul %326, %324, %cst_106 {dimension_numbers = #tpu.dot_dimension_numbers<[1], [1], [0], [0], [0, 0, 1, 0], [], []>} : vector<16x32xf32>, vector<64x32xf32>, vector<16x64xf32> -> vector<16x64xf32>
    %328 = vector.broadcast %37 : f32 to vector<16x64xf32>
    %329 = arith.mulf %328, %327 : vector<16x64xf32>
    %330 = vector.broadcast %38 : f32 to vector<16x64xf32>
    %331 = arith.addf %330, %329 : vector<16x64xf32>
    %332 = arith.negf %331 : vector<16x64xf32>
    %333 = math.exp %332 : vector<16x64xf32>
    %cst_107 = arith.constant 1.000000e+00 : f32
    %334 = vector.broadcast %cst_107 : f32 to vector<16x64xf32>
    %335 = arith.addf %334, %333 : vector<16x64xf32>
    %336 = arith.divf %334, %335 : vector<16x64xf32>
    %337 = vector.extract_strided_slice %336 {offsets = [0, 0], sizes = [4, 64], strides = [1, 1]} : vector<16x64xf32> to vector<4x64xf32>
    %cst_108 = arith.constant dense<0xFF800000> : vector<64xf32>
    %338 = vector.multi_reduction <maximumf>, %337, %cst_108 [0] : vector<4x64xf32> to vector<64xf32>
    %339 = vector.shape_cast %338 : vector<64xf32> to vector<1x64xf32>
    %340 = vector.broadcast %339 : vector<1x64xf32> to vector<4x64xf32>
    %341 = arith.cmpf oge, %337, %340 : vector<4x64xf32>
    %c4_i32_109 = arith.constant 4 : i32
    %342 = vector.broadcast %c4_i32_109 : i32 to vector<4x64xi32>
    %343 = arith.select %341, %43, %342 : vector<4x64xi1>, vector<4x64xi32>
    %cst_110 = arith.constant dense<2147483647> : vector<64xi32>
    %344 = vector.multi_reduction <minsi>, %343, %cst_110 [0] : vector<4x64xi32> to vector<64xi32>
    %345 = vector.shape_cast %344 : vector<64xi32> to vector<1x64xi32>
    %346 = vector.broadcast %345 : vector<1x64xi32> to vector<4x64xi32>
    %347 = arith.cmpi eq, %43, %346 : vector<4x64xi32>
    %cst_111 = arith.constant 0.000000e+00 : f32
    %348 = vector.broadcast %cst_111 : f32 to vector<4x64xf32>
    %349 = arith.select %347, %337, %348 : vector<4x64xi1>, vector<4x64xf32>
    %350 = vector.extract_strided_slice %336 {offsets = [4, 0], sizes = [4, 64], strides = [1, 1]} : vector<16x64xf32> to vector<4x64xf32>
    %cst_112 = arith.constant dense<0xFF800000> : vector<64xf32>
    %351 = vector.multi_reduction <maximumf>, %350, %cst_112 [0] : vector<4x64xf32> to vector<64xf32>
    %352 = vector.shape_cast %351 : vector<64xf32> to vector<1x64xf32>
    %353 = vector.broadcast %352 : vector<1x64xf32> to vector<4x64xf32>
    %354 = arith.cmpf oge, %350, %353 : vector<4x64xf32>
    %c4_i32_113 = arith.constant 4 : i32
    %355 = vector.broadcast %c4_i32_113 : i32 to vector<4x64xi32>
    %356 = arith.select %354, %43, %355 : vector<4x64xi1>, vector<4x64xi32>
    %cst_114 = arith.constant dense<2147483647> : vector<64xi32>
    %357 = vector.multi_reduction <minsi>, %356, %cst_114 [0] : vector<4x64xi32> to vector<64xi32>
    %358 = vector.shape_cast %357 : vector<64xi32> to vector<1x64xi32>
    %359 = vector.broadcast %358 : vector<1x64xi32> to vector<4x64xi32>
    %360 = arith.cmpi eq, %43, %359 : vector<4x64xi32>
    %cst_115 = arith.constant 0.000000e+00 : f32
    %361 = vector.broadcast %cst_115 : f32 to vector<4x64xf32>
    %362 = arith.select %360, %350, %361 : vector<4x64xi1>, vector<4x64xf32>
    %363 = vector.extract_strided_slice %336 {offsets = [8, 0], sizes = [4, 64], strides = [1, 1]} : vector<16x64xf32> to vector<4x64xf32>
    %cst_116 = arith.constant dense<0xFF800000> : vector<64xf32>
    %364 = vector.multi_reduction <maximumf>, %363, %cst_116 [0] : vector<4x64xf32> to vector<64xf32>
    %365 = vector.shape_cast %364 : vector<64xf32> to vector<1x64xf32>
    %366 = vector.broadcast %365 : vector<1x64xf32> to vector<4x64xf32>
    %367 = arith.cmpf oge, %363, %366 : vector<4x64xf32>
    %c4_i32_117 = arith.constant 4 : i32
    %368 = vector.broadcast %c4_i32_117 : i32 to vector<4x64xi32>
    %369 = arith.select %367, %43, %368 : vector<4x64xi1>, vector<4x64xi32>
    %cst_118 = arith.constant dense<2147483647> : vector<64xi32>
    %370 = vector.multi_reduction <minsi>, %369, %cst_118 [0] : vector<4x64xi32> to vector<64xi32>
    %371 = vector.shape_cast %370 : vector<64xi32> to vector<1x64xi32>
    %372 = vector.broadcast %371 : vector<1x64xi32> to vector<4x64xi32>
    %373 = arith.cmpi eq, %43, %372 : vector<4x64xi32>
    %cst_119 = arith.constant 0.000000e+00 : f32
    %374 = vector.broadcast %cst_119 : f32 to vector<4x64xf32>
    %375 = arith.select %373, %363, %374 : vector<4x64xi1>, vector<4x64xf32>
    %376 = vector.extract_strided_slice %336 {offsets = [12, 0], sizes = [4, 64], strides = [1, 1]} : vector<16x64xf32> to vector<4x64xf32>
    %cst_120 = arith.constant dense<0xFF800000> : vector<64xf32>
    %377 = vector.multi_reduction <maximumf>, %376, %cst_120 [0] : vector<4x64xf32> to vector<64xf32>
    %378 = vector.shape_cast %377 : vector<64xf32> to vector<1x64xf32>
    %379 = vector.broadcast %378 : vector<1x64xf32> to vector<4x64xf32>
    %380 = arith.cmpf oge, %376, %379 : vector<4x64xf32>
    %c4_i32_121 = arith.constant 4 : i32
    %381 = vector.broadcast %c4_i32_121 : i32 to vector<4x64xi32>
    %382 = arith.select %380, %43, %381 : vector<4x64xi1>, vector<4x64xi32>
    %cst_122 = arith.constant dense<2147483647> : vector<64xi32>
    %383 = vector.multi_reduction <minsi>, %382, %cst_122 [0] : vector<4x64xi32> to vector<64xi32>
    %384 = vector.shape_cast %383 : vector<64xi32> to vector<1x64xi32>
    %385 = vector.broadcast %384 : vector<1x64xi32> to vector<4x64xi32>
    %386 = arith.cmpi eq, %43, %385 : vector<4x64xi32>
    %cst_123 = arith.constant 0.000000e+00 : f32
    %387 = vector.broadcast %cst_123 : f32 to vector<4x64xf32>
    %388 = arith.select %386, %376, %387 : vector<4x64xi1>, vector<4x64xf32>
    %389 = tpu.concatenate %349, %362, %375, %388 in 0 : vector<4x64xf32>, vector<4x64xf32>, vector<4x64xf32>, vector<4x64xf32> -> vector<16x64xf32>
    %cst_124 = arith.constant dense<0.000000e+00> : vector<16x32xf32>
    %390 = tpu.matmul %389, %307, %cst_124 {dimension_numbers = #tpu.dot_dimension_numbers<[1], [0], [0], [1], [0, 0, 1, 1], [], []>} : vector<16x64xf32>, vector<64x32xf32>, vector<16x32xf32> -> vector<16x32xf32>
    %391 = arith.mulf %390, %42 : vector<16x32xf32>
    %cst_125 = arith.constant dense<0.000000e+00> : vector<16xf32>
    %392 = vector.multi_reduction <add>, %389, %cst_125 [1] : vector<16x64xf32> to vector<16xf32>
    %393 = vector.shape_cast %392 : vector<16xf32> to vector<16x1xf32>
    %394 = vector.extract_strided_slice %391 {offsets = [0, 0], sizes = [4, 32], strides = [1, 1]} : vector<16x32xf32> to vector<4x32xf32>
    %395 = arith.addf %310, %394 : vector<4x32xf32>
    %396 = vector.extract_strided_slice %393 {offsets = [0, 0], sizes = [4, 1], strides = [1, 1]} : vector<16x1xf32> to vector<4x1xf32>
    %397 = vector.extract_strided_slice %41 {offsets = [0, 0], sizes = [1, 32], strides = [1, 1]} : vector<4x32xf32> to vector<1x32xf32>
    %398 = vector.broadcast %396 : vector<4x1xf32> to vector<4x32xf32>
    %399 = vector.broadcast %397 : vector<1x32xf32> to vector<4x32xf32>
    %400 = arith.mulf %398, %399 : vector<4x32xf32>
    %401 = vector.extract_strided_slice %391 {offsets = [4, 0], sizes = [4, 32], strides = [1, 1]} : vector<16x32xf32> to vector<4x32xf32>
    %402 = arith.addf %395, %401 : vector<4x32xf32>
    %403 = vector.extract_strided_slice %393 {offsets = [4, 0], sizes = [4, 1], strides = [1, 1]} : vector<16x1xf32> to vector<4x1xf32>
    %404 = vector.extract_strided_slice %41 {offsets = [1, 0], sizes = [1, 32], strides = [1, 1]} : vector<4x32xf32> to vector<1x32xf32>
    %405 = vector.broadcast %403 : vector<4x1xf32> to vector<4x32xf32>
    %406 = vector.broadcast %404 : vector<1x32xf32> to vector<4x32xf32>
    %407 = arith.mulf %405, %406 : vector<4x32xf32>
    %408 = arith.addf %400, %407 : vector<4x32xf32>
    %409 = vector.extract_strided_slice %391 {offsets = [8, 0], sizes = [4, 32], strides = [1, 1]} : vector<16x32xf32> to vector<4x32xf32>
    %410 = arith.addf %402, %409 : vector<4x32xf32>
    %411 = vector.extract_strided_slice %393 {offsets = [8, 0], sizes = [4, 1], strides = [1, 1]} : vector<16x1xf32> to vector<4x1xf32>
    %412 = vector.extract_strided_slice %41 {offsets = [2, 0], sizes = [1, 32], strides = [1, 1]} : vector<4x32xf32> to vector<1x32xf32>
    %413 = vector.broadcast %411 : vector<4x1xf32> to vector<4x32xf32>
    %414 = vector.broadcast %412 : vector<1x32xf32> to vector<4x32xf32>
    %415 = arith.mulf %413, %414 : vector<4x32xf32>
    %416 = arith.addf %408, %415 : vector<4x32xf32>
    %417 = vector.extract_strided_slice %391 {offsets = [12, 0], sizes = [4, 32], strides = [1, 1]} : vector<16x32xf32> to vector<4x32xf32>
    %418 = arith.addf %410, %417 : vector<4x32xf32>
    %419 = vector.extract_strided_slice %393 {offsets = [12, 0], sizes = [4, 1], strides = [1, 1]} : vector<16x1xf32> to vector<4x1xf32>
    %420 = vector.extract_strided_slice %41 {offsets = [3, 0], sizes = [1, 32], strides = [1, 1]} : vector<4x32xf32> to vector<1x32xf32>
    %421 = vector.broadcast %419 : vector<4x1xf32> to vector<4x32xf32>
    %422 = vector.broadcast %420 : vector<1x32xf32> to vector<4x32xf32>
    %423 = arith.mulf %421, %422 : vector<4x32xf32>
    %424 = arith.addf %416, %423 : vector<4x32xf32>
    %cst_126 = arith.constant 1.000000e+00 : f32
    %425 = vector.broadcast %cst_126 : f32 to vector<4x32xf32>
    %426 = arith.addf %424, %425 : vector<4x32xf32>
    %427 = tpu.reciprocal %426 {approx = true} : vector<4x32xf32> -> vector<4x32xf32>
    %428 = arith.mulf %418, %427 : vector<4x32xf32>
    %429 = tpu.concatenate %428, %428, %428, %428 in 0 : vector<4x32xf32>, vector<4x32xf32>, vector<4x32xf32>, vector<4x32xf32> -> vector<16x32xf32>
    %430 = arith.mulf %429, %42 : vector<16x32xf32>
    %cst_127 = arith.constant dense<0.000000e+00> : vector<64x32xf32>
    %431 = tpu.matmul %389, %430, %cst_127 {dimension_numbers = #tpu.dot_dimension_numbers<[0], [0], [1], [1], [0, 1, 1, 1], [], []>} : vector<16x64xf32>, vector<16x32xf32>, vector<64x32xf32> -> vector<64x32xf32>
    %432 = vector.shape_cast %431 : vector<64x32xf32> to vector<8x8x32xf32>
    %c8_128 = arith.constant 8 : index
    %c0_129 = arith.constant 0 : index
    %c0_130 = arith.constant 0 : index
    %433 = vector.load %arg24[%c8_128, %c0_129, %c0_130] : memref<16x16x32xf32, #tpu.memory_space<vmem>>, vector<8x8x32xf32>
    tpu.vector_store %arg24[%c8_128, %c0_129, %c0_130], %432 {strides = array<i32>} : memref<16x16x32xf32, #tpu.memory_space<vmem>>, vector<8x8x32xf32>,
    %c8_131 = arith.constant 8 : index
    %c8_132 = arith.constant 8 : index
    %c0_133 = arith.constant 0 : index
    %434 = vector.load %arg23[%c8_131, %c8_132, %c0_133] : memref<16x16x64xf32, #tpu.memory_space<vmem>>, vector<8x8x64xf32>
    %435 = vector.shape_cast %434 : vector<8x8x64xf32> to vector<64x64xf32>
    %436 = vector.extract_strided_slice %435 {offsets = [0, 0], sizes = [64, 32], strides = [1, 1]} : vector<64x64xf32> to vector<64x32xf32>
    %437 = vector.extract_strided_slice %435 {offsets = [0, 32], sizes = [64, 32], strides = [1, 1]} : vector<64x64xf32> to vector<64x32xf32>
    %cst_134 = arith.constant dense<0.000000e+00> : vector<4x64xf32>
    %438 = tpu.matmul %39, %435, %cst_134 {dimension_numbers = #tpu.dot_dimension_numbers<[1], [0], [0], [1], [0, 0, 1, 1], [], []>} : vector<4x64xf32>, vector<64x64xf32>, vector<4x64xf32> -> vector<4x64xf32>
    %439 = vector.extract_strided_slice %438 {offsets = [0, 0], sizes = [4, 32], strides = [1, 1]} : vector<4x64xf32> to vector<4x32xf32>
    %440 = vector.extract_strided_slice %438 {offsets = [0, 32], sizes = [4, 32], strides = [1, 1]} : vector<4x64xf32> to vector<4x32xf32>
    %441 = arith.mulf %439, %439 : vector<4x32xf32>
    %cst_135 = arith.constant dense<0.000000e+00> : vector<4x4xf32>
    %442 = tpu.matmul %441, %40, %cst_135 {dimension_numbers = #tpu.dot_dimension_numbers<[1], [0], [0], [1], [0, 0, 1, 1], [], []>} : vector<4x32xf32>, vector<32x4xf32>, vector<4x4xf32> -> vector<4x4xf32>
    %cst_136 = arith.constant 1.000000e-24 : f32
    %443 = vector.broadcast %cst_136 : f32 to vector<4x4xf32>
    %444 = arith.maximumf %442, %443 : vector<4x4xf32>
    %445 = math.rsqrt %444 : vector<4x4xf32>
    %446 = arith.mulf %436, %436 : vector<64x32xf32>
    %cst_137 = arith.constant dense<0.000000e+00> : vector<64x4xf32>
    %447 = tpu.matmul %446, %40, %cst_137 {dimension_numbers = #tpu.dot_dimension_numbers<[1], [0], [0], [1], [0, 0, 1, 1], [], []>} : vector<64x32xf32>, vector<32x4xf32>, vector<64x4xf32> -> vector<64x4xf32>
    %cst_138 = arith.constant 1.000000e-24 : f32
    %448 = vector.broadcast %cst_138 : f32 to vector<64x4xf32>
    %449 = arith.maximumf %447, %448 : vector<64x4xf32>
    %450 = math.rsqrt %449 : vector<64x4xf32>
    %cst_139 = arith.constant dense<0.000000e+00> : vector<4x32xf32>
    %451 = tpu.matmul %445, %41, %cst_139 {dimension_numbers = #tpu.dot_dimension_numbers<[1], [0], [0], [1], [0, 0, 1, 1], [], []>} : vector<4x4xf32>, vector<4x32xf32>, vector<4x32xf32> -> vector<4x32xf32>
    %452 = arith.mulf %439, %451 : vector<4x32xf32>
    %cst_140 = arith.constant dense<0.000000e+00> : vector<64x32xf32>
    %453 = tpu.matmul %450, %41, %cst_140 {dimension_numbers = #tpu.dot_dimension_numbers<[1], [0], [0], [1], [0, 0, 1, 1], [], []>} : vector<64x4xf32>, vector<4x32xf32>, vector<64x32xf32> -> vector<64x32xf32>
    %454 = arith.mulf %436, %453 : vector<64x32xf32>
    %455 = tpu.concatenate %452, %452, %452, %452 in 0 : vector<4x32xf32>, vector<4x32xf32>, vector<4x32xf32>, vector<4x32xf32> -> vector<16x32xf32>
    %456 = arith.mulf %455, %42 : vector<16x32xf32>
    %cst_141 = arith.constant dense<0.000000e+00> : vector<16x64xf32>
    %457 = tpu.matmul %456, %454, %cst_141 {dimension_numbers = #tpu.dot_dimension_numbers<[1], [1], [0], [0], [0, 0, 1, 0], [], []>} : vector<16x32xf32>, vector<64x32xf32>, vector<16x64xf32> -> vector<16x64xf32>
    %458 = vector.broadcast %37 : f32 to vector<16x64xf32>
    %459 = arith.mulf %458, %457 : vector<16x64xf32>
    %460 = vector.broadcast %38 : f32 to vector<16x64xf32>
    %461 = arith.addf %460, %459 : vector<16x64xf32>
    %462 = arith.negf %461 : vector<16x64xf32>
    %463 = math.exp %462 : vector<16x64xf32>
    %cst_142 = arith.constant 1.000000e+00 : f32
    %464 = vector.broadcast %cst_142 : f32 to vector<16x64xf32>
    %465 = arith.addf %464, %463 : vector<16x64xf32>
    %466 = arith.divf %464, %465 : vector<16x64xf32>
    %467 = vector.extract_strided_slice %466 {offsets = [0, 0], sizes = [4, 64], strides = [1, 1]} : vector<16x64xf32> to vector<4x64xf32>
    %cst_143 = arith.constant dense<0xFF800000> : vector<64xf32>
    %468 = vector.multi_reduction <maximumf>, %467, %cst_143 [0] : vector<4x64xf32> to vector<64xf32>
    %469 = vector.shape_cast %468 : vector<64xf32> to vector<1x64xf32>
    %470 = vector.broadcast %469 : vector<1x64xf32> to vector<4x64xf32>
    %471 = arith.cmpf oge, %467, %470 : vector<4x64xf32>
    %c4_i32_144 = arith.constant 4 : i32
    %472 = vector.broadcast %c4_i32_144 : i32 to vector<4x64xi32>
    %473 = arith.select %471, %43, %472 : vector<4x64xi1>, vector<4x64xi32>
    %cst_145 = arith.constant dense<2147483647> : vector<64xi32>
    %474 = vector.multi_reduction <minsi>, %473, %cst_145 [0] : vector<4x64xi32> to vector<64xi32>
    %475 = vector.shape_cast %474 : vector<64xi32> to vector<1x64xi32>
    %476 = vector.broadcast %475 : vector<1x64xi32> to vector<4x64xi32>
    %477 = arith.cmpi eq, %43, %476 : vector<4x64xi32>
    %cst_146 = arith.constant 0.000000e+00 : f32
    %478 = vector.broadcast %cst_146 : f32 to vector<4x64xf32>
    %479 = arith.select %477, %467, %478 : vector<4x64xi1>, vector<4x64xf32>
    %480 = vector.extract_strided_slice %466 {offsets = [4, 0], sizes = [4, 64], strides = [1, 1]} : vector<16x64xf32> to vector<4x64xf32>
    %cst_147 = arith.constant dense<0xFF800000> : vector<64xf32>
    %481 = vector.multi_reduction <maximumf>, %480, %cst_147 [0] : vector<4x64xf32> to vector<64xf32>
    %482 = vector.shape_cast %481 : vector<64xf32> to vector<1x64xf32>
    %483 = vector.broadcast %482 : vector<1x64xf32> to vector<4x64xf32>
    %484 = arith.cmpf oge, %480, %483 : vector<4x64xf32>
    %c4_i32_148 = arith.constant 4 : i32
    %485 = vector.broadcast %c4_i32_148 : i32 to vector<4x64xi32>
    %486 = arith.select %484, %43, %485 : vector<4x64xi1>, vector<4x64xi32>
    %cst_149 = arith.constant dense<2147483647> : vector<64xi32>
    %487 = vector.multi_reduction <minsi>, %486, %cst_149 [0] : vector<4x64xi32> to vector<64xi32>
    %488 = vector.shape_cast %487 : vector<64xi32> to vector<1x64xi32>
    %489 = vector.broadcast %488 : vector<1x64xi32> to vector<4x64xi32>
    %490 = arith.cmpi eq, %43, %489 : vector<4x64xi32>
    %cst_150 = arith.constant 0.000000e+00 : f32
    %491 = vector.broadcast %cst_150 : f32 to vector<4x64xf32>
    %492 = arith.select %490, %480, %491 : vector<4x64xi1>, vector<4x64xf32>
    %493 = vector.extract_strided_slice %466 {offsets = [8, 0], sizes = [4, 64], strides = [1, 1]} : vector<16x64xf32> to vector<4x64xf32>
    %cst_151 = arith.constant dense<0xFF800000> : vector<64xf32>
    %494 = vector.multi_reduction <maximumf>, %493, %cst_151 [0] : vector<4x64xf32> to vector<64xf32>
    %495 = vector.shape_cast %494 : vector<64xf32> to vector<1x64xf32>
    %496 = vector.broadcast %495 : vector<1x64xf32> to vector<4x64xf32>
    %497 = arith.cmpf oge, %493, %496 : vector<4x64xf32>
    %c4_i32_152 = arith.constant 4 : i32
    %498 = vector.broadcast %c4_i32_152 : i32 to vector<4x64xi32>
    %499 = arith.select %497, %43, %498 : vector<4x64xi1>, vector<4x64xi32>
    %cst_153 = arith.constant dense<2147483647> : vector<64xi32>
    %500 = vector.multi_reduction <minsi>, %499, %cst_153 [0] : vector<4x64xi32> to vector<64xi32>
    %501 = vector.shape_cast %500 : vector<64xi32> to vector<1x64xi32>
    %502 = vector.broadcast %501 : vector<1x64xi32> to vector<4x64xi32>
    %503 = arith.cmpi eq, %43, %502 : vector<4x64xi32>
    %cst_154 = arith.constant 0.000000e+00 : f32
    %504 = vector.broadcast %cst_154 : f32 to vector<4x64xf32>
    %505 = arith.select %503, %493, %504 : vector<4x64xi1>, vector<4x64xf32>
    %506 = vector.extract_strided_slice %466 {offsets = [12, 0], sizes = [4, 64], strides = [1, 1]} : vector<16x64xf32> to vector<4x64xf32>
    %cst_155 = arith.constant dense<0xFF800000> : vector<64xf32>
    %507 = vector.multi_reduction <maximumf>, %506, %cst_155 [0] : vector<4x64xf32> to vector<64xf32>
    %508 = vector.shape_cast %507 : vector<64xf32> to vector<1x64xf32>
    %509 = vector.broadcast %508 : vector<1x64xf32> to vector<4x64xf32>
    %510 = arith.cmpf oge, %506, %509 : vector<4x64xf32>
    %c4_i32_156 = arith.constant 4 : i32
    %511 = vector.broadcast %c4_i32_156 : i32 to vector<4x64xi32>
    %512 = arith.select %510, %43, %511 : vector<4x64xi1>, vector<4x64xi32>
    %cst_157 = arith.constant dense<2147483647> : vector<64xi32>
    %513 = vector.multi_reduction <minsi>, %512, %cst_157 [0] : vector<4x64xi32> to vector<64xi32>
    %514 = vector.shape_cast %513 : vector<64xi32> to vector<1x64xi32>
    %515 = vector.broadcast %514 : vector<1x64xi32> to vector<4x64xi32>
    %516 = arith.cmpi eq, %43, %515 : vector<4x64xi32>
    %cst_158 = arith.constant 0.000000e+00 : f32
    %517 = vector.broadcast %cst_158 : f32 to vector<4x64xf32>
    %518 = arith.select %516, %506, %517 : vector<4x64xi1>, vector<4x64xf32>
    %519 = tpu.concatenate %479, %492, %505, %518 in 0 : vector<4x64xf32>, vector<4x64xf32>, vector<4x64xf32>, vector<4x64xf32> -> vector<16x64xf32>
    %cst_159 = arith.constant dense<0.000000e+00> : vector<16x32xf32>
    %520 = tpu.matmul %519, %437, %cst_159 {dimension_numbers = #tpu.dot_dimension_numbers<[1], [0], [0], [1], [0, 0, 1, 1], [], []>} : vector<16x64xf32>, vector<64x32xf32>, vector<16x32xf32> -> vector<16x32xf32>
    %521 = arith.mulf %520, %42 : vector<16x32xf32>
    %cst_160 = arith.constant dense<0.000000e+00> : vector<16xf32>
    %522 = vector.multi_reduction <add>, %519, %cst_160 [1] : vector<16x64xf32> to vector<16xf32>
    %523 = vector.shape_cast %522 : vector<16xf32> to vector<16x1xf32>
    %524 = vector.extract_strided_slice %521 {offsets = [0, 0], sizes = [4, 32], strides = [1, 1]} : vector<16x32xf32> to vector<4x32xf32>
    %525 = arith.addf %440, %524 : vector<4x32xf32>
    %526 = vector.extract_strided_slice %523 {offsets = [0, 0], sizes = [4, 1], strides = [1, 1]} : vector<16x1xf32> to vector<4x1xf32>
    %527 = vector.extract_strided_slice %41 {offsets = [0, 0], sizes = [1, 32], strides = [1, 1]} : vector<4x32xf32> to vector<1x32xf32>
    %528 = vector.broadcast %526 : vector<4x1xf32> to vector<4x32xf32>
    %529 = vector.broadcast %527 : vector<1x32xf32> to vector<4x32xf32>
    %530 = arith.mulf %528, %529 : vector<4x32xf32>
    %531 = vector.extract_strided_slice %521 {offsets = [4, 0], sizes = [4, 32], strides = [1, 1]} : vector<16x32xf32> to vector<4x32xf32>
    %532 = arith.addf %525, %531 : vector<4x32xf32>
    %533 = vector.extract_strided_slice %523 {offsets = [4, 0], sizes = [4, 1], strides = [1, 1]} : vector<16x1xf32> to vector<4x1xf32>
    %534 = vector.extract_strided_slice %41 {offsets = [1, 0], sizes = [1, 32], strides = [1, 1]} : vector<4x32xf32> to vector<1x32xf32>
    %535 = vector.broadcast %533 : vector<4x1xf32> to vector<4x32xf32>
    %536 = vector.broadcast %534 : vector<1x32xf32> to vector<4x32xf32>
    %537 = arith.mulf %535, %536 : vector<4x32xf32>
    %538 = arith.addf %530, %537 : vector<4x32xf32>
    %539 = vector.extract_strided_slice %521 {offsets = [8, 0], sizes = [4, 32], strides = [1, 1]} : vector<16x32xf32> to vector<4x32xf32>
    %540 = arith.addf %532, %539 : vector<4x32xf32>
    %541 = vector.extract_strided_slice %523 {offsets = [8, 0], sizes = [4, 1], strides = [1, 1]} : vector<16x1xf32> to vector<4x1xf32>
    %542 = vector.extract_strided_slice %41 {offsets = [2, 0], sizes = [1, 32], strides = [1, 1]} : vector<4x32xf32> to vector<1x32xf32>
    %543 = vector.broadcast %541 : vector<4x1xf32> to vector<4x32xf32>
    %544 = vector.broadcast %542 : vector<1x32xf32> to vector<4x32xf32>
    %545 = arith.mulf %543, %544 : vector<4x32xf32>
    %546 = arith.addf %538, %545 : vector<4x32xf32>
    %547 = vector.extract_strided_slice %521 {offsets = [12, 0], sizes = [4, 32], strides = [1, 1]} : vector<16x32xf32> to vector<4x32xf32>
    %548 = arith.addf %540, %547 : vector<4x32xf32>
    %549 = vector.extract_strided_slice %523 {offsets = [12, 0], sizes = [4, 1], strides = [1, 1]} : vector<16x1xf32> to vector<4x1xf32>
    %550 = vector.extract_strided_slice %41 {offsets = [3, 0], sizes = [1, 32], strides = [1, 1]} : vector<4x32xf32> to vector<1x32xf32>
    %551 = vector.broadcast %549 : vector<4x1xf32> to vector<4x32xf32>
    %552 = vector.broadcast %550 : vector<1x32xf32> to vector<4x32xf32>
    %553 = arith.mulf %551, %552 : vector<4x32xf32>
    %554 = arith.addf %546, %553 : vector<4x32xf32>
    %cst_161 = arith.constant 1.000000e+00 : f32
    %555 = vector.broadcast %cst_161 : f32 to vector<4x32xf32>
    %556 = arith.addf %554, %555 : vector<4x32xf32>
    %557 = tpu.reciprocal %556 {approx = true} : vector<4x32xf32> -> vector<4x32xf32>
    %558 = arith.mulf %548, %557 : vector<4x32xf32>
    %559 = tpu.concatenate %558, %558, %558, %558 in 0 : vector<4x32xf32>, vector<4x32xf32>, vector<4x32xf32>, vector<4x32xf32> -> vector<16x32xf32>
    %560 = arith.mulf %559, %42 : vector<16x32xf32>
    %cst_162 = arith.constant dense<0.000000e+00> : vector<64x32xf32>
    %561 = tpu.matmul %519, %560, %cst_162 {dimension_numbers = #tpu.dot_dimension_numbers<[0], [0], [1], [1], [0, 1, 1, 1], [], []>} : vector<16x64xf32>, vector<16x32xf32>, vector<64x32xf32> -> vector<64x32xf32>
    %562 = vector.shape_cast %561 : vector<64x32xf32> to vector<8x8x32xf32>
    %c8_163 = arith.constant 8 : index
    %c8_164 = arith.constant 8 : index
    %c0_165 = arith.constant 0 : index
    %563 = vector.load %arg24[%c8_163, %c8_164, %c0_165] : memref<16x16x32xf32, #tpu.memory_space<vmem>>, vector<8x8x32xf32>
    tpu.vector_store %arg24[%c8_163, %c8_164, %c0_165], %562 {strides = array<i32>} : memref<16x16x32xf32, #tpu.memory_space<vmem>>, vector<8x8x32xf32>,
    %c0_166 = arith.constant 0 : index
    %c0_167 = arith.constant 0 : index
    %c0_168 = arith.constant 0 : index
    %564 = vector.load %arg24[%c0_166, %c0_167, %c0_168] : memref<16x16x32xf32, #tpu.memory_space<vmem>>, vector<16x16x32xf32>
    %565 = vector.shape_cast %564 : vector<16x16x32xf32> to vector<256x32xf32>
    %c0_169 = arith.constant 0 : index
    %c0_170 = arith.constant 0 : index
    %566 = vector.load %arg12[%c0_169, %c0_170] : memref<32x32xf32, #tpu.memory_space<vmem>>, vector<32x32xf32>
    %cst_171 = arith.constant dense<0.000000e+00> : vector<256x32xf32>
    %567 = tpu.matmul %565, %566, %cst_171 {dimension_numbers = #tpu.dot_dimension_numbers<[1], [0], [0], [1], [0, 0, 1, 1], [], []>} : vector<256x32xf32>, vector<32x32xf32>, vector<256x32xf32> -> vector<256x32xf32>
    %c0_172 = arith.constant 0 : index
    %c0_173 = arith.constant 0 : index
    %568 = vector.load %arg13[%c0_172, %c0_173] : memref<1x32xf32, #tpu.memory_space<vmem>>, vector<1x32xf32>
    %569 = vector.broadcast %568 : vector<1x32xf32> to vector<256x32xf32>
    %570 = arith.addf %567, %569 : vector<256x32xf32>
    %c0_174 = arith.constant 0 : index
    %c0_175 = arith.constant 0 : index
    %571 = vector.load %arg14[%c0_174, %c0_175] : memref<1x32xf32, #tpu.memory_space<vmem>>, vector<1x32xf32>
    %572 = vector.broadcast %571 : vector<1x32xf32> to vector<256x32xf32>
    %573 = arith.mulf %572, %570 : vector<256x32xf32>
    %574 = arith.addf %1, %573 : vector<256x32xf32>
    %575 = vector.shape_cast %574 : vector<256x32xf32> to vector<1x256x32xf32>
    %cst_176 = arith.constant dense<0.000000e+00> : vector<1xf32>
    %576 = vector.multi_reduction <add>, %575, %cst_176 [1, 2] : vector<1x256x32xf32> to vector<1xf32>
    %577 = vector.shape_cast %576 : vector<1xf32> to vector<1x1x1xf32>
    %578 = vector.extract %577[0, 0, 0] : f32 from vector<1x1x1xf32>
    %579 = vector.broadcast %578 : f32 to vector<1x1xf32>
    %cst_177 = arith.constant 8.192000e+03 : f32
    %580 = vector.broadcast %cst_177 : f32 to vector<1x1xf32>
    %581 = arith.divf %579, %580 : vector<1x1xf32>
    %582 = vector.broadcast %581 : vector<1x1xf32> to vector<256x32xf32>
    %583 = arith.subf %574, %582 : vector<256x32xf32>
    %584 = arith.mulf %583, %583 : vector<256x32xf32>
    %585 = vector.shape_cast %584 : vector<256x32xf32> to vector<1x256x32xf32>
    %cst_178 = arith.constant dense<0.000000e+00> : vector<1xf32>
    %586 = vector.multi_reduction <add>, %585, %cst_178 [1, 2] : vector<1x256x32xf32> to vector<1xf32>
    %587 = vector.shape_cast %586 : vector<1xf32> to vector<1x1x1xf32>
    %588 = vector.extract %587[0, 0, 0] : f32 from vector<1x1x1xf32>
    %589 = vector.broadcast %588 : f32 to vector<1x1xf32>
    %cst_179 = arith.constant 8.192000e+03 : f32
    %590 = vector.broadcast %cst_179 : f32 to vector<1x1xf32>
    %591 = arith.divf %589, %590 : vector<1x1xf32>
    %cst_180 = arith.constant 9.99999974E-6 : f32
    %592 = vector.broadcast %cst_180 : f32 to vector<1x1xf32>
    %593 = arith.addf %591, %592 : vector<1x1xf32>
    %594 = math.rsqrt %593 : vector<1x1xf32>
    %595 = vector.broadcast %594 : vector<1x1xf32> to vector<256x32xf32>
    %596 = arith.mulf %583, %595 : vector<256x32xf32>
    %c0_181 = arith.constant 0 : index
    %c0_182 = arith.constant 0 : index
    %597 = vector.load %arg15[%c0_181, %c0_182] : memref<1x32xf32, #tpu.memory_space<vmem>>, vector<1x32xf32>
    %598 = vector.broadcast %597 : vector<1x32xf32> to vector<256x32xf32>
    %599 = arith.mulf %596, %598 : vector<256x32xf32>
    %c0_183 = arith.constant 0 : index
    %c0_184 = arith.constant 0 : index
    %600 = vector.load %arg16[%c0_183, %c0_184] : memref<1x32xf32, #tpu.memory_space<vmem>>, vector<1x32xf32>
    %601 = vector.broadcast %600 : vector<1x32xf32> to vector<256x32xf32>
    %602 = arith.addf %599, %601 : vector<256x32xf32>
    %c0_185 = arith.constant 0 : index
    %c0_186 = arith.constant 0 : index
    %603 = vector.load %arg17[%c0_185, %c0_186] : memref<32x128xf32, #tpu.memory_space<vmem>>, vector<32x128xf32>
    %cst_187 = arith.constant dense<0.000000e+00> : vector<256x128xf32>
    %604 = tpu.matmul %602, %603, %cst_187 {dimension_numbers = #tpu.dot_dimension_numbers<[1], [0], [0], [1], [0, 0, 1, 1], [], []>} : vector<256x32xf32>, vector<32x128xf32>, vector<256x128xf32> -> vector<256x128xf32>
    %c0_188 = arith.constant 0 : index
    %c0_189 = arith.constant 0 : index
    %605 = vector.load %arg18[%c0_188, %c0_189] : memref<1x128xf32, #tpu.memory_space<vmem>>, vector<1x128xf32>
    %606 = vector.broadcast %605 : vector<1x128xf32> to vector<256x128xf32>
    %607 = arith.addf %604, %606 : vector<256x128xf32>
    %cst_190 = arith.constant 5.000000e-01 : f32
    %608 = vector.broadcast %cst_190 : f32 to vector<256x128xf32>
    %609 = arith.mulf %608, %607 : vector<256x128xf32>
    %cst_191 = arith.constant 0.707106769 : f32
    %610 = vector.broadcast %cst_191 : f32 to vector<256x128xf32>
    %611 = arith.mulf %607, %610 : vector<256x128xf32>
    %cst_192 = arith.constant 0.000000e+00 : f32
    %612 = vector.broadcast %cst_192 : f32 to vector<256x128xf32>
    %613 = arith.cmpf oge, %611, %612 : vector<256x128xf32>
    %cst_193 = arith.constant 1.000000e+00 : f32
    %cst_194 = arith.constant -1.000000e+00 : f32
    %614 = vector.broadcast %cst_193 : f32 to vector<256x128xf32>
    %615 = vector.broadcast %cst_194 : f32 to vector<256x128xf32>
    %616 = arith.select %613, %614, %615 : vector<256x128xi1>, vector<256x128xf32>
    %617 = math.absf %611 : vector<256x128xf32>
    %cst_195 = arith.constant 0.327591091 : f32
    %618 = vector.broadcast %cst_195 : f32 to vector<256x128xf32>
    %619 = arith.mulf %618, %617 : vector<256x128xf32>
    %cst_196 = arith.constant 1.000000e+00 : f32
    %620 = vector.broadcast %cst_196 : f32 to vector<256x128xf32>
    %621 = arith.addf %620, %619 : vector<256x128xf32>
    %cst_197 = arith.constant 1.000000e+00 : f32
    %622 = vector.broadcast %cst_197 : f32 to vector<256x128xf32>
    %623 = arith.divf %622, %621 : vector<256x128xf32>
    %cst_198 = arith.constant 1.06140542 : f32
    %624 = vector.broadcast %cst_198 : f32 to vector<256x128xf32>
    %625 = arith.mulf %624, %623 : vector<256x128xf32>
    %cst_199 = arith.constant -1.45315206 : f32
    %626 = vector.broadcast %cst_199 : f32 to vector<256x128xf32>
    %627 = arith.addf %625, %626 : vector<256x128xf32>
    %628 = arith.mulf %627, %623 : vector<256x128xf32>
    %cst_200 = arith.constant 1.42141378 : f32
    %629 = vector.broadcast %cst_200 : f32 to vector<256x128xf32>
    %630 = arith.addf %628, %629 : vector<256x128xf32>
    %631 = arith.mulf %630, %623 : vector<256x128xf32>
    %cst_201 = arith.constant -0.284496725 : f32
    %632 = vector.broadcast %cst_201 : f32 to vector<256x128xf32>
    %633 = arith.addf %631, %632 : vector<256x128xf32>
    %634 = arith.mulf %633, %623 : vector<256x128xf32>
    %cst_202 = arith.constant 0.254829586 : f32
    %635 = vector.broadcast %cst_202 : f32 to vector<256x128xf32>
    %636 = arith.addf %634, %635 : vector<256x128xf32>
    %637 = arith.mulf %636, %623 : vector<256x128xf32>
    %cst_203 = arith.constant 0.000000e+00 : f32
    %638 = vector.broadcast %cst_203 : f32 to vector<256x128xf32>
    %639 = arith.subf %638, %617 : vector<256x128xf32>
    %640 = arith.mulf %639, %617 : vector<256x128xf32>
    %641 = math.exp %640 : vector<256x128xf32>
    %642 = arith.mulf %637, %641 : vector<256x128xf32>
    %cst_204 = arith.constant 1.000000e+00 : f32
    %643 = vector.broadcast %cst_204 : f32 to vector<256x128xf32>
    %644 = arith.subf %643, %642 : vector<256x128xf32>
    %645 = arith.mulf %616, %644 : vector<256x128xf32>
    %cst_205 = arith.constant 1.000000e+00 : f32
    %646 = vector.broadcast %cst_205 : f32 to vector<256x128xf32>
    %647 = arith.addf %646, %645 : vector<256x128xf32>
    %648 = arith.mulf %609, %647 : vector<256x128xf32>
    %c0_206 = arith.constant 0 : index
    %c0_207 = arith.constant 0 : index
    %649 = vector.load %arg19[%c0_206, %c0_207] : memref<128x32xf32, #tpu.memory_space<vmem>>, vector<128x32xf32>
    %cst_208 = arith.constant dense<0.000000e+00> : vector<256x32xf32>
    %650 = tpu.matmul %648, %649, %cst_208 {dimension_numbers = #tpu.dot_dimension_numbers<[1], [0], [0], [1], [0, 0, 1, 1], [], []>} : vector<256x128xf32>, vector<128x32xf32>, vector<256x32xf32> -> vector<256x32xf32>
    %c0_209 = arith.constant 0 : index
    %c0_210 = arith.constant 0 : index
    %651 = vector.load %arg20[%c0_209, %c0_210] : memref<1x32xf32, #tpu.memory_space<vmem>>, vector<1x32xf32>
    %652 = vector.broadcast %651 : vector<1x32xf32> to vector<256x32xf32>
    %653 = arith.addf %650, %652 : vector<256x32xf32>
    %c0_211 = arith.constant 0 : index
    %c0_212 = arith.constant 0 : index
    %654 = vector.load %arg21[%c0_211, %c0_212] : memref<1x32xf32, #tpu.memory_space<vmem>>, vector<1x32xf32>
    %655 = vector.broadcast %654 : vector<1x32xf32> to vector<256x32xf32>
    %656 = arith.mulf %655, %653 : vector<256x32xf32>
    %657 = arith.addf %574, %656 : vector<256x32xf32>
    %c0_213 = arith.constant 0 : index
    %c0_214 = arith.constant 0 : index
    %c0_215 = arith.constant 0 : index
    %658 = vector.load %arg22[%c0_213, %c0_214, %c0_215] : memref<1x256x32xf32, #tpu.memory_space<vmem>>, vector<1x256x32xf32>
    %659 = vector.shape_cast %658 : vector<1x256x32xf32> to vector<256x32xf32>
    %660 = vector.shape_cast %657 : vector<256x32xf32> to vector<1x256x32xf32>
    tpu.vector_store %arg22[%c0_213, %c0_214, %c0_215], %660 {strides = array<i32>} : memref<1x256x32xf32, #tpu.memory_space<vmem>>, vector<1x256x32xf32>,
    return
  }
  func.func @transform_0(%arg0: i32) -> i32 {
    %c0_i32 = arith.constant 0 : i32
    %c0_i32_0 = arith.constant 0 : i32
    return %c0_i32 : i32
  }
  func.func @transform_1(%arg0: i32) -> i32 {
    %c0_i32 = arith.constant 0 : i32
    %c0_i32_0 = arith.constant 0 : i32
    return %c0_i32 : i32
  }
  func.func @transform_2(%arg0: i32) -> (i32, i32, i32) {
    %c0_i32 = arith.constant 0 : i32
    %c0_i32_0 = arith.constant 0 : i32
    %c0_i32_1 = arith.constant 0 : i32
    return %arg0, %c0_i32, %c0_i32_0 : i32, i32, i32
  }
  func.func @transform_3(%arg0: i32) -> (i32, i32) {
    %c0_i32 = arith.constant 0 : i32
    %c0_i32_0 = arith.constant 0 : i32
    %c0_i32_1 = arith.constant 0 : i32
    return %c0_i32, %c0_i32_0 : i32, i32
  }
  func.func @transform_4(%arg0: i32) -> (i32, i32) {
    %c0_i32 = arith.constant 0 : i32
    %c0_i32_0 = arith.constant 0 : i32
    %c0_i32_1 = arith.constant 0 : i32
    return %c0_i32, %c0_i32_0 : i32, i32
  }
  func.func @transform_5(%arg0: i32) -> (i32, i32) {
    %c0_i32 = arith.constant 0 : i32
    %c0_i32_0 = arith.constant 0 : i32
    %c0_i32_1 = arith.constant 0 : i32
    return %c0_i32, %c0_i32_0 : i32, i32
  }
  func.func @transform_6(%arg0: i32) -> (i32, i32) {
    %c0_i32 = arith.constant 0 : i32
    %c0_i32_0 = arith.constant 0 : i32
    %c0_i32_1 = arith.constant 0 : i32
    return %c0_i32, %c0_i32_0 : i32, i32
  }
  func.func @transform_7(%arg0: i32) -> (i32, i32) {
    %c0_i32 = arith.constant 0 : i32
    %c0_i32_0 = arith.constant 0 : i32
    %c0_i32_1 = arith.constant 0 : i32
    return %c0_i32, %c0_i32_0 : i32, i32
  }
  func.func @transform_8(%arg0: i32) -> (i32, i32) {
    %c0_i32 = arith.constant 0 : i32
    %c0_i32_0 = arith.constant 0 : i32
    %c0_i32_1 = arith.constant 0 : i32
    return %c0_i32, %c0_i32_0 : i32, i32
  }
  func.func @transform_9(%arg0: i32) -> (i32, i32) {
    %c0_i32 = arith.constant 0 : i32
    %c0_i32_0 = arith.constant 0 : i32
    %c0_i32_1 = arith.constant 0 : i32
    return %c0_i32, %c0_i32_0 : i32, i32
  }
  func.func @transform_10(%arg0: i32) -> (i32, i32) {
    %c0_i32 = arith.constant 0 : i32
    %c0_i32_0 = arith.constant 0 : i32
    %c0_i32_1 = arith.constant 0 : i32
    return %c0_i32, %c0_i32_0 : i32, i32
  }
  func.func @transform_11(%arg0: i32) -> (i32, i32) {
    %c0_i32 = arith.constant 0 : i32
    %c0_i32_0 = arith.constant 0 : i32
    %c0_i32_1 = arith.constant 0 : i32
    return %c0_i32, %c0_i32_0 : i32, i32
  }
  func.func @transform_12(%arg0: i32) -> (i32, i32) {
    %c0_i32 = arith.constant 0 : i32
    %c0_i32_0 = arith.constant 0 : i32
    %c0_i32_1 = arith.constant 0 : i32
    return %c0_i32, %c0_i32_0 : i32, i32
  }
  func.func @transform_13(%arg0: i32) -> (i32, i32) {
    %c0_i32 = arith.constant 0 : i32
    %c0_i32_0 = arith.constant 0 : i32
    %c0_i32_1 = arith.constant 0 : i32
    return %c0_i32, %c0_i32_0 : i32, i32
  }
  func.func @transform_14(%arg0: i32) -> (i32, i32) {
    %c0_i32 = arith.constant 0 : i32
    %c0_i32_0 = arith.constant 0 : i32
    %c0_i32_1 = arith.constant 0 : i32
    return %c0_i32, %c0_i32_0 : i32, i32
  }
  func.func @transform_15(%arg0: i32) -> (i32, i32) {
    %c0_i32 = arith.constant 0 : i32
    %c0_i32_0 = arith.constant 0 : i32
    %c0_i32_1 = arith.constant 0 : i32
    return %c0_i32, %c0_i32_0 : i32, i32
  }
  func.func @transform_16(%arg0: i32) -> (i32, i32) {
    %c0_i32 = arith.constant 0 : i32
    %c0_i32_0 = arith.constant 0 : i32
    %c0_i32_1 = arith.constant 0 : i32
    return %c0_i32, %c0_i32_0 : i32, i32
  }
  func.func @transform_17(%arg0: i32) -> (i32, i32) {
    %c0_i32 = arith.constant 0 : i32
    %c0_i32_0 = arith.constant 0 : i32
    %c0_i32_1 = arith.constant 0 : i32
    return %c0_i32, %c0_i32_0 : i32, i32
  }
  func.func @transform_18(%arg0: i32) -> (i32, i32) {
    %c0_i32 = arith.constant 0 : i32
    %c0_i32_0 = arith.constant 0 : i32
    %c0_i32_1 = arith.constant 0 : i32
    return %c0_i32, %c0_i32_0 : i32, i32
  }
  func.func @transform_19(%arg0: i32) -> (i32, i32) {
    %c0_i32 = arith.constant 0 : i32
    %c0_i32_0 = arith.constant 0 : i32
    %c0_i32_1 = arith.constant 0 : i32
    return %c0_i32, %c0_i32_0 : i32, i32
  }
  func.func @transform_20(%arg0: i32) -> (i32, i32) {
    %c0_i32 = arith.constant 0 : i32
    %c0_i32_0 = arith.constant 0 : i32
    %c0_i32_1 = arith.constant 0 : i32
    return %c0_i32, %c0_i32_0 : i32, i32
  }
  func.func @transform_21(%arg0: i32) -> (i32, i32, i32) {
    %c0_i32 = arith.constant 0 : i32
    %c0_i32_0 = arith.constant 0 : i32
    %c0_i32_1 = arith.constant 0 : i32
    return %arg0, %c0_i32, %c0_i32_0 : i32, i32, i32
  }
}

</mosaic_0001>

<llo_original>
// kernel: cluster_block_forward.1
$region0: #{cluster_block_forward.1}
  #allocation0 [shape = 'u32[]', space=smem, size = 0x4, offset = 0x4, fixed_abs, tag = 'smem constant byte address 0x4 - core index']
  #allocation1 [shape = 'u32[72,128]{1,0:T(1,128)}', space=vmem, size = 0x9000, scoped, tag = 'internal scratch']
  #allocation2 [shape = 'f32[16,16,64]{2,1,0:T(8,128)}', space=vmem, size = 0x20000, scoped, tag = 'scratch operand']
  #allocation3 [shape = 'f32[16,16,32]{2,1,0:T(8,128)}', space=vmem, size = 0x20000, scoped, tag = 'scratch operand']
  #allocation4 [shape = 'f32[1]{0:T(128)S(6)}', space=smem, size = 0x200, scoped, tag = 'scoped memory for cluster_block_forward.1']
  #allocation5 [shape = 'f32[1]{0:T(128)S(6)}', space=smem, size = 0x200, scoped, tag = 'scoped memory for cluster_block_forward.1']
  %s0 = inlined_call_operand.<no memory space> [shape: f32[1], index: 0, kind: input, shape index: {}]
  %s1 = inlined_call_operand.<no memory space> [shape: f32[1], index: 1, kind: input, shape index: {}]
  %s2 = inlined_call_operand.hbm [shape: f32[2,256,32], index: 2, kind: input, shape index: {}]
  %s3 = inlined_call_operand.vmem [shape: f32[1,32], index: 3, kind: input, shape index: {}]
  %s4 = inlined_call_operand.vmem [shape: f32[1,32], index: 4, kind: input, shape index: {}]
  %s5 = inlined_call_operand.vmem [shape: f32[32,64], index: 5, kind: input, shape index: {}]
  %s6 = inlined_call_operand.vmem [shape: f32[1,64], index: 6, kind: input, shape index: {}]
  %s7 = inlined_call_operand.vmem [shape: f32[4,64], index: 7, kind: input, shape index: {}]
  %s8 = inlined_call_operand.vmem [shape: f32[32,4], index: 8, kind: input, shape index: {}]
  %s9 = inlined_call_operand.vmem [shape: f32[4,32], index: 9, kind: input, shape index: {}]
  %s10 = inlined_call_operand.vmem [shape: f32[16,32], index: 10, kind: input, shape index: {}]
  %s11 = inlined_call_operand.vmem [shape: f32[32,32], index: 11, kind: input, shape index: {}]
  %s12 = inlined_call_operand.vmem [shape: f32[1,32], index: 12, kind: input, shape index: {}]
  %s13 = inlined_call_operand.vmem [shape: f32[1,32], index: 13, kind: input, shape index: {}]
  %s14 = inlined_call_operand.vmem [shape: f32[1,32], index: 14, kind: input, shape index: {}]
  %s15 = inlined_call_operand.vmem [shape: f32[1,32], index: 15, kind: input, shape index: {}]
  %s16 = inlined_call_operand.vmem [shape: f32[32,128], index: 16, kind: input, shape index: {}]
  %s17 = inlined_call_operand.vmem [shape: f32[1,128], index: 17, kind: input, shape index: {}]
  %s18 = inlined_call_operand.vmem [shape: f32[128,32], index: 18, kind: input, shape index: {}]
  %s19 = inlined_call_operand.vmem [shape: f32[1,32], index: 19, kind: input, shape index: {}]
  %s20 = inlined_call_operand.vmem [shape: f32[1,32], index: 20, kind: input, shape index: {}]
  %s21 = inlined_call_operand.hbm [shape: f32[2,256,32], index: 21, kind: output, shape index: {}]
  %s22 = sld [smem:[#allocation0]]
  $region121: #{cluster_block_forward.1} parent=0
    _
  %s24 = ssub.s32 1, %s22
  %s25 = scalar_select 0, %s24, %s22
  %26 = sst [smem:[#allocation4]] %s0
  %27 = sst [smem:[#allocation5]] %s1
  $region1: #{cluster_block_forward.1} parent=0
    #allocation6 [shape = 'u8[262144]{0}', space=vmem, size = 0x40000, scoped, tag = 'input window, operand 2']
    #allocation7 [shape = 's32[2]{0}', space=sflag, size = 0x8, scoped, tag = 'scoped memory for cluster_block_forward.1']
    #allocation8 [shape = 's32[2]{0}', space=sflag, size = 0x8, scoped, tag = 'scoped memory for cluster_block_forward.1']
    #allocation9 [shape = 'u8[262144]{0}', space=vmem, size = 0x40000, scoped, tag = 'output window, operand 0']
    %28 = vsyncpa [#allocation7], 0
    %s29 = scalar_lea.sflag [#allocation7], 1
    %30 = vsyncpa %s29, 0
    %31 = vsyncpa [#allocation8], 0
    %s32 = scalar_lea.sflag [#allocation8], 1
    %33 = vsyncpa %s32, 0
    loop: start=0, step=1, limit=4
    $region2: #{cluster_block_forward.1} parent=1 // loop_pre_header
      _
    $region3: #{cluster_block_forward.1} parent=1 // loop_header
      %s35 = sphi 0, %s39
      %p36 = scmp.ge.s32.totalorder %s35, 4
      %s43 = sphi 0, %s43
      %s45 = sphi 0, %s43
      %s46 = sphi 0, %s45
      %s60 = sphi 0, %s46
      %s64 = sphi 0, %s64
      %s66 = sphi 0, %s64
      %s67 = sphi 0, %s66
      %s81 = sphi 0, %s67
      %s87 = sphi 0, %s89
      %s90 = sphi 0, %s87
      %s91 = sphi 0, %s90
      %s107 = sphi 0, %s91
      %s111 = sphi 0, %s111
      %s113 = sphi 0, %s111
      %s114 = sphi 0, %s113
      %s128 = sphi 0, %s114
      %s132 = sphi 0, %s132
      %s134 = sphi 0, %s132
      %s135 = sphi 0, %s134
      %s149 = sphi 0, %s135
      %s153 = sphi 0, %s153
      %s155 = sphi 0, %s153
      %s156 = sphi 0, %s155
      %s170 = sphi 0, %s156
      %s174 = sphi 0, %s174
      %s176 = sphi 0, %s174
      %s177 = sphi 0, %s176
      %s191 = sphi 0, %s177
      %s195 = sphi 0, %s195
      %s197 = sphi 0, %s195
      %s198 = sphi 0, %s197
      %s212 = sphi 0, %s198
      %s216 = sphi 0, %s216
      %s218 = sphi 0, %s216
      %s219 = sphi 0, %s218
      %s233 = sphi 0, %s219
      %s237 = sphi 0, %s237
      %s239 = sphi 0, %s237
      %s240 = sphi 0, %s239
      %s254 = sphi 0, %s240
      %s258 = sphi 0, %s258
      %s260 = sphi 0, %s258
      %s261 = sphi 0, %s260
      %s275 = sphi 0, %s261
      %s279 = sphi 0, %s279
      %s281 = sphi 0, %s279
      %s282 = sphi 0, %s281
      %s296 = sphi 0, %s282
      %s300 = sphi 0, %s300
      %s302 = sphi 0, %s300
      %s303 = sphi 0, %s302
      %s317 = sphi 0, %s303
      %s321 = sphi 0, %s321
      %s323 = sphi 0, %s321
      %s324 = sphi 0, %s323
      %s338 = sphi 0, %s324
      %s342 = sphi 0, %s342
      %s344 = sphi 0, %s342
      %s345 = sphi 0, %s344
      %s359 = sphi 0, %s345
      %s363 = sphi 0, %s363
      %s365 = sphi 0, %s363
      %s366 = sphi 0, %s365
      %s380 = sphi 0, %s366
      %s384 = sphi 0, %s384
      %s386 = sphi 0, %s384
      %s387 = sphi 0, %s386
      %s401 = sphi 0, %s387
      %s405 = sphi 0, %s405
      %s407 = sphi 0, %s405
      %s408 = sphi 0, %s407
      %s422 = sphi 0, %s408
      %s426 = sphi 0, %s426
      %s428 = sphi 0, %s426
      %s429 = sphi 0, %s428
      %s443 = sphi 0, %s429
      %s447 = sphi 0, %s447
      %s449 = sphi 0, %s447
      %s450 = sphi 0, %s449
      %s464 = sphi 0, %s450
      %s468 = sphi 0, %s468
      %s470 = sphi 0, %s468
      %s471 = sphi 0, %s470
      %s485 = sphi 0, %s471
      %s491 = sphi 0, %s493
      %s494 = sphi 0, %s491
      %s495 = sphi 0, %s494
      %s511 = sphi 0, %s495
    $region4: #{cluster_block_forward.1} parent=1 // loop_header_branch
      %38 = sbr.rel (%p36) target = $region8
    $region5: #{cluster_block_forward.1} parent=1 // loop_body
      %s40 = ssub.s32 %s35, 1
      %s41 = ssub.s32 %s35, 2
      %s42 = sadd.s32 %s35, 1
      %s44 = sadd.s32 %s43, 1
      %p47 = scmp.eq.s32.totalorder %s35, 1
      %p48 = scmp.ne.s32.totalorder %s43, %s45
      %p49 = scmp.eq.s32.totalorder %s35, 0
      %p50 = por %p48, %p49
      %p51 = scmp.ne.s32.totalorder %s43, %s45
      %p52 = scmp.eq.s32.totalorder %s40, 1
      %p53 = por %p51, %p52
      %p54 = scmp.ne.s32.totalorder %s45, %s46
      %p55 = scmp.eq.s32.totalorder %s40, 0
      %p56 = por %p54, %p55
      %p57 = scmp.ne.s32.totalorder %s45, %s46
      %p58 = scmp.eq.s32.totalorder %s41, 1
      %p59 = por %p57, %p58
      %p61 = scmp.ne.s32.totalorder %s46, %s60
      %p62 = scmp.eq.s32.totalorder %s41, 0
      %p63 = por %p61, %p62
      %s65 = sadd.s32 %s64, 1
      %p68 = scmp.eq.s32.totalorder %s35, 1
      %p69 = scmp.ne.s32.totalorder %s64, %s66
      %p70 = scmp.eq.s32.totalorder %s35, 0
      %p71 = por %p69, %p70
      %p72 = scmp.ne.s32.totalorder %s64, %s66
      %p73 = scmp.eq.s32.totalorder %s40, 1
      %p74 = por %p72, %p73
      %p75 = scmp.ne.s32.totalorder %s66, %s67
      %p76 = scmp.eq.s32.totalorder %s40, 0
      %p77 = por %p75, %p76
      %p78 = scmp.ne.s32.totalorder %s66, %s67
      %p79 = scmp.eq.s32.totalorder %s41, 1
      %p80 = por %p78, %p79
      %p82 = scmp.ne.s32.totalorder %s67, %s81
      %p83 = scmp.eq.s32.totalorder %s41, 0
      %p84 = por %p82, %p83
      %s85 = ssub.s32 %s35, %s42
      %p86 = scmp.eq.s32.totalorder %s85, 0
      %s88 = sadd.s32 %s87, 1
      %s89 = scalar_select %p86, %s87, %s88
      %p92 = pneg %p86
      %p93 = scmp.eq.s32.totalorder %s35, 1
      %p94 = por %p92, %p93
      %p95 = scmp.ne.s32.totalorder %s87, %s90
      %p96 = scmp.eq.s32.totalorder %s35, 0
      %p97 = por %p95, %p96
      %p98 = scmp.ne.s32.totalorder %s87, %s90
      %p99 = scmp.eq.s32.totalorder %s40, 1
      %p100 = por %p98, %p99
      %p101 = scmp.ne.s32.totalorder %s90, %s91
      %p102 = scmp.eq.s32.totalorder %s40, 0
      %p103 = por %p101, %p102
      %p104 = scmp.ne.s32.totalorder %s90, %s91
      %p105 = scmp.eq.s32.totalorder %s41, 1
      %p106 = por %p104, %p105
      %p108 = scmp.ne.s32.totalorder %s91, %s107
      %p109 = scmp.eq.s32.totalorder %s41, 0
      %p110 = por %p108, %p109
      %s112 = sadd.s32 %s111, 1
      %p115 = scmp.eq.s32.totalorder %s35, 1
      %p116 = scmp.ne.s32.totalorder %s111, %s113
      %p117 = scmp.eq.s32.totalorder %s35, 0
      %p118 = por %p116, %p117
      %p119 = scmp.ne.s32.totalorder %s111, %s113
      %p120 = scmp.eq.s32.totalorder %s40, 1
      %p121 = por %p119, %p120
      %p122 = scmp.ne.s32.totalorder %s113, %s114
      %p123 = scmp.eq.s32.totalorder %s40, 0
      %p124 = por %p122, %p123
      %p125 = scmp.ne.s32.totalorder %s113, %s114
      %p126 = scmp.eq.s32.totalorder %s41, 1
      %p127 = por %p125, %p126
      %p129 = scmp.ne.s32.totalorder %s114, %s128
      %p130 = scmp.eq.s32.totalorder %s41, 0
      %p131 = por %p129, %p130
      %s133 = sadd.s32 %s132, 1
      %p136 = scmp.eq.s32.totalorder %s35, 1
      %p137 = scmp.ne.s32.totalorder %s132, %s134
      %p138 = scmp.eq.s32.totalorder %s35, 0
      %p139 = por %p137, %p138
      %p140 = scmp.ne.s32.totalorder %s132, %s134
      %p141 = scmp.eq.s32.totalorder %s40, 1
      %p142 = por %p140, %p141
      %p143 = scmp.ne.s32.totalorder %s134, %s135
      %p144 = scmp.eq.s32.totalorder %s40, 0
      %p145 = por %p143, %p144
      %p146 = scmp.ne.s32.totalorder %s134, %s135
      %p147 = scmp.eq.s32.totalorder %s41, 1
      %p148 = por %p146, %p147
      %p150 = scmp.ne.s32.totalorder %s135, %s149
      %p151 = scmp.eq.s32.totalorder %s41, 0
      %p152 = por %p150, %p151
      %s154 = sadd.s32 %s153, 1
      %p157 = scmp.eq.s32.totalorder %s35, 1
      %p158 = scmp.ne.s32.totalorder %s153, %s155
      %p159 = scmp.eq.s32.totalorder %s35, 0
      %p160 = por %p158, %p159
      %p161 = scmp.ne.s32.totalorder %s153, %s155
      %p162 = scmp.eq.s32.totalorder %s40, 1
      %p163 = por %p161, %p162
      %p164 = scmp.ne.s32.totalorder %s155, %s156
      %p165 = scmp.eq.s32.totalorder %s40, 0
      %p166 = por %p164, %p165
      %p167 = scmp.ne.s32.totalorder %s155, %s156
      %p168 = scmp.eq.s32.totalorder %s41, 1
      %p169 = por %p167, %p168
      %p171 = scmp.ne.s32.totalorder %s156, %s170
      %p172 = scmp.eq.s32.totalorder %s41, 0
      %p173 = por %p171, %p172
      %s175 = sadd.s32 %s174, 1
      %p178 = scmp.eq.s32.totalorder %s35, 1
      %p179 = scmp.ne.s32.totalorder %s174, %s176
      %p180 = scmp.eq.s32.totalorder %s35, 0
      %p181 = por %p179, %p180
      %p182 = scmp.ne.s32.totalorder %s174, %s176
      %p183 = scmp.eq.s32.totalorder %s40, 1
      %p184 = por %p182, %p183
      %p185 = scmp.ne.s32.totalorder %s176, %s177
      %p186 = scmp.eq.s32.totalorder %s40, 0
      %p187 = por %p185, %p186
      %p188 = scmp.ne.s32.totalorder %s176, %s177
      %p189 = scmp.eq.s32.totalorder %s41, 1
      %p190 = por %p188, %p189
      %p192 = scmp.ne.s32.totalorder %s177, %s191
      %p193 = scmp.eq.s32.totalorder %s41, 0
      %p194 = por %p192, %p193
      %s196 = sadd.s32 %s195, 1
      %p199 = scmp.eq.s32.totalorder %s35, 1
      %p200 = scmp.ne.s32.totalorder %s195, %s197
      %p201 = scmp.eq.s32.totalorder %s35, 0
      %p202 = por %p200, %p201
      %p203 = scmp.ne.s32.totalorder %s195, %s197
      %p204 = scmp.eq.s32.totalorder %s40, 1
      %p205 = por %p203, %p204
      %p206 = scmp.ne.s32.totalorder %s197, %s198
      %p207 = scmp.eq.s32.totalorder %s40, 0
      %p208 = por %p206, %p207
      %p209 = scmp.ne.s32.totalorder %s197, %s198
      %p210 = scmp.eq.s32.totalorder %s41, 1
      %p211 = por %p209, %p210
      %p213 = scmp.ne.s32.totalorder %s198, %s212
      %p214 = scmp.eq.s32.totalorder %s41, 0
      %p215 = por %p213, %p214
      %s217 = sadd.s32 %s216, 1
      %p220 = scmp.eq.s32.totalorder %s35, 1
      %p221 = scmp.ne.s32.totalorder %s216, %s218
      %p222 = scmp.eq.s32.totalorder %s35, 0
      %p223 = por %p221, %p222
      %p224 = scmp.ne.s32.totalorder %s216, %s218
      %p225 = scmp.eq.s32.totalorder %s40, 1
      %p226 = por %p224, %p225
      %p227 = scmp.ne.s32.totalorder %s218, %s219
      %p228 = scmp.eq.s32.totalorder %s40, 0
      %p229 = por %p227, %p228
      %p230 = scmp.ne.s32.totalorder %s218, %s219
      %p231 = scmp.eq.s32.totalorder %s41, 1
      %p232 = por %p230, %p231
      %p234 = scmp.ne.s32.totalorder %s219, %s233
      %p235 = scmp.eq.s32.totalorder %s41, 0
      %p236 = por %p234, %p235
      %s238 = sadd.s32 %s237, 1
      %p241 = scmp.eq.s32.totalorder %s35, 1
      %p242 = scmp.ne.s32.totalorder %s237, %s239
      %p243 = scmp.eq.s32.totalorder %s35, 0
      %p244 = por %p242, %p243
      %p245 = scmp.ne.s32.totalorder %s237, %s239
      %p246 = scmp.eq.s32.totalorder %s40, 1
      %p247 = por %p245, %p246
      %p248 = scmp.ne.s32.totalorder %s239, %s240
      %p249 = scmp.eq.s32.totalorder %s40, 0
      %p250 = por %p248, %p249
      %p251 = scmp.ne.s32.totalorder %s239, %s240
      %p252 = scmp.eq.s32.totalorder %s41, 1
      %p253 = por %p251, %p252
      %p255 = scmp.ne.s32.totalorder %s240, %s254
      %p256 = scmp.eq.s32.totalorder %s41, 0
      %p257 = por %p255, %p256
      %s259 = sadd.s32 %s258, 1
      %p262 = scmp.eq.s32.totalorder %s35, 1
      %p263 = scmp.ne.s32.totalorder %s258, %s260
      %p264 = scmp.eq.s32.totalorder %s35, 0
      %p265 = por %p263, %p264
      %p266 = scmp.ne.s32.totalorder %s258, %s260
      %p267 = scmp.eq.s32.totalorder %s40, 1
      %p268 = por %p266, %p267
      %p269 = scmp.ne.s32.totalorder %s260, %s261
      %p270 = scmp.eq.s32.totalorder %s40, 0
      %p271 = por %p269, %p270
      %p272 = scmp.ne.s32.totalorder %s260, %s261
      %p273 = scmp.eq.s32.totalorder %s41, 1
      %p274 = por %p272, %p273
      %p276 = scmp.ne.s32.totalorder %s261, %s275
      %p277 = scmp.eq.s32.totalorder %s41, 0
      %p278 = por %p276, %p277
      %s280 = sadd.s32 %s279, 1
      %p283 = scmp.eq.s32.totalorder %s35, 1
      %p284 = scmp.ne.s32.totalorder %s279, %s281
      %p285 = scmp.eq.s32.totalorder %s35, 0
      %p286 = por %p284, %p285
      %p287 = scmp.ne.s32.totalorder %s279, %s281
      %p288 = scmp.eq.s32.totalorder %s40, 1
      %p289 = por %p287, %p288
      %p290 = scmp.ne.s32.totalorder %s281, %s282
      %p291 = scmp.eq.s32.totalorder %s40, 0
      %p292 = por %p290, %p291
      %p293 = scmp.ne.s32.totalorder %s281, %s282
      %p294 = scmp.eq.s32.totalorder %s41, 1
      %p295 = por %p293, %p294
      %p297 = scmp.ne.s32.totalorder %s282, %s296
      %p298 = scmp.eq.s32.totalorder %s41, 0
      %p299 = por %p297, %p298
      %s301 = sadd.s32 %s300, 1
      %p304 = scmp.eq.s32.totalorder %s35, 1
      %p305 = scmp.ne.s32.totalorder %s300, %s302
      %p306 = scmp.eq.s32.totalorder %s35, 0
      %p307 = por %p305, %p306
      %p308 = scmp.ne.s32.totalorder %s300, %s302
      %p309 = scmp.eq.s32.totalorder %s40, 1
      %p310 = por %p308, %p309
      %p311 = scmp.ne.s32.totalorder %s302, %s303
      %p312 = scmp.eq.s32.totalorder %s40, 0
      %p313 = por %p311, %p312
      %p314 = scmp.ne.s32.totalorder %s302, %s303
      %p315 = scmp.eq.s32.totalorder %s41, 1
      %p316 = por %p314, %p315
      %p318 = scmp.ne.s32.totalorder %s303, %s317
      %p319 = scmp.eq.s32.totalorder %s41, 0
      %p320 = por %p318, %p319
      %s322 = sadd.s32 %s321, 1
      %p325 = scmp.eq.s32.totalorder %s35, 1
      %p326 = scmp.ne.s32.totalorder %s321, %s323
      %p327 = scmp.eq.s32.totalorder %s35, 0
      %p328 = por %p326, %p327
      %p329 = scmp.ne.s32.totalorder %s321, %s323
      %p330 = scmp.eq.s32.totalorder %s40, 1
      %p331 = por %p329, %p330
      %p332 = scmp.ne.s32.totalorder %s323, %s324
      %p333 = scmp.eq.s32.totalorder %s40, 0
      %p334 = por %p332, %p333
      %p335 = scmp.ne.s32.totalorder %s323, %s324
      %p336 = scmp.eq.s32.totalorder %s41, 1
      %p337 = por %p335, %p336
      %p339 = scmp.ne.s32.totalorder %s324, %s338
      %p340 = scmp.eq.s32.totalorder %s41, 0
      %p341 = por %p339, %p340
      %s343 = sadd.s32 %s342, 1
      %p346 = scmp.eq.s32.totalorder %s35, 1
      %p347 = scmp.ne.s32.totalorder %s342, %s344
      %p348 = scmp.eq.s32.totalorder %s35, 0
      %p349 = por %p347, %p348
      %p350 = scmp.ne.s32.totalorder %s342, %s344
      %p351 = scmp.eq.s32.totalorder %s40, 1
      %p352 = por %p350, %p351
      %p353 = scmp.ne.s32.totalorder %s344, %s345
      %p354 = scmp.eq.s32.totalorder %s40, 0
      %p355 = por %p353, %p354
      %p356 = scmp.ne.s32.totalorder %s344, %s345
      %p357 = scmp.eq.s32.totalorder %s41, 1
      %p358 = por %p356, %p357
      %p360 = scmp.ne.s32.totalorder %s345, %s359
      %p361 = scmp.eq.s32.totalorder %s41, 0
      %p362 = por %p360, %p361
      %s364 = sadd.s32 %s363, 1
      %p367 = scmp.eq.s32.totalorder %s35, 1
      %p368 = scmp.ne.s32.totalorder %s363, %s365
      %p369 = scmp.eq.s32.totalorder %s35, 0
      %p370 = por %p368, %p369
      %p371 = scmp.ne.s32.totalorder %s363, %s365
      %p372 = scmp.eq.s32.totalorder %s40, 1
      %p373 = por %p371, %p372
      %p374 = scmp.ne.s32.totalorder %s365, %s366
      %p375 = scmp.eq.s32.totalorder %s40, 0
      %p376 = por %p374, %p375
      %p377 = scmp.ne.s32.totalorder %s365, %s366
      %p378 = scmp.eq.s32.totalorder %s41, 1
      %p379 = por %p377, %p378
      %p381 = scmp.ne.s32.totalorder %s366, %s380
      %p382 = scmp.eq.s32.totalorder %s41, 0
      %p383 = por %p381, %p382
      %s385 = sadd.s32 %s384, 1
      %p388 = scmp.eq.s32.totalorder %s35, 1
      %p389 = scmp.ne.s32.totalorder %s384, %s386
      %p390 = scmp.eq.s32.totalorder %s35, 0
      %p391 = por %p389, %p390
      %p392 = scmp.ne.s32.totalorder %s384, %s386
      %p393 = scmp.eq.s32.totalorder %s40, 1
      %p394 = por %p392, %p393
      %p395 = scmp.ne.s32.totalorder %s386, %s387
      %p396 = scmp.eq.s32.totalorder %s40, 0
      %p397 = por %p395, %p396
      %p398 = scmp.ne.s32.totalorder %s386, %s387
      %p399 = scmp.eq.s32.totalorder %s41, 1
      %p400 = por %p398, %p399
      %p402 = scmp.ne.s32.totalorder %s387, %s401
      %p403 = scmp.eq.s32.totalorder %s41, 0
      %p404 = por %p402, %p403
      %s406 = sadd.s32 %s405, 1
      %p409 = scmp.eq.s32.totalorder %s35, 1
      %p410 = scmp.ne.s32.totalorder %s405, %s407
      %p411 = scmp.eq.s32.totalorder %s35, 0
      %p412 = por %p410, %p411
      %p413 = scmp.ne.s32.totalorder %s405, %s407
      %p414 = scmp.eq.s32.totalorder %s40, 1
      %p415 = por %p413, %p414
      %p416 = scmp.ne.s32.totalorder %s407, %s408
      %p417 = scmp.eq.s32.totalorder %s40, 0
      %p418 = por %p416, %p417
      %p419 = scmp.ne.s32.totalorder %s407, %s408
      %p420 = scmp.eq.s32.totalorder %s41, 1
      %p421 = por %p419, %p420
      %p423 = scmp.ne.s32.totalorder %s408, %s422
      %p424 = scmp.eq.s32.totalorder %s41, 0
      %p425 = por %p423, %p424
      %s427 = sadd.s32 %s426, 1
      %p430 = scmp.eq.s32.totalorder %s35, 1
      %p431 = scmp.ne.s32.totalorder %s426, %s428
      %p432 = scmp.eq.s32.totalorder %s35, 0
      %p433 = por %p431, %p432
      %p434 = scmp.ne.s32.totalorder %s426, %s428
      %p435 = scmp.eq.s32.totalorder %s40, 1
      %p436 = por %p434, %p435
      %p437 = scmp.ne.s32.totalorder %s428, %s429
      %p438 = scmp.eq.s32.totalorder %s40, 0
      %p439 = por %p437, %p438
      %p440 = scmp.ne.s32.totalorder %s428, %s429
      %p441 = scmp.eq.s32.totalorder %s41, 1
      %p442 = por %p440, %p441
      %p444 = scmp.ne.s32.totalorder %s429, %s443
      %p445 = scmp.eq.s32.totalorder %s41, 0
      %p446 = por %p444, %p445
      %s448 = sadd.s32 %s447, 1
      %p451 = scmp.eq.s32.totalorder %s35, 1
      %p452 = scmp.ne.s32.totalorder %s447, %s449
      %p453 = scmp.eq.s32.totalorder %s35, 0
      %p454 = por %p452, %p453
      %p455 = scmp.ne.s32.totalorder %s447, %s449
      %p456 = scmp.eq.s32.totalorder %s40, 1
      %p457 = por %p455, %p456
      %p458 = scmp.ne.s32.totalorder %s449, %s450
      %p459 = scmp.eq.s32.totalorder %s40, 0
      %p460 = por %p458, %p459
      %p461 = scmp.ne.s32.totalorder %s449, %s450
      %p462 = scmp.eq.s32.totalorder %s41, 1
      %p463 = por %p461, %p462
      %p465 = scmp.ne.s32.totalorder %s450, %s464
      %p466 = scmp.eq.s32.totalorder %s41, 0
      %p467 = por %p465, %p466
      %s469 = sadd.s32 %s468, 1
      %p472 = scmp.eq.s32.totalorder %s35, 1
      %p473 = scmp.ne.s32.totalorder %s468, %s470
      %p474 = scmp.eq.s32.totalorder %s35, 0
      %p475 = por %p473, %p474
      %p476 = scmp.ne.s32.totalorder %s468, %s470
      %p477 = scmp.eq.s32.totalorder %s40, 1
      %p478 = por %p476, %p477
      %p479 = scmp.ne.s32.totalorder %s470, %s471
      %p480 = scmp.eq.s32.totalorder %s40, 0
      %p481 = por %p479, %p480
      %p482 = scmp.ne.s32.totalorder %s470, %s471
      %p483 = scmp.eq.s32.totalorder %s41, 1
      %p484 = por %p482, %p483
      %p486 = scmp.ne.s32.totalorder %s471, %s485
      %p487 = scmp.eq.s32.totalorder %s41, 0
      %p488 = por %p486, %p487
      %s489 = ssub.s32 %s35, %s42
      %p490 = scmp.eq.s32.totalorder %s489, 0
      %s492 = sadd.s32 %s491, 1
      %s493 = scalar_select %p490, %s491, %s492
      %p496 = pneg %p490
      %p497 = scmp.eq.s32.totalorder %s35, 1
      %p498 = por %p496, %p497
      %p499 = scmp.ne.s32.totalorder %s491, %s494
      %p500 = scmp.eq.s32.totalorder %s35, 0
      %p501 = por %p499, %p500
      %p502 = scmp.ne.s32.totalorder %s491, %s494
      %p503 = scmp.eq.s32.totalorder %s40, 1
      %p504 = por %p502, %p503
      %p505 = scmp.ne.s32.totalorder %s494, %s495
      %p506 = scmp.eq.s32.totalorder %s40, 0
      %p507 = por %p505, %p506
      %p508 = scmp.ne.s32.totalorder %s494, %s495
      %p509 = scmp.eq.s32.totalorder %s41, 1
      %p510 = por %p508, %p509
      %p512 = scmp.ne.s32.totalorder %s495, %s511
      %p513 = scmp.eq.s32.totalorder %s41, 0
      %p514 = por %p512, %p513
      %p515 = scmp.le.s32.totalorder 1, %s35
      %p516 = scmp.lt.s32.totalorder %s35, 3
      %p517 = pnand %p515, %p516
      %p518 = pneg %p517
      // Predicated region
      $region9: #{cluster_block_forward.1} parent=5 // pred_check
        _
      $region10: #{cluster_block_forward.1} parent=5 // pred_check_branch
        %520 = sbr.rel (%p517) target = $region12
      $region11: #{cluster_block_forward.1} parent=5 // pred_region
        %s521 = ssub.s32 %s35, 1
        // Predicated region
        $region13: #{cluster_block_forward.1} parent=11 // pred_check
          %p522 = pneg %p56
        $region14: #{cluster_block_forward.1} parent=11 // pred_check_branch
          %524 = sbr.rel (%p522) target = $region16
        $region15: #{cluster_block_forward.1} parent=11 // pred_region
          _
        $region16: #{cluster_block_forward.1} parent=11 // pred_fallthru
          _
        // Predicated region
        $region17: #{cluster_block_forward.1} parent=11 // pred_check
          %p525 = pneg %p77
        $region18: #{cluster_block_forward.1} parent=11 // pred_check_branch
          %527 = sbr.rel (%p525) target = $region20
        $region19: #{cluster_block_forward.1} parent=11 // pred_region
          _
        $region20: #{cluster_block_forward.1} parent=11 // pred_fallthru
          _
        // Predicated region
        $region21: #{cluster_block_forward.1} parent=11 // pred_check
          %p528 = pneg %p124
        $region22: #{cluster_block_forward.1} parent=11 // pred_check_branch
          %530 = sbr.rel (%p528) target = $region24
        $region23: #{cluster_block_forward.1} parent=11 // pred_region
          _
        $region24: #{cluster_block_forward.1} parent=11 // pred_fallthru
          _
        // Predicated region
        $region25: #{cluster_block_forward.1} parent=11 // pred_check
          %p531 = pneg %p145
        $region26: #{cluster_block_forward.1} parent=11 // pred_check_branch
          %533 = sbr.rel (%p531) target = $region28
        $region27: #{cluster_block_forward.1} parent=11 // pred_region
          _
        $region28: #{cluster_block_forward.1} parent=11 // pred_fallthru
          _
        // Predicated region
        $region29: #{cluster_block_forward.1} parent=11 // pred_check
          %p534 = pneg %p166
        $region30: #{cluster_block_forward.1} parent=11 // pred_check_branch
          %536 = sbr.rel (%p534) target = $region32
        $region31: #{cluster_block_forward.1} parent=11 // pred_region
          _
        $region32: #{cluster_block_forward.1} parent=11 // pred_fallthru
          _
        // Predicated region
        $region33: #{cluster_block_forward.1} parent=11 // pred_check
          %p537 = pneg %p187
        $region34: #{cluster_block_forward.1} parent=11 // pred_check_branch
          %539 = sbr.rel (%p537) target = $region36
        $region35: #{cluster_block_forward.1} parent=11 // pred_region
          _
        $region36: #{cluster_block_forward.1} parent=11 // pred_fallthru
          _
        // Predicated region
        $region37: #{cluster_block_forward.1} parent=11 // pred_check
          %p540 = pneg %p208
        $region38: #{cluster_block_forward.1} parent=11 // pred_check_branch
          %542 = sbr.rel (%p540) target = $region40
        $region39: #{cluster_block_forward.1} parent=11 // pred_region
          _
        $region40: #{cluster_block_forward.1} parent=11 // pred_fallthru
          _
        // Predicated region
        $region41: #{cluster_block_forward.1} parent=11 // pred_check
          %p543 = pneg %p229
        $region42: #{cluster_block_forward.1} parent=11 // pred_check_branch
          %545 = sbr.rel (%p543) target = $region44
        $region43: #{cluster_block_forward.1} parent=11 // pred_region
          _
        $region44: #{cluster_block_forward.1} parent=11 // pred_fallthru
          _
        // Predicated region
        $region45: #{cluster_block_forward.1} parent=11 // pred_check
          %p546 = pneg %p250
        $region46: #{cluster_block_forward.1} parent=11 // pred_check_branch
          %548 = sbr.rel (%p546) target = $region48
        $region47: #{cluster_block_forward.1} parent=11 // pred_region
          _
        $region48: #{cluster_block_forward.1} parent=11 // pred_fallthru
          _
        // Predicated region
        $region49: #{cluster_block_forward.1} parent=11 // pred_check
          %p549 = pneg %p271
        $region50: #{cluster_block_forward.1} parent=11 // pred_check_branch
          %551 = sbr.rel (%p549) target = $region52
        $region51: #{cluster_block_forward.1} parent=11 // pred_region
          _
        $region52: #{cluster_block_forward.1} parent=11 // pred_fallthru
          _
        // Predicated region
        $region53: #{cluster_block_forward.1} parent=11 // pred_check
          %p552 = pneg %p292
        $region54: #{cluster_block_forward.1} parent=11 // pred_check_branch
          %554 = sbr.rel (%p552) target = $region56
        $region55: #{cluster_block_forward.1} parent=11 // pred_region
          _
        $region56: #{cluster_block_forward.1} parent=11 // pred_fallthru
          _
        // Predicated region
        $region57: #{cluster_block_forward.1} parent=11 // pred_check
          %p555 = pneg %p313
        $region58: #{cluster_block_forward.1} parent=11 // pred_check_branch
          %557 = sbr.rel (%p555) target = $region60
        $region59: #{cluster_block_forward.1} parent=11 // pred_region
          _
        $region60: #{cluster_block_forward.1} parent=11 // pred_fallthru
          _
        // Predicated region
        $region61: #{cluster_block_forward.1} parent=11 // pred_check
          %p558 = pneg %p334
        $region62: #{cluster_block_forward.1} parent=11 // pred_check_branch
          %560 = sbr.rel (%p558) target = $region64
        $region63: #{cluster_block_forward.1} parent=11 // pred_region
          _
        $region64: #{cluster_block_forward.1} parent=11 // pred_fallthru
          _
        // Predicated region
        $region65: #{cluster_block_forward.1} parent=11 // pred_check
          %p561 = pneg %p355
        $region66: #{cluster_block_forward.1} parent=11 // pred_check_branch
          %563 = sbr.rel (%p561) target = $region68
        $region67: #{cluster_block_forward.1} parent=11 // pred_region
          _
        $region68: #{cluster_block_forward.1} parent=11 // pred_fallthru
          _
        // Predicated region
        $region69: #{cluster_block_forward.1} parent=11 // pred_check
          %p564 = pneg %p376
        $region70: #{cluster_block_forward.1} parent=11 // pred_check_branch
          %566 = sbr.rel (%p564) target = $region72
        $region71: #{cluster_block_forward.1} parent=11 // pred_region
          _
        $region72: #{cluster_block_forward.1} parent=11 // pred_fallthru
          _
        // Predicated region
        $region73: #{cluster_block_forward.1} parent=11 // pred_check
          %p567 = pneg %p397
        $region74: #{cluster_block_forward.1} parent=11 // pred_check_branch
          %569 = sbr.rel (%p567) target = $region76
        $region75: #{cluster_block_forward.1} parent=11 // pred_region
          _
        $region76: #{cluster_block_forward.1} parent=11 // pred_fallthru
          _
        // Predicated region
        $region77: #{cluster_block_forward.1} parent=11 // pred_check
          %p570 = pneg %p418
        $region78: #{cluster_block_forward.1} parent=11 // pred_check_branch
          %572 = sbr.rel (%p570) target = $region80
        $region79: #{cluster_block_forward.1} parent=11 // pred_region
          _
        $region80: #{cluster_block_forward.1} parent=11 // pred_fallthru
          _
        // Predicated region
        $region81: #{cluster_block_forward.1} parent=11 // pred_check
          %p573 = pneg %p439
        $region82: #{cluster_block_forward.1} parent=11 // pred_check_branch
          %575 = sbr.rel (%p573) target = $region84
        $region83: #{cluster_block_forward.1} parent=11 // pred_region
          _
        $region84: #{cluster_block_forward.1} parent=11 // pred_fallthru
          _
        // Predicated region
        $region85: #{cluster_block_forward.1} parent=11 // pred_check
          %p576 = pneg %p460
        $region86: #{cluster_block_forward.1} parent=11 // pred_check_branch
          %578 = sbr.rel (%p576) target = $region88
        $region87: #{cluster_block_forward.1} parent=11 // pred_region
          _
        $region88: #{cluster_block_forward.1} parent=11 // pred_fallthru
          _
        // Predicated region
        $region89: #{cluster_block_forward.1} parent=11 // pred_check
          %p579 = pneg %p481
        $region90: #{cluster_block_forward.1} parent=11 // pred_check_branch
          %581 = sbr.rel (%p579) target = $region92
        $region91: #{cluster_block_forward.1} parent=11 // pred_region
          _
        $region92: #{cluster_block_forward.1} parent=11 // pred_fallthru
          _
      $region12: #{cluster_block_forward.1} parent=5 // pred_fallthru
        _
      %p582 = scmp.lt.s32.totalorder %s35, 2
      // Predicated region
      $region93: #{cluster_block_forward.1} parent=5 // pred_check
        %p583 = pneg %p582
      $region94: #{cluster_block_forward.1} parent=5 // pred_check_branch
        %585 = sbr.rel (%p583) target = $region96
      $region95: #{cluster_block_forward.1} parent=5 // pred_region
        // Predicated region
        $region97: #{cluster_block_forward.1} parent=95 // pred_check
          %p586 = pneg %p97
        $region98: #{cluster_block_forward.1} parent=95 // pred_check_branch
          %588 = sbr.rel (%p586) target = $region100
        $region99: #{cluster_block_forward.1} parent=95 // pred_region
          %s589 = sand.u32 %s87, 1
          %s590 = scalar_lea.sflag [#allocation7], %s589
          %s591 = sand.u32 %s87, 1
          %s592 = smul.addr %s591, 256
          %s593 = scalar_lea.vmem [#allocation6], %s592
          %595 = vsyncadd %s590, 0
          %s596 = smul.addr %s35, 32
          %s597 = smul.addr %s596, 8
          %s598 = scalar_lea.hbm %s2, %s597
          %s599 = sshll.u32 %s598, 4
          %s600 = int_to_ptr.hbm [resolvable:$true] %s599
          %s601 = sshll.u32 %s593, 4
          %s602 = int_to_ptr.vmem [resolvable:$true] %s601
          %607 = dma.hbm_to_vmem [thread:$0]  %s600, 4096, %s602, %s590, 128, 128, 8
        $region100: #{cluster_block_forward.1} parent=95 // pred_fallthru
          _
      $region96: #{cluster_block_forward.1} parent=5 // pred_fallthru
        _
      %p608 = scmp.le.s32.totalorder 1, %s35
      %p609 = scmp.lt.s32.totalorder %s35, 3
      %p610 = pnand %p608, %p609
      %p611 = pneg %p610
      // Predicated region
      $region101: #{cluster_block_forward.1} parent=5 // pred_check
        _
      $region102: #{cluster_block_forward.1} parent=5 // pred_check_branch
        %613 = sbr.rel (%p610) target = $region104
      $region103: #{cluster_block_forward.1} parent=5 // pred_region
        %s614 = ssub.s32 %s35, 1
        %s615 = sand.u32 %s90, 1
        %s616 = scalar_lea.sflag [#allocation7], %s615
        %s617 = sand.u32 %s90, 1
        %s618 = smul.addr %s617, 256
        %s619 = scalar_lea.vmem [#allocation6], %s618
        // Predicated region
        $region105: #{cluster_block_forward.1} parent=103 // pred_check
          %p620 = pneg %p103
        $region106: #{cluster_block_forward.1} parent=103 // pred_check_branch
          %622 = sbr.rel (%p620) target = $region108
        $region107: #{cluster_block_forward.1} parent=103 // pred_region
          %624 = dma.done %s616, 4096
        $region108: #{cluster_block_forward.1} parent=103 // pred_fallthru
          _
        %p625 = pneg %p56
        %p626 = pneg %p53
        %p627 = pneg %p77
        %p628 = pneg %p74
        %s629 = sand.u32 %s90, 1
        %s630 = scalar_lea.sflag [#allocation7], %s629
        %s631 = sand.u32 %s90, 1
        %s632 = smul.addr %s631, 256
        %s633 = scalar_lea.vmem [#allocation6], %s632
        %p634 = pneg %p103
        %p635 = pneg %p100
        %p636 = pneg %p124
        %p637 = pneg %p121
        %p638 = pneg %p145
        %p639 = pneg %p142
        %p640 = pneg %p166
        %p641 = pneg %p163
        %p642 = pneg %p187
        %p643 = pneg %p184
        %p644 = pneg %p208
        %p645 = pneg %p205
        %p646 = pneg %p229
        %p647 = pneg %p226
        %p648 = pneg %p250
        %p649 = pneg %p247
        %p650 = pneg %p271
        %p651 = pneg %p268
        %p652 = pneg %p292
        %p653 = pneg %p289
        %p654 = pneg %p313
        %p655 = pneg %p310
        %p656 = pneg %p334
        %p657 = pneg %p331
        %p658 = pneg %p355
        %p659 = pneg %p352
        %p660 = pneg %p376
        %p661 = pneg %p373
        %p662 = pneg %p397
        %p663 = pneg %p394
        %p664 = pneg %p418
        %p665 = pneg %p415
        %p666 = pneg %p439
        %p667 = pneg %p436
        %p668 = pneg %p460
        %p669 = pneg %p457
        %p670 = pneg %p481
        %p671 = pneg %p478
        %p672 = pneg %p507
        %p673 = pneg %p504
        %s674 = sand.u32 %s494, 1
        %s675 = scalar_lea.sflag [#allocation8], %s674
        %s676 = sand.u32 %s494, 1
        %s677 = smul.addr %s676, 256
        %s678 = scalar_lea.vmem [#allocation9], %s677
        %v679 = vld [vmem:[%s619] sm:$0xff]
        %v680 = vld [vmem:[%s619 + $0x8] sm:$0xff]
        %v681 = vld [vmem:[%s619 + $0x10] sm:$0xff]
        %v682 = vld [vmem:[%s619 + $0x18] sm:$0xff]
        %v683 = vld [vmem:[%s619 + $0x20] sm:$0xff]
        %v684 = vld [vmem:[%s619 + $0x28] sm:$0xff]
        %v685 = vld [vmem:[%s619 + $0x30] sm:$0xff]
        %v686 = vld [vmem:[%s619 + $0x38] sm:$0xff]
        %v687 = vld [vmem:[%s619 + $0x40] sm:$0xff]
        %v688 = vld [vmem:[%s619 + $0x48] sm:$0xff]
        %v689 = vld [vmem:[%s619 + $0x50] sm:$0xff]
        %v690 = vld [vmem:[%s619 + $0x58] sm:$0xff]
        %v691 = vld [vmem:[%s619 + $0x60] sm:$0xff]
        %v692 = vld [vmem:[%s619 + $0x68] sm:$0xff]
        %v693 = vld [vmem:[%s619 + $0x70] sm:$0xff]
        %v694 = vld [vmem:[%s619 + $0x78] sm:$0xff]
        %v695 = vld [vmem:[%s619 + $0x80] sm:$0xff]
        %v696 = vld [vmem:[%s619 + $0x88] sm:$0xff]
        %v697 = vld [vmem:[%s619 + $0x90] sm:$0xff]
        %v698 = vld [vmem:[%s619 + $0x98] sm:$0xff]
        %v699 = vld [vmem:[%s619 + $0xa0] sm:$0xff]
        %v700 = vld [vmem:[%s619 + $0xa8] sm:$0xff]
        %v701 = vld [vmem:[%s619 + $0xb0] sm:$0xff]
        %v702 = vld [vmem:[%s619 + $0xb8] sm:$0xff]
        %v703 = vld [vmem:[%s619 + $0xc0] sm:$0xff]
        %v704 = vld [vmem:[%s619 + $0xc8] sm:$0xff]
        %v705 = vld [vmem:[%s619 + $0xd0] sm:$0xff]
        %v706 = vld [vmem:[%s619 + $0xd8] sm:$0xff]
        %v707 = vld [vmem:[%s619 + $0xe0] sm:$0xff]
        %v708 = vld [vmem:[%s619 + $0xe8] sm:$0xff]
        %v709 = vld [vmem:[%s619 + $0xf0] sm:$0xff]
        %v710 = vld [vmem:[%s619 + $0xf8] sm:$0xff]
        %vm711 = vcmask 261120
        %v712 = vsel %vm711, %v679, 0.0
        %v713 = vsel %vm711, %v680, 0.0
        %v714 = vadd.f32 %v712, %v713
        %v715 = vsel %vm711, %v681, 0.0
        %v716 = vadd.f32 %v714, %v715
        %v717 = vsel %vm711, %v682, 0.0
        %v718 = vadd.f32 %v716, %v717
        %v719 = vsel %vm711, %v683, 0.0
        %v720 = vadd.f32 %v718, %v719
        %v721 = vsel %vm711, %v684, 0.0
        %v722 = vadd.f32 %v720, %v721
        %v723 = vsel %vm711, %v685, 0.0
        %v724 = vadd.f32 %v722, %v723
        %v725 = vsel %vm711, %v686, 0.0
        %v726 = vadd.f32 %v724, %v725
        %v727 = vsel %vm711, %v687, 0.0
        %v728 = vadd.f32 %v726, %v727
        %v729 = vsel %vm711, %v688, 0.0
        %v730 = vadd.f32 %v728, %v729
        %v731 = vsel %vm711, %v689, 0.0
        %v732 = vadd.f32 %v730, %v731
        %v733 = vsel %vm711, %v690, 0.0
        %v734 = vadd.f32 %v732, %v733
        %v735 = vsel %vm711, %v691, 0.0
        %v736 = vadd.f32 %v734, %v735
        %v737 = vsel %vm711, %v692, 0.0
        %v738 = vadd.f32 %v736, %v737
        %v739 = vsel %vm711, %v693, 0.0
        %v740 = vadd.f32 %v738, %v739
        %v741 = vsel %vm711, %v694, 0.0
        %v742 = vadd.f32 %v740, %v741
        %v743 = vsel %vm711, %v695, 0.0
        %v744 = vadd.f32 %v742, %v743
        %v745 = vsel %vm711, %v696, 0.0
        %v746 = vadd.f32 %v744, %v745
        %v747 = vsel %vm711, %v697, 0.0
        %v748 = vadd.f32 %v746, %v747
        %v749 = vsel %vm711, %v698, 0.0
        %v750 = vadd.f32 %v748, %v749
        %v751 = vsel %vm711, %v699, 0.0
        %v752 = vadd.f32 %v750, %v751
        %v753 = vsel %vm711, %v700, 0.0
        %v754 = vadd.f32 %v752, %v753
        %v755 = vsel %vm711, %v701, 0.0
        %v756 = vadd.f32 %v754, %v755
        %v757 = vsel %vm711, %v702, 0.0
        %v758 = vadd.f32 %v756, %v757
        %v759 = vsel %vm711, %v703, 0.0
        %v760 = vadd.f32 %v758, %v759
        %v761 = vsel %vm711, %v704, 0.0
        %v762 = vadd.f32 %v760, %v761
        %v763 = vsel %vm711, %v705, 0.0
        %v764 = vadd.f32 %v762, %v763
        %v765 = vsel %vm711, %v706, 0.0
        %v766 = vadd.f32 %v764, %v765
        %v767 = vsel %vm711, %v707, 0.0
        %v768 = vadd.f32 %v766, %v767
        %v769 = vsel %vm711, %v708, 0.0
        %v770 = vadd.f32 %v768, %v769
        %v771 = vsel %vm711, %v709, 0.0
        %v772 = vadd.f32 %v770, %v771
        %v773 = vsel %vm711, %v710, 0.0
        %v774 = vadd.f32 %v772, %v773
        %775 = vadd.xlane.f32.xlu0 %v774
        %v776 = vpop.xlane.xlu0 %775
        %v777 = vrot.slane %v776, 4
        %v778 = vadd.f32 %v776, %v777
        %v779 = vrot.slane %v778, 2
        %v780 = vadd.f32 %v778, %v779
        %v781 = vrot.slane %v780, 1
        %v782 = vadd.f32 %v780, %v781
        %s783 = vtos %v782
        %v784 = vstv %s783
        %v785 = vrcp.pop 8192.0
        %v786 = vmul.f32 8192.0, %v785
        %v787 = vsub.f32 1.0, %v786
        %v788 = vmul.f32 %v785, %v787
        %v789 = vadd.f32 %v785, %v788
        %vm790 = vweird.f32 %v785
        %v791 = vsel %vm790, %v785, %v789
        %v792 = vmul.f32 %v784, %v791
        %v793 = vsub.f32 %v679, %v792
        %v794 = vsub.f32 %v680, %v792
        %v795 = vsub.f32 %v681, %v792
        %v796 = vsub.f32 %v682, %v792
        %v797 = vsub.f32 %v683, %v792
        %v798 = vsub.f32 %v684, %v792
        %v799 = vsub.f32 %v685, %v792
        %v800 = vsub.f32 %v686, %v792
        %v801 = vsub.f32 %v687, %v792
        %v802 = vsub.f32 %v688, %v792
        %v803 = vsub.f32 %v689, %v792
        %v804 = vsub.f32 %v690, %v792
        %v805 = vsub.f32 %v691, %v792
        %v806 = vsub.f32 %v692, %v792
        %v807 = vsub.f32 %v693, %v792
        %v808 = vsub.f32 %v694, %v792
        %v809 = vsub.f32 %v695, %v792
        %v810 = vsub.f32 %v696, %v792
        %v811 = vsub.f32 %v697, %v792
        %v812 = vsub.f32 %v698, %v792
        %v813 = vsub.f32 %v699, %v792
        %v814 = vsub.f32 %v700, %v792
        %v815 = vsub.f32 %v701, %v792
        %v816 = vsub.f32 %v702, %v792
        %v817 = vsub.f32 %v703, %v792
        %v818 = vsub.f32 %v704, %v792
        %v819 = vsub.f32 %v705, %v792
        %v820 = vsub.f32 %v706, %v792
        %v821 = vsub.f32 %v707, %v792
        %v822 = vsub.f32 %v708, %v792
        %v823 = vsub.f32 %v709, %v792
        %v824 = vsub.f32 %v710, %v792
        %v825 = vmul.f32 %v793, %v793
        %v826 = vmul.f32 %v794, %v794
        %v827 = vmul.f32 %v795, %v795
        %v828 = vmul.f32 %v796, %v796
        %v829 = vmul.f32 %v797, %v797
        %v830 = vmul.f32 %v798, %v798
        %v831 = vmul.f32 %v799, %v799
        %v832 = vmul.f32 %v800, %v800
        %v833 = vmul.f32 %v801, %v801
        %v834 = vmul.f32 %v802, %v802
        %v835 = vmul.f32 %v803, %v803
        %v836 = vmul.f32 %v804, %v804
        %v837 = vmul.f32 %v805, %v805
        %v838 = vmul.f32 %v806, %v806
        %v839 = vmul.f32 %v807, %v807
        %v840 = vmul.f32 %v808, %v808
        %v841 = vmul.f32 %v809, %v809
        %v842 = vmul.f32 %v810, %v810
        %v843 = vmul.f32 %v811, %v811
        %v844 = vmul.f32 %v812, %v812
        %v845 = vmul.f32 %v813, %v813
        %v846 = vmul.f32 %v814, %v814
        %v847 = vmul.f32 %v815, %v815
        %v848 = vmul.f32 %v816, %v816
        %v849 = vmul.f32 %v817, %v817
        %v850 = vmul.f32 %v818, %v818
        %v851 = vmul.f32 %v819, %v819
        %v852 = vmul.f32 %v820, %v820
        %v853 = vmul.f32 %v821, %v821
        %v854 = vmul.f32 %v822, %v822
        %v855 = vmul.f32 %v823, %v823
        %v856 = vmul.f32 %v824, %v824
        %v857 = vsel %vm711, %v825, 0.0
        %v858 = vsel %vm711, %v826, 0.0
        %v859 = vadd.f32 %v857, %v858
        %v860 = vsel %vm711, %v827, 0.0
        %v861 = vadd.f32 %v859, %v860
        %v862 = vsel %vm711, %v828, 0.0
        %v863 = vadd.f32 %v861, %v862
        %v864 = vsel %vm711, %v829, 0.0
        %v865 = vadd.f32 %v863, %v864
        %v866 = vsel %vm711, %v830, 0.0
        %v867 = vadd.f32 %v865, %v866
        %v868 = vsel %vm711, %v831, 0.0
        %v869 = vadd.f32 %v867, %v868
        %v870 = vsel %vm711, %v832, 0.0
        %v871 = vadd.f32 %v869, %v870
        %v872 = vsel %vm711, %v833, 0.0
        %v873 = vadd.f32 %v871, %v872
        %v874 = vsel %vm711, %v834, 0.0
        %v875 = vadd.f32 %v873, %v874
        %v876 = vsel %vm711, %v835, 0.0
        %v877 = vadd.f32 %v875, %v876
        %v878 = vsel %vm711, %v836, 0.0
        %v879 = vadd.f32 %v877, %v878
        %v880 = vsel %vm711, %v837, 0.0
        %v881 = vadd.f32 %v879, %v880
        %v882 = vsel %vm711, %v838, 0.0
        %v883 = vadd.f32 %v881, %v882
        %v884 = vsel %vm711, %v839, 0.0
        %v885 = vadd.f32 %v883, %v884
        %v886 = vsel %vm711, %v840, 0.0
        %v887 = vadd.f32 %v885, %v886
        %v888 = vsel %vm711, %v841, 0.0
        %v889 = vadd.f32 %v887, %v888
        %v890 = vsel %vm711, %v842, 0.0
        %v891 = vadd.f32 %v889, %v890
        %v892 = vsel %vm711, %v843, 0.0
        %v893 = vadd.f32 %v891, %v892
        %v894 = vsel %vm711, %v844, 0.0
        %v895 = vadd.f32 %v893, %v894
        %v896 = vsel %vm711, %v845, 0.0
        %v897 = vadd.f32 %v895, %v896
        %v898 = vsel %vm711, %v846, 0.0
        %v899 = vadd.f32 %v897, %v898
        %v900 = vsel %vm711, %v847, 0.0
        %v901 = vadd.f32 %v899, %v900
        %v902 = vsel %vm711, %v848, 0.0
        %v903 = vadd.f32 %v901, %v902
        %v904 = vsel %vm711, %v849, 0.0
        %v905 = vadd.f32 %v903, %v904
        %v906 = vsel %vm711, %v850, 0.0
        %v907 = vadd.f32 %v905, %v906
        %v908 = vsel %vm711, %v851, 0.0
        %v909 = vadd.f32 %v907, %v908
        %v910 = vsel %vm711, %v852, 0.0
        %v911 = vadd.f32 %v909, %v910
        %v912 = vsel %vm711, %v853, 0.0
        %v913 = vadd.f32 %v911, %v912
        %v914 = vsel %vm711, %v854, 0.0
        %v915 = vadd.f32 %v913, %v914
        %v916 = vsel %vm711, %v855, 0.0
        %v917 = vadd.f32 %v915, %v916
        %v918 = vsel %vm711, %v856, 0.0
        %v919 = vadd.f32 %v917, %v918
        %920 = vadd.xlane.f32.xlu0 %v919
        %v921 = vpop.xlane.xlu0 %920
        %v922 = vrot.slane %v921, 4
        %v923 = vadd.f32 %v921, %v922
        %v924 = vrot.slane %v923, 2
        %v925 = vadd.f32 %v923, %v924
        %v926 = vrot.slane %v925, 1
        %v927 = vadd.f32 %v925, %v926
        %s928 = vtos %v927
        %v929 = vstv %s928
        %v930 = vmul.f32 %v929, %v791
        %v931 = vadd.f32 %v930, 1e-05
        %v932 = vrsqrt.pop %v931
        %v933 = vmul.f32 %v932, %v931
        %v934 = vmul.f32 %v933, %v932
        %v935 = vmul.f32 0.5, %v934
        %v936 = vsub.f32 1.5, %v935
        %v937 = vmul.f32 %v932, %v936
        %vm938 = vweird.f32 %v931
        %vm939 = vweird.f32 %v932
        %vm940 = vmor %vm938, %vm939
        %v941 = vsel %vm940, %v932, %v937
        %v942 = vmul.f32 %v793, %v941
        %v943 = vmul.f32 %v794, %v941
        %v944 = vmul.f32 %v795, %v941
        %v945 = vmul.f32 %v796, %v941
        %v946 = vmul.f32 %v797, %v941
        %v947 = vmul.f32 %v798, %v941
        %v948 = vmul.f32 %v799, %v941
        %v949 = vmul.f32 %v800, %v941
        %v950 = vmul.f32 %v801, %v941
        %v951 = vmul.f32 %v802, %v941
        %v952 = vmul.f32 %v803, %v941
        %v953 = vmul.f32 %v804, %v941
        %v954 = vmul.f32 %v805, %v941
        %v955 = vmul.f32 %v806, %v941
        %v956 = vmul.f32 %v807, %v941
        %v957 = vmul.f32 %v808, %v941
        %v958 = vmul.f32 %v809, %v941
        %v959 = vmul.f32 %v810, %v941
        %v960 = vmul.f32 %v811, %v941
        %v961 = vmul.f32 %v812, %v941
        %v962 = vmul.f32 %v813, %v941
        %v963 = vmul.f32 %v814, %v941
        %v964 = vmul.f32 %v815, %v941
        %v965 = vmul.f32 %v816, %v941
        %v966 = vmul.f32 %v817, %v941
        %v967 = vmul.f32 %v818, %v941
        %v968 = vmul.f32 %v819, %v941
        %v969 = vmul.f32 %v820, %v941
        %v970 = vmul.f32 %v821, %v941
        %v971 = vmul.f32 %v822, %v941
        %v972 = vmul.f32 %v823, %v941
        %v973 = vmul.f32 %v824, %v941
        %v974 = vld [vmem:[%s3] sm:$0x1]
        %v976 = vperm.slane %v974, 0
        %v978 = vmul.f32 %v942, %v976
        %v979 = vmul.f32 %v943, %v976
        %v980 = vmul.f32 %v944, %v976
        %v981 = vmul.f32 %v945, %v976
        %v982 = vmul.f32 %v946, %v976
        %v983 = vmul.f32 %v947, %v976
        %v984 = vmul.f32 %v948, %v976
        %v985 = vmul.f32 %v949, %v976
        %v986 = vmul.f32 %v950, %v976
        %v987 = vmul.f32 %v951, %v976
        %v988 = vmul.f32 %v952, %v976
        %v989 = vmul.f32 %v953, %v976
        %v990 = vmul.f32 %v954, %v976
        %v991 = vmul.f32 %v955, %v976
        %v992 = vmul.f32 %v956, %v976
        %v993 = vmul.f32 %v957, %v976
        %v994 = vmul.f32 %v958, %v976
        %v995 = vmul.f32 %v959, %v976
        %v996 = vmul.f32 %v960, %v976
        %v997 = vmul.f32 %v961, %v976
        %v998 = vmul.f32 %v962, %v976
        %v999 = vmul.f32 %v963, %v976
        %v1000 = vmul.f32 %v964, %v976
        %v1001 = vmul.f32 %v965, %v976
        %v1002 = vmul.f32 %v966, %v976
        %v1003 = vmul.f32 %v967, %v976
        %v1004 = vmul.f32 %v968, %v976
        %v1005 = vmul.f32 %v969, %v976
        %v1006 = vmul.f32 %v970, %v976
        %v1007 = vmul.f32 %v971, %v976
        %v1008 = vmul.f32 %v972, %v976
        %v1009 = vmul.f32 %v973, %v976
        %v1010 = vld [vmem:[%s4] sm:$0x1]
        %v1012 = vperm.slane %v1010, 0
        %v1014 = vadd.f32 %v978, %v1012
        %v1015 = vadd.f32 %v979, %v1012
        %v1016 = vadd.f32 %v980, %v1012
        %v1017 = vadd.f32 %v981, %v1012
        %v1018 = vadd.f32 %v982, %v1012
        %v1019 = vadd.f32 %v983, %v1012
        %v1020 = vadd.f32 %v984, %v1012
        %v1021 = vadd.f32 %v985, %v1012
        %v1022 = vadd.f32 %v986, %v1012
        %v1023 = vadd.f32 %v987, %v1012
        %v1024 = vadd.f32 %v988, %v1012
        %v1025 = vadd.f32 %v989, %v1012
        %v1026 = vadd.f32 %v990, %v1012
        %v1027 = vadd.f32 %v991, %v1012
        %v1028 = vadd.f32 %v992, %v1012
        %v1029 = vadd.f32 %v993, %v1012
        %v1030 = vadd.f32 %v994, %v1012
        %v1031 = vadd.f32 %v995, %v1012
        %v1032 = vadd.f32 %v996, %v1012
        %v1033 = vadd.f32 %v997, %v1012
        %v1034 = vadd.f32 %v998, %v1012
        %v1035 = vadd.f32 %v999, %v1012
        %v1036 = vadd.f32 %v1000, %v1012
        %v1037 = vadd.f32 %v1001, %v1012
        %v1038 = vadd.f32 %v1002, %v1012
        %v1039 = vadd.f32 %v1003, %v1012
        %v1040 = vadd.f32 %v1004, %v1012
        %v1041 = vadd.f32 %v1005, %v1012
        %v1042 = vadd.f32 %v1006, %v1012
        %v1043 = vadd.f32 %v1007, %v1012
        %v1044 = vadd.f32 %v1008, %v1012
        %v1045 = vadd.f32 %v1009, %v1012
        %v1046 = vld [vmem:[%s5] sm:$0xff]
        %v1047 = vld [vmem:[%s5 + $0x8] sm:$0xff]
        %v1048 = vld [vmem:[%s5 + $0x10] sm:$0xff]
        %v1049 = vld [vmem:[%s5 + $0x18] sm:$0xff]
        %v1050 = vld [vmem:[%s6] sm:$0x1]
        %v1052 = vperm.slane %v1050, 0
        %v1055 = vsel %vm711, %v1014, 0
        %v1058 = vsel %vm711, %v1015, 0
        %v1061 = vsel %vm711, %v1016, 0
        %v1064 = vsel %vm711, %v1017, 0
        %v1067 = vsel %vm711, %v1018, 0
        %v1070 = vsel %vm711, %v1019, 0
        %v1073 = vsel %vm711, %v1020, 0
        %v1076 = vsel %vm711, %v1021, 0
        %v1079 = vsel %vm711, %v1022, 0
        %v1082 = vsel %vm711, %v1023, 0
        %v1085 = vsel %vm711, %v1024, 0
        %v1088 = vsel %vm711, %v1025, 0
        %v1091 = vsel %vm711, %v1026, 0
        %v1094 = vsel %vm711, %v1027, 0
        %v1097 = vsel %vm711, %v1028, 0
        %v1100 = vsel %vm711, %v1029, 0
        %v1103 = vsel %vm711, %v1030, 0
        %v1106 = vsel %vm711, %v1031, 0
        %v1109 = vsel %vm711, %v1032, 0
        %v1112 = vsel %vm711, %v1033, 0
        %v1115 = vsel %vm711, %v1034, 0
        %v1118 = vsel %vm711, %v1035, 0
        %v1121 = vsel %vm711, %v1036, 0
        %v1124 = vsel %vm711, %v1037, 0
        %v1127 = vsel %vm711, %v1038, 0
        %v1130 = vsel %vm711, %v1039, 0
        %v1133 = vsel %vm711, %v1040, 0
        %v1136 = vsel %vm711, %v1041, 0
        %v1139 = vsel %vm711, %v1042, 0
        %v1142 = vsel %vm711, %v1043, 0
        %v1145 = vsel %vm711, %v1044, 0
        %v1148 = vsel %vm711, %v1045, 0
        %1150 = vmatpush.msra.mxu0 0.0
        %1151 = vmatpush.msra.mxu0 0.0
        %1152 = vmatpush.msra.mxu0 0.0
        %1153 = vmatpush.msra.mxu0 0.0
        %1154 = vmatpush.msra.mxu0 0.0
        %1155 = vmatpush.msra.mxu0 0.0
        %1156 = vmatpush.msra.mxu0 0.0
        %1157 = vmatpush.msra.mxu0 0.0
        %1158 = vmatpush.msra.mxu0 0.0
        %1159 = vmatpush.msra.mxu0 0.0
        %1160 = vmatpush.msra.mxu0 0.0
        %1161 = vmatpush.msra.mxu0 0.0
        %1162 = vmatpush.msra.mxu0 %v1049
        %1163 = vmatpush.msra.mxu0 %v1048
        %1164 = vmatpush.msra.mxu0 %v1047
        %1165 = vmatpush.msra.mxu0 %v1046
        %1166 = vmatmul.f32.gmra.mxu0 %v1055
        %v1167 = vpop.f32.mrf.mxu0
        %v1168 = vadd.f32 %v1052, %v1167
        %1169 = vmatmul.f32.gmra.mxu0 %v1058
        %v1170 = vpop.f32.mrf.mxu0
        %v1171 = vadd.f32 %v1052, %v1170
        %1172 = vmatmul.f32.gmra.mxu0 %v1061
        %v1173 = vpop.f32.mrf.mxu0
        %v1174 = vadd.f32 %v1052, %v1173
        %1175 = vmatmul.f32.gmra.mxu0 %v1064
        %v1176 = vpop.f32.mrf.mxu0
        %v1177 = vadd.f32 %v1052, %v1176
        %1178 = vmatmul.f32.gmra.mxu0 %v1067
        %v1179 = vpop.f32.mrf.mxu0
        %v1180 = vadd.f32 %v1052, %v1179
        %1181 = vmatmul.f32.gmra.mxu0 %v1070
        %v1182 = vpop.f32.mrf.mxu0
        %v1183 = vadd.f32 %v1052, %v1182
        %1184 = vmatmul.f32.gmra.mxu0 %v1073
        %v1185 = vpop.f32.mrf.mxu0
        %v1186 = vadd.f32 %v1052, %v1185
        %1187 = vmatmul.f32.gmra.mxu0 %v1076
        %v1188 = vpop.f32.mrf.mxu0
        %v1189 = vadd.f32 %v1052, %v1188
        %1190 = vmatmul.f32.gmra.mxu0 %v1079
        %v1191 = vpop.f32.mrf.mxu0
        %v1192 = vadd.f32 %v1052, %v1191
        %1193 = vmatmul.f32.gmra.mxu0 %v1082
        %v1194 = vpop.f32.mrf.mxu0
        %v1195 = vadd.f32 %v1052, %v1194
        %1196 = vmatmul.f32.gmra.mxu0 %v1085
        %v1197 = vpop.f32.mrf.mxu0
        %v1198 = vadd.f32 %v1052, %v1197
        %1199 = vmatmul.f32.gmra.mxu0 %v1088
        %v1200 = vpop.f32.mrf.mxu0
        %v1201 = vadd.f32 %v1052, %v1200
        %1202 = vmatmul.f32.gmra.mxu0 %v1091
        %v1203 = vpop.f32.mrf.mxu0
        %v1204 = vadd.f32 %v1052, %v1203
        %1205 = vmatmul.f32.gmra.mxu0 %v1094
        %v1206 = vpop.f32.mrf.mxu0
        %v1207 = vadd.f32 %v1052, %v1206
        %1208 = vmatmul.f32.gmra.mxu0 %v1097
        %v1209 = vpop.f32.mrf.mxu0
        %v1210 = vadd.f32 %v1052, %v1209
        %1211 = vmatmul.f32.gmra.mxu0 %v1100
        %v1212 = vpop.f32.mrf.mxu0
        %v1213 = vadd.f32 %v1052, %v1212
        %1214 = vmatmul.f32.gmra.mxu0 %v1103
        %v1215 = vpop.f32.mrf.mxu0
        %v1216 = vadd.f32 %v1052, %v1215
        %1217 = vmatmul.f32.gmra.mxu0 %v1106
        %v1218 = vpop.f32.mrf.mxu0
        %v1219 = vadd.f32 %v1052, %v1218
        %1220 = vmatmul.f32.gmra.mxu0 %v1109
        %v1221 = vpop.f32.mrf.mxu0
        %v1222 = vadd.f32 %v1052, %v1221
        %1223 = vmatmul.f32.gmra.mxu0 %v1112
        %v1224 = vpop.f32.mrf.mxu0
        %v1225 = vadd.f32 %v1052, %v1224
        %1226 = vmatmul.f32.gmra.mxu0 %v1115
        %v1227 = vpop.f32.mrf.mxu0
        %v1228 = vadd.f32 %v1052, %v1227
        %1229 = vmatmul.f32.gmra.mxu0 %v1118
        %v1230 = vpop.f32.mrf.mxu0
        %v1231 = vadd.f32 %v1052, %v1230
        %1232 = vmatmul.f32.gmra.mxu0 %v1121
        %v1233 = vpop.f32.mrf.mxu0
        %v1234 = vadd.f32 %v1052, %v1233
        %1235 = vmatmul.f32.gmra.mxu0 %v1124
        %v1236 = vpop.f32.mrf.mxu0
        %v1237 = vadd.f32 %v1052, %v1236
        %1238 = vmatmul.f32.gmra.mxu0 %v1127
        %v1239 = vpop.f32.mrf.mxu0
        %v1240 = vadd.f32 %v1052, %v1239
        %1241 = vmatmul.f32.gmra.mxu0 %v1130
        %v1242 = vpop.f32.mrf.mxu0
        %v1243 = vadd.f32 %v1052, %v1242
        %1244 = vmatmul.f32.gmra.mxu0 %v1133
        %v1245 = vpop.f32.mrf.mxu0
        %v1246 = vadd.f32 %v1052, %v1245
        %1247 = vmatmul.f32.gmra.mxu0 %v1136
        %v1248 = vpop.f32.mrf.mxu0
        %v1249 = vadd.f32 %v1052, %v1248
        %1250 = vmatmul.f32.gmra.mxu0 %v1139
        %v1251 = vpop.f32.mrf.mxu0
        %v1252 = vadd.f32 %v1052, %v1251
        %1253 = vmatmul.f32.gmra.mxu0 %v1142
        %v1254 = vpop.f32.mrf.mxu0
        %v1255 = vadd.f32 %v1052, %v1254
        %1256 = vmatmul.f32.gmra.mxu0 %v1145
        %v1257 = vpop.f32.mrf.mxu0
        %v1258 = vadd.f32 %v1052, %v1257
        %1259 = vmatmul.f32.gmra.mxu0 %v1148
        %v1260 = vpop.f32.mrf.mxu0
        %v1261 = vadd.f32 %v1052, %v1260
        %1262 = vdwg.mxu0
        %vm1263 = vcmask 523264
        %1264 = vst.msk [vmem:[#allocation2] sm:$0xff] %vm1263, %v1168
        %1265 = vst.msk [vmem:[#allocation2 + $0x8] sm:$0xff] %vm1263, %v1171
        %1266 = vst.msk [vmem:[#allocation2 + $0x10] sm:$0xff] %vm1263, %v1174
        %1267 = vst.msk [vmem:[#allocation2 + $0x18] sm:$0xff] %vm1263, %v1177
        %1268 = vst.msk [vmem:[#allocation2 + $0x20] sm:$0xff] %vm1263, %v1180
        %1269 = vst.msk [vmem:[#allocation2 + $0x28] sm:$0xff] %vm1263, %v1183
        %1270 = vst.msk [vmem:[#allocation2 + $0x30] sm:$0xff] %vm1263, %v1186
        %1271 = vst.msk [vmem:[#allocation2 + $0x38] sm:$0xff] %vm1263, %v1189
        %1272 = vst.msk [vmem:[#allocation2 + $0x40] sm:$0xff] %vm1263, %v1192
        %1273 = vst.msk [vmem:[#allocation2 + $0x48] sm:$0xff] %vm1263, %v1195
        %1274 = vst.msk [vmem:[#allocation2 + $0x50] sm:$0xff] %vm1263, %v1198
        %1275 = vst.msk [vmem:[#allocation2 + $0x58] sm:$0xff] %vm1263, %v1201
        %1276 = vst.msk [vmem:[#allocation2 + $0x60] sm:$0xff] %vm1263, %v1204
        %1277 = vst.msk [vmem:[#allocation2 + $0x68] sm:$0xff] %vm1263, %v1207
        %1278 = vst.msk [vmem:[#allocation2 + $0x70] sm:$0xff] %vm1263, %v1210
        %1279 = vst.msk [vmem:[#allocation2 + $0x78] sm:$0xff] %vm1263, %v1213
        %1280 = vst.msk [vmem:[#allocation2 + $0x80] sm:$0xff] %vm1263, %v1216
        %1281 = vst.msk [vmem:[#allocation2 + $0x88] sm:$0xff] %vm1263, %v1219
        %1282 = vst.msk [vmem:[#allocation2 + $0x90] sm:$0xff] %vm1263, %v1222
        %1283 = vst.msk [vmem:[#allocation2 + $0x98] sm:$0xff] %vm1263, %v1225
        %1284 = vst.msk [vmem:[#allocation2 + $0xa0] sm:$0xff] %vm1263, %v1228
        %1285 = vst.msk [vmem:[#allocation2 + $0xa8] sm:$0xff] %vm1263, %v1231
        %1286 = vst.msk [vmem:[#allocation2 + $0xb0] sm:$0xff] %vm1263, %v1234
        %1287 = vst.msk [vmem:[#allocation2 + $0xb8] sm:$0xff] %vm1263, %v1237
        %1288 = vst.msk [vmem:[#allocation2 + $0xc0] sm:$0xff] %vm1263, %v1240
        %1289 = vst.msk [vmem:[#allocation2 + $0xc8] sm:$0xff] %vm1263, %v1243
        %1290 = vst.msk [vmem:[#allocation2 + $0xd0] sm:$0xff] %vm1263, %v1246
        %1291 = vst.msk [vmem:[#allocation2 + $0xd8] sm:$0xff] %vm1263, %v1249
        %1292 = vst.msk [vmem:[#allocation2 + $0xe0] sm:$0xff] %vm1263, %v1252
        %1293 = vst.msk [vmem:[#allocation2 + $0xe8] sm:$0xff] %vm1263, %v1255
        %1294 = vst.msk [vmem:[#allocation2 + $0xf0] sm:$0xff] %vm1263, %v1258
        %1295 = vst.msk [vmem:[#allocation2 + $0xf8] sm:$0xff] %vm1263, %v1261
        %s1296 = sld [smem:[#allocation4]]
        %s1297 = sld [smem:[#allocation5]]
        %v1298 = vld [vmem:[%s7] sm:$0xf]
        %v1299 = vld [vmem:[%s8] sm:$0xff]
        %v1300 = vld [vmem:[%s8 + $0x8] sm:$0xff]
        %v1301 = vld [vmem:[%s8 + $0x10] sm:$0xff]
        %v1302 = vld [vmem:[%s8 + $0x18] sm:$0xff]
        %v1303 = vld [vmem:[%s9] sm:$0xf]
        %v1304 = vld [vmem:[%s10] sm:$0xff]
        %v1305 = vld [vmem:[%s10 + $0x8] sm:$0xff]
        %v1306 = vlaneseq
        %v1307 = vshrl.u32 %v1306, 7
        %v1308 = vld [vmem:[#allocation2] sm:$0xff]
        %v1309 = vld [vmem:[#allocation2 + $0x10] sm:$0xff]
        %v1310 = vld [vmem:[#allocation2 + $0x20] sm:$0xff]
        %v1311 = vld [vmem:[#allocation2 + $0x30] sm:$0xff]
        %v1312 = vld [vmem:[#allocation2 + $0x40] sm:$0xff]
        %v1313 = vld [vmem:[#allocation2 + $0x50] sm:$0xff]
        %v1314 = vld [vmem:[#allocation2 + $0x60] sm:$0xff]
        %v1315 = vld [vmem:[#allocation2 + $0x70] sm:$0xff]
        %v1317 = vsel %vm1263, %v1298, 0
        %1319 = vmatpush.msra.mxu0 0.0
        %1320 = vmatpush.msra.mxu0 0.0
        %1321 = vmatpush.msra.mxu0 0.0
        %1322 = vmatpush.msra.mxu0 0.0
        %1323 = vmatpush.msra.mxu0 0.0
        %1324 = vmatpush.msra.mxu0 0.0
        %1325 = vmatpush.msra.mxu0 0.0
        %1326 = vmatpush.msra.mxu0 0.0
        %1327 = vmatpush.msra.mxu0 %v1315
        %1328 = vmatpush.msra.mxu0 %v1314
        %1329 = vmatpush.msra.mxu0 %v1313
        %1330 = vmatpush.msra.mxu0 %v1312
        %1331 = vmatpush.msra.mxu0 %v1311
        %1332 = vmatpush.msra.mxu0 %v1310
        %1333 = vmatpush.msra.mxu0 %v1309
        %1334 = vmatpush.msra.mxu0 %v1308
        %1335 = vmatmul.f32.gmra.mxu0 %v1317
        %v1336 = vpop.f32.mrf.mxu0
        %v1337 = vadd.f32 0.0, %v1336
        %1338 = vdwg.mxu0
        %v1339 = vmul.f32 %v1337, %v1337
        %v1341 = vsel %vm711, %v1339, 0
        %1343 = vmatpush.msra.mxu0 0.0
        %1344 = vmatpush.msra.mxu0 0.0
        %1345 = vmatpush.msra.mxu0 0.0
        %1346 = vmatpush.msra.mxu0 0.0
        %1347 = vmatpush.msra.mxu0 0.0
        %1348 = vmatpush.msra.mxu0 0.0
        %1349 = vmatpush.msra.mxu0 0.0
        %1350 = vmatpush.msra.mxu0 0.0
        %1351 = vmatpush.msra.mxu0 0.0
        %1352 = vmatpush.msra.mxu0 0.0
        %1353 = vmatpush.msra.mxu0 0.0
        %1354 = vmatpush.msra.mxu0 0.0
        %1355 = vmatpush.msra.mxu0 %v1302
        %1356 = vmatpush.msra.mxu0 %v1301
        %1357 = vmatpush.msra.mxu0 %v1300
        %1358 = vmatpush.msra.mxu0 %v1299
        %1359 = vmatmul.f32.gmra.mxu0 %v1341
        %v1360 = vpop.f32.mrf.mxu0
        %v1361 = vadd.f32 0.0, %v1360
        %1362 = vdwg.mxu0
        %v1363 = vmax.f32 %v1361, 1e-24
        %v1364 = vrsqrt.pop %v1363
        %v1365 = vmul.f32 %v1364, %v1363
        %v1366 = vmul.f32 %v1365, %v1364
        %v1367 = vmul.f32 0.5, %v1366
        %v1368 = vsub.f32 1.5, %v1367
        %v1369 = vmul.f32 %v1364, %v1368
        %vm1370 = vweird.f32 %v1363
        %vm1371 = vweird.f32 %v1364
        %vm1372 = vmor %vm1370, %vm1371
        %v1373 = vsel %vm1372, %v1364, %v1369
        %v1374 = vmul.f32 %v1308, %v1308
        %v1375 = vmul.f32 %v1309, %v1309
        %v1376 = vmul.f32 %v1310, %v1310
        %v1377 = vmul.f32 %v1311, %v1311
        %v1378 = vmul.f32 %v1312, %v1312
        %v1379 = vmul.f32 %v1313, %v1313
        %v1380 = vmul.f32 %v1314, %v1314
        %v1381 = vmul.f32 %v1315, %v1315
        %v1383 = vsel %vm711, %v1374, 0
        %v1386 = vsel %vm711, %v1375, 0
        %v1389 = vsel %vm711, %v1376, 0
        %v1392 = vsel %vm711, %v1377, 0
        %v1395 = vsel %vm711, %v1378, 0
        %v1398 = vsel %vm711, %v1379, 0
        %v1401 = vsel %vm711, %v1380, 0
        %v1404 = vsel %vm711, %v1381, 0
        %1406 = vmatpush.msra.mxu0 0.0
        %1407 = vmatpush.msra.mxu0 0.0
        %1408 = vmatpush.msra.mxu0 0.0
        %1409 = vmatpush.msra.mxu0 0.0
        %1410 = vmatpush.msra.mxu0 0.0
        %1411 = vmatpush.msra.mxu0 0.0
        %1412 = vmatpush.msra.mxu0 0.0
        %1413 = vmatpush.msra.mxu0 0.0
        %1414 = vmatpush.msra.mxu0 0.0
        %1415 = vmatpush.msra.mxu0 0.0
        %1416 = vmatpush.msra.mxu0 0.0
        %1417 = vmatpush.msra.mxu0 0.0
        %1418 = vmatpush.msra.mxu0 %v1302
        %1419 = vmatpush.msra.mxu0 %v1301
        %1420 = vmatpush.msra.mxu0 %v1300
        %1421 = vmatpush.msra.mxu0 %v1299
        %1422 = vmatmul.f32.gmra.mxu0 %v1383
        %v1423 = vpop.f32.mrf.mxu0
        %v1424 = vadd.f32 0.0, %v1423
        %1425 = vmatmul.f32.gmra.mxu0 %v1386
        %v1426 = vpop.f32.mrf.mxu0
        %v1427 = vadd.f32 0.0, %v1426
        %1428 = vmatmul.f32.gmra.mxu0 %v1389
        %v1429 = vpop.f32.mrf.mxu0
        %v1430 = vadd.f32 0.0, %v1429
        %1431 = vmatmul.f32.gmra.mxu0 %v1392
        %v1432 = vpop.f32.mrf.mxu0
        %v1433 = vadd.f32 0.0, %v1432
        %1434 = vmatmul.f32.gmra.mxu0 %v1395
        %v1435 = vpop.f32.mrf.mxu0
        %v1436 = vadd.f32 0.0, %v1435
        %1437 = vmatmul.f32.gmra.mxu0 %v1398
        %v1438 = vpop.f32.mrf.mxu0
        %v1439 = vadd.f32 0.0, %v1438
        %1440 = vmatmul.f32.gmra.mxu0 %v1401
        %v1441 = vpop.f32.mrf.mxu0
        %v1442 = vadd.f32 0.0, %v1441
        %1443 = vmatmul.f32.gmra.mxu0 %v1404
        %v1444 = vpop.f32.mrf.mxu0
        %v1445 = vadd.f32 0.0, %v1444
        %1446 = vdwg.mxu0
        %v1447 = vmax.f32 %v1424, 1e-24
        %v1448 = vmax.f32 %v1427, 1e-24
        %v1449 = vmax.f32 %v1430, 1e-24
        %v1450 = vmax.f32 %v1433, 1e-24
        %v1451 = vmax.f32 %v1436, 1e-24
        %v1452 = vmax.f32 %v1439, 1e-24
        %v1453 = vmax.f32 %v1442, 1e-24
        %v1454 = vmax.f32 %v1445, 1e-24
        %v1455 = vrsqrt.pop %v1447
        %v1456 = vmul.f32 %v1455, %v1447
        %v1457 = vmul.f32 %v1456, %v1455
        %v1458 = vmul.f32 0.5, %v1457
        %v1459 = vsub.f32 1.5, %v1458
        %v1460 = vmul.f32 %v1455, %v1459
        %vm1461 = vweird.f32 %v1447
        %vm1462 = vweird.f32 %v1455
        %vm1463 = vmor %vm1461, %vm1462
        %v1464 = vsel %vm1463, %v1455, %v1460
        %v1465 = vrsqrt.pop %v1448
        %v1466 = vmul.f32 %v1465, %v1448
        %v1467 = vmul.f32 %v1466, %v1465
        %v1468 = vmul.f32 0.5, %v1467
        %v1469 = vsub.f32 1.5, %v1468
        %v1470 = vmul.f32 %v1465, %v1469
        %vm1471 = vweird.f32 %v1448
        %vm1472 = vweird.f32 %v1465
        %vm1473 = vmor %vm1471, %vm1472
        %v1474 = vsel %vm1473, %v1465, %v1470
        %v1475 = vrsqrt.pop %v1449
        %v1476 = vmul.f32 %v1475, %v1449
        %v1477 = vmul.f32 %v1476, %v1475
        %v1478 = vmul.f32 0.5, %v1477
        %v1479 = vsub.f32 1.5, %v1478
        %v1480 = vmul.f32 %v1475, %v1479
        %vm1481 = vweird.f32 %v1449
        %vm1482 = vweird.f32 %v1475
        %vm1483 = vmor %vm1481, %vm1482
        %v1484 = vsel %vm1483, %v1475, %v1480
        %v1485 = vrsqrt.pop %v1450
        %v1486 = vmul.f32 %v1485, %v1450
        %v1487 = vmul.f32 %v1486, %v1485
        %v1488 = vmul.f32 0.5, %v1487
        %v1489 = vsub.f32 1.5, %v1488
        %v1490 = vmul.f32 %v1485, %v1489
        %vm1491 = vweird.f32 %v1450
        %vm1492 = vweird.f32 %v1485
        %vm1493 = vmor %vm1491, %vm1492
        %v1494 = vsel %vm1493, %v1485, %v1490
        %v1495 = vrsqrt.pop %v1451
        %v1496 = vmul.f32 %v1495, %v1451
        %v1497 = vmul.f32 %v1496, %v1495
        %v1498 = vmul.f32 0.5, %v1497
        %v1499 = vsub.f32 1.5, %v1498
        %v1500 = vmul.f32 %v1495, %v1499
        %vm1501 = vweird.f32 %v1451
        %vm1502 = vweird.f32 %v1495
        %vm1503 = vmor %vm1501, %vm1502
        %v1504 = vsel %vm1503, %v1495, %v1500
        %v1505 = vrsqrt.pop %v1452
        %v1506 = vmul.f32 %v1505, %v1452
        %v1507 = vmul.f32 %v1506, %v1505
        %v1508 = vmul.f32 0.5, %v1507
        %v1509 = vsub.f32 1.5, %v1508
        %v1510 = vmul.f32 %v1505, %v1509
        %vm1511 = vweird.f32 %v1452
        %vm1512 = vweird.f32 %v1505
        %vm1513 = vmor %vm1511, %vm1512
        %v1514 = vsel %vm1513, %v1505, %v1510
        %v1515 = vrsqrt.pop %v1453
        %v1516 = vmul.f32 %v1515, %v1453
        %v1517 = vmul.f32 %v1516, %v1515
        %v1518 = vmul.f32 0.5, %v1517
        %v1519 = vsub.f32 1.5, %v1518
        %v1520 = vmul.f32 %v1515, %v1519
        %vm1521 = vweird.f32 %v1453
        %vm1522 = vweird.f32 %v1515
        %vm1523 = vmor %vm1521, %vm1522
        %v1524 = vsel %vm1523, %v1515, %v1520
        %v1525 = vrsqrt.pop %v1454
        %v1526 = vmul.f32 %v1525, %v1454
        %v1527 = vmul.f32 %v1526, %v1525
        %v1528 = vmul.f32 0.5, %v1527
        %v1529 = vsub.f32 1.5, %v1528
        %v1530 = vmul.f32 %v1525, %v1529
        %vm1531 = vweird.f32 %v1454
        %vm1532 = vweird.f32 %v1525
        %vm1533 = vmor %vm1531, %vm1532
        %v1534 = vsel %vm1533, %v1525, %v1530
        %vm1535 = vcmask 31744
        %v1537 = vsel %vm1535, %v1373, 0
        %vm1539 = vcmask 1043456
        %v1541 = vsel %vm1539, %v1303, 0
        %1543 = vmatpush.msra.mxu0 0.0
        %1544 = vmatpush.msra.mxu0 0.0
        %1545 = vmatpush.msra.mxu0 0.0
        %1546 = vmatpush.msra.mxu0 0.0
        %1547 = vmatpush.msra.mxu0 0.0
        %1548 = vmatpush.msra.mxu0 0.0
        %1549 = vmatpush.msra.mxu0 0.0
        %1550 = vmatpush.msra.mxu0 0.0
        %1551 = vmatpush.msra.mxu0 0.0
        %1552 = vmatpush.msra.mxu0 0.0
        %1553 = vmatpush.msra.mxu0 0.0
        %1554 = vmatpush.msra.mxu0 0.0
        %1555 = vmatpush.msra.mxu0 0.0
        %1556 = vmatpush.msra.mxu0 0.0
        %1557 = vmatpush.msra.mxu0 0.0
        %1558 = vmatpush.msra.mxu0 %v1541
        %1559 = vmatmul.f32.gmra.mxu0 %v1537
        %v1560 = vpop.f32.mrf.mxu0
        %v1561 = vadd.f32 0.0, %v1560
        %1562 = vdwg.mxu0
        %v1563 = vmul.f32 %v1337, %v1561
        %v1565 = vsel %vm1535, %v1464, 0
        %v1568 = vsel %vm1535, %v1474, 0
        %v1571 = vsel %vm1535, %v1484, 0
        %v1574 = vsel %vm1535, %v1494, 0
        %v1577 = vsel %vm1535, %v1504, 0
        %v1580 = vsel %vm1535, %v1514, 0
        %v1583 = vsel %vm1535, %v1524, 0
        %v1586 = vsel %vm1535, %v1534, 0
        %1588 = vmatpush.msra.mxu0 0.0
        %1589 = vmatpush.msra.mxu0 0.0
        %1590 = vmatpush.msra.mxu0 0.0
        %1591 = vmatpush.msra.mxu0 0.0
        %1592 = vmatpush.msra.mxu0 0.0
        %1593 = vmatpush.msra.mxu0 0.0
        %1594 = vmatpush.msra.mxu0 0.0
        %1595 = vmatpush.msra.mxu0 0.0
        %1596 = vmatpush.msra.mxu0 0.0
        %1597 = vmatpush.msra.mxu0 0.0
        %1598 = vmatpush.msra.mxu0 0.0
        %1599 = vmatpush.msra.mxu0 0.0
        %1600 = vmatpush.msra.mxu0 0.0
        %1601 = vmatpush.msra.mxu0 0.0
        %1602 = vmatpush.msra.mxu0 0.0
        %1603 = vmatpush.msra.mxu0 %v1541
        %1604 = vmatmul.f32.gmra.mxu0 %v1565
        %v1605 = vpop.f32.mrf.mxu0
        %v1606 = vadd.f32 0.0, %v1605
        %1607 = vmatmul.f32.gmra.mxu0 %v1568
        %v1608 = vpop.f32.mrf.mxu0
        %v1609 = vadd.f32 0.0, %v1608
        %1610 = vmatmul.f32.gmra.mxu0 %v1571
        %v1611 = vpop.f32.mrf.mxu0
        %v1612 = vadd.f32 0.0, %v1611
        %1613 = vmatmul.f32.gmra.mxu0 %v1574
        %v1614 = vpop.f32.mrf.mxu0
        %v1615 = vadd.f32 0.0, %v1614
        %1616 = vmatmul.f32.gmra.mxu0 %v1577
        %v1617 = vpop.f32.mrf.mxu0
        %v1618 = vadd.f32 0.0, %v1617
        %1619 = vmatmul.f32.gmra.mxu0 %v1580
        %v1620 = vpop.f32.mrf.mxu0
        %v1621 = vadd.f32 0.0, %v1620
        %1622 = vmatmul.f32.gmra.mxu0 %v1583
        %v1623 = vpop.f32.mrf.mxu0
        %v1624 = vadd.f32 0.0, %v1623
        %1625 = vmatmul.f32.gmra.mxu0 %v1586
        %v1626 = vpop.f32.mrf.mxu0
        %v1627 = vadd.f32 0.0, %v1626
        %1628 = vdwg.mxu0
        %v1629 = vmul.f32 %v1308, %v1606
        %v1630 = vmul.f32 %v1309, %v1609
        %v1631 = vmul.f32 %v1310, %v1612
        %v1632 = vmul.f32 %v1311, %v1615
        %v1633 = vmul.f32 %v1312, %v1618
        %v1634 = vmul.f32 %v1313, %v1621
        %v1635 = vmul.f32 %v1314, %v1624
        %v1636 = vmul.f32 %v1315, %v1627
        %v1638 = vrot.slane %v1563, 4
        %v1640 = vsel %vm1539, %v1563, %v1638
        %v1641 = vmul.f32 %v1640, %v1304
        %v1642 = vmul.f32 %v1640, %v1305
        %v1644 = vsel %vm711, %v1641, 0
        %v1647 = vsel %vm711, %v1642, 0
        %v1650 = vsel %vm711, %v1629, 0
        %v1653 = vsel %vm711, %v1630, 0
        %v1656 = vsel %vm711, %v1631, 0
        %v1659 = vsel %vm711, %v1632, 0
        %v1662 = vsel %vm711, %v1633, 0
        %v1665 = vsel %vm711, %v1634, 0
        %v1668 = vsel %vm711, %v1635, 0
        %v1671 = vsel %vm711, %v1636, 0
        %1673 = vmatpush.xpose.msra.mxu0 0.0
        %1674 = vmatpush.xpose.msra.mxu0 0.0
        %1675 = vmatpush.xpose.msra.mxu0 0.0
        %1676 = vmatpush.xpose.msra.mxu0 0.0
        %1677 = vmatpush.xpose.msra.mxu0 0.0
        %1678 = vmatpush.xpose.msra.mxu0 0.0
        %1679 = vmatpush.xpose.msra.mxu0 0.0
        %1680 = vmatpush.xpose.msra.mxu0 0.0
        %1681 = vmatpush.xpose.msra.mxu0 %v1671
        %1682 = vmatpush.xpose.msra.mxu0 %v1668
        %1683 = vmatpush.xpose.msra.mxu0 %v1665
        %1684 = vmatpush.xpose.msra.mxu0 %v1662
        %1685 = vmatpush.xpose.msra.mxu0 %v1659
        %1686 = vmatpush.xpose.msra.mxu0 %v1656
        %1687 = vmatpush.xpose.msra.mxu0 %v1653
        %1688 = vmatpush.xpose.msra.mxu0 %v1650
        %1689 = vmatmul.f32.gmra.mxu0 %v1644
        %v1690 = vpop.f32.mrf.mxu0
        %v1691 = vadd.f32 0.0, %v1690
        %1692 = vmatmul.f32.gmra.mxu0 %v1647
        %v1693 = vpop.f32.mrf.mxu0
        %v1694 = vadd.f32 0.0, %v1693
        %1695 = vdwg.mxu0
        %v1696 = vstv %s1296
        %v1697 = vmul.f32 %v1696, %v1691
        %v1698 = vmul.f32 %v1696, %v1694
        %v1699 = vstv %s1297
        %v1700 = vadd.f32 %v1699, %v1697
        %v1701 = vadd.f32 %v1699, %v1698
        %v1702 = vxor.u32 %v1700, 2147483648
        %v1703 = vxor.u32 %v1701, 2147483648
        %v1704 = vmul.f32 %v1702, 1.442695
        %v1705 = vpow.pop %v1704
        %v1706 = vmul.f32 %v1703, 1.442695
        %v1707 = vpow.pop %v1706
        %v1708 = vadd.f32 %v1705, 1.0
        %v1709 = vadd.f32 %v1707, 1.0
        %v1710 = vrcp.pop %v1708
        %v1711 = vmul.f32 %v1708, %v1710
        %v1712 = vsub.f32 1.0, %v1711
        %v1713 = vmul.f32 %v1710, %v1712
        %v1714 = vadd.f32 %v1710, %v1713
        %vm1715 = vweird.f32 %v1708
        %vm1716 = vweird.f32 %v1710
        %vm1717 = vmor %vm1715, %vm1716
        %v1718 = vsel %vm1717, %v1710, %v1714
        %v1719 = vand.u32 2147483647, %v1708
        %vm1720 = vcmp.eq.f32.partialorder %v1719, 8.507059e+37
        %v1721 = vand.u32 %v1708, 2147483648
        %v1722 = vor.u32 1.1754944e-38, %v1721
        %v1723 = vsel %vm1720, %v1722, %v1718
        %v1724 = vmul.f32 1.0, %v1723
        %v1725 = vrcp.pop %v1709
        %v1726 = vmul.f32 %v1709, %v1725
        %v1727 = vsub.f32 1.0, %v1726
        %v1728 = vmul.f32 %v1725, %v1727
        %v1729 = vadd.f32 %v1725, %v1728
        %vm1730 = vweird.f32 %v1709
        %vm1731 = vweird.f32 %v1725
        %vm1732 = vmor %vm1730, %vm1731
        %v1733 = vsel %vm1732, %v1725, %v1729
        %v1734 = vand.u32 2147483647, %v1709
        %vm1735 = vcmp.eq.f32.partialorder %v1734, 8.507059e+37
        %v1736 = vand.u32 %v1709, 2147483648
        %v1737 = vor.u32 1.1754944e-38, %v1736
        %v1738 = vsel %vm1735, %v1737, %v1733
        %v1739 = vmul.f32 1.0, %v1738
        %vm1740 = vcmask 519168
        %v1741 = vsel %vm1740, %v1724, -inf
        %v1742 = vrot.slane %v1741, 4
        %v1743 = vmax.f32 %v1741, %v1742
        %v1744 = vrot.slane %v1743, 2
        %v1745 = vmax.f32 %v1743, %v1744
        %v1746 = vrot.slane %v1745, 1
        %v1747 = vmax.f32 %v1745, %v1746
        %vm1748 = vcmp.ge.f32.partialorder %v1724, %v1747
        %v1749 = vsel %vm1748, %v1307, 4
        %v1750 = vsel %vm1740, %v1749, 2147483647
        %v1751 = vrot.slane %v1750, 4
        %vm1752 = vcmp.lt.s32.totalorder %v1750, %v1751
        %v1753 = vsel %vm1752, %v1750, %v1751
        %v1754 = vrot.slane %v1753, 2
        %vm1755 = vcmp.lt.s32.totalorder %v1753, %v1754
        %v1756 = vsel %vm1755, %v1753, %v1754
        %v1757 = vrot.slane %v1756, 1
        %vm1758 = vcmp.lt.s32.totalorder %v1756, %v1757
        %v1759 = vsel %vm1758, %v1756, %v1757
        %vm1760 = vcmp.eq.s32.totalorder %v1307, %v1759
        %v1761 = vsel %vm1760, %v1724, 0.0
        %vm1762 = vcmask 523268
        %v1763 = vsel %vm1762, %v1724, -inf
        %v1764 = vrot.slane %v1763, 4
        %v1765 = vmax.f32 %v1763, %v1764
        %v1766 = vrot.slane %v1765, 2
        %v1767 = vmax.f32 %v1765, %v1766
        %v1768 = vrot.slane %v1767, 1
        %v1769 = vmax.f32 %v1767, %v1768
        %vm1770 = vcmp.ge.f32.partialorder %v1724, %v1769
        %v1771 = vrot.slane %v1307, 4
        %v1772 = vsel %vm1770, %v1771, 4
        %v1773 = vsel %vm1762, %v1772, 2147483647
        %v1774 = vrot.slane %v1773, 4
        %vm1775 = vcmp.lt.s32.totalorder %v1773, %v1774
        %v1776 = vsel %vm1775, %v1773, %v1774
        %v1777 = vrot.slane %v1776, 2
        %vm1778 = vcmp.lt.s32.totalorder %v1776, %v1777
        %v1779 = vsel %vm1778, %v1776, %v1777
        %v1780 = vrot.slane %v1779, 1
        %vm1781 = vcmp.lt.s32.totalorder %v1779, %v1780
        %v1782 = vsel %vm1781, %v1779, %v1780
        %vm1783 = vcmp.eq.s32.totalorder %v1307, %v1782
        %v1785 = vrot.slane %v1724, 4
        %v1787 = vsel %vm1783, %v1785, 0.0
        %v1788 = vsel %vm1740, %v1739, -inf
        %v1789 = vrot.slane %v1788, 4
        %v1790 = vmax.f32 %v1788, %v1789
        %v1791 = vrot.slane %v1790, 2
        %v1792 = vmax.f32 %v1790, %v1791
        %v1793 = vrot.slane %v1792, 1
        %v1794 = vmax.f32 %v1792, %v1793
        %vm1795 = vcmp.ge.f32.partialorder %v1739, %v1794
        %v1796 = vsel %vm1795, %v1307, 4
        %v1797 = vsel %vm1740, %v1796, 2147483647
        %v1798 = vrot.slane %v1797, 4
        %vm1799 = vcmp.lt.s32.totalorder %v1797, %v1798
        %v1800 = vsel %vm1799, %v1797, %v1798
        %v1801 = vrot.slane %v1800, 2
        %vm1802 = vcmp.lt.s32.totalorder %v1800, %v1801
        %v1803 = vsel %vm1802, %v1800, %v1801
        %v1804 = vrot.slane %v1803, 1
        %vm1805 = vcmp.lt.s32.totalorder %v1803, %v1804
        %v1806 = vsel %vm1805, %v1803, %v1804
        %vm1807 = vcmp.eq.s32.totalorder %v1307, %v1806
        %v1808 = vsel %vm1807, %v1739, 0.0
        %v1809 = vsel %vm1762, %v1739, -inf
        %v1810 = vrot.slane %v1809, 4
        %v1811 = vmax.f32 %v1809, %v1810
        %v1812 = vrot.slane %v1811, 2
        %v1813 = vmax.f32 %v1811, %v1812
        %v1814 = vrot.slane %v1813, 1
        %v1815 = vmax.f32 %v1813, %v1814
        %vm1816 = vcmp.ge.f32.partialorder %v1739, %v1815
        %v1817 = vsel %vm1816, %v1771, 4
        %v1818 = vsel %vm1762, %v1817, 2147483647
        %v1819 = vrot.slane %v1818, 4
        %vm1820 = vcmp.lt.s32.totalorder %v1818, %v1819
        %v1821 = vsel %vm1820, %v1818, %v1819
        %v1822 = vrot.slane %v1821, 2
        %vm1823 = vcmp.lt.s32.totalorder %v1821, %v1822
        %v1824 = vsel %vm1823, %v1821, %v1822
        %v1825 = vrot.slane %v1824, 1
        %vm1826 = vcmp.lt.s32.totalorder %v1824, %v1825
        %v1827 = vsel %vm1826, %v1824, %v1825
        %vm1828 = vcmp.eq.s32.totalorder %v1307, %v1827
        %v1830 = vrot.slane %v1739, 4
        %v1832 = vsel %vm1828, %v1830, 0.0
        %v1834 = vrot.slane %v1787, 4
        %v1837 = vrot.slane %v1832, 4
        %v1839 = vsel %vm1539, %v1761, %v1834
        %v1840 = vsel %vm1539, %v1808, %v1837
        %1849 = vrot.lane.b32.xlu0 %v1308, 96
        %v1850 = vpop.permute.xlu0 %1849
        %1851 = vrot.lane.b32.xlu0 %v1309, 96
        %v1852 = vpop.permute.xlu0 %1851
        %1853 = vrot.lane.b32.xlu0 %v1310, 96
        %v1854 = vpop.permute.xlu0 %1853
        %1855 = vrot.lane.b32.xlu0 %v1311, 96
        %v1856 = vpop.permute.xlu0 %1855
        %1857 = vrot.lane.b32.xlu0 %v1312, 96
        %v1858 = vpop.permute.xlu0 %1857
        %1859 = vrot.lane.b32.xlu0 %v1313, 96
        %v1860 = vpop.permute.xlu0 %1859
        %1861 = vrot.lane.b32.xlu0 %v1314, 96
        %v1862 = vpop.permute.xlu0 %1861
        %1863 = vrot.lane.b32.xlu0 %v1315, 96
        %v1864 = vpop.permute.xlu0 %1863
        %v1874 = vsel %vm1263, %v1839, 0
        %v1877 = vsel %vm1263, %v1840, 0
        %1879 = vmatpush.msra.mxu0 0.0
        %1880 = vmatpush.msra.mxu0 0.0
        %1881 = vmatpush.msra.mxu0 0.0
        %1882 = vmatpush.msra.mxu0 0.0
        %1883 = vmatpush.msra.mxu0 0.0
        %1884 = vmatpush.msra.mxu0 0.0
        %1885 = vmatpush.msra.mxu0 0.0
        %1886 = vmatpush.msra.mxu0 0.0
        %1887 = vmatpush.msra.mxu0 %v1864
        %1888 = vmatpush.msra.mxu0 %v1862
        %1889 = vmatpush.msra.mxu0 %v1860
        %1890 = vmatpush.msra.mxu0 %v1858
        %1891 = vmatpush.msra.mxu0 %v1856
        %1892 = vmatpush.msra.mxu0 %v1854
        %1893 = vmatpush.msra.mxu0 %v1852
        %1894 = vmatpush.msra.mxu0 %v1850
        %1895 = vmatmul.f32.gmra.mxu0 %v1874
        %v1896 = vpop.f32.mrf.mxu0
        %v1897 = vadd.f32 0.0, %v1896
        %1898 = vmatmul.f32.gmra.mxu0 %v1877
        %v1899 = vpop.f32.mrf.mxu0
        %v1900 = vadd.f32 0.0, %v1899
        %1901 = vdwg.mxu0
        %v1902 = vmul.f32 %v1897, %v1304
        %v1903 = vmul.f32 %v1900, %v1305
        %v1904 = vsel %vm1263, %v1839, 0.0
        %1905 = vadd.xlane.f32.xlu0 %v1904
        %v1906 = vpop.xlane.xlu0 %1905
        %v1907 = vsel %vm1263, %v1840, 0.0
        %1908 = vadd.xlane.f32.xlu0 %v1907
        %v1909 = vpop.xlane.xlu0 %1908
        %1911 = vrot.lane.b32.xlu0 %v1902, 32
        %v1912 = vpop.permute.xlu0 %1911
        %v1914 = vadd.f32 %v1337, %v1912
        %v1915 = vperm.slane %v1303, 0
        %v1916 = vmul.f32 %v1906, %v1915
        %v1917 = vrot.slane %v1902, 4
        %1918 = vrot.lane.b32.xlu0 %v1917, 32
        %v1919 = vpop.permute.xlu0 %1918
        %v1921 = vadd.f32 %v1914, %v1919
        %v1922 = vperm.slane %v1303, 1
        %v1923 = vmul.f32 %v1906, %v1922
        %v1925 = vrot.slane %v1923, 4
        %v1927 = vadd.f32 %v1916, %v1925
        %1929 = vrot.lane.b32.xlu0 %v1903, 32
        %v1930 = vpop.permute.xlu0 %1929
        %v1932 = vadd.f32 %v1921, %v1930
        %v1933 = vperm.slane %v1303, 2
        %v1934 = vmul.f32 %v1909, %v1933
        %v1935 = vadd.f32 %v1927, %v1934
        %v1936 = vrot.slane %v1903, 4
        %1937 = vrot.lane.b32.xlu0 %v1936, 32
        %v1938 = vpop.permute.xlu0 %1937
        %v1940 = vadd.f32 %v1932, %v1938
        %v1941 = vperm.slane %v1303, 3
        %v1942 = vmul.f32 %v1909, %v1941
        %v1944 = vrot.slane %v1942, 4
        %v1946 = vadd.f32 %v1935, %v1944
        %v1947 = vadd.f32 %v1946, 1.0
        %v1948 = vrcp.pop %v1947
        %1950 = vrot.lane.b32.xlu0 %v1948, 32
        %v1951 = vpop.permute.xlu0 %1950
        %v1953 = vmul.f32 %v1940, %v1951
        %v1955 = vrot.slane %v1953, 4
        %v1957 = vsel %vm1539, %v1953, %v1955
        %1960 = vrot.lane.b32.xlu0 %v1304, 32
        %v1961 = vpop.permute.xlu0 %1960
        %1962 = vrot.lane.b32.xlu0 %v1305, 32
        %v1963 = vpop.permute.xlu0 %1962
        %v1966 = vmul.f32 %v1957, %v1961
        %v1967 = vmul.f32 %v1957, %v1963
        %1968 = vxpose.xlu0.b32.start [1/16] %v1839, 128
        %1969 = vxpose.xlu0.b32.cont [2/16] %v1840, 128
        %1970 = vxpose.xlu0.b32.cont [3/16] 0.0, 128
        %1971 = vxpose.xlu0.b32.cont [4/16] 0.0, 128
        %1972 = vxpose.xlu0.b32.cont [5/16] 0.0, 128
        %1973 = vxpose.xlu0.b32.cont [6/16] 0.0, 128
        %1974 = vxpose.xlu0.b32.cont [7/16] 0.0, 128
        %1975 = vxpose.xlu0.b32.cont [8/16] 0.0, 128
        %1976 = vxpose.xlu0.b32.cont [9/16] 0.0, 128
        %1977 = vxpose.xlu0.b32.cont [10/16] 0.0, 128
        %1978 = vxpose.xlu0.b32.cont [11/16] 0.0, 128
        %1979 = vxpose.xlu0.b32.cont [12/16] 0.0, 128
        %1980 = vxpose.xlu0.b32.cont [13/16] 0.0, 128
        %1981 = vxpose.xlu0.b32.cont [14/16] 0.0, 128
        %1982 = vxpose.xlu0.b32.cont [15/16] 0.0, 128
        %1983 = vxpose.xlu0.b32.end [16/16] 0.0, 128
        %v1984 = vpop.trf.xlu0
        %v1985 = vpop.trf.xlu0
        %v1986 = vpop.trf.xlu0
        %v1987 = vpop.trf.xlu0
        %v1988 = vpop.trf.xlu0
        %v1989 = vpop.trf.xlu0
        %v1990 = vpop.trf.xlu0
        %v1991 = vpop.trf.xlu0
        %v1992 = vpop.trf.xlu0
        %v1993 = vpop.trf.xlu0
        %v1994 = vpop.trf.xlu0
        %v1995 = vpop.trf.xlu0
        %v1996 = vpop.trf.xlu0
        %v1997 = vpop.trf.xlu0
        %v1998 = vpop.trf.xlu0
        %v1999 = vpop.trf.xlu0
        %2002 = vrot.lane.b32.xlu0 %v1966, 96
        %v2003 = vpop.permute.xlu0 %2002
        %2004 = vrot.lane.b32.xlu0 %v1967, 96
        %v2005 = vpop.permute.xlu0 %2004
        %vm2008 = vcmask 130048
        %v2010 = vsel %vm2008, %v1984, 0
        %v2013 = vsel %vm2008, %v1985, 0
        %v2016 = vsel %vm2008, %v1986, 0
        %v2019 = vsel %vm2008, %v1987, 0
        %v2022 = vsel %vm2008, %v1988, 0
        %v2025 = vsel %vm2008, %v1989, 0
        %v2028 = vsel %vm2008, %v1990, 0
        %v2031 = vsel %vm2008, %v1991, 0
        %2033 = vmatpush.msra.mxu0 0.0
        %2034 = vmatpush.msra.mxu0 0.0
        %2035 = vmatpush.msra.mxu0 0.0
        %2036 = vmatpush.msra.mxu0 0.0
        %2037 = vmatpush.msra.mxu0 0.0
        %2038 = vmatpush.msra.mxu0 0.0
        %2039 = vmatpush.msra.mxu0 0.0
        %2040 = vmatpush.msra.mxu0 0.0
        %2041 = vmatpush.msra.mxu0 0.0
        %2042 = vmatpush.msra.mxu0 0.0
        %2043 = vmatpush.msra.mxu0 0.0
        %2044 = vmatpush.msra.mxu0 0.0
        %2045 = vmatpush.msra.mxu0 0.0
        %2046 = vmatpush.msra.mxu0 0.0
        %2047 = vmatpush.msra.mxu0 %v2005
        %2048 = vmatpush.msra.mxu0 %v2003
        %2049 = vmatmul.f32.gmra.mxu0 %v2010
        %v2050 = vpop.f32.mrf.mxu0
        %v2051 = vadd.f32 0.0, %v2050
        %2052 = vmatmul.f32.gmra.mxu0 %v2013
        %v2053 = vpop.f32.mrf.mxu0
        %v2054 = vadd.f32 0.0, %v2053
        %2055 = vmatmul.f32.gmra.mxu0 %v2016
        %v2056 = vpop.f32.mrf.mxu0
        %v2057 = vadd.f32 0.0, %v2056
        %2058 = vmatmul.f32.gmra.mxu0 %v2019
        %v2059 = vpop.f32.mrf.mxu0
        %v2060 = vadd.f32 0.0, %v2059
        %2061 = vmatmul.f32.gmra.mxu0 %v2022
        %v2062 = vpop.f32.mrf.mxu0
        %v2063 = vadd.f32 0.0, %v2062
        %2064 = vmatmul.f32.gmra.mxu0 %v2025
        %v2065 = vpop.f32.mrf.mxu0
        %v2066 = vadd.f32 0.0, %v2065
        %2067 = vmatmul.f32.gmra.mxu0 %v2028
        %v2068 = vpop.f32.mrf.mxu0
        %v2069 = vadd.f32 0.0, %v2068
        %2070 = vmatmul.f32.gmra.mxu0 %v2031
        %v2071 = vpop.f32.mrf.mxu0
        %v2072 = vadd.f32 0.0, %v2071
        %2073 = vdwg.mxu0
        %2074 = vst.msk [vmem:[#allocation3] sm:$0xff] %vm711, %v2051
        %2075 = vst.msk [vmem:[#allocation3 + $0x10] sm:$0xff] %vm711, %v2054
        %2076 = vst.msk [vmem:[#allocation3 + $0x20] sm:$0xff] %vm711, %v2057
        %2077 = vst.msk [vmem:[#allocation3 + $0x30] sm:$0xff] %vm711, %v2060
        %2078 = vst.msk [vmem:[#allocation3 + $0x40] sm:$0xff] %vm711, %v2063
        %2079 = vst.msk [vmem:[#allocation3 + $0x50] sm:$0xff] %vm711, %v2066
        %2080 = vst.msk [vmem:[#allocation3 + $0x60] sm:$0xff] %vm711, %v2069
        %2081 = vst.msk [vmem:[#allocation3 + $0x70] sm:$0xff] %vm711, %v2072
        %v2082 = vld [vmem:[#allocation2 + $0x8] sm:$0xff]
        %v2083 = vld [vmem:[#allocation2 + $0x18] sm:$0xff]
        %v2084 = vld [vmem:[#allocation2 + $0x28] sm:$0xff]
        %v2085 = vld [vmem:[#allocation2 + $0x38] sm:$0xff]
        %v2086 = vld [vmem:[#allocation2 + $0x48] sm:$0xff]
        %v2087 = vld [vmem:[#allocation2 + $0x58] sm:$0xff]
        %v2088 = vld [vmem:[#allocation2 + $0x68] sm:$0xff]
        %v2089 = vld [vmem:[#allocation2 + $0x78] sm:$0xff]
        %2090 = vmatpush.msra.mxu0 0.0
        %2091 = vmatpush.msra.mxu0 0.0
        %2092 = vmatpush.msra.mxu0 0.0
        %2093 = vmatpush.msra.mxu0 0.0
        %2094 = vmatpush.msra.mxu0 0.0
        %2095 = vmatpush.msra.mxu0 0.0
        %2096 = vmatpush.msra.mxu0 0.0
        %2097 = vmatpush.msra.mxu0 0.0
        %2098 = vmatpush.msra.mxu0 %v2089
        %2099 = vmatpush.msra.mxu0 %v2088
        %2100 = vmatpush.msra.mxu0 %v2087
        %2101 = vmatpush.msra.mxu0 %v2086
        %2102 = vmatpush.msra.mxu0 %v2085
        %2103 = vmatpush.msra.mxu0 %v2084
        %2104 = vmatpush.msra.mxu0 %v2083
        %2105 = vmatpush.msra.mxu0 %v2082
        %2106 = vmatmul.f32.gmra.mxu0 %v1317
        %v2107 = vpop.f32.mrf.mxu0
        %v2108 = vadd.f32 0.0, %v2107
        %2109 = vdwg.mxu0
        %v2110 = vmul.f32 %v2108, %v2108
        %v2112 = vsel %vm711, %v2110, 0
        %2114 = vmatpush.msra.mxu0 0.0
        %2115 = vmatpush.msra.mxu0 0.0
        %2116 = vmatpush.msra.mxu0 0.0
        %2117 = vmatpush.msra.mxu0 0.0
        %2118 = vmatpush.msra.mxu0 0.0
        %2119 = vmatpush.msra.mxu0 0.0
        %2120 = vmatpush.msra.mxu0 0.0
        %2121 = vmatpush.msra.mxu0 0.0
        %2122 = vmatpush.msra.mxu0 0.0
        %2123 = vmatpush.msra.mxu0 0.0
        %2124 = vmatpush.msra.mxu0 0.0
        %2125 = vmatpush.msra.mxu0 0.0
        %2126 = vmatpush.msra.mxu0 %v1302
        %2127 = vmatpush.msra.mxu0 %v1301
        %2128 = vmatpush.msra.mxu0 %v1300
        %2129 = vmatpush.msra.mxu0 %v1299
        %2130 = vmatmul.f32.gmra.mxu0 %v2112
        %v2131 = vpop.f32.mrf.mxu0
        %v2132 = vadd.f32 0.0, %v2131
        %2133 = vdwg.mxu0
        %v2134 = vmax.f32 %v2132, 1e-24
        %v2135 = vrsqrt.pop %v2134
        %v2136 = vmul.f32 %v2135, %v2134
        %v2137 = vmul.f32 %v2136, %v2135
        %v2138 = vmul.f32 0.5, %v2137
        %v2139 = vsub.f32 1.5, %v2138
        %v2140 = vmul.f32 %v2135, %v2139
        %vm2141 = vweird.f32 %v2134
        %vm2142 = vweird.f32 %v2135
        %vm2143 = vmor %vm2141, %vm2142
        %v2144 = vsel %vm2143, %v2135, %v2140
        %v2145 = vmul.f32 %v2082, %v2082
        %v2146 = vmul.f32 %v2083, %v2083
        %v2147 = vmul.f32 %v2084, %v2084
        %v2148 = vmul.f32 %v2085, %v2085
        %v2149 = vmul.f32 %v2086, %v2086
        %v2150 = vmul.f32 %v2087, %v2087
        %v2151 = vmul.f32 %v2088, %v2088
        %v2152 = vmul.f32 %v2089, %v2089
        %v2154 = vsel %vm711, %v2145, 0
        %v2157 = vsel %vm711, %v2146, 0
        %v2160 = vsel %vm711, %v2147, 0
        %v2163 = vsel %vm711, %v2148, 0
        %v2166 = vsel %vm711, %v2149, 0
        %v2169 = vsel %vm711, %v2150, 0
        %v2172 = vsel %vm711, %v2151, 0
        %v2175 = vsel %vm711, %v2152, 0
        %2177 = vmatpush.msra.mxu0 0.0
        %2178 = vmatpush.msra.mxu0 0.0
        %2179 = vmatpush.msra.mxu0 0.0
        %2180 = vmatpush.msra.mxu0 0.0
        %2181 = vmatpush.msra.mxu0 0.0
        %2182 = vmatpush.msra.mxu0 0.0
        %2183 = vmatpush.msra.mxu0 0.0
        %2184 = vmatpush.msra.mxu0 0.0
        %2185 = vmatpush.msra.mxu0 0.0
        %2186 = vmatpush.msra.mxu0 0.0
        %2187 = vmatpush.msra.mxu0 0.0
        %2188 = vmatpush.msra.mxu0 0.0
        %2189 = vmatpush.msra.mxu0 %v1302
        %2190 = vmatpush.msra.mxu0 %v1301
        %2191 = vmatpush.msra.mxu0 %v1300
        %2192 = vmatpush.msra.mxu0 %v1299
        %2193 = vmatmul.f32.gmra.mxu0 %v2154
        %v2194 = vpop.f32.mrf.mxu0
        %v2195 = vadd.f32 0.0, %v2194
        %2196 = vmatmul.f32.gmra.mxu0 %v2157
        %v2197 = vpop.f32.mrf.mxu0
        %v2198 = vadd.f32 0.0, %v2197
        %2199 = vmatmul.f32.gmra.mxu0 %v2160
        %v2200 = vpop.f32.mrf.mxu0
        %v2201 = vadd.f32 0.0, %v2200
        %2202 = vmatmul.f32.gmra.mxu0 %v2163
        %v2203 = vpop.f32.mrf.mxu0
        %v2204 = vadd.f32 0.0, %v2203
        %2205 = vmatmul.f32.gmra.mxu0 %v2166
        %v2206 = vpop.f32.mrf.mxu0
        %v2207 = vadd.f32 0.0, %v2206
        %2208 = vmatmul.f32.gmra.mxu0 %v2169
        %v2209 = vpop.f32.mrf.mxu0
        %v2210 = vadd.f32 0.0, %v2209
        %2211 = vmatmul.f32.gmra.mxu0 %v2172
        %v2212 = vpop.f32.mrf.mxu0
        %v2213 = vadd.f32 0.0, %v2212
        %2214 = vmatmul.f32.gmra.mxu0 %v2175
        %v2215 = vpop.f32.mrf.mxu0
        %v2216 = vadd.f32 0.0, %v2215
        %2217 = vdwg.mxu0
        %v2218 = vmax.f32 %v2195, 1e-24
        %v2219 = vmax.f32 %v2198, 1e-24
        %v2220 = vmax.f32 %v2201, 1e-24
        %v2221 = vmax.f32 %v2204, 1e-24
        %v2222 = vmax.f32 %v2207, 1e-24
        %v2223 = vmax.f32 %v2210, 1e-24
        %v2224 = vmax.f32 %v2213, 1e-24
        %v2225 = vmax.f32 %v2216, 1e-24
        %v2226 = vrsqrt.pop %v2218
        %v2227 = vmul.f32 %v2226, %v2218
        %v2228 = vmul.f32 %v2227, %v2226
        %v2229 = vmul.f32 0.5, %v2228
        %v2230 = vsub.f32 1.5, %v2229
        %v2231 = vmul.f32 %v2226, %v2230
        %vm2232 = vweird.f32 %v2218
        %vm2233 = vweird.f32 %v2226
        %vm2234 = vmor %vm2232, %vm2233
        %v2235 = vsel %vm2234, %v2226, %v2231
        %v2236 = vrsqrt.pop %v2219
        %v2237 = vmul.f32 %v2236, %v2219
        %v2238 = vmul.f32 %v2237, %v2236
        %v2239 = vmul.f32 0.5, %v2238
        %v2240 = vsub.f32 1.5, %v2239
        %v2241 = vmul.f32 %v2236, %v2240
        %vm2242 = vweird.f32 %v2219
        %vm2243 = vweird.f32 %v2236
        %vm2244 = vmor %vm2242, %vm2243
        %v2245 = vsel %vm2244, %v2236, %v2241
        %v2246 = vrsqrt.pop %v2220
        %v2247 = vmul.f32 %v2246, %v2220
        %v2248 = vmul.f32 %v2247, %v2246
        %v2249 = vmul.f32 0.5, %v2248
        %v2250 = vsub.f32 1.5, %v2249
        %v2251 = vmul.f32 %v2246, %v2250
        %vm2252 = vweird.f32 %v2220
        %vm2253 = vweird.f32 %v2246
        %vm2254 = vmor %vm2252, %vm2253
        %v2255 = vsel %vm2254, %v2246, %v2251
        %v2256 = vrsqrt.pop %v2221
        %v2257 = vmul.f32 %v2256, %v2221
        %v2258 = vmul.f32 %v2257, %v2256
        %v2259 = vmul.f32 0.5, %v2258
        %v2260 = vsub.f32 1.5, %v2259
        %v2261 = vmul.f32 %v2256, %v2260
        %vm2262 = vweird.f32 %v2221
        %vm2263 = vweird.f32 %v2256
        %vm2264 = vmor %vm2262, %vm2263
        %v2265 = vsel %vm2264, %v2256, %v2261
        %v2266 = vrsqrt.pop %v2222
        %v2267 = vmul.f32 %v2266, %v2222
        %v2268 = vmul.f32 %v2267, %v2266
        %v2269 = vmul.f32 0.5, %v2268
        %v2270 = vsub.f32 1.5, %v2269
        %v2271 = vmul.f32 %v2266, %v2270
        %vm2272 = vweird.f32 %v2222
        %vm2273 = vweird.f32 %v2266
        %vm2274 = vmor %vm2272, %vm2273
        %v2275 = vsel %vm2274, %v2266, %v2271
        %v2276 = vrsqrt.pop %v2223
        %v2277 = vmul.f32 %v2276, %v2223
        %v2278 = vmul.f32 %v2277, %v2276
        %v2279 = vmul.f32 0.5, %v2278
        %v2280 = vsub.f32 1.5, %v2279
        %v2281 = vmul.f32 %v2276, %v2280
        %vm2282 = vweird.f32 %v2223
        %vm2283 = vweird.f32 %v2276
        %vm2284 = vmor %vm2282, %vm2283
        %v2285 = vsel %vm2284, %v2276, %v2281
        %v2286 = vrsqrt.pop %v2224
        %v2287 = vmul.f32 %v2286, %v2224
        %v2288 = vmul.f32 %v2287, %v2286
        %v2289 = vmul.f32 0.5, %v2288
        %v2290 = vsub.f32 1.5, %v2289
        %v2291 = vmul.f32 %v2286, %v2290
        %vm2292 = vweird.f32 %v2224
        %vm2293 = vweird.f32 %v2286
        %vm2294 = vmor %vm2292, %vm2293
        %v2295 = vsel %vm2294, %v2286, %v2291
        %v2296 = vrsqrt.pop %v2225
        %v2297 = vmul.f32 %v2296, %v2225
        %v2298 = vmul.f32 %v2297, %v2296
        %v2299 = vmul.f32 0.5, %v2298
        %v2300 = vsub.f32 1.5, %v2299
        %v2301 = vmul.f32 %v2296, %v2300
        %vm2302 = vweird.f32 %v2225
        %vm2303 = vweird.f32 %v2296
        %vm2304 = vmor %vm2302, %vm2303
        %v2305 = vsel %vm2304, %v2296, %v2301
        %v2307 = vsel %vm1535, %v2144, 0
        %2309 = vmatpush.msra.mxu0 0.0
        %2310 = vmatpush.msra.mxu0 0.0
        %2311 = vmatpush.msra.mxu0 0.0
        %2312 = vmatpush.msra.mxu0 0.0
        %2313 = vmatpush.msra.mxu0 0.0
        %2314 = vmatpush.msra.mxu0 0.0
        %2315 = vmatpush.msra.mxu0 0.0
        %2316 = vmatpush.msra.mxu0 0.0
        %2317 = vmatpush.msra.mxu0 0.0
        %2318 = vmatpush.msra.mxu0 0.0
        %2319 = vmatpush.msra.mxu0 0.0
        %2320 = vmatpush.msra.mxu0 0.0
        %2321 = vmatpush.msra.mxu0 0.0
        %2322 = vmatpush.msra.mxu0 0.0
        %2323 = vmatpush.msra.mxu0 0.0
        %2324 = vmatpush.msra.mxu0 %v1541
        %2325 = vmatmul.f32.gmra.mxu0 %v2307
        %v2326 = vpop.f32.mrf.mxu0
        %v2327 = vadd.f32 0.0, %v2326
        %2328 = vdwg.mxu0
        %v2329 = vmul.f32 %v2108, %v2327
        %v2331 = vsel %vm1535, %v2235, 0
        %v2334 = vsel %vm1535, %v2245, 0
        %v2337 = vsel %vm1535, %v2255, 0
        %v2340 = vsel %vm1535, %v2265, 0
        %v2343 = vsel %vm1535, %v2275, 0
        %v2346 = vsel %vm1535, %v2285, 0
        %v2349 = vsel %vm1535, %v2295, 0
        %v2352 = vsel %vm1535, %v2305, 0
        %2354 = vmatpush.msra.mxu0 0.0
        %2355 = vmatpush.msra.mxu0 0.0
        %2356 = vmatpush.msra.mxu0 0.0
        %2357 = vmatpush.msra.mxu0 0.0
        %2358 = vmatpush.msra.mxu0 0.0
        %2359 = vmatpush.msra.mxu0 0.0
        %2360 = vmatpush.msra.mxu0 0.0
        %2361 = vmatpush.msra.mxu0 0.0
        %2362 = vmatpush.msra.mxu0 0.0
        %2363 = vmatpush.msra.mxu0 0.0
        %2364 = vmatpush.msra.mxu0 0.0
        %2365 = vmatpush.msra.mxu0 0.0
        %2366 = vmatpush.msra.mxu0 0.0
        %2367 = vmatpush.msra.mxu0 0.0
        %2368 = vmatpush.msra.mxu0 0.0
        %2369 = vmatpush.msra.mxu0 %v1541
        %2370 = vmatmul.f32.gmra.mxu0 %v2331
        %v2371 = vpop.f32.mrf.mxu0
        %v2372 = vadd.f32 0.0, %v2371
        %2373 = vmatmul.f32.gmra.mxu0 %v2334
        %v2374 = vpop.f32.mrf.mxu0
        %v2375 = vadd.f32 0.0, %v2374
        %2376 = vmatmul.f32.gmra.mxu0 %v2337
        %v2377 = vpop.f32.mrf.mxu0
        %v2378 = vadd.f32 0.0, %v2377
        %2379 = vmatmul.f32.gmra.mxu0 %v2340
        %v2380 = vpop.f32.mrf.mxu0
        %v2381 = vadd.f32 0.0, %v2380
        %2382 = vmatmul.f32.gmra.mxu0 %v2343
        %v2383 = vpop.f32.mrf.mxu0
        %v2384 = vadd.f32 0.0, %v2383
        %2385 = vmatmul.f32.gmra.mxu0 %v2346
        %v2386 = vpop.f32.mrf.mxu0
        %v2387 = vadd.f32 0.0, %v2386
        %2388 = vmatmul.f32.gmra.mxu0 %v2349
        %v2389 = vpop.f32.mrf.mxu0
        %v2390 = vadd.f32 0.0, %v2389
        %2391 = vmatmul.f32.gmra.mxu0 %v2352
        %v2392 = vpop.f32.mrf.mxu0
        %v2393 = vadd.f32 0.0, %v2392
        %2394 = vdwg.mxu0
        %v2395 = vmul.f32 %v2082, %v2372
        %v2396 = vmul.f32 %v2083, %v2375
        %v2397 = vmul.f32 %v2084, %v2378
        %v2398 = vmul.f32 %v2085, %v2381
        %v2399 = vmul.f32 %v2086, %v2384
        %v2400 = vmul.f32 %v2087, %v2387
        %v2401 = vmul.f32 %v2088, %v2390
        %v2402 = vmul.f32 %v2089, %v2393
        %v2404 = vrot.slane %v2329, 4
        %v2406 = vsel %vm1539, %v2329, %v2404
        %v2407 = vmul.f32 %v2406, %v1304
        %v2408 = vmul.f32 %v2406, %v1305
        %v2410 = vsel %vm711, %v2407, 0
        %v2413 = vsel %vm711, %v2408, 0
        %v2416 = vsel %vm711, %v2395, 0
        %v2419 = vsel %vm711, %v2396, 0
        %v2422 = vsel %vm711, %v2397, 0
        %v2425 = vsel %vm711, %v2398, 0
        %v2428 = vsel %vm711, %v2399, 0
        %v2431 = vsel %vm711, %v2400, 0
        %v2434 = vsel %vm711, %v2401, 0
        %v2437 = vsel %vm711, %v2402, 0
        %2439 = vmatpush.xpose.msra.mxu0 0.0
        %2440 = vmatpush.xpose.msra.mxu0 0.0
        %2441 = vmatpush.xpose.msra.mxu0 0.0
        %2442 = vmatpush.xpose.msra.mxu0 0.0
        %2443 = vmatpush.xpose.msra.mxu0 0.0
        %2444 = vmatpush.xpose.msra.mxu0 0.0
        %2445 = vmatpush.xpose.msra.mxu0 0.0
        %2446 = vmatpush.xpose.msra.mxu0 0.0
        %2447 = vmatpush.xpose.msra.mxu0 %v2437
        %2448 = vmatpush.xpose.msra.mxu0 %v2434
        %2449 = vmatpush.xpose.msra.mxu0 %v2431
        %2450 = vmatpush.xpose.msra.mxu0 %v2428
        %2451 = vmatpush.xpose.msra.mxu0 %v2425
        %2452 = vmatpush.xpose.msra.mxu0 %v2422
        %2453 = vmatpush.xpose.msra.mxu0 %v2419
        %2454 = vmatpush.xpose.msra.mxu0 %v2416
        %2455 = vmatmul.f32.gmra.mxu0 %v2410
        %v2456 = vpop.f32.mrf.mxu0
        %v2457 = vadd.f32 0.0, %v2456
        %2458 = vmatmul.f32.gmra.mxu0 %v2413
        %v2459 = vpop.f32.mrf.mxu0
        %v2460 = vadd.f32 0.0, %v2459
        %2461 = vdwg.mxu0
        %v2462 = vmul.f32 %v1696, %v2457
        %v2463 = vmul.f32 %v1696, %v2460
        %v2464 = vadd.f32 %v1699, %v2462
        %v2465 = vadd.f32 %v1699, %v2463
        %v2466 = vxor.u32 %v2464, 2147483648
        %v2467 = vxor.u32 %v2465, 2147483648
        %v2468 = vmul.f32 %v2466, 1.442695
        %v2469 = vpow.pop %v2468
        %v2470 = vmul.f32 %v2467, 1.442695
        %v2471 = vpow.pop %v2470
        %v2472 = vadd.f32 %v2469, 1.0
        %v2473 = vadd.f32 %v2471, 1.0
        %v2474 = vrcp.pop %v2472
        %v2475 = vmul.f32 %v2472, %v2474
        %v2476 = vsub.f32 1.0, %v2475
        %v2477 = vmul.f32 %v2474, %v2476
        %v2478 = vadd.f32 %v2474, %v2477
        %vm2479 = vweird.f32 %v2472
        %vm2480 = vweird.f32 %v2474
        %vm2481 = vmor %vm2479, %vm2480
        %v2482 = vsel %vm2481, %v2474, %v2478
        %v2483 = vand.u32 2147483647, %v2472
        %vm2484 = vcmp.eq.f32.partialorder %v2483, 8.507059e+37
        %v2485 = vand.u32 %v2472, 2147483648
        %v2486 = vor.u32 1.1754944e-38, %v2485
        %v2487 = vsel %vm2484, %v2486, %v2482
        %v2488 = vmul.f32 1.0, %v2487
        %v2489 = vrcp.pop %v2473
        %v2490 = vmul.f32 %v2473, %v2489
        %v2491 = vsub.f32 1.0, %v2490
        %v2492 = vmul.f32 %v2489, %v2491
        %v2493 = vadd.f32 %v2489, %v2492
        %vm2494 = vweird.f32 %v2473
        %vm2495 = vweird.f32 %v2489
        %vm2496 = vmor %vm2494, %vm2495
        %v2497 = vsel %vm2496, %v2489, %v2493
        %v2498 = vand.u32 2147483647, %v2473
        %vm2499 = vcmp.eq.f32.partialorder %v2498, 8.507059e+37
        %v2500 = vand.u32 %v2473, 2147483648
        %v2501 = vor.u32 1.1754944e-38, %v2500
        %v2502 = vsel %vm2499, %v2501, %v2497
        %v2503 = vmul.f32 1.0, %v2502
        %v2504 = vsel %vm1740, %v2488, -inf
        %v2505 = vrot.slane %v2504, 4
        %v2506 = vmax.f32 %v2504, %v2505
        %v2507 = vrot.slane %v2506, 2
        %v2508 = vmax.f32 %v2506, %v2507
        %v2509 = vrot.slane %v2508, 1
        %v2510 = vmax.f32 %v2508, %v2509
        %vm2511 = vcmp.ge.f32.partialorder %v2488, %v2510
        %v2512 = vsel %vm2511, %v1307, 4
        %v2513 = vsel %vm1740, %v2512, 2147483647
        %v2514 = vrot.slane %v2513, 4
        %vm2515 = vcmp.lt.s32.totalorder %v2513, %v2514
        %v2516 = vsel %vm2515, %v2513, %v2514
        %v2517 = vrot.slane %v2516, 2
        %vm2518 = vcmp.lt.s32.totalorder %v2516, %v2517
        %v2519 = vsel %vm2518, %v2516, %v2517
        %v2520 = vrot.slane %v2519, 1
        %vm2521 = vcmp.lt.s32.totalorder %v2519, %v2520
        %v2522 = vsel %vm2521, %v2519, %v2520
        %vm2523 = vcmp.eq.s32.totalorder %v1307, %v2522
        %v2524 = vsel %vm2523, %v2488, 0.0
        %v2525 = vsel %vm1762, %v2488, -inf
        %v2526 = vrot.slane %v2525, 4
        %v2527 = vmax.f32 %v2525, %v2526
        %v2528 = vrot.slane %v2527, 2
        %v2529 = vmax.f32 %v2527, %v2528
        %v2530 = vrot.slane %v2529, 1
        %v2531 = vmax.f32 %v2529, %v2530
        %vm2532 = vcmp.ge.f32.partialorder %v2488, %v2531
        %v2533 = vsel %vm2532, %v1771, 4
        %v2534 = vsel %vm1762, %v2533, 2147483647
        %v2535 = vrot.slane %v2534, 4
        %vm2536 = vcmp.lt.s32.totalorder %v2534, %v2535
        %v2537 = vsel %vm2536, %v2534, %v2535
        %v2538 = vrot.slane %v2537, 2
        %vm2539 = vcmp.lt.s32.totalorder %v2537, %v2538
        %v2540 = vsel %vm2539, %v2537, %v2538
        %v2541 = vrot.slane %v2540, 1
        %vm2542 = vcmp.lt.s32.totalorder %v2540, %v2541
        %v2543 = vsel %vm2542, %v2540, %v2541
        %vm2544 = vcmp.eq.s32.totalorder %v1307, %v2543
        %v2546 = vrot.slane %v2488, 4
        %v2548 = vsel %vm2544, %v2546, 0.0
        %v2549 = vsel %vm1740, %v2503, -inf
        %v2550 = vrot.slane %v2549, 4
        %v2551 = vmax.f32 %v2549, %v2550
        %v2552 = vrot.slane %v2551, 2
        %v2553 = vmax.f32 %v2551, %v2552
        %v2554 = vrot.slane %v2553, 1
        %v2555 = vmax.f32 %v2553, %v2554
        %vm2556 = vcmp.ge.f32.partialorder %v2503, %v2555
        %v2557 = vsel %vm2556, %v1307, 4
        %v2558 = vsel %vm1740, %v2557, 2147483647
        %v2559 = vrot.slane %v2558, 4
        %vm2560 = vcmp.lt.s32.totalorder %v2558, %v2559
        %v2561 = vsel %vm2560, %v2558, %v2559
        %v2562 = vrot.slane %v2561, 2
        %vm2563 = vcmp.lt.s32.totalorder %v2561, %v2562
        %v2564 = vsel %vm2563, %v2561, %v2562
        %v2565 = vrot.slane %v2564, 1
        %vm2566 = vcmp.lt.s32.totalorder %v2564, %v2565
        %v2567 = vsel %vm2566, %v2564, %v2565
        %vm2568 = vcmp.eq.s32.totalorder %v1307, %v2567
        %v2569 = vsel %vm2568, %v2503, 0.0
        %v2570 = vsel %vm1762, %v2503, -inf
        %v2571 = vrot.slane %v2570, 4
        %v2572 = vmax.f32 %v2570, %v2571
        %v2573 = vrot.slane %v2572, 2
        %v2574 = vmax.f32 %v2572, %v2573
        %v2575 = vrot.slane %v2574, 1
        %v2576 = vmax.f32 %v2574, %v2575
        %vm2577 = vcmp.ge.f32.partialorder %v2503, %v2576
        %v2578 = vsel %vm2577, %v1771, 4
        %v2579 = vsel %vm1762, %v2578, 2147483647
        %v2580 = vrot.slane %v2579, 4
        %vm2581 = vcmp.lt.s32.totalorder %v2579, %v2580
        %v2582 = vsel %vm2581, %v2579, %v2580
        %v2583 = vrot.slane %v2582, 2
        %vm2584 = vcmp.lt.s32.totalorder %v2582, %v2583
        %v2585 = vsel %vm2584, %v2582, %v2583
        %v2586 = vrot.slane %v2585, 1
        %vm2587 = vcmp.lt.s32.totalorder %v2585, %v2586
        %v2588 = vsel %vm2587, %v2585, %v2586
        %vm2589 = vcmp.eq.s32.totalorder %v1307, %v2588
        %v2591 = vrot.slane %v2503, 4
        %v2593 = vsel %vm2589, %v2591, 0.0
        %v2595 = vrot.slane %v2548, 4
        %v2598 = vrot.slane %v2593, 4
        %v2600 = vsel %vm1539, %v2524, %v2595
        %v2601 = vsel %vm1539, %v2569, %v2598
        %2610 = vrot.lane.b32.xlu0 %v2082, 96
        %v2611 = vpop.permute.xlu0 %2610
        %2612 = vrot.lane.b32.xlu0 %v2083, 96
        %v2613 = vpop.permute.xlu0 %2612
        %2614 = vrot.lane.b32.xlu0 %v2084, 96
        %v2615 = vpop.permute.xlu0 %2614
        %2616 = vrot.lane.b32.xlu0 %v2085, 96
        %v2617 = vpop.permute.xlu0 %2616
        %2618 = vrot.lane.b32.xlu0 %v2086, 96
        %v2619 = vpop.permute.xlu0 %2618
        %2620 = vrot.lane.b32.xlu0 %v2087, 96
        %v2621 = vpop.permute.xlu0 %2620
        %2622 = vrot.lane.b32.xlu0 %v2088, 96
        %v2623 = vpop.permute.xlu0 %2622
        %2624 = vrot.lane.b32.xlu0 %v2089, 96
        %v2625 = vpop.permute.xlu0 %2624
        %v2635 = vsel %vm1263, %v2600, 0
        %v2638 = vsel %vm1263, %v2601, 0
        %2640 = vmatpush.msra.mxu0 0.0
        %2641 = vmatpush.msra.mxu0 0.0
        %2642 = vmatpush.msra.mxu0 0.0
        %2643 = vmatpush.msra.mxu0 0.0
        %2644 = vmatpush.msra.mxu0 0.0
        %2645 = vmatpush.msra.mxu0 0.0
        %2646 = vmatpush.msra.mxu0 0.0
        %2647 = vmatpush.msra.mxu0 0.0
        %2648 = vmatpush.msra.mxu0 %v2625
        %2649 = vmatpush.msra.mxu0 %v2623
        %2650 = vmatpush.msra.mxu0 %v2621
        %2651 = vmatpush.msra.mxu0 %v2619
        %2652 = vmatpush.msra.mxu0 %v2617
        %2653 = vmatpush.msra.mxu0 %v2615
        %2654 = vmatpush.msra.mxu0 %v2613
        %2655 = vmatpush.msra.mxu0 %v2611
        %2656 = vmatmul.f32.gmra.mxu0 %v2635
        %v2657 = vpop.f32.mrf.mxu0
        %v2658 = vadd.f32 0.0, %v2657
        %2659 = vmatmul.f32.gmra.mxu0 %v2638
        %v2660 = vpop.f32.mrf.mxu0
        %v2661 = vadd.f32 0.0, %v2660
        %2662 = vdwg.mxu0
        %v2663 = vmul.f32 %v2658, %v1304
        %v2664 = vmul.f32 %v2661, %v1305
        %v2665 = vsel %vm1263, %v2600, 0.0
        %2666 = vadd.xlane.f32.xlu0 %v2665
        %v2667 = vpop.xlane.xlu0 %2666
        %v2668 = vsel %vm1263, %v2601, 0.0
        %2669 = vadd.xlane.f32.xlu0 %v2668
        %v2670 = vpop.xlane.xlu0 %2669
        %2672 = vrot.lane.b32.xlu0 %v2663, 32
        %v2673 = vpop.permute.xlu0 %2672
        %v2675 = vadd.f32 %v2108, %v2673
        %v2676 = vmul.f32 %v2667, %v1915
        %v2677 = vrot.slane %v2663, 4
        %2678 = vrot.lane.b32.xlu0 %v2677, 32
        %v2679 = vpop.permute.xlu0 %2678
        %v2681 = vadd.f32 %v2675, %v2679
        %v2682 = vmul.f32 %v2667, %v1922
        %v2684 = vrot.slane %v2682, 4
        %v2686 = vadd.f32 %v2676, %v2684
        %2688 = vrot.lane.b32.xlu0 %v2664, 32
        %v2689 = vpop.permute.xlu0 %2688
        %v2691 = vadd.f32 %v2681, %v2689
        %v2692 = vmul.f32 %v2670, %v1933
        %v2693 = vadd.f32 %v2686, %v2692
        %v2694 = vrot.slane %v2664, 4
        %2695 = vrot.lane.b32.xlu0 %v2694, 32
        %v2696 = vpop.permute.xlu0 %2695
        %v2698 = vadd.f32 %v2691, %v2696
        %v2699 = vmul.f32 %v2670, %v1941
        %v2701 = vrot.slane %v2699, 4
        %v2703 = vadd.f32 %v2693, %v2701
        %v2704 = vadd.f32 %v2703, 1.0
        %v2705 = vrcp.pop %v2704
        %2707 = vrot.lane.b32.xlu0 %v2705, 32
        %v2708 = vpop.permute.xlu0 %2707
        %v2710 = vmul.f32 %v2698, %v2708
        %v2712 = vrot.slane %v2710, 4
        %v2714 = vsel %vm1539, %v2710, %v2712
        %v2715 = vmul.f32 %v2714, %v1961
        %v2716 = vmul.f32 %v2714, %v1963
        %2717 = vxpose.xlu0.b32.start [1/16] %v2600, 128
        %2718 = vxpose.xlu0.b32.cont [2/16] %v2601, 128
        %2719 = vxpose.xlu0.b32.cont [3/16] 0.0, 128
        %2720 = vxpose.xlu0.b32.cont [4/16] 0.0, 128
        %2721 = vxpose.xlu0.b32.cont [5/16] 0.0, 128
        %2722 = vxpose.xlu0.b32.cont [6/16] 0.0, 128
        %2723 = vxpose.xlu0.b32.cont [7/16] 0.0, 128
        %2724 = vxpose.xlu0.b32.cont [8/16] 0.0, 128
        %2725 = vxpose.xlu0.b32.cont [9/16] 0.0, 128
        %2726 = vxpose.xlu0.b32.cont [10/16] 0.0, 128
        %2727 = vxpose.xlu0.b32.cont [11/16] 0.0, 128
        %2728 = vxpose.xlu0.b32.cont [12/16] 0.0, 128
        %2729 = vxpose.xlu0.b32.cont [13/16] 0.0, 128
        %2730 = vxpose.xlu0.b32.cont [14/16] 0.0, 128
        %2731 = vxpose.xlu0.b32.cont [15/16] 0.0, 128
        %2732 = vxpose.xlu0.b32.end [16/16] 0.0, 128
        %v2733 = vpop.trf.xlu0
        %v2734 = vpop.trf.xlu0
        %v2735 = vpop.trf.xlu0
        %v2736 = vpop.trf.xlu0
        %v2737 = vpop.trf.xlu0
        %v2738 = vpop.trf.xlu0
        %v2739 = vpop.trf.xlu0
        %v2740 = vpop.trf.xlu0
        %v2741 = vpop.trf.xlu0
        %v2742 = vpop.trf.xlu0
        %v2743 = vpop.trf.xlu0
        %v2744 = vpop.trf.xlu0
        %v2745 = vpop.trf.xlu0
        %v2746 = vpop.trf.xlu0
        %v2747 = vpop.trf.xlu0
        %v2748 = vpop.trf.xlu0
        %2751 = vrot.lane.b32.xlu0 %v2715, 96
        %v2752 = vpop.permute.xlu0 %2751
        %2753 = vrot.lane.b32.xlu0 %v2716, 96
        %v2754 = vpop.permute.xlu0 %2753
        %v2758 = vsel %vm2008, %v2733, 0
        %v2761 = vsel %vm2008, %v2734, 0
        %v2764 = vsel %vm2008, %v2735, 0
        %v2767 = vsel %vm2008, %v2736, 0
        %v2770 = vsel %vm2008, %v2737, 0
        %v2773 = vsel %vm2008, %v2738, 0
        %v2776 = vsel %vm2008, %v2739, 0
        %v2779 = vsel %vm2008, %v2740, 0
        %2781 = vmatpush.msra.mxu0 0.0
        %2782 = vmatpush.msra.mxu0 0.0
        %2783 = vmatpush.msra.mxu0 0.0
        %2784 = vmatpush.msra.mxu0 0.0
        %2785 = vmatpush.msra.mxu0 0.0
        %2786 = vmatpush.msra.mxu0 0.0
        %2787 = vmatpush.msra.mxu0 0.0
        %2788 = vmatpush.msra.mxu0 0.0
        %2789 = vmatpush.msra.mxu0 0.0
        %2790 = vmatpush.msra.mxu0 0.0
        %2791 = vmatpush.msra.mxu0 0.0
        %2792 = vmatpush.msra.mxu0 0.0
        %2793 = vmatpush.msra.mxu0 0.0
        %2794 = vmatpush.msra.mxu0 0.0
        %2795 = vmatpush.msra.mxu0 %v2754
        %2796 = vmatpush.msra.mxu0 %v2752
        %2797 = vmatmul.f32.gmra.mxu0 %v2758
        %v2798 = vpop.f32.mrf.mxu0
        %v2799 = vadd.f32 0.0, %v2798
        %2800 = vmatmul.f32.gmra.mxu0 %v2761
        %v2801 = vpop.f32.mrf.mxu0
        %v2802 = vadd.f32 0.0, %v2801
        %2803 = vmatmul.f32.gmra.mxu0 %v2764
        %v2804 = vpop.f32.mrf.mxu0
        %v2805 = vadd.f32 0.0, %v2804
        %2806 = vmatmul.f32.gmra.mxu0 %v2767
        %v2807 = vpop.f32.mrf.mxu0
        %v2808 = vadd.f32 0.0, %v2807
        %2809 = vmatmul.f32.gmra.mxu0 %v2770
        %v2810 = vpop.f32.mrf.mxu0
        %v2811 = vadd.f32 0.0, %v2810
        %2812 = vmatmul.f32.gmra.mxu0 %v2773
        %v2813 = vpop.f32.mrf.mxu0
        %v2814 = vadd.f32 0.0, %v2813
        %2815 = vmatmul.f32.gmra.mxu0 %v2776
        %v2816 = vpop.f32.mrf.mxu0
        %v2817 = vadd.f32 0.0, %v2816
        %2818 = vmatmul.f32.gmra.mxu0 %v2779
        %v2819 = vpop.f32.mrf.mxu0
        %v2820 = vadd.f32 0.0, %v2819
        %2821 = vdwg.mxu0
        %2822 = vst.msk [vmem:[#allocation3 + $0x8] sm:$0xff] %vm711, %v2799
        %2823 = vst.msk [vmem:[#allocation3 + $0x18] sm:$0xff] %vm711, %v2802
        %2824 = vst.msk [vmem:[#allocation3 + $0x28] sm:$0xff] %vm711, %v2805
        %2825 = vst.msk [vmem:[#allocation3 + $0x38] sm:$0xff] %vm711, %v2808
        %2826 = vst.msk [vmem:[#allocation3 + $0x48] sm:$0xff] %vm711, %v2811
        %2827 = vst.msk [vmem:[#allocation3 + $0x58] sm:$0xff] %vm711, %v2814
        %2828 = vst.msk [vmem:[#allocation3 + $0x68] sm:$0xff] %vm711, %v2817
        %2829 = vst.msk [vmem:[#allocation3 + $0x78] sm:$0xff] %vm711, %v2820
        %s2830 = scalar_lea.vmem [#allocation2], 128
        %v2831 = vld [vmem:[%s2830] sm:$0xff]
        %v2832 = vld [vmem:[%s2830 + $0x10] sm:$0xff]
        %v2833 = vld [vmem:[%s2830 + $0x20] sm:$0xff]
        %v2834 = vld [vmem:[%s2830 + $0x30] sm:$0xff]
        %v2835 = vld [vmem:[%s2830 + $0x40] sm:$0xff]
        %v2836 = vld [vmem:[%s2830 + $0x50] sm:$0xff]
        %v2837 = vld [vmem:[%s2830 + $0x60] sm:$0xff]
        %v2838 = vld [vmem:[%s2830 + $0x70] sm:$0xff]
        %2839 = vmatpush.msra.mxu0 0.0
        %2840 = vmatpush.msra.mxu0 0.0
        %2841 = vmatpush.msra.mxu0 0.0
        %2842 = vmatpush.msra.mxu0 0.0
        %2843 = vmatpush.msra.mxu0 0.0
        %2844 = vmatpush.msra.mxu0 0.0
        %2845 = vmatpush.msra.mxu0 0.0
        %2846 = vmatpush.msra.mxu0 0.0
        %2847 = vmatpush.msra.mxu0 %v2838
        %2848 = vmatpush.msra.mxu0 %v2837
        %2849 = vmatpush.msra.mxu0 %v2836
        %2850 = vmatpush.msra.mxu0 %v2835
        %2851 = vmatpush.msra.mxu0 %v2834
        %2852 = vmatpush.msra.mxu0 %v2833
        %2853 = vmatpush.msra.mxu0 %v2832
        %2854 = vmatpush.msra.mxu0 %v2831
        %2855 = vmatmul.f32.gmra.mxu0 %v1317
        %v2856 = vpop.f32.mrf.mxu0
        %v2857 = vadd.f32 0.0, %v2856
        %2858 = vdwg.mxu0
        %v2859 = vmul.f32 %v2857, %v2857
        %v2861 = vsel %vm711, %v2859, 0
        %2863 = vmatpush.msra.mxu0 0.0
        %2864 = vmatpush.msra.mxu0 0.0
        %2865 = vmatpush.msra.mxu0 0.0
        %2866 = vmatpush.msra.mxu0 0.0
        %2867 = vmatpush.msra.mxu0 0.0
        %2868 = vmatpush.msra.mxu0 0.0
        %2869 = vmatpush.msra.mxu0 0.0
        %2870 = vmatpush.msra.mxu0 0.0
        %2871 = vmatpush.msra.mxu0 0.0
        %2872 = vmatpush.msra.mxu0 0.0
        %2873 = vmatpush.msra.mxu0 0.0
        %2874 = vmatpush.msra.mxu0 0.0
        %2875 = vmatpush.msra.mxu0 %v1302
        %2876 = vmatpush.msra.mxu0 %v1301
        %2877 = vmatpush.msra.mxu0 %v1300
        %2878 = vmatpush.msra.mxu0 %v1299
        %2879 = vmatmul.f32.gmra.mxu0 %v2861
        %v2880 = vpop.f32.mrf.mxu0
        %v2881 = vadd.f32 0.0, %v2880
        %2882 = vdwg.mxu0
        %v2883 = vmax.f32 %v2881, 1e-24
        %v2884 = vrsqrt.pop %v2883
        %v2885 = vmul.f32 %v2884, %v2883
        %v2886 = vmul.f32 %v2885, %v2884
        %v2887 = vmul.f32 0.5, %v2886
        %v2888 = vsub.f32 1.5, %v2887
        %v2889 = vmul.f32 %v2884, %v2888
        %vm2890 = vweird.f32 %v2883
        %vm2891 = vweird.f32 %v2884
        %vm2892 = vmor %vm2890, %vm2891
        %v2893 = vsel %vm2892, %v2884, %v2889
        %v2894 = vmul.f32 %v2831, %v2831
        %v2895 = vmul.f32 %v2832, %v2832
        %v2896 = vmul.f32 %v2833, %v2833
        %v2897 = vmul.f32 %v2834, %v2834
        %v2898 = vmul.f32 %v2835, %v2835
        %v2899 = vmul.f32 %v2836, %v2836
        %v2900 = vmul.f32 %v2837, %v2837
        %v2901 = vmul.f32 %v2838, %v2838
        %v2903 = vsel %vm711, %v2894, 0
        %v2906 = vsel %vm711, %v2895, 0
        %v2909 = vsel %vm711, %v2896, 0
        %v2912 = vsel %vm711, %v2897, 0
        %v2915 = vsel %vm711, %v2898, 0
        %v2918 = vsel %vm711, %v2899, 0
        %v2921 = vsel %vm711, %v2900, 0
        %v2924 = vsel %vm711, %v2901, 0
        %2926 = vmatpush.msra.mxu0 0.0
        %2927 = vmatpush.msra.mxu0 0.0
        %2928 = vmatpush.msra.mxu0 0.0
        %2929 = vmatpush.msra.mxu0 0.0
        %2930 = vmatpush.msra.mxu0 0.0
        %2931 = vmatpush.msra.mxu0 0.0
        %2932 = vmatpush.msra.mxu0 0.0
        %2933 = vmatpush.msra.mxu0 0.0
        %2934 = vmatpush.msra.mxu0 0.0
        %2935 = vmatpush.msra.mxu0 0.0
        %2936 = vmatpush.msra.mxu0 0.0
        %2937 = vmatpush.msra.mxu0 0.0
        %2938 = vmatpush.msra.mxu0 %v1302
        %2939 = vmatpush.msra.mxu0 %v1301
        %2940 = vmatpush.msra.mxu0 %v1300
        %2941 = vmatpush.msra.mxu0 %v1299
        %2942 = vmatmul.f32.gmra.mxu0 %v2903
        %v2943 = vpop.f32.mrf.mxu0
        %v2944 = vadd.f32 0.0, %v2943
        %2945 = vmatmul.f32.gmra.mxu0 %v2906
        %v2946 = vpop.f32.mrf.mxu0
        %v2947 = vadd.f32 0.0, %v2946
        %2948 = vmatmul.f32.gmra.mxu0 %v2909
        %v2949 = vpop.f32.mrf.mxu0
        %v2950 = vadd.f32 0.0, %v2949
        %2951 = vmatmul.f32.gmra.mxu0 %v2912
        %v2952 = vpop.f32.mrf.mxu0
        %v2953 = vadd.f32 0.0, %v2952
        %2954 = vmatmul.f32.gmra.mxu0 %v2915
        %v2955 = vpop.f32.mrf.mxu0
        %v2956 = vadd.f32 0.0, %v2955
        %2957 = vmatmul.f32.gmra.mxu0 %v2918
        %v2958 = vpop.f32.mrf.mxu0
        %v2959 = vadd.f32 0.0, %v2958
        %2960 = vmatmul.f32.gmra.mxu0 %v2921
        %v2961 = vpop.f32.mrf.mxu0
        %v2962 = vadd.f32 0.0, %v2961
        %2963 = vmatmul.f32.gmra.mxu0 %v2924
        %v2964 = vpop.f32.mrf.mxu0
        %v2965 = vadd.f32 0.0, %v2964
        %2966 = vdwg.mxu0
        %v2967 = vmax.f32 %v2944, 1e-24
        %v2968 = vmax.f32 %v2947, 1e-24
        %v2969 = vmax.f32 %v2950, 1e-24
        %v2970 = vmax.f32 %v2953, 1e-24
        %v2971 = vmax.f32 %v2956, 1e-24
        %v2972 = vmax.f32 %v2959, 1e-24
        %v2973 = vmax.f32 %v2962, 1e-24
        %v2974 = vmax.f32 %v2965, 1e-24
        %v2975 = vrsqrt.pop %v2967
        %v2976 = vmul.f32 %v2975, %v2967
        %v2977 = vmul.f32 %v2976, %v2975
        %v2978 = vmul.f32 0.5, %v2977
        %v2979 = vsub.f32 1.5, %v2978
        %v2980 = vmul.f32 %v2975, %v2979
        %vm2981 = vweird.f32 %v2967
        %vm2982 = vweird.f32 %v2975
        %vm2983 = vmor %vm2981, %vm2982
        %v2984 = vsel %vm2983, %v2975, %v2980
        %v2985 = vrsqrt.pop %v2968
        %v2986 = vmul.f32 %v2985, %v2968
        %v2987 = vmul.f32 %v2986, %v2985
        %v2988 = vmul.f32 0.5, %v2987
        %v2989 = vsub.f32 1.5, %v2988
        %v2990 = vmul.f32 %v2985, %v2989
        %vm2991 = vweird.f32 %v2968
        %vm2992 = vweird.f32 %v2985
        %vm2993 = vmor %vm2991, %vm2992
        %v2994 = vsel %vm2993, %v2985, %v2990
        %v2995 = vrsqrt.pop %v2969
        %v2996 = vmul.f32 %v2995, %v2969
        %v2997 = vmul.f32 %v2996, %v2995
        %v2998 = vmul.f32 0.5, %v2997
        %v2999 = vsub.f32 1.5, %v2998
        %v3000 = vmul.f32 %v2995, %v2999
        %vm3001 = vweird.f32 %v2969
        %vm3002 = vweird.f32 %v2995
        %vm3003 = vmor %vm3001, %vm3002
        %v3004 = vsel %vm3003, %v2995, %v3000
        %v3005 = vrsqrt.pop %v2970
        %v3006 = vmul.f32 %v3005, %v2970
        %v3007 = vmul.f32 %v3006, %v3005
        %v3008 = vmul.f32 0.5, %v3007
        %v3009 = vsub.f32 1.5, %v3008
        %v3010 = vmul.f32 %v3005, %v3009
        %vm3011 = vweird.f32 %v2970
        %vm3012 = vweird.f32 %v3005
        %vm3013 = vmor %vm3011, %vm3012
        %v3014 = vsel %vm3013, %v3005, %v3010
        %v3015 = vrsqrt.pop %v2971
        %v3016 = vmul.f32 %v3015, %v2971
        %v3017 = vmul.f32 %v3016, %v3015
        %v3018 = vmul.f32 0.5, %v3017
        %v3019 = vsub.f32 1.5, %v3018
        %v3020 = vmul.f32 %v3015, %v3019
        %vm3021 = vweird.f32 %v2971
        %vm3022 = vweird.f32 %v3015
        %vm3023 = vmor %vm3021, %vm3022
        %v3024 = vsel %vm3023, %v3015, %v3020
        %v3025 = vrsqrt.pop %v2972
        %v3026 = vmul.f32 %v3025, %v2972
        %v3027 = vmul.f32 %v3026, %v3025
        %v3028 = vmul.f32 0.5, %v3027
        %v3029 = vsub.f32 1.5, %v3028
        %v3030 = vmul.f32 %v3025, %v3029
        %vm3031 = vweird.f32 %v2972
        %vm3032 = vweird.f32 %v3025
        %vm3033 = vmor %vm3031, %vm3032
        %v3034 = vsel %vm3033, %v3025, %v3030
        %v3035 = vrsqrt.pop %v2973
        %v3036 = vmul.f32 %v3035, %v2973
        %v3037 = vmul.f32 %v3036, %v3035
        %v3038 = vmul.f32 0.5, %v3037
        %v3039 = vsub.f32 1.5, %v3038
        %v3040 = vmul.f32 %v3035, %v3039
        %vm3041 = vweird.f32 %v2973
        %vm3042 = vweird.f32 %v3035
        %vm3043 = vmor %vm3041, %vm3042
        %v3044 = vsel %vm3043, %v3035, %v3040
        %v3045 = vrsqrt.pop %v2974
        %v3046 = vmul.f32 %v3045, %v2974
        %v3047 = vmul.f32 %v3046, %v3045
        %v3048 = vmul.f32 0.5, %v3047
        %v3049 = vsub.f32 1.5, %v3048
        %v3050 = vmul.f32 %v3045, %v3049
        %vm3051 = vweird.f32 %v2974
        %vm3052 = vweird.f32 %v3045
        %vm3053 = vmor %vm3051, %vm3052
        %v3054 = vsel %vm3053, %v3045, %v3050
        %v3056 = vsel %vm1535, %v2893, 0
        %3058 = vmatpush.msra.mxu0 0.0
        %3059 = vmatpush.msra.mxu0 0.0
        %3060 = vmatpush.msra.mxu0 0.0
        %3061 = vmatpush.msra.mxu0 0.0
        %3062 = vmatpush.msra.mxu0 0.0
        %3063 = vmatpush.msra.mxu0 0.0
        %3064 = vmatpush.msra.mxu0 0.0
        %3065 = vmatpush.msra.mxu0 0.0
        %3066 = vmatpush.msra.mxu0 0.0
        %3067 = vmatpush.msra.mxu0 0.0
        %3068 = vmatpush.msra.mxu0 0.0
        %3069 = vmatpush.msra.mxu0 0.0
        %3070 = vmatpush.msra.mxu0 0.0
        %3071 = vmatpush.msra.mxu0 0.0
        %3072 = vmatpush.msra.mxu0 0.0
        %3073 = vmatpush.msra.mxu0 %v1541
        %3074 = vmatmul.f32.gmra.mxu0 %v3056
        %v3075 = vpop.f32.mrf.mxu0
        %v3076 = vadd.f32 0.0, %v3075
        %3077 = vdwg.mxu0
        %v3078 = vmul.f32 %v2857, %v3076
        %v3080 = vsel %vm1535, %v2984, 0
        %v3083 = vsel %vm1535, %v2994, 0
        %v3086 = vsel %vm1535, %v3004, 0
        %v3089 = vsel %vm1535, %v3014, 0
        %v3092 = vsel %vm1535, %v3024, 0
        %v3095 = vsel %vm1535, %v3034, 0
        %v3098 = vsel %vm1535, %v3044, 0
        %v3101 = vsel %vm1535, %v3054, 0
        %3103 = vmatpush.msra.mxu0 0.0
        %3104 = vmatpush.msra.mxu0 0.0
        %3105 = vmatpush.msra.mxu0 0.0
        %3106 = vmatpush.msra.mxu0 0.0
        %3107 = vmatpush.msra.mxu0 0.0
        %3108 = vmatpush.msra.mxu0 0.0
        %3109 = vmatpush.msra.mxu0 0.0
        %3110 = vmatpush.msra.mxu0 0.0
        %3111 = vmatpush.msra.mxu0 0.0
        %3112 = vmatpush.msra.mxu0 0.0
        %3113 = vmatpush.msra.mxu0 0.0
        %3114 = vmatpush.msra.mxu0 0.0
        %3115 = vmatpush.msra.mxu0 0.0
        %3116 = vmatpush.msra.mxu0 0.0
        %3117 = vmatpush.msra.mxu0 0.0
        %3118 = vmatpush.msra.mxu0 %v1541
        %3119 = vmatmul.f32.gmra.mxu0 %v3080
        %v3120 = vpop.f32.mrf.mxu0
        %v3121 = vadd.f32 0.0, %v3120
        %3122 = vmatmul.f32.gmra.mxu0 %v3083
        %v3123 = vpop.f32.mrf.mxu0
        %v3124 = vadd.f32 0.0, %v3123
        %3125 = vmatmul.f32.gmra.mxu0 %v3086
        %v3126 = vpop.f32.mrf.mxu0
        %v3127 = vadd.f32 0.0, %v3126
        %3128 = vmatmul.f32.gmra.mxu0 %v3089
        %v3129 = vpop.f32.mrf.mxu0
        %v3130 = vadd.f32 0.0, %v3129
        %3131 = vmatmul.f32.gmra.mxu0 %v3092
        %v3132 = vpop.f32.mrf.mxu0
        %v3133 = vadd.f32 0.0, %v3132
        %3134 = vmatmul.f32.gmra.mxu0 %v3095
        %v3135 = vpop.f32.mrf.mxu0
        %v3136 = vadd.f32 0.0, %v3135
        %3137 = vmatmul.f32.gmra.mxu0 %v3098
        %v3138 = vpop.f32.mrf.mxu0
        %v3139 = vadd.f32 0.0, %v3138
        %3140 = vmatmul.f32.gmra.mxu0 %v3101
        %v3141 = vpop.f32.mrf.mxu0
        %v3142 = vadd.f32 0.0, %v3141
        %3143 = vdwg.mxu0
        %v3144 = vmul.f32 %v2831, %v3121
        %v3145 = vmul.f32 %v2832, %v3124
        %v3146 = vmul.f32 %v2833, %v3127
        %v3147 = vmul.f32 %v2834, %v3130
        %v3148 = vmul.f32 %v2835, %v3133
        %v3149 = vmul.f32 %v2836, %v3136
        %v3150 = vmul.f32 %v2837, %v3139
        %v3151 = vmul.f32 %v2838, %v3142
        %v3153 = vrot.slane %v3078, 4
        %v3155 = vsel %vm1539, %v3078, %v3153
        %v3156 = vmul.f32 %v3155, %v1304
        %v3157 = vmul.f32 %v3155, %v1305
        %v3159 = vsel %vm711, %v3156, 0
        %v3162 = vsel %vm711, %v3157, 0
        %v3165 = vsel %vm711, %v3144, 0
        %v3168 = vsel %vm711, %v3145, 0
        %v3171 = vsel %vm711, %v3146, 0
        %v3174 = vsel %vm711, %v3147, 0
        %v3177 = vsel %vm711, %v3148, 0
        %v3180 = vsel %vm711, %v3149, 0
        %v3183 = vsel %vm711, %v3150, 0
        %v3186 = vsel %vm711, %v3151, 0
        %3188 = vmatpush.xpose.msra.mxu0 0.0
        %3189 = vmatpush.xpose.msra.mxu0 0.0
        %3190 = vmatpush.xpose.msra.mxu0 0.0
        %3191 = vmatpush.xpose.msra.mxu0 0.0
        %3192 = vmatpush.xpose.msra.mxu0 0.0
        %3193 = vmatpush.xpose.msra.mxu0 0.0
        %3194 = vmatpush.xpose.msra.mxu0 0.0
        %3195 = vmatpush.xpose.msra.mxu0 0.0
        %3196 = vmatpush.xpose.msra.mxu0 %v3186
        %3197 = vmatpush.xpose.msra.mxu0 %v3183
        %3198 = vmatpush.xpose.msra.mxu0 %v3180
        %3199 = vmatpush.xpose.msra.mxu0 %v3177
        %3200 = vmatpush.xpose.msra.mxu0 %v3174
        %3201 = vmatpush.xpose.msra.mxu0 %v3171
        %3202 = vmatpush.xpose.msra.mxu0 %v3168
        %3203 = vmatpush.xpose.msra.mxu0 %v3165
        %3204 = vmatmul.f32.gmra.mxu0 %v3159
        %v3205 = vpop.f32.mrf.mxu0
        %v3206 = vadd.f32 0.0, %v3205
        %3207 = vmatmul.f32.gmra.mxu0 %v3162
        %v3208 = vpop.f32.mrf.mxu0
        %v3209 = vadd.f32 0.0, %v3208
        %3210 = vdwg.mxu0
        %v3211 = vmul.f32 %v1696, %v3206
        %v3212 = vmul.f32 %v1696, %v3209
        %v3213 = vadd.f32 %v1699, %v3211
        %v3214 = vadd.f32 %v1699, %v3212
        %v3215 = vxor.u32 %v3213, 2147483648
        %v3216 = vxor.u32 %v3214, 2147483648
        %v3217 = vmul.f32 %v3215, 1.442695
        %v3218 = vpow.pop %v3217
        %v3219 = vmul.f32 %v3216, 1.442695
        %v3220 = vpow.pop %v3219
        %v3221 = vadd.f32 %v3218, 1.0
        %v3222 = vadd.f32 %v3220, 1.0
        %v3223 = vrcp.pop %v3221
        %v3224 = vmul.f32 %v3221, %v3223
        %v3225 = vsub.f32 1.0, %v3224
        %v3226 = vmul.f32 %v3223, %v3225
        %v3227 = vadd.f32 %v3223, %v3226
        %vm3228 = vweird.f32 %v3221
        %vm3229 = vweird.f32 %v3223
        %vm3230 = vmor %vm3228, %vm3229
        %v3231 = vsel %vm3230, %v3223, %v3227
        %v3232 = vand.u32 2147483647, %v3221
        %vm3233 = vcmp.eq.f32.partialorder %v3232, 8.507059e+37
        %v3234 = vand.u32 %v3221, 2147483648
        %v3235 = vor.u32 1.1754944e-38, %v3234
        %v3236 = vsel %vm3233, %v3235, %v3231
        %v3237 = vmul.f32 1.0, %v3236
        %v3238 = vrcp.pop %v3222
        %v3239 = vmul.f32 %v3222, %v3238
        %v3240 = vsub.f32 1.0, %v3239
        %v3241 = vmul.f32 %v3238, %v3240
        %v3242 = vadd.f32 %v3238, %v3241
        %vm3243 = vweird.f32 %v3222
        %vm3244 = vweird.f32 %v3238
        %vm3245 = vmor %vm3243, %vm3244
        %v3246 = vsel %vm3245, %v3238, %v3242
        %v3247 = vand.u32 2147483647, %v3222
        %vm3248 = vcmp.eq.f32.partialorder %v3247, 8.507059e+37
        %v3249 = vand.u32 %v3222, 2147483648
        %v3250 = vor.u32 1.1754944e-38, %v3249
        %v3251 = vsel %vm3248, %v3250, %v3246
        %v3252 = vmul.f32 1.0, %v3251
        %v3253 = vsel %vm1740, %v3237, -inf
        %v3254 = vrot.slane %v3253, 4
        %v3255 = vmax.f32 %v3253, %v3254
        %v3256 = vrot.slane %v3255, 2
        %v3257 = vmax.f32 %v3255, %v3256
        %v3258 = vrot.slane %v3257, 1
        %v3259 = vmax.f32 %v3257, %v3258
        %vm3260 = vcmp.ge.f32.partialorder %v3237, %v3259
        %v3261 = vsel %vm3260, %v1307, 4
        %v3262 = vsel %vm1740, %v3261, 2147483647
        %v3263 = vrot.slane %v3262, 4
        %vm3264 = vcmp.lt.s32.totalorder %v3262, %v3263
        %v3265 = vsel %vm3264, %v3262, %v3263
        %v3266 = vrot.slane %v3265, 2
        %vm3267 = vcmp.lt.s32.totalorder %v3265, %v3266
        %v3268 = vsel %vm3267, %v3265, %v3266
        %v3269 = vrot.slane %v3268, 1
        %vm3270 = vcmp.lt.s32.totalorder %v3268, %v3269
        %v3271 = vsel %vm3270, %v3268, %v3269
        %vm3272 = vcmp.eq.s32.totalorder %v1307, %v3271
        %v3273 = vsel %vm3272, %v3237, 0.0
        %v3274 = vsel %vm1762, %v3237, -inf
        %v3275 = vrot.slane %v3274, 4
        %v3276 = vmax.f32 %v3274, %v3275
        %v3277 = vrot.slane %v3276, 2
        %v3278 = vmax.f32 %v3276, %v3277
        %v3279 = vrot.slane %v3278, 1
        %v3280 = vmax.f32 %v3278, %v3279
        %vm3281 = vcmp.ge.f32.partialorder %v3237, %v3280
        %v3282 = vsel %vm3281, %v1771, 4
        %v3283 = vsel %vm1762, %v3282, 2147483647
        %v3284 = vrot.slane %v3283, 4
        %vm3285 = vcmp.lt.s32.totalorder %v3283, %v3284
        %v3286 = vsel %vm3285, %v3283, %v3284
        %v3287 = vrot.slane %v3286, 2
        %vm3288 = vcmp.lt.s32.totalorder %v3286, %v3287
        %v3289 = vsel %vm3288, %v3286, %v3287
        %v3290 = vrot.slane %v3289, 1
        %vm3291 = vcmp.lt.s32.totalorder %v3289, %v3290
        %v3292 = vsel %vm3291, %v3289, %v3290
        %vm3293 = vcmp.eq.s32.totalorder %v1307, %v3292
        %v3295 = vrot.slane %v3237, 4
        %v3297 = vsel %vm3293, %v3295, 0.0
        %v3298 = vsel %vm1740, %v3252, -inf
        %v3299 = vrot.slane %v3298, 4
        %v3300 = vmax.f32 %v3298, %v3299
        %v3301 = vrot.slane %v3300, 2
        %v3302 = vmax.f32 %v3300, %v3301
        %v3303 = vrot.slane %v3302, 1
        %v3304 = vmax.f32 %v3302, %v3303
        %vm3305 = vcmp.ge.f32.partialorder %v3252, %v3304
        %v3306 = vsel %vm3305, %v1307, 4
        %v3307 = vsel %vm1740, %v3306, 2147483647
        %v3308 = vrot.slane %v3307, 4
        %vm3309 = vcmp.lt.s32.totalorder %v3307, %v3308
        %v3310 = vsel %vm3309, %v3307, %v3308
        %v3311 = vrot.slane %v3310, 2
        %vm3312 = vcmp.lt.s32.totalorder %v3310, %v3311
        %v3313 = vsel %vm3312, %v3310, %v3311
        %v3314 = vrot.slane %v3313, 1
        %vm3315 = vcmp.lt.s32.totalorder %v3313, %v3314
        %v3316 = vsel %vm3315, %v3313, %v3314
        %vm3317 = vcmp.eq.s32.totalorder %v1307, %v3316
        %v3318 = vsel %vm3317, %v3252, 0.0
        %v3319 = vsel %vm1762, %v3252, -inf
        %v3320 = vrot.slane %v3319, 4
        %v3321 = vmax.f32 %v3319, %v3320
        %v3322 = vrot.slane %v3321, 2
        %v3323 = vmax.f32 %v3321, %v3322
        %v3324 = vrot.slane %v3323, 1
        %v3325 = vmax.f32 %v3323, %v3324
        %vm3326 = vcmp.ge.f32.partialorder %v3252, %v3325
        %v3327 = vsel %vm3326, %v1771, 4
        %v3328 = vsel %vm1762, %v3327, 2147483647
        %v3329 = vrot.slane %v3328, 4
        %vm3330 = vcmp.lt.s32.totalorder %v3328, %v3329
        %v3331 = vsel %vm3330, %v3328, %v3329
        %v3332 = vrot.slane %v3331, 2
        %vm3333 = vcmp.lt.s32.totalorder %v3331, %v3332
        %v3334 = vsel %vm3333, %v3331, %v3332
        %v3335 = vrot.slane %v3334, 1
        %vm3336 = vcmp.lt.s32.totalorder %v3334, %v3335
        %v3337 = vsel %vm3336, %v3334, %v3335
        %vm3338 = vcmp.eq.s32.totalorder %v1307, %v3337
        %v3340 = vrot.slane %v3252, 4
        %v3342 = vsel %vm3338, %v3340, 0.0
        %v3344 = vrot.slane %v3297, 4
        %v3347 = vrot.slane %v3342, 4
        %v3349 = vsel %vm1539, %v3273, %v3344
        %v3350 = vsel %vm1539, %v3318, %v3347
        %3359 = vrot.lane.b32.xlu0 %v2831, 96
        %v3360 = vpop.permute.xlu0 %3359
        %3361 = vrot.lane.b32.xlu0 %v2832, 96
        %v3362 = vpop.permute.xlu0 %3361
        %3363 = vrot.lane.b32.xlu0 %v2833, 96
        %v3364 = vpop.permute.xlu0 %3363
        %3365 = vrot.lane.b32.xlu0 %v2834, 96
        %v3366 = vpop.permute.xlu0 %3365
        %3367 = vrot.lane.b32.xlu0 %v2835, 96
        %v3368 = vpop.permute.xlu0 %3367
        %3369 = vrot.lane.b32.xlu0 %v2836, 96
        %v3370 = vpop.permute.xlu0 %3369
        %3371 = vrot.lane.b32.xlu0 %v2837, 96
        %v3372 = vpop.permute.xlu0 %3371
        %3373 = vrot.lane.b32.xlu0 %v2838, 96
        %v3374 = vpop.permute.xlu0 %3373
        %v3384 = vsel %vm1263, %v3349, 0
        %v3387 = vsel %vm1263, %v3350, 0
        %3389 = vmatpush.msra.mxu0 0.0
        %3390 = vmatpush.msra.mxu0 0.0
        %3391 = vmatpush.msra.mxu0 0.0
        %3392 = vmatpush.msra.mxu0 0.0
        %3393 = vmatpush.msra.mxu0 0.0
        %3394 = vmatpush.msra.mxu0 0.0
        %3395 = vmatpush.msra.mxu0 0.0
        %3396 = vmatpush.msra.mxu0 0.0
        %3397 = vmatpush.msra.mxu0 %v3374
        %3398 = vmatpush.msra.mxu0 %v3372
        %3399 = vmatpush.msra.mxu0 %v3370
        %3400 = vmatpush.msra.mxu0 %v3368
        %3401 = vmatpush.msra.mxu0 %v3366
        %3402 = vmatpush.msra.mxu0 %v3364
        %3403 = vmatpush.msra.mxu0 %v3362
        %3404 = vmatpush.msra.mxu0 %v3360
        %3405 = vmatmul.f32.gmra.mxu0 %v3384
        %v3406 = vpop.f32.mrf.mxu0
        %v3407 = vadd.f32 0.0, %v3406
        %3408 = vmatmul.f32.gmra.mxu0 %v3387
        %v3409 = vpop.f32.mrf.mxu0
        %v3410 = vadd.f32 0.0, %v3409
        %3411 = vdwg.mxu0
        %v3412 = vmul.f32 %v3407, %v1304
        %v3413 = vmul.f32 %v3410, %v1305
        %v3414 = vsel %vm1263, %v3349, 0.0
        %3415 = vadd.xlane.f32.xlu0 %v3414
        %v3416 = vpop.xlane.xlu0 %3415
        %v3417 = vsel %vm1263, %v3350, 0.0
        %3418 = vadd.xlane.f32.xlu0 %v3417
        %v3419 = vpop.xlane.xlu0 %3418
        %3421 = vrot.lane.b32.xlu0 %v3412, 32
        %v3422 = vpop.permute.xlu0 %3421
        %v3424 = vadd.f32 %v2857, %v3422
        %v3425 = vmul.f32 %v3416, %v1915
        %v3426 = vrot.slane %v3412, 4
        %3427 = vrot.lane.b32.xlu0 %v3426, 32
        %v3428 = vpop.permute.xlu0 %3427
        %v3430 = vadd.f32 %v3424, %v3428
        %v3431 = vmul.f32 %v3416, %v1922
        %v3433 = vrot.slane %v3431, 4
        %v3435 = vadd.f32 %v3425, %v3433
        %3437 = vrot.lane.b32.xlu0 %v3413, 32
        %v3438 = vpop.permute.xlu0 %3437
        %v3440 = vadd.f32 %v3430, %v3438
        %v3441 = vmul.f32 %v3419, %v1933
        %v3442 = vadd.f32 %v3435, %v3441
        %v3443 = vrot.slane %v3413, 4
        %3444 = vrot.lane.b32.xlu0 %v3443, 32
        %v3445 = vpop.permute.xlu0 %3444
        %v3447 = vadd.f32 %v3440, %v3445
        %v3448 = vmul.f32 %v3419, %v1941
        %v3450 = vrot.slane %v3448, 4
        %v3452 = vadd.f32 %v3442, %v3450
        %v3453 = vadd.f32 %v3452, 1.0
        %v3454 = vrcp.pop %v3453
        %3456 = vrot.lane.b32.xlu0 %v3454, 32
        %v3457 = vpop.permute.xlu0 %3456
        %v3459 = vmul.f32 %v3447, %v3457
        %v3461 = vrot.slane %v3459, 4
        %v3463 = vsel %vm1539, %v3459, %v3461
        %v3464 = vmul.f32 %v3463, %v1961
        %v3465 = vmul.f32 %v3463, %v1963
        %3466 = vxpose.xlu0.b32.start [1/16] %v3349, 128
        %3467 = vxpose.xlu0.b32.cont [2/16] %v3350, 128
        %3468 = vxpose.xlu0.b32.cont [3/16] 0.0, 128
        %3469 = vxpose.xlu0.b32.cont [4/16] 0.0, 128
        %3470 = vxpose.xlu0.b32.cont [5/16] 0.0, 128
        %3471 = vxpose.xlu0.b32.cont [6/16] 0.0, 128
        %3472 = vxpose.xlu0.b32.cont [7/16] 0.0, 128
        %3473 = vxpose.xlu0.b32.cont [8/16] 0.0, 128
        %3474 = vxpose.xlu0.b32.cont [9/16] 0.0, 128
        %3475 = vxpose.xlu0.b32.cont [10/16] 0.0, 128
        %3476 = vxpose.xlu0.b32.cont [11/16] 0.0, 128
        %3477 = vxpose.xlu0.b32.cont [12/16] 0.0, 128
        %3478 = vxpose.xlu0.b32.cont [13/16] 0.0, 128
        %3479 = vxpose.xlu0.b32.cont [14/16] 0.0, 128
        %3480 = vxpose.xlu0.b32.cont [15/16] 0.0, 128
        %3481 = vxpose.xlu0.b32.end [16/16] 0.0, 128
        %v3482 = vpop.trf.xlu0
        %v3483 = vpop.trf.xlu0
        %v3484 = vpop.trf.xlu0
        %v3485 = vpop.trf.xlu0
        %v3486 = vpop.trf.xlu0
        %v3487 = vpop.trf.xlu0
        %v3488 = vpop.trf.xlu0
        %v3489 = vpop.trf.xlu0
        %v3490 = vpop.trf.xlu0
        %v3491 = vpop.trf.xlu0
        %v3492 = vpop.trf.xlu0
        %v3493 = vpop.trf.xlu0
        %v3494 = vpop.trf.xlu0
        %v3495 = vpop.trf.xlu0
        %v3496 = vpop.trf.xlu0
        %v3497 = vpop.trf.xlu0
        %3500 = vrot.lane.b32.xlu0 %v3464, 96
        %v3501 = vpop.permute.xlu0 %3500
        %3502 = vrot.lane.b32.xlu0 %v3465, 96
        %v3503 = vpop.permute.xlu0 %3502
        %v3507 = vsel %vm2008, %v3482, 0
        %v3510 = vsel %vm2008, %v3483, 0
        %v3513 = vsel %vm2008, %v3484, 0
        %v3516 = vsel %vm2008, %v3485, 0
        %v3519 = vsel %vm2008, %v3486, 0
        %v3522 = vsel %vm2008, %v3487, 0
        %v3525 = vsel %vm2008, %v3488, 0
        %v3528 = vsel %vm2008, %v3489, 0
        %3530 = vmatpush.msra.mxu0 0.0
        %3531 = vmatpush.msra.mxu0 0.0
        %3532 = vmatpush.msra.mxu0 0.0
        %3533 = vmatpush.msra.mxu0 0.0
        %3534 = vmatpush.msra.mxu0 0.0
        %3535 = vmatpush.msra.mxu0 0.0
        %3536 = vmatpush.msra.mxu0 0.0
        %3537 = vmatpush.msra.mxu0 0.0
        %3538 = vmatpush.msra.mxu0 0.0
        %3539 = vmatpush.msra.mxu0 0.0
        %3540 = vmatpush.msra.mxu0 0.0
        %3541 = vmatpush.msra.mxu0 0.0
        %3542 = vmatpush.msra.mxu0 0.0
        %3543 = vmatpush.msra.mxu0 0.0
        %3544 = vmatpush.msra.mxu0 %v3503
        %3545 = vmatpush.msra.mxu0 %v3501
        %3546 = vmatmul.f32.gmra.mxu0 %v3507
        %v3547 = vpop.f32.mrf.mxu0
        %v3548 = vadd.f32 0.0, %v3547
        %3549 = vmatmul.f32.gmra.mxu0 %v3510
        %v3550 = vpop.f32.mrf.mxu0
        %v3551 = vadd.f32 0.0, %v3550
        %3552 = vmatmul.f32.gmra.mxu0 %v3513
        %v3553 = vpop.f32.mrf.mxu0
        %v3554 = vadd.f32 0.0, %v3553
        %3555 = vmatmul.f32.gmra.mxu0 %v3516
        %v3556 = vpop.f32.mrf.mxu0
        %v3557 = vadd.f32 0.0, %v3556
        %3558 = vmatmul.f32.gmra.mxu0 %v3519
        %v3559 = vpop.f32.mrf.mxu0
        %v3560 = vadd.f32 0.0, %v3559
        %3561 = vmatmul.f32.gmra.mxu0 %v3522
        %v3562 = vpop.f32.mrf.mxu0
        %v3563 = vadd.f32 0.0, %v3562
        %3564 = vmatmul.f32.gmra.mxu0 %v3525
        %v3565 = vpop.f32.mrf.mxu0
        %v3566 = vadd.f32 0.0, %v3565
        %3567 = vmatmul.f32.gmra.mxu0 %v3528
        %v3568 = vpop.f32.mrf.mxu0
        %v3569 = vadd.f32 0.0, %v3568
        %3570 = vdwg.mxu0
        %s3571 = scalar_lea.vmem [#allocation3], 128
        %3572 = vst.msk [vmem:[%s3571] sm:$0xff] %vm711, %v3548
        %3573 = vst.msk [vmem:[%s3571 + $0x10] sm:$0xff] %vm711, %v3551
        %3574 = vst.msk [vmem:[%s3571 + $0x20] sm:$0xff] %vm711, %v3554
        %3575 = vst.msk [vmem:[%s3571 + $0x30] sm:$0xff] %vm711, %v3557
        %3576 = vst.msk [vmem:[%s3571 + $0x40] sm:$0xff] %vm711, %v3560
        %3577 = vst.msk [vmem:[%s3571 + $0x50] sm:$0xff] %vm711, %v3563
        %3578 = vst.msk [vmem:[%s3571 + $0x60] sm:$0xff] %vm711, %v3566
        %3579 = vst.msk [vmem:[%s3571 + $0x70] sm:$0xff] %vm711, %v3569
        %v3580 = vld [vmem:[%s2830 + $0x8] sm:$0xff]
        %v3581 = vld [vmem:[%s2830 + $0x18] sm:$0xff]
        %v3582 = vld [vmem:[%s2830 + $0x28] sm:$0xff]
        %v3583 = vld [vmem:[%s2830 + $0x38] sm:$0xff]
        %v3584 = vld [vmem:[%s2830 + $0x48] sm:$0xff]
        %v3585 = vld [vmem:[%s2830 + $0x58] sm:$0xff]
        %v3586 = vld [vmem:[%s2830 + $0x68] sm:$0xff]
        %v3587 = vld [vmem:[%s2830 + $0x78] sm:$0xff]
        %3588 = vmatpush.msra.mxu0 0.0
        %3589 = vmatpush.msra.mxu0 0.0
        %3590 = vmatpush.msra.mxu0 0.0
        %3591 = vmatpush.msra.mxu0 0.0
        %3592 = vmatpush.msra.mxu0 0.0
        %3593 = vmatpush.msra.mxu0 0.0
        %3594 = vmatpush.msra.mxu0 0.0
        %3595 = vmatpush.msra.mxu0 0.0
        %3596 = vmatpush.msra.mxu0 %v3587
        %3597 = vmatpush.msra.mxu0 %v3586
        %3598 = vmatpush.msra.mxu0 %v3585
        %3599 = vmatpush.msra.mxu0 %v3584
        %3600 = vmatpush.msra.mxu0 %v3583
        %3601 = vmatpush.msra.mxu0 %v3582
        %3602 = vmatpush.msra.mxu0 %v3581
        %3603 = vmatpush.msra.mxu0 %v3580
        %3604 = vmatmul.f32.gmra.mxu0 %v1317
        %v3605 = vpop.f32.mrf.mxu0
        %v3606 = vadd.f32 0.0, %v3605
        %3607 = vdwg.mxu0
        %v3608 = vmul.f32 %v3606, %v3606
        %v3610 = vsel %vm711, %v3608, 0
        %3612 = vmatpush.msra.mxu0 0.0
        %3613 = vmatpush.msra.mxu0 0.0
        %3614 = vmatpush.msra.mxu0 0.0
        %3615 = vmatpush.msra.mxu0 0.0
        %3616 = vmatpush.msra.mxu0 0.0
        %3617 = vmatpush.msra.mxu0 0.0
        %3618 = vmatpush.msra.mxu0 0.0
        %3619 = vmatpush.msra.mxu0 0.0
        %3620 = vmatpush.msra.mxu0 0.0
        %3621 = vmatpush.msra.mxu0 0.0
        %3622 = vmatpush.msra.mxu0 0.0
        %3623 = vmatpush.msra.mxu0 0.0
        %3624 = vmatpush.msra.mxu0 %v1302
        %3625 = vmatpush.msra.mxu0 %v1301
        %3626 = vmatpush.msra.mxu0 %v1300
        %3627 = vmatpush.msra.mxu0 %v1299
        %3628 = vmatmul.f32.gmra.mxu0 %v3610
        %v3629 = vpop.f32.mrf.mxu0
        %v3630 = vadd.f32 0.0, %v3629
        %3631 = vdwg.mxu0
        %v3632 = vmax.f32 %v3630, 1e-24
        %v3633 = vrsqrt.pop %v3632
        %v3634 = vmul.f32 %v3633, %v3632
        %v3635 = vmul.f32 %v3634, %v3633
        %v3636 = vmul.f32 0.5, %v3635
        %v3637 = vsub.f32 1.5, %v3636
        %v3638 = vmul.f32 %v3633, %v3637
        %vm3639 = vweird.f32 %v3632
        %vm3640 = vweird.f32 %v3633
        %vm3641 = vmor %vm3639, %vm3640
        %v3642 = vsel %vm3641, %v3633, %v3638
        %v3643 = vmul.f32 %v3580, %v3580
        %v3644 = vmul.f32 %v3581, %v3581
        %v3645 = vmul.f32 %v3582, %v3582
        %v3646 = vmul.f32 %v3583, %v3583
        %v3647 = vmul.f32 %v3584, %v3584
        %v3648 = vmul.f32 %v3585, %v3585
        %v3649 = vmul.f32 %v3586, %v3586
        %v3650 = vmul.f32 %v3587, %v3587
        %v3652 = vsel %vm711, %v3643, 0
        %v3655 = vsel %vm711, %v3644, 0
        %v3658 = vsel %vm711, %v3645, 0
        %v3661 = vsel %vm711, %v3646, 0
        %v3664 = vsel %vm711, %v3647, 0
        %v3667 = vsel %vm711, %v3648, 0
        %v3670 = vsel %vm711, %v3649, 0
        %v3673 = vsel %vm711, %v3650, 0
        %3675 = vmatpush.msra.mxu0 0.0
        %3676 = vmatpush.msra.mxu0 0.0
        %3677 = vmatpush.msra.mxu0 0.0
        %3678 = vmatpush.msra.mxu0 0.0
        %3679 = vmatpush.msra.mxu0 0.0
        %3680 = vmatpush.msra.mxu0 0.0
        %3681 = vmatpush.msra.mxu0 0.0
        %3682 = vmatpush.msra.mxu0 0.0
        %3683 = vmatpush.msra.mxu0 0.0
        %3684 = vmatpush.msra.mxu0 0.0
        %3685 = vmatpush.msra.mxu0 0.0
        %3686 = vmatpush.msra.mxu0 0.0
        %3687 = vmatpush.msra.mxu0 %v1302
        %3688 = vmatpush.msra.mxu0 %v1301
        %3689 = vmatpush.msra.mxu0 %v1300
        %3690 = vmatpush.msra.mxu0 %v1299
        %3691 = vmatmul.f32.gmra.mxu0 %v3652
        %v3692 = vpop.f32.mrf.mxu0
        %v3693 = vadd.f32 0.0, %v3692
        %3694 = vmatmul.f32.gmra.mxu0 %v3655
        %v3695 = vpop.f32.mrf.mxu0
        %v3696 = vadd.f32 0.0, %v3695
        %3697 = vmatmul.f32.gmra.mxu0 %v3658
        %v3698 = vpop.f32.mrf.mxu0
        %v3699 = vadd.f32 0.0, %v3698
        %3700 = vmatmul.f32.gmra.mxu0 %v3661
        %v3701 = vpop.f32.mrf.mxu0
        %v3702 = vadd.f32 0.0, %v3701
        %3703 = vmatmul.f32.gmra.mxu0 %v3664
        %v3704 = vpop.f32.mrf.mxu0
        %v3705 = vadd.f32 0.0, %v3704
        %3706 = vmatmul.f32.gmra.mxu0 %v3667
        %v3707 = vpop.f32.mrf.mxu0
        %v3708 = vadd.f32 0.0, %v3707
        %3709 = vmatmul.f32.gmra.mxu0 %v3670
        %v3710 = vpop.f32.mrf.mxu0
        %v3711 = vadd.f32 0.0, %v3710
        %3712 = vmatmul.f32.gmra.mxu0 %v3673
        %v3713 = vpop.f32.mrf.mxu0
        %v3714 = vadd.f32 0.0, %v3713
        %3715 = vdwg.mxu0
        %v3716 = vmax.f32 %v3693, 1e-24
        %v3717 = vmax.f32 %v3696, 1e-24
        %v3718 = vmax.f32 %v3699, 1e-24
        %v3719 = vmax.f32 %v3702, 1e-24
        %v3720 = vmax.f32 %v3705, 1e-24
        %v3721 = vmax.f32 %v3708, 1e-24
        %v3722 = vmax.f32 %v3711, 1e-24
        %v3723 = vmax.f32 %v3714, 1e-24
        %v3724 = vrsqrt.pop %v3716
        %v3725 = vmul.f32 %v3724, %v3716
        %v3726 = vmul.f32 %v3725, %v3724
        %v3727 = vmul.f32 0.5, %v3726
        %v3728 = vsub.f32 1.5, %v3727
        %v3729 = vmul.f32 %v3724, %v3728
        %vm3730 = vweird.f32 %v3716
        %vm3731 = vweird.f32 %v3724
        %vm3732 = vmor %vm3730, %vm3731
        %v3733 = vsel %vm3732, %v3724, %v3729
        %v3734 = vrsqrt.pop %v3717
        %v3735 = vmul.f32 %v3734, %v3717
        %v3736 = vmul.f32 %v3735, %v3734
        %v3737 = vmul.f32 0.5, %v3736
        %v3738 = vsub.f32 1.5, %v3737
        %v3739 = vmul.f32 %v3734, %v3738
        %vm3740 = vweird.f32 %v3717
        %vm3741 = vweird.f32 %v3734
        %vm3742 = vmor %vm3740, %vm3741
        %v3743 = vsel %vm3742, %v3734, %v3739
        %v3744 = vrsqrt.pop %v3718
        %v3745 = vmul.f32 %v3744, %v3718
        %v3746 = vmul.f32 %v3745, %v3744
        %v3747 = vmul.f32 0.5, %v3746
        %v3748 = vsub.f32 1.5, %v3747
        %v3749 = vmul.f32 %v3744, %v3748
        %vm3750 = vweird.f32 %v3718
        %vm3751 = vweird.f32 %v3744
        %vm3752 = vmor %vm3750, %vm3751
        %v3753 = vsel %vm3752, %v3744, %v3749
        %v3754 = vrsqrt.pop %v3719
        %v3755 = vmul.f32 %v3754, %v3719
        %v3756 = vmul.f32 %v3755, %v3754
        %v3757 = vmul.f32 0.5, %v3756
        %v3758 = vsub.f32 1.5, %v3757
        %v3759 = vmul.f32 %v3754, %v3758
        %vm3760 = vweird.f32 %v3719
        %vm3761 = vweird.f32 %v3754
        %vm3762 = vmor %vm3760, %vm3761
        %v3763 = vsel %vm3762, %v3754, %v3759
        %v3764 = vrsqrt.pop %v3720
        %v3765 = vmul.f32 %v3764, %v3720
        %v3766 = vmul.f32 %v3765, %v3764
        %v3767 = vmul.f32 0.5, %v3766
        %v3768 = vsub.f32 1.5, %v3767
        %v3769 = vmul.f32 %v3764, %v3768
        %vm3770 = vweird.f32 %v3720
        %vm3771 = vweird.f32 %v3764
        %vm3772 = vmor %vm3770, %vm3771
        %v3773 = vsel %vm3772, %v3764, %v3769
        %v3774 = vrsqrt.pop %v3721
        %v3775 = vmul.f32 %v3774, %v3721
        %v3776 = vmul.f32 %v3775, %v3774
        %v3777 = vmul.f32 0.5, %v3776
        %v3778 = vsub.f32 1.5, %v3777
        %v3779 = vmul.f32 %v3774, %v3778
        %vm3780 = vweird.f32 %v3721
        %vm3781 = vweird.f32 %v3774
        %vm3782 = vmor %vm3780, %vm3781
        %v3783 = vsel %vm3782, %v3774, %v3779
        %v3784 = vrsqrt.pop %v3722
        %v3785 = vmul.f32 %v3784, %v3722
        %v3786 = vmul.f32 %v3785, %v3784
        %v3787 = vmul.f32 0.5, %v3786
        %v3788 = vsub.f32 1.5, %v3787
        %v3789 = vmul.f32 %v3784, %v3788
        %vm3790 = vweird.f32 %v3722
        %vm3791 = vweird.f32 %v3784
        %vm3792 = vmor %vm3790, %vm3791
        %v3793 = vsel %vm3792, %v3784, %v3789
        %v3794 = vrsqrt.pop %v3723
        %v3795 = vmul.f32 %v3794, %v3723
        %v3796 = vmul.f32 %v3795, %v3794
        %v3797 = vmul.f32 0.5, %v3796
        %v3798 = vsub.f32 1.5, %v3797
        %v3799 = vmul.f32 %v3794, %v3798
        %vm3800 = vweird.f32 %v3723
        %vm3801 = vweird.f32 %v3794
        %vm3802 = vmor %vm3800, %vm3801
        %v3803 = vsel %vm3802, %v3794, %v3799
        %v3805 = vsel %vm1535, %v3642, 0
        %3807 = vmatpush.msra.mxu0 0.0
        %3808 = vmatpush.msra.mxu0 0.0
        %3809 = vmatpush.msra.mxu0 0.0
        %3810 = vmatpush.msra.mxu0 0.0
        %3811 = vmatpush.msra.mxu0 0.0
        %3812 = vmatpush.msra.mxu0 0.0
        %3813 = vmatpush.msra.mxu0 0.0
        %3814 = vmatpush.msra.mxu0 0.0
        %3815 = vmatpush.msra.mxu0 0.0
        %3816 = vmatpush.msra.mxu0 0.0
        %3817 = vmatpush.msra.mxu0 0.0
        %3818 = vmatpush.msra.mxu0 0.0
        %3819 = vmatpush.msra.mxu0 0.0
        %3820 = vmatpush.msra.mxu0 0.0
        %3821 = vmatpush.msra.mxu0 0.0
        %3822 = vmatpush.msra.mxu0 %v1541
        %3823 = vmatmul.f32.gmra.mxu0 %v3805
        %v3824 = vpop.f32.mrf.mxu0
        %v3825 = vadd.f32 0.0, %v3824
        %3826 = vdwg.mxu0
        %v3827 = vmul.f32 %v3606, %v3825
        %v3829 = vsel %vm1535, %v3733, 0
        %v3832 = vsel %vm1535, %v3743, 0
        %v3835 = vsel %vm1535, %v3753, 0
        %v3838 = vsel %vm1535, %v3763, 0
        %v3841 = vsel %vm1535, %v3773, 0
        %v3844 = vsel %vm1535, %v3783, 0
        %v3847 = vsel %vm1535, %v3793, 0
        %v3850 = vsel %vm1535, %v3803, 0
        %3852 = vmatpush.msra.mxu0 0.0
        %3853 = vmatpush.msra.mxu0 0.0
        %3854 = vmatpush.msra.mxu0 0.0
        %3855 = vmatpush.msra.mxu0 0.0
        %3856 = vmatpush.msra.mxu0 0.0
        %3857 = vmatpush.msra.mxu0 0.0
        %3858 = vmatpush.msra.mxu0 0.0
        %3859 = vmatpush.msra.mxu0 0.0
        %3860 = vmatpush.msra.mxu0 0.0
        %3861 = vmatpush.msra.mxu0 0.0
        %3862 = vmatpush.msra.mxu0 0.0
        %3863 = vmatpush.msra.mxu0 0.0
        %3864 = vmatpush.msra.mxu0 0.0
        %3865 = vmatpush.msra.mxu0 0.0
        %3866 = vmatpush.msra.mxu0 0.0
        %3867 = vmatpush.msra.mxu0 %v1541
        %3868 = vmatmul.f32.gmra.mxu0 %v3829
        %v3869 = vpop.f32.mrf.mxu0
        %v3870 = vadd.f32 0.0, %v3869
        %3871 = vmatmul.f32.gmra.mxu0 %v3832
        %v3872 = vpop.f32.mrf.mxu0
        %v3873 = vadd.f32 0.0, %v3872
        %3874 = vmatmul.f32.gmra.mxu0 %v3835
        %v3875 = vpop.f32.mrf.mxu0
        %v3876 = vadd.f32 0.0, %v3875
        %3877 = vmatmul.f32.gmra.mxu0 %v3838
        %v3878 = vpop.f32.mrf.mxu0
        %v3879 = vadd.f32 0.0, %v3878
        %3880 = vmatmul.f32.gmra.mxu0 %v3841
        %v3881 = vpop.f32.mrf.mxu0
        %v3882 = vadd.f32 0.0, %v3881
        %3883 = vmatmul.f32.gmra.mxu0 %v3844
        %v3884 = vpop.f32.mrf.mxu0
        %v3885 = vadd.f32 0.0, %v3884
        %3886 = vmatmul.f32.gmra.mxu0 %v3847
        %v3887 = vpop.f32.mrf.mxu0
        %v3888 = vadd.f32 0.0, %v3887
        %3889 = vmatmul.f32.gmra.mxu0 %v3850
        %v3890 = vpop.f32.mrf.mxu0
        %v3891 = vadd.f32 0.0, %v3890
        %3892 = vdwg.mxu0
        %v3893 = vmul.f32 %v3580, %v3870
        %v3894 = vmul.f32 %v3581, %v3873
        %v3895 = vmul.f32 %v3582, %v3876
        %v3896 = vmul.f32 %v3583, %v3879
        %v3897 = vmul.f32 %v3584, %v3882
        %v3898 = vmul.f32 %v3585, %v3885
        %v3899 = vmul.f32 %v3586, %v3888
        %v3900 = vmul.f32 %v3587, %v3891
        %v3902 = vrot.slane %v3827, 4
        %v3904 = vsel %vm1539, %v3827, %v3902
        %v3905 = vmul.f32 %v3904, %v1304
        %v3906 = vmul.f32 %v3904, %v1305
        %v3908 = vsel %vm711, %v3905, 0
        %v3911 = vsel %vm711, %v3906, 0
        %v3914 = vsel %vm711, %v3893, 0
        %v3917 = vsel %vm711, %v3894, 0
        %v3920 = vsel %vm711, %v3895, 0
        %v3923 = vsel %vm711, %v3896, 0
        %v3926 = vsel %vm711, %v3897, 0
        %v3929 = vsel %vm711, %v3898, 0
        %v3932 = vsel %vm711, %v3899, 0
        %v3935 = vsel %vm711, %v3900, 0
        %3937 = vmatpush.xpose.msra.mxu0 0.0
        %3938 = vmatpush.xpose.msra.mxu0 0.0
        %3939 = vmatpush.xpose.msra.mxu0 0.0
        %3940 = vmatpush.xpose.msra.mxu0 0.0
        %3941 = vmatpush.xpose.msra.mxu0 0.0
        %3942 = vmatpush.xpose.msra.mxu0 0.0
        %3943 = vmatpush.xpose.msra.mxu0 0.0
        %3944 = vmatpush.xpose.msra.mxu0 0.0
        %3945 = vmatpush.xpose.msra.mxu0 %v3935
        %3946 = vmatpush.xpose.msra.mxu0 %v3932
        %3947 = vmatpush.xpose.msra.mxu0 %v3929
        %3948 = vmatpush.xpose.msra.mxu0 %v3926
        %3949 = vmatpush.xpose.msra.mxu0 %v3923
        %3950 = vmatpush.xpose.msra.mxu0 %v3920
        %3951 = vmatpush.xpose.msra.mxu0 %v3917
        %3952 = vmatpush.xpose.msra.mxu0 %v3914
        %3953 = vmatmul.f32.gmra.mxu0 %v3908
        %v3954 = vpop.f32.mrf.mxu0
        %v3955 = vadd.f32 0.0, %v3954
        %3956 = vmatmul.f32.gmra.mxu0 %v3911
        %v3957 = vpop.f32.mrf.mxu0
        %v3958 = vadd.f32 0.0, %v3957
        %3959 = vdwg.mxu0
        %v3960 = vmul.f32 %v1696, %v3955
        %v3961 = vmul.f32 %v1696, %v3958
        %v3962 = vadd.f32 %v1699, %v3960
        %v3963 = vadd.f32 %v1699, %v3961
        %v3964 = vxor.u32 %v3962, 2147483648
        %v3965 = vxor.u32 %v3963, 2147483648
        %v3966 = vmul.f32 %v3964, 1.442695
        %v3967 = vpow.pop %v3966
        %v3968 = vmul.f32 %v3965, 1.442695
        %v3969 = vpow.pop %v3968
        %v3970 = vadd.f32 %v3967, 1.0
        %v3971 = vadd.f32 %v3969, 1.0
        %v3972 = vrcp.pop %v3970
        %v3973 = vmul.f32 %v3970, %v3972
        %v3974 = vsub.f32 1.0, %v3973
        %v3975 = vmul.f32 %v3972, %v3974
        %v3976 = vadd.f32 %v3972, %v3975
        %vm3977 = vweird.f32 %v3970
        %vm3978 = vweird.f32 %v3972
        %vm3979 = vmor %vm3977, %vm3978
        %v3980 = vsel %vm3979, %v3972, %v3976
        %v3981 = vand.u32 2147483647, %v3970
        %vm3982 = vcmp.eq.f32.partialorder %v3981, 8.507059e+37
        %v3983 = vand.u32 %v3970, 2147483648
        %v3984 = vor.u32 1.1754944e-38, %v3983
        %v3985 = vsel %vm3982, %v3984, %v3980
        %v3986 = vmul.f32 1.0, %v3985
        %v3987 = vrcp.pop %v3971
        %v3988 = vmul.f32 %v3971, %v3987
        %v3989 = vsub.f32 1.0, %v3988
        %v3990 = vmul.f32 %v3987, %v3989
        %v3991 = vadd.f32 %v3987, %v3990
        %vm3992 = vweird.f32 %v3971
        %vm3993 = vweird.f32 %v3987
        %vm3994 = vmor %vm3992, %vm3993
        %v3995 = vsel %vm3994, %v3987, %v3991
        %v3996 = vand.u32 2147483647, %v3971
        %vm3997 = vcmp.eq.f32.partialorder %v3996, 8.507059e+37
        %v3998 = vand.u32 %v3971, 2147483648
        %v3999 = vor.u32 1.1754944e-38, %v3998
        %v4000 = vsel %vm3997, %v3999, %v3995
        %v4001 = vmul.f32 1.0, %v4000
        %v4002 = vsel %vm1740, %v3986, -inf
        %v4003 = vrot.slane %v4002, 4
        %v4004 = vmax.f32 %v4002, %v4003
        %v4005 = vrot.slane %v4004, 2
        %v4006 = vmax.f32 %v4004, %v4005
        %v4007 = vrot.slane %v4006, 1
        %v4008 = vmax.f32 %v4006, %v4007
        %vm4009 = vcmp.ge.f32.partialorder %v3986, %v4008
        %v4010 = vsel %vm4009, %v1307, 4
        %v4011 = vsel %vm1740, %v4010, 2147483647
        %v4012 = vrot.slane %v4011, 4
        %vm4013 = vcmp.lt.s32.totalorder %v4011, %v4012
        %v4014 = vsel %vm4013, %v4011, %v4012
        %v4015 = vrot.slane %v4014, 2
        %vm4016 = vcmp.lt.s32.totalorder %v4014, %v4015
        %v4017 = vsel %vm4016, %v4014, %v4015
        %v4018 = vrot.slane %v4017, 1
        %vm4019 = vcmp.lt.s32.totalorder %v4017, %v4018
        %v4020 = vsel %vm4019, %v4017, %v4018
        %vm4021 = vcmp.eq.s32.totalorder %v1307, %v4020
        %v4022 = vsel %vm4021, %v3986, 0.0
        %v4023 = vsel %vm1762, %v3986, -inf
        %v4024 = vrot.slane %v4023, 4
        %v4025 = vmax.f32 %v4023, %v4024
        %v4026 = vrot.slane %v4025, 2
        %v4027 = vmax.f32 %v4025, %v4026
        %v4028 = vrot.slane %v4027, 1
        %v4029 = vmax.f32 %v4027, %v4028
        %vm4030 = vcmp.ge.f32.partialorder %v3986, %v4029
        %v4031 = vsel %vm4030, %v1771, 4
        %v4032 = vsel %vm1762, %v4031, 2147483647
        %v4033 = vrot.slane %v4032, 4
        %vm4034 = vcmp.lt.s32.totalorder %v4032, %v4033
        %v4035 = vsel %vm4034, %v4032, %v4033
        %v4036 = vrot.slane %v4035, 2
        %vm4037 = vcmp.lt.s32.totalorder %v4035, %v4036
        %v4038 = vsel %vm4037, %v4035, %v4036
        %v4039 = vrot.slane %v4038, 1
        %vm4040 = vcmp.lt.s32.totalorder %v4038, %v4039
        %v4041 = vsel %vm4040, %v4038, %v4039
        %vm4042 = vcmp.eq.s32.totalorder %v1307, %v4041
        %v4044 = vrot.slane %v3986, 4
        %v4046 = vsel %vm4042, %v4044, 0.0
        %v4047 = vsel %vm1740, %v4001, -inf
        %v4048 = vrot.slane %v4047, 4
        %v4049 = vmax.f32 %v4047, %v4048
        %v4050 = vrot.slane %v4049, 2
        %v4051 = vmax.f32 %v4049, %v4050
        %v4052 = vrot.slane %v4051, 1
        %v4053 = vmax.f32 %v4051, %v4052
        %vm4054 = vcmp.ge.f32.partialorder %v4001, %v4053
        %v4055 = vsel %vm4054, %v1307, 4
        %v4056 = vsel %vm1740, %v4055, 2147483647
        %v4057 = vrot.slane %v4056, 4
        %vm4058 = vcmp.lt.s32.totalorder %v4056, %v4057
        %v4059 = vsel %vm4058, %v4056, %v4057
        %v4060 = vrot.slane %v4059, 2
        %vm4061 = vcmp.lt.s32.totalorder %v4059, %v4060
        %v4062 = vsel %vm4061, %v4059, %v4060
        %v4063 = vrot.slane %v4062, 1
        %vm4064 = vcmp.lt.s32.totalorder %v4062, %v4063
        %v4065 = vsel %vm4064, %v4062, %v4063
        %vm4066 = vcmp.eq.s32.totalorder %v1307, %v4065
        %v4067 = vsel %vm4066, %v4001, 0.0
        %v4068 = vsel %vm1762, %v4001, -inf
        %v4069 = vrot.slane %v4068, 4
        %v4070 = vmax.f32 %v4068, %v4069
        %v4071 = vrot.slane %v4070, 2
        %v4072 = vmax.f32 %v4070, %v4071
        %v4073 = vrot.slane %v4072, 1
        %v4074 = vmax.f32 %v4072, %v4073
        %vm4075 = vcmp.ge.f32.partialorder %v4001, %v4074
        %v4076 = vsel %vm4075, %v1771, 4
        %v4077 = vsel %vm1762, %v4076, 2147483647
        %v4078 = vrot.slane %v4077, 4
        %vm4079 = vcmp.lt.s32.totalorder %v4077, %v4078
        %v4080 = vsel %vm4079, %v4077, %v4078
        %v4081 = vrot.slane %v4080, 2
        %vm4082 = vcmp.lt.s32.totalorder %v4080, %v4081
        %v4083 = vsel %vm4082, %v4080, %v4081
        %v4084 = vrot.slane %v4083, 1
        %vm4085 = vcmp.lt.s32.totalorder %v4083, %v4084
        %v4086 = vsel %vm4085, %v4083, %v4084
        %vm4087 = vcmp.eq.s32.totalorder %v1307, %v4086
        %v4089 = vrot.slane %v4001, 4
        %v4091 = vsel %vm4087, %v4089, 0.0
        %v4093 = vrot.slane %v4046, 4
        %v4096 = vrot.slane %v4091, 4
        %v4098 = vsel %vm1539, %v4022, %v4093
        %v4099 = vsel %vm1539, %v4067, %v4096
        %4108 = vrot.lane.b32.xlu0 %v3580, 96
        %v4109 = vpop.permute.xlu0 %4108
        %4110 = vrot.lane.b32.xlu0 %v3581, 96
        %v4111 = vpop.permute.xlu0 %4110
        %4112 = vrot.lane.b32.xlu0 %v3582, 96
        %v4113 = vpop.permute.xlu0 %4112
        %4114 = vrot.lane.b32.xlu0 %v3583, 96
        %v4115 = vpop.permute.xlu0 %4114
        %4116 = vrot.lane.b32.xlu0 %v3584, 96
        %v4117 = vpop.permute.xlu0 %4116
        %4118 = vrot.lane.b32.xlu0 %v3585, 96
        %v4119 = vpop.permute.xlu0 %4118
        %4120 = vrot.lane.b32.xlu0 %v3586, 96
        %v4121 = vpop.permute.xlu0 %4120
        %4122 = vrot.lane.b32.xlu0 %v3587, 96
        %v4123 = vpop.permute.xlu0 %4122
        %v4133 = vsel %vm1263, %v4098, 0
        %v4136 = vsel %vm1263, %v4099, 0
        %4138 = vmatpush.msra.mxu0 0.0
        %4139 = vmatpush.msra.mxu0 0.0
        %4140 = vmatpush.msra.mxu0 0.0
        %4141 = vmatpush.msra.mxu0 0.0
        %4142 = vmatpush.msra.mxu0 0.0
        %4143 = vmatpush.msra.mxu0 0.0
        %4144 = vmatpush.msra.mxu0 0.0
        %4145 = vmatpush.msra.mxu0 0.0
        %4146 = vmatpush.msra.mxu0 %v4123
        %4147 = vmatpush.msra.mxu0 %v4121
        %4148 = vmatpush.msra.mxu0 %v4119
        %4149 = vmatpush.msra.mxu0 %v4117
        %4150 = vmatpush.msra.mxu0 %v4115
        %4151 = vmatpush.msra.mxu0 %v4113
        %4152 = vmatpush.msra.mxu0 %v4111
        %4153 = vmatpush.msra.mxu0 %v4109
        %4154 = vmatmul.f32.gmra.mxu0 %v4133
        %v4155 = vpop.f32.mrf.mxu0
        %v4156 = vadd.f32 0.0, %v4155
        %4157 = vmatmul.f32.gmra.mxu0 %v4136
        %v4158 = vpop.f32.mrf.mxu0
        %v4159 = vadd.f32 0.0, %v4158
        %4160 = vdwg.mxu0
        %v4161 = vmul.f32 %v4156, %v1304
        %v4162 = vmul.f32 %v4159, %v1305
        %v4163 = vsel %vm1263, %v4098, 0.0
        %4164 = vadd.xlane.f32.xlu0 %v4163
        %v4165 = vpop.xlane.xlu0 %4164
        %v4166 = vsel %vm1263, %v4099, 0.0
        %4167 = vadd.xlane.f32.xlu0 %v4166
        %v4168 = vpop.xlane.xlu0 %4167
        %4170 = vrot.lane.b32.xlu0 %v4161, 32
        %v4171 = vpop.permute.xlu0 %4170
        %v4173 = vadd.f32 %v3606, %v4171
        %v4174 = vmul.f32 %v4165, %v1915
        %v4175 = vrot.slane %v4161, 4
        %4176 = vrot.lane.b32.xlu0 %v4175, 32
        %v4177 = vpop.permute.xlu0 %4176
        %v4179 = vadd.f32 %v4173, %v4177
        %v4180 = vmul.f32 %v4165, %v1922
        %v4182 = vrot.slane %v4180, 4
        %v4184 = vadd.f32 %v4174, %v4182
        %4186 = vrot.lane.b32.xlu0 %v4162, 32
        %v4187 = vpop.permute.xlu0 %4186
        %v4189 = vadd.f32 %v4179, %v4187
        %v4190 = vmul.f32 %v4168, %v1933
        %v4191 = vadd.f32 %v4184, %v4190
        %v4192 = vrot.slane %v4162, 4
        %4193 = vrot.lane.b32.xlu0 %v4192, 32
        %v4194 = vpop.permute.xlu0 %4193
        %v4196 = vadd.f32 %v4189, %v4194
        %v4197 = vmul.f32 %v4168, %v1941
        %v4199 = vrot.slane %v4197, 4
        %v4201 = vadd.f32 %v4191, %v4199
        %v4202 = vadd.f32 %v4201, 1.0
        %v4203 = vrcp.pop %v4202
        %4205 = vrot.lane.b32.xlu0 %v4203, 32
        %v4206 = vpop.permute.xlu0 %4205
        %v4208 = vmul.f32 %v4196, %v4206
        %v4210 = vrot.slane %v4208, 4
        %v4212 = vsel %vm1539, %v4208, %v4210
        %v4213 = vmul.f32 %v4212, %v1961
        %v4214 = vmul.f32 %v4212, %v1963
        %4215 = vxpose.xlu0.b32.start [1/16] %v4098, 128
        %4216 = vxpose.xlu0.b32.cont [2/16] %v4099, 128
        %4217 = vxpose.xlu0.b32.cont [3/16] 0.0, 128
        %4218 = vxpose.xlu0.b32.cont [4/16] 0.0, 128
        %4219 = vxpose.xlu0.b32.cont [5/16] 0.0, 128
        %4220 = vxpose.xlu0.b32.cont [6/16] 0.0, 128
        %4221 = vxpose.xlu0.b32.cont [7/16] 0.0, 128
        %4222 = vxpose.xlu0.b32.cont [8/16] 0.0, 128
        %4223 = vxpose.xlu0.b32.cont [9/16] 0.0, 128
        %4224 = vxpose.xlu0.b32.cont [10/16] 0.0, 128
        %4225 = vxpose.xlu0.b32.cont [11/16] 0.0, 128
        %4226 = vxpose.xlu0.b32.cont [12/16] 0.0, 128
        %4227 = vxpose.xlu0.b32.cont [13/16] 0.0, 128
        %4228 = vxpose.xlu0.b32.cont [14/16] 0.0, 128
        %4229 = vxpose.xlu0.b32.cont [15/16] 0.0, 128
        %4230 = vxpose.xlu0.b32.end [16/16] 0.0, 128
        %v4231 = vpop.trf.xlu0
        %v4232 = vpop.trf.xlu0
        %v4233 = vpop.trf.xlu0
        %v4234 = vpop.trf.xlu0
        %v4235 = vpop.trf.xlu0
        %v4236 = vpop.trf.xlu0
        %v4237 = vpop.trf.xlu0
        %v4238 = vpop.trf.xlu0
        %v4239 = vpop.trf.xlu0
        %v4240 = vpop.trf.xlu0
        %v4241 = vpop.trf.xlu0
        %v4242 = vpop.trf.xlu0
        %v4243 = vpop.trf.xlu0
        %v4244 = vpop.trf.xlu0
        %v4245 = vpop.trf.xlu0
        %v4246 = vpop.trf.xlu0
        %4249 = vrot.lane.b32.xlu0 %v4213, 96
        %v4250 = vpop.permute.xlu0 %4249
        %4251 = vrot.lane.b32.xlu0 %v4214, 96
        %v4252 = vpop.permute.xlu0 %4251
        %v4256 = vsel %vm2008, %v4231, 0
        %v4259 = vsel %vm2008, %v4232, 0
        %v4262 = vsel %vm2008, %v4233, 0
        %v4265 = vsel %vm2008, %v4234, 0
        %v4268 = vsel %vm2008, %v4235, 0
        %v4271 = vsel %vm2008, %v4236, 0
        %v4274 = vsel %vm2008, %v4237, 0
        %v4277 = vsel %vm2008, %v4238, 0
        %4279 = vmatpush.msra.mxu0 0.0
        %4280 = vmatpush.msra.mxu0 0.0
        %4281 = vmatpush.msra.mxu0 0.0
        %4282 = vmatpush.msra.mxu0 0.0
        %4283 = vmatpush.msra.mxu0 0.0
        %4284 = vmatpush.msra.mxu0 0.0
        %4285 = vmatpush.msra.mxu0 0.0
        %4286 = vmatpush.msra.mxu0 0.0
        %4287 = vmatpush.msra.mxu0 0.0
        %4288 = vmatpush.msra.mxu0 0.0
        %4289 = vmatpush.msra.mxu0 0.0
        %4290 = vmatpush.msra.mxu0 0.0
        %4291 = vmatpush.msra.mxu0 0.0
        %4292 = vmatpush.msra.mxu0 0.0
        %4293 = vmatpush.msra.mxu0 %v4252
        %4294 = vmatpush.msra.mxu0 %v4250
        %4295 = vmatmul.f32.gmra.mxu0 %v4256
        %v4296 = vpop.f32.mrf.mxu0
        %v4297 = vadd.f32 0.0, %v4296
        %4298 = vmatmul.f32.gmra.mxu0 %v4259
        %v4299 = vpop.f32.mrf.mxu0
        %v4300 = vadd.f32 0.0, %v4299
        %4301 = vmatmul.f32.gmra.mxu0 %v4262
        %v4302 = vpop.f32.mrf.mxu0
        %v4303 = vadd.f32 0.0, %v4302
        %4304 = vmatmul.f32.gmra.mxu0 %v4265
        %v4305 = vpop.f32.mrf.mxu0
        %v4306 = vadd.f32 0.0, %v4305
        %4307 = vmatmul.f32.gmra.mxu0 %v4268
        %v4308 = vpop.f32.mrf.mxu0
        %v4309 = vadd.f32 0.0, %v4308
        %4310 = vmatmul.f32.gmra.mxu0 %v4271
        %v4311 = vpop.f32.mrf.mxu0
        %v4312 = vadd.f32 0.0, %v4311
        %4313 = vmatmul.f32.gmra.mxu0 %v4274
        %v4314 = vpop.f32.mrf.mxu0
        %v4315 = vadd.f32 0.0, %v4314
        %4316 = vmatmul.f32.gmra.mxu0 %v4277
        %v4317 = vpop.f32.mrf.mxu0
        %v4318 = vadd.f32 0.0, %v4317
        %4319 = vdwg.mxu0
        %4320 = vst.msk [vmem:[%s3571 + $0x8] sm:$0xff] %vm711, %v4297
        %4321 = vst.msk [vmem:[%s3571 + $0x18] sm:$0xff] %vm711, %v4300
        %4322 = vst.msk [vmem:[%s3571 + $0x28] sm:$0xff] %vm711, %v4303
        %4323 = vst.msk [vmem:[%s3571 + $0x38] sm:$0xff] %vm711, %v4306
        %4324 = vst.msk [vmem:[%s3571 + $0x48] sm:$0xff] %vm711, %v4309
        %4325 = vst.msk [vmem:[%s3571 + $0x58] sm:$0xff] %vm711, %v4312
        %4326 = vst.msk [vmem:[%s3571 + $0x68] sm:$0xff] %vm711, %v4315
        %4327 = vst.msk [vmem:[%s3571 + $0x78] sm:$0xff] %vm711, %v4318
        %v4328 = vld [vmem:[#allocation3] sm:$0xff]
        %v4329 = vld [vmem:[#allocation3 + $0x8] sm:$0xff]
        %v4330 = vld [vmem:[#allocation3 + $0x10] sm:$0xff]
        %v4331 = vld [vmem:[#allocation3 + $0x18] sm:$0xff]
        %v4332 = vld [vmem:[#allocation3 + $0x20] sm:$0xff]
        %v4333 = vld [vmem:[#allocation3 + $0x28] sm:$0xff]
        %v4334 = vld [vmem:[#allocation3 + $0x30] sm:$0xff]
        %v4335 = vld [vmem:[#allocation3 + $0x38] sm:$0xff]
        %v4336 = vld [vmem:[#allocation3 + $0x40] sm:$0xff]
        %v4337 = vld [vmem:[#allocation3 + $0x48] sm:$0xff]
        %v4338 = vld [vmem:[#allocation3 + $0x50] sm:$0xff]
        %v4339 = vld [vmem:[#allocation3 + $0x58] sm:$0xff]
        %v4340 = vld [vmem:[#allocation3 + $0x60] sm:$0xff]
        %v4341 = vld [vmem:[#allocation3 + $0x68] sm:$0xff]
        %v4342 = vld [vmem:[#allocation3 + $0x70] sm:$0xff]
        %v4343 = vld [vmem:[#allocation3 + $0x78] sm:$0xff]
        %v4344 = vld [vmem:[#allocation3 + $0x80] sm:$0xff]
        %v4345 = vld [vmem:[#allocation3 + $0x88] sm:$0xff]
        %v4346 = vld [vmem:[#allocation3 + $0x90] sm:$0xff]
        %v4347 = vld [vmem:[#allocation3 + $0x98] sm:$0xff]
        %v4348 = vld [vmem:[#allocation3 + $0xa0] sm:$0xff]
        %v4349 = vld [vmem:[#allocation3 + $0xa8] sm:$0xff]
        %v4350 = vld [vmem:[#allocation3 + $0xb0] sm:$0xff]
        %v4351 = vld [vmem:[#allocation3 + $0xb8] sm:$0xff]
        %v4352 = vld [vmem:[#allocation3 + $0xc0] sm:$0xff]
        %v4353 = vld [vmem:[#allocation3 + $0xc8] sm:$0xff]
        %v4354 = vld [vmem:[#allocation3 + $0xd0] sm:$0xff]
        %v4355 = vld [vmem:[#allocation3 + $0xd8] sm:$0xff]
        %v4356 = vld [vmem:[#allocation3 + $0xe0] sm:$0xff]
        %v4357 = vld [vmem:[#allocation3 + $0xe8] sm:$0xff]
        %v4358 = vld [vmem:[#allocation3 + $0xf0] sm:$0xff]
        %v4359 = vld [vmem:[#allocation3 + $0xf8] sm:$0xff]
        %v4360 = vld [vmem:[%s11] sm:$0xff]
        %v4361 = vld [vmem:[%s11 + $0x8] sm:$0xff]
        %v4362 = vld [vmem:[%s11 + $0x10] sm:$0xff]
        %v4363 = vld [vmem:[%s11 + $0x18] sm:$0xff]
        %v4364 = vld [vmem:[%s12] sm:$0x1]
        %v4366 = vperm.slane %v4364, 0
        %v4369 = vsel %vm711, %v4328, 0
        %v4372 = vsel %vm711, %v4329, 0
        %v4375 = vsel %vm711, %v4330, 0
        %v4378 = vsel %vm711, %v4331, 0
        %v4381 = vsel %vm711, %v4332, 0
        %v4384 = vsel %vm711, %v4333, 0
        %v4387 = vsel %vm711, %v4334, 0
        %v4390 = vsel %vm711, %v4335, 0
        %v4393 = vsel %vm711, %v4336, 0
        %v4396 = vsel %vm711, %v4337, 0
        %v4399 = vsel %vm711, %v4338, 0
        %v4402 = vsel %vm711, %v4339, 0
        %v4405 = vsel %vm711, %v4340, 0
        %v4408 = vsel %vm711, %v4341, 0
        %v4411 = vsel %vm711, %v4342, 0
        %v4414 = vsel %vm711, %v4343, 0
        %v4417 = vsel %vm711, %v4344, 0
        %v4420 = vsel %vm711, %v4345, 0
        %v4423 = vsel %vm711, %v4346, 0
        %v4426 = vsel %vm711, %v4347, 0
        %v4429 = vsel %vm711, %v4348, 0
        %v4432 = vsel %vm711, %v4349, 0
        %v4435 = vsel %vm711, %v4350, 0
        %v4438 = vsel %vm711, %v4351, 0
        %v4441 = vsel %vm711, %v4352, 0
        %v4444 = vsel %vm711, %v4353, 0
        %v4447 = vsel %vm711, %v4354, 0
        %v4450 = vsel %vm711, %v4355, 0
        %v4453 = vsel %vm711, %v4356, 0
        %v4456 = vsel %vm711, %v4357, 0
        %v4459 = vsel %vm711, %v4358, 0
        %v4462 = vsel %vm711, %v4359, 0
        %4464 = vmatpush.msra.mxu0 0.0
        %4465 = vmatpush.msra.mxu0 0.0
        %4466 = vmatpush.msra.mxu0 0.0
        %4467 = vmatpush.msra.mxu0 0.0
        %4468 = vmatpush.msra.mxu0 0.0
        %4469 = vmatpush.msra.mxu0 0.0
        %4470 = vmatpush.msra.mxu0 0.0
        %4471 = vmatpush.msra.mxu0 0.0
        %4472 = vmatpush.msra.mxu0 0.0
        %4473 = vmatpush.msra.mxu0 0.0
        %4474 = vmatpush.msra.mxu0 0.0
        %4475 = vmatpush.msra.mxu0 0.0
        %4476 = vmatpush.msra.mxu0 %v4363
        %4477 = vmatpush.msra.mxu0 %v4362
        %4478 = vmatpush.msra.mxu0 %v4361
        %4479 = vmatpush.msra.mxu0 %v4360
        %4480 = vmatmul.f32.gmra.mxu0 %v4369
        %v4481 = vpop.f32.mrf.mxu0
        %v4482 = vadd.f32 %v4366, %v4481
        %4483 = vmatmul.f32.gmra.mxu0 %v4372
        %v4484 = vpop.f32.mrf.mxu0
        %v4485 = vadd.f32 %v4366, %v4484
        %4486 = vmatmul.f32.gmra.mxu0 %v4375
        %v4487 = vpop.f32.mrf.mxu0
        %v4488 = vadd.f32 %v4366, %v4487
        %4489 = vmatmul.f32.gmra.mxu0 %v4378
        %v4490 = vpop.f32.mrf.mxu0
        %v4491 = vadd.f32 %v4366, %v4490
        %4492 = vmatmul.f32.gmra.mxu0 %v4381
        %v4493 = vpop.f32.mrf.mxu0
        %v4494 = vadd.f32 %v4366, %v4493
        %4495 = vmatmul.f32.gmra.mxu0 %v4384
        %v4496 = vpop.f32.mrf.mxu0
        %v4497 = vadd.f32 %v4366, %v4496
        %4498 = vmatmul.f32.gmra.mxu0 %v4387
        %v4499 = vpop.f32.mrf.mxu0
        %v4500 = vadd.f32 %v4366, %v4499
        %4501 = vmatmul.f32.gmra.mxu0 %v4390
        %v4502 = vpop.f32.mrf.mxu0
        %v4503 = vadd.f32 %v4366, %v4502
        %4504 = vmatmul.f32.gmra.mxu0 %v4393
        %v4505 = vpop.f32.mrf.mxu0
        %v4506 = vadd.f32 %v4366, %v4505
        %4507 = vmatmul.f32.gmra.mxu0 %v4396
        %v4508 = vpop.f32.mrf.mxu0
        %v4509 = vadd.f32 %v4366, %v4508
        %4510 = vmatmul.f32.gmra.mxu0 %v4399
        %v4511 = vpop.f32.mrf.mxu0
        %v4512 = vadd.f32 %v4366, %v4511
        %4513 = vmatmul.f32.gmra.mxu0 %v4402
        %v4514 = vpop.f32.mrf.mxu0
        %v4515 = vadd.f32 %v4366, %v4514
        %4516 = vmatmul.f32.gmra.mxu0 %v4405
        %v4517 = vpop.f32.mrf.mxu0
        %v4518 = vadd.f32 %v4366, %v4517
        %4519 = vmatmul.f32.gmra.mxu0 %v4408
        %v4520 = vpop.f32.mrf.mxu0
        %v4521 = vadd.f32 %v4366, %v4520
        %4522 = vmatmul.f32.gmra.mxu0 %v4411
        %v4523 = vpop.f32.mrf.mxu0
        %v4524 = vadd.f32 %v4366, %v4523
        %4525 = vmatmul.f32.gmra.mxu0 %v4414
        %v4526 = vpop.f32.mrf.mxu0
        %v4527 = vadd.f32 %v4366, %v4526
        %4528 = vmatmul.f32.gmra.mxu0 %v4417
        %v4529 = vpop.f32.mrf.mxu0
        %v4530 = vadd.f32 %v4366, %v4529
        %4531 = vmatmul.f32.gmra.mxu0 %v4420
        %v4532 = vpop.f32.mrf.mxu0
        %v4533 = vadd.f32 %v4366, %v4532
        %4534 = vmatmul.f32.gmra.mxu0 %v4423
        %v4535 = vpop.f32.mrf.mxu0
        %v4536 = vadd.f32 %v4366, %v4535
        %4537 = vmatmul.f32.gmra.mxu0 %v4426
        %v4538 = vpop.f32.mrf.mxu0
        %v4539 = vadd.f32 %v4366, %v4538
        %4540 = vmatmul.f32.gmra.mxu0 %v4429
        %v4541 = vpop.f32.mrf.mxu0
        %v4542 = vadd.f32 %v4366, %v4541
        %4543 = vmatmul.f32.gmra.mxu0 %v4432
        %v4544 = vpop.f32.mrf.mxu0
        %v4545 = vadd.f32 %v4366, %v4544
        %4546 = vmatmul.f32.gmra.mxu0 %v4435
        %v4547 = vpop.f32.mrf.mxu0
        %v4548 = vadd.f32 %v4366, %v4547
        %4549 = vmatmul.f32.gmra.mxu0 %v4438
        %v4550 = vpop.f32.mrf.mxu0
        %v4551 = vadd.f32 %v4366, %v4550
        %4552 = vmatmul.f32.gmra.mxu0 %v4441
        %v4553 = vpop.f32.mrf.mxu0
        %v4554 = vadd.f32 %v4366, %v4553
        %4555 = vmatmul.f32.gmra.mxu0 %v4444
        %v4556 = vpop.f32.mrf.mxu0
        %v4557 = vadd.f32 %v4366, %v4556
        %4558 = vmatmul.f32.gmra.mxu0 %v4447
        %v4559 = vpop.f32.mrf.mxu0
        %v4560 = vadd.f32 %v4366, %v4559
        %4561 = vmatmul.f32.gmra.mxu0 %v4450
        %v4562 = vpop.f32.mrf.mxu0
        %v4563 = vadd.f32 %v4366, %v4562
        %4564 = vmatmul.f32.gmra.mxu0 %v4453
        %v4565 = vpop.f32.mrf.mxu0
        %v4566 = vadd.f32 %v4366, %v4565
        %4567 = vmatmul.f32.gmra.mxu0 %v4456
        %v4568 = vpop.f32.mrf.mxu0
        %v4569 = vadd.f32 %v4366, %v4568
        %4570 = vmatmul.f32.gmra.mxu0 %v4459
        %v4571 = vpop.f32.mrf.mxu0
        %v4572 = vadd.f32 %v4366, %v4571
        %4573 = vmatmul.f32.gmra.mxu0 %v4462
        %v4574 = vpop.f32.mrf.mxu0
        %v4575 = vadd.f32 %v4366, %v4574
        %4576 = vdwg.mxu0
        %v4577 = vld [vmem:[%s13] sm:$0x1]
        %v4579 = vperm.slane %v4577, 0
        %v4581 = vmul.f32 %v4579, %v4482
        %v4582 = vmul.f32 %v4579, %v4485
        %v4583 = vmul.f32 %v4579, %v4488
        %v4584 = vmul.f32 %v4579, %v4491
        %v4585 = vmul.f32 %v4579, %v4494
        %v4586 = vmul.f32 %v4579, %v4497
        %v4587 = vmul.f32 %v4579, %v4500
        %v4588 = vmul.f32 %v4579, %v4503
        %v4589 = vmul.f32 %v4579, %v4506
        %v4590 = vmul.f32 %v4579, %v4509
        %v4591 = vmul.f32 %v4579, %v4512
        %v4592 = vmul.f32 %v4579, %v4515
        %v4593 = vmul.f32 %v4579, %v4518
        %v4594 = vmul.f32 %v4579, %v4521
        %v4595 = vmul.f32 %v4579, %v4524
        %v4596 = vmul.f32 %v4579, %v4527
        %v4597 = vmul.f32 %v4579, %v4530
        %v4598 = vmul.f32 %v4579, %v4533
        %v4599 = vmul.f32 %v4579, %v4536
        %v4600 = vmul.f32 %v4579, %v4539
        %v4601 = vmul.f32 %v4579, %v4542
        %v4602 = vmul.f32 %v4579, %v4545
        %v4603 = vmul.f32 %v4579, %v4548
        %v4604 = vmul.f32 %v4579, %v4551
        %v4605 = vmul.f32 %v4579, %v4554
        %v4606 = vmul.f32 %v4579, %v4557
        %v4607 = vmul.f32 %v4579, %v4560
        %v4608 = vmul.f32 %v4579, %v4563
        %v4609 = vmul.f32 %v4579, %v4566
        %v4610 = vmul.f32 %v4579, %v4569
        %v4611 = vmul.f32 %v4579, %v4572
        %v4612 = vmul.f32 %v4579, %v4575
        %v4613 = vadd.f32 %v679, %v4581
        %v4614 = vadd.f32 %v680, %v4582
        %v4615 = vadd.f32 %v681, %v4583
        %v4616 = vadd.f32 %v682, %v4584
        %v4617 = vadd.f32 %v683, %v4585
        %v4618 = vadd.f32 %v684, %v4586
        %v4619 = vadd.f32 %v685, %v4587
        %v4620 = vadd.f32 %v686, %v4588
        %v4621 = vadd.f32 %v687, %v4589
        %v4622 = vadd.f32 %v688, %v4590
        %v4623 = vadd.f32 %v689, %v4591
        %v4624 = vadd.f32 %v690, %v4592
        %v4625 = vadd.f32 %v691, %v4593
        %v4626 = vadd.f32 %v692, %v4594
        %v4627 = vadd.f32 %v693, %v4595
        %v4628 = vadd.f32 %v694, %v4596
        %v4629 = vadd.f32 %v695, %v4597
        %v4630 = vadd.f32 %v696, %v4598
        %v4631 = vadd.f32 %v697, %v4599
        %v4632 = vadd.f32 %v698, %v4600
        %v4633 = vadd.f32 %v699, %v4601
        %v4634 = vadd.f32 %v700, %v4602
        %v4635 = vadd.f32 %v701, %v4603
        %v4636 = vadd.f32 %v702, %v4604
        %v4637 = vadd.f32 %v703, %v4605
        %v4638 = vadd.f32 %v704, %v4606
        %v4639 = vadd.f32 %v705, %v4607
        %v4640 = vadd.f32 %v706, %v4608
        %v4641 = vadd.f32 %v707, %v4609
        %v4642 = vadd.f32 %v708, %v4610
        %v4643 = vadd.f32 %v709, %v4611
        %v4644 = vadd.f32 %v710, %v4612
        %v4645 = vsel %vm711, %v4613, 0.0
        %v4646 = vsel %vm711, %v4614, 0.0
        %v4647 = vadd.f32 %v4645, %v4646
        %v4648 = vsel %vm711, %v4615, 0.0
        %v4649 = vadd.f32 %v4647, %v4648
        %v4650 = vsel %vm711, %v4616, 0.0
        %v4651 = vadd.f32 %v4649, %v4650
        %v4652 = vsel %vm711, %v4617, 0.0
        %v4653 = vadd.f32 %v4651, %v4652
        %v4654 = vsel %vm711, %v4618, 0.0
        %v4655 = vadd.f32 %v4653, %v4654
        %v4656 = vsel %vm711, %v4619, 0.0
        %v4657 = vadd.f32 %v4655, %v4656
        %v4658 = vsel %vm711, %v4620, 0.0
        %v4659 = vadd.f32 %v4657, %v4658
        %v4660 = vsel %vm711, %v4621, 0.0
        %v4661 = vadd.f32 %v4659, %v4660
        %v4662 = vsel %vm711, %v4622, 0.0
        %v4663 = vadd.f32 %v4661, %v4662
        %v4664 = vsel %vm711, %v4623, 0.0
        %v4665 = vadd.f32 %v4663, %v4664
        %v4666 = vsel %vm711, %v4624, 0.0
        %v4667 = vadd.f32 %v4665, %v4666
        %v4668 = vsel %vm711, %v4625, 0.0
        %v4669 = vadd.f32 %v4667, %v4668
        %v4670 = vsel %vm711, %v4626, 0.0
        %v4671 = vadd.f32 %v4669, %v4670
        %v4672 = vsel %vm711, %v4627, 0.0
        %v4673 = vadd.f32 %v4671, %v4672
        %v4674 = vsel %vm711, %v4628, 0.0
        %v4675 = vadd.f32 %v4673, %v4674
        %v4676 = vsel %vm711, %v4629, 0.0
        %v4677 = vadd.f32 %v4675, %v4676
        %v4678 = vsel %vm711, %v4630, 0.0
        %v4679 = vadd.f32 %v4677, %v4678
        %v4680 = vsel %vm711, %v4631, 0.0
        %v4681 = vadd.f32 %v4679, %v4680
        %v4682 = vsel %vm711, %v4632, 0.0
        %v4683 = vadd.f32 %v4681, %v4682
        %v4684 = vsel %vm711, %v4633, 0.0
        %v4685 = vadd.f32 %v4683, %v4684
        %v4686 = vsel %vm711, %v4634, 0.0
        %v4687 = vadd.f32 %v4685, %v4686
        %v4688 = vsel %vm711, %v4635, 0.0
        %v4689 = vadd.f32 %v4687, %v4688
        %v4690 = vsel %vm711, %v4636, 0.0
        %v4691 = vadd.f32 %v4689, %v4690
        %v4692 = vsel %vm711, %v4637, 0.0
        %v4693 = vadd.f32 %v4691, %v4692
        %v4694 = vsel %vm711, %v4638, 0.0
        %v4695 = vadd.f32 %v4693, %v4694
        %v4696 = vsel %vm711, %v4639, 0.0
        %v4697 = vadd.f32 %v4695, %v4696
        %v4698 = vsel %vm711, %v4640, 0.0
        %v4699 = vadd.f32 %v4697, %v4698
        %v4700 = vsel %vm711, %v4641, 0.0
        %v4701 = vadd.f32 %v4699, %v4700
        %v4702 = vsel %vm711, %v4642, 0.0
        %v4703 = vadd.f32 %v4701, %v4702
        %v4704 = vsel %vm711, %v4643, 0.0
        %v4705 = vadd.f32 %v4703, %v4704
        %v4706 = vsel %vm711, %v4644, 0.0
        %v4707 = vadd.f32 %v4705, %v4706
        %4708 = vadd.xlane.f32.xlu0 %v4707
        %v4709 = vpop.xlane.xlu0 %4708
        %v4710 = vrot.slane %v4709, 4
        %v4711 = vadd.f32 %v4709, %v4710
        %v4712 = vrot.slane %v4711, 2
        %v4713 = vadd.f32 %v4711, %v4712
        %v4714 = vrot.slane %v4713, 1
        %v4715 = vadd.f32 %v4713, %v4714
        %s4716 = vtos %v4715
        %v4717 = vstv %s4716
        %v4718 = vmul.f32 %v4717, %v791
        %v4719 = vsub.f32 %v4613, %v4718
        %v4720 = vsub.f32 %v4614, %v4718
        %v4721 = vsub.f32 %v4615, %v4718
        %v4722 = vsub.f32 %v4616, %v4718
        %v4723 = vsub.f32 %v4617, %v4718
        %v4724 = vsub.f32 %v4618, %v4718
        %v4725 = vsub.f32 %v4619, %v4718
        %v4726 = vsub.f32 %v4620, %v4718
        %v4727 = vsub.f32 %v4621, %v4718
        %v4728 = vsub.f32 %v4622, %v4718
        %v4729 = vsub.f32 %v4623, %v4718
        %v4730 = vsub.f32 %v4624, %v4718
        %v4731 = vsub.f32 %v4625, %v4718
        %v4732 = vsub.f32 %v4626, %v4718
        %v4733 = vsub.f32 %v4627, %v4718
        %v4734 = vsub.f32 %v4628, %v4718
        %v4735 = vsub.f32 %v4629, %v4718
        %v4736 = vsub.f32 %v4630, %v4718
        %v4737 = vsub.f32 %v4631, %v4718
        %v4738 = vsub.f32 %v4632, %v4718
        %v4739 = vsub.f32 %v4633, %v4718
        %v4740 = vsub.f32 %v4634, %v4718
        %v4741 = vsub.f32 %v4635, %v4718
        %v4742 = vsub.f32 %v4636, %v4718
        %v4743 = vsub.f32 %v4637, %v4718
        %v4744 = vsub.f32 %v4638, %v4718
        %v4745 = vsub.f32 %v4639, %v4718
        %v4746 = vsub.f32 %v4640, %v4718
        %v4747 = vsub.f32 %v4641, %v4718
        %v4748 = vsub.f32 %v4642, %v4718
        %v4749 = vsub.f32 %v4643, %v4718
        %v4750 = vsub.f32 %v4644, %v4718
        %v4751 = vmul.f32 %v4719, %v4719
        %v4752 = vmul.f32 %v4720, %v4720
        %v4753 = vmul.f32 %v4721, %v4721
        %v4754 = vmul.f32 %v4722, %v4722
        %v4755 = vmul.f32 %v4723, %v4723
        %v4756 = vmul.f32 %v4724, %v4724
        %v4757 = vmul.f32 %v4725, %v4725
        %v4758 = vmul.f32 %v4726, %v4726
        %v4759 = vmul.f32 %v4727, %v4727
        %v4760 = vmul.f32 %v4728, %v4728
        %v4761 = vmul.f32 %v4729, %v4729
        %v4762 = vmul.f32 %v4730, %v4730
        %v4763 = vmul.f32 %v4731, %v4731
        %v4764 = vmul.f32 %v4732, %v4732
        %v4765 = vmul.f32 %v4733, %v4733
        %v4766 = vmul.f32 %v4734, %v4734
        %v4767 = vmul.f32 %v4735, %v4735
        %v4768 = vmul.f32 %v4736, %v4736
        %v4769 = vmul.f32 %v4737, %v4737
        %v4770 = vmul.f32 %v4738, %v4738
        %v4771 = vmul.f32 %v4739, %v4739
        %v4772 = vmul.f32 %v4740, %v4740
        %v4773 = vmul.f32 %v4741, %v4741
        %v4774 = vmul.f32 %v4742, %v4742
        %v4775 = vmul.f32 %v4743, %v4743
        %v4776 = vmul.f32 %v4744, %v4744
        %v4777 = vmul.f32 %v4745, %v4745
        %v4778 = vmul.f32 %v4746, %v4746
        %v4779 = vmul.f32 %v4747, %v4747
        %v4780 = vmul.f32 %v4748, %v4748
        %v4781 = vmul.f32 %v4749, %v4749
        %v4782 = vmul.f32 %v4750, %v4750
        %v4783 = vsel %vm711, %v4751, 0.0
        %v4784 = vsel %vm711, %v4752, 0.0
        %v4785 = vadd.f32 %v4783, %v4784
        %v4786 = vsel %vm711, %v4753, 0.0
        %v4787 = vadd.f32 %v4785, %v4786
        %v4788 = vsel %vm711, %v4754, 0.0
        %v4789 = vadd.f32 %v4787, %v4788
        %v4790 = vsel %vm711, %v4755, 0.0
        %v4791 = vadd.f32 %v4789, %v4790
        %v4792 = vsel %vm711, %v4756, 0.0
        %v4793 = vadd.f32 %v4791, %v4792
        %v4794 = vsel %vm711, %v4757, 0.0
        %v4795 = vadd.f32 %v4793, %v4794
        %v4796 = vsel %vm711, %v4758, 0.0
        %v4797 = vadd.f32 %v4795, %v4796
        %v4798 = vsel %vm711, %v4759, 0.0
        %v4799 = vadd.f32 %v4797, %v4798
        %v4800 = vsel %vm711, %v4760, 0.0
        %v4801 = vadd.f32 %v4799, %v4800
        %v4802 = vsel %vm711, %v4761, 0.0
        %v4803 = vadd.f32 %v4801, %v4802
        %v4804 = vsel %vm711, %v4762, 0.0
        %v4805 = vadd.f32 %v4803, %v4804
        %v4806 = vsel %vm711, %v4763, 0.0
        %v4807 = vadd.f32 %v4805, %v4806
        %v4808 = vsel %vm711, %v4764, 0.0
        %v4809 = vadd.f32 %v4807, %v4808
        %v4810 = vsel %vm711, %v4765, 0.0
        %v4811 = vadd.f32 %v4809, %v4810
        %v4812 = vsel %vm711, %v4766, 0.0
        %v4813 = vadd.f32 %v4811, %v4812
        %v4814 = vsel %vm711, %v4767, 0.0
        %v4815 = vadd.f32 %v4813, %v4814
        %v4816 = vsel %vm711, %v4768, 0.0
        %v4817 = vadd.f32 %v4815, %v4816
        %v4818 = vsel %vm711, %v4769, 0.0
        %v4819 = vadd.f32 %v4817, %v4818
        %v4820 = vsel %vm711, %v4770, 0.0
        %v4821 = vadd.f32 %v4819, %v4820
        %v4822 = vsel %vm711, %v4771, 0.0
        %v4823 = vadd.f32 %v4821, %v4822
        %v4824 = vsel %vm711, %v4772, 0.0
        %v4825 = vadd.f32 %v4823, %v4824
        %v4826 = vsel %vm711, %v4773, 0.0
        %v4827 = vadd.f32 %v4825, %v4826
        %v4828 = vsel %vm711, %v4774, 0.0
        %v4829 = vadd.f32 %v4827, %v4828
        %v4830 = vsel %vm711, %v4775, 0.0
        %v4831 = vadd.f32 %v4829, %v4830
        %v4832 = vsel %vm711, %v4776, 0.0
        %v4833 = vadd.f32 %v4831, %v4832
        %v4834 = vsel %vm711, %v4777, 0.0
        %v4835 = vadd.f32 %v4833, %v4834
        %v4836 = vsel %vm711, %v4778, 0.0
        %v4837 = vadd.f32 %v4835, %v4836
        %v4838 = vsel %vm711, %v4779, 0.0
        %v4839 = vadd.f32 %v4837, %v4838
        %v4840 = vsel %vm711, %v4780, 0.0
        %v4841 = vadd.f32 %v4839, %v4840
        %v4842 = vsel %vm711, %v4781, 0.0
        %v4843 = vadd.f32 %v4841, %v4842
        %v4844 = vsel %vm711, %v4782, 0.0
        %v4845 = vadd.f32 %v4843, %v4844
        %4846 = vadd.xlane.f32.xlu0 %v4845
        %v4847 = vpop.xlane.xlu0 %4846
        %v4848 = vrot.slane %v4847, 4
        %v4849 = vadd.f32 %v4847, %v4848
        %v4850 = vrot.slane %v4849, 2
        %v4851 = vadd.f32 %v4849, %v4850
        %v4852 = vrot.slane %v4851, 1
        %v4853 = vadd.f32 %v4851, %v4852
        %s4854 = vtos %v4853
        %v4855 = vstv %s4854
        %v4856 = vmul.f32 %v4855, %v791
        %v4857 = vadd.f32 %v4856, 1e-05
        %v4858 = vrsqrt.pop %v4857
        %v4859 = vmul.f32 %v4858, %v4857
        %v4860 = vmul.f32 %v4859, %v4858
        %v4861 = vmul.f32 0.5, %v4860
        %v4862 = vsub.f32 1.5, %v4861
        %v4863 = vmul.f32 %v4858, %v4862
        %vm4864 = vweird.f32 %v4857
        %vm4865 = vweird.f32 %v4858
        %vm4866 = vmor %vm4864, %vm4865
        %v4867 = vsel %vm4866, %v4858, %v4863
        %v4868 = vmul.f32 %v4719, %v4867
        %v4869 = vmul.f32 %v4720, %v4867
        %v4870 = vmul.f32 %v4721, %v4867
        %v4871 = vmul.f32 %v4722, %v4867
        %v4872 = vmul.f32 %v4723, %v4867
        %v4873 = vmul.f32 %v4724, %v4867
        %v4874 = vmul.f32 %v4725, %v4867
        %v4875 = vmul.f32 %v4726, %v4867
        %v4876 = vmul.f32 %v4727, %v4867
        %v4877 = vmul.f32 %v4728, %v4867
        %v4878 = vmul.f32 %v4729, %v4867
        %v4879 = vmul.f32 %v4730, %v4867
        %v4880 = vmul.f32 %v4731, %v4867
        %v4881 = vmul.f32 %v4732, %v4867
        %v4882 = vmul.f32 %v4733, %v4867
        %v4883 = vmul.f32 %v4734, %v4867
        %v4884 = vmul.f32 %v4735, %v4867
        %v4885 = vmul.f32 %v4736, %v4867
        %v4886 = vmul.f32 %v4737, %v4867
        %v4887 = vmul.f32 %v4738, %v4867
        %v4888 = vmul.f32 %v4739, %v4867
        %v4889 = vmul.f32 %v4740, %v4867
        %v4890 = vmul.f32 %v4741, %v4867
        %v4891 = vmul.f32 %v4742, %v4867
        %v4892 = vmul.f32 %v4743, %v4867
        %v4893 = vmul.f32 %v4744, %v4867
        %v4894 = vmul.f32 %v4745, %v4867
        %v4895 = vmul.f32 %v4746, %v4867
        %v4896 = vmul.f32 %v4747, %v4867
        %v4897 = vmul.f32 %v4748, %v4867
        %v4898 = vmul.f32 %v4749, %v4867
        %v4899 = vmul.f32 %v4750, %v4867
        %v4900 = vld [vmem:[%s14] sm:$0x1]
        %v4902 = vperm.slane %v4900, 0
        %v4904 = vmul.f32 %v4868, %v4902
        %v4905 = vmul.f32 %v4869, %v4902
        %v4906 = vmul.f32 %v4870, %v4902
        %v4907 = vmul.f32 %v4871, %v4902
        %v4908 = vmul.f32 %v4872, %v4902
        %v4909 = vmul.f32 %v4873, %v4902
        %v4910 = vmul.f32 %v4874, %v4902
        %v4911 = vmul.f32 %v4875, %v4902
        %v4912 = vmul.f32 %v4876, %v4902
        %v4913 = vmul.f32 %v4877, %v4902
        %v4914 = vmul.f32 %v4878, %v4902
        %v4915 = vmul.f32 %v4879, %v4902
        %v4916 = vmul.f32 %v4880, %v4902
        %v4917 = vmul.f32 %v4881, %v4902
        %v4918 = vmul.f32 %v4882, %v4902
        %v4919 = vmul.f32 %v4883, %v4902
        %v4920 = vmul.f32 %v4884, %v4902
        %v4921 = vmul.f32 %v4885, %v4902
        %v4922 = vmul.f32 %v4886, %v4902
        %v4923 = vmul.f32 %v4887, %v4902
        %v4924 = vmul.f32 %v4888, %v4902
        %v4925 = vmul.f32 %v4889, %v4902
        %v4926 = vmul.f32 %v4890, %v4902
        %v4927 = vmul.f32 %v4891, %v4902
        %v4928 = vmul.f32 %v4892, %v4902
        %v4929 = vmul.f32 %v4893, %v4902
        %v4930 = vmul.f32 %v4894, %v4902
        %v4931 = vmul.f32 %v4895, %v4902
        %v4932 = vmul.f32 %v4896, %v4902
        %v4933 = vmul.f32 %v4897, %v4902
        %v4934 = vmul.f32 %v4898, %v4902
        %v4935 = vmul.f32 %v4899, %v4902
        %v4936 = vld [vmem:[%s15] sm:$0x1]
        %v4938 = vperm.slane %v4936, 0
        %v4940 = vadd.f32 %v4904, %v4938
        %v4941 = vadd.f32 %v4905, %v4938
        %v4942 = vadd.f32 %v4906, %v4938
        %v4943 = vadd.f32 %v4907, %v4938
        %v4944 = vadd.f32 %v4908, %v4938
        %v4945 = vadd.f32 %v4909, %v4938
        %v4946 = vadd.f32 %v4910, %v4938
        %v4947 = vadd.f32 %v4911, %v4938
        %v4948 = vadd.f32 %v4912, %v4938
        %v4949 = vadd.f32 %v4913, %v4938
        %v4950 = vadd.f32 %v4914, %v4938
        %v4951 = vadd.f32 %v4915, %v4938
        %v4952 = vadd.f32 %v4916, %v4938
        %v4953 = vadd.f32 %v4917, %v4938
        %v4954 = vadd.f32 %v4918, %v4938
        %v4955 = vadd.f32 %v4919, %v4938
        %v4956 = vadd.f32 %v4920, %v4938
        %v4957 = vadd.f32 %v4921, %v4938
        %v4958 = vadd.f32 %v4922, %v4938
        %v4959 = vadd.f32 %v4923, %v4938
        %v4960 = vadd.f32 %v4924, %v4938
        %v4961 = vadd.f32 %v4925, %v4938
        %v4962 = vadd.f32 %v4926, %v4938
        %v4963 = vadd.f32 %v4927, %v4938
        %v4964 = vadd.f32 %v4928, %v4938
        %v4965 = vadd.f32 %v4929, %v4938
        %v4966 = vadd.f32 %v4930, %v4938
        %v4967 = vadd.f32 %v4931, %v4938
        %v4968 = vadd.f32 %v4932, %v4938
        %v4969 = vadd.f32 %v4933, %v4938
        %v4970 = vadd.f32 %v4934, %v4938
        %v4971 = vadd.f32 %v4935, %v4938
        %v4972 = vld [vmem:[%s16] sm:$0xff]
        %v4973 = vld [vmem:[%s16 + $0x8] sm:$0xff]
        %v4974 = vld [vmem:[%s16 + $0x10] sm:$0xff]
        %v4975 = vld [vmem:[%s16 + $0x18] sm:$0xff]
        %v4976 = vld [vmem:[%s17] sm:$0x1]
        %v4978 = vperm.slane %v4976, 0
        %v4981 = vsel %vm711, %v4940, 0
        %v4984 = vsel %vm711, %v4941, 0
        %v4987 = vsel %vm711, %v4942, 0
        %v4990 = vsel %vm711, %v4943, 0
        %v4993 = vsel %vm711, %v4944, 0
        %v4996 = vsel %vm711, %v4945, 0
        %v4999 = vsel %vm711, %v4946, 0
        %v5002 = vsel %vm711, %v4947, 0
        %v5005 = vsel %vm711, %v4948, 0
        %v5008 = vsel %vm711, %v4949, 0
        %v5011 = vsel %vm711, %v4950, 0
        %v5014 = vsel %vm711, %v4951, 0
        %v5017 = vsel %vm711, %v4952, 0
        %v5020 = vsel %vm711, %v4953, 0
        %v5023 = vsel %vm711, %v4954, 0
        %v5026 = vsel %vm711, %v4955, 0
        %v5029 = vsel %vm711, %v4956, 0
        %v5032 = vsel %vm711, %v4957, 0
        %v5035 = vsel %vm711, %v4958, 0
        %v5038 = vsel %vm711, %v4959, 0
        %v5041 = vsel %vm711, %v4960, 0
        %v5044 = vsel %vm711, %v4961, 0
        %v5047 = vsel %vm711, %v4962, 0
        %v5050 = vsel %vm711, %v4963, 0
        %v5053 = vsel %vm711, %v4964, 0
        %v5056 = vsel %vm711, %v4965, 0
        %v5059 = vsel %vm711, %v4966, 0
        %v5062 = vsel %vm711, %v4967, 0
        %v5065 = vsel %vm711, %v4968, 0
        %v5068 = vsel %vm711, %v4969, 0
        %v5071 = vsel %vm711, %v4970, 0
        %v5074 = vsel %vm711, %v4971, 0
        %5076 = vmatpush.msra.mxu0 0.0
        %5077 = vmatpush.msra.mxu0 0.0
        %5078 = vmatpush.msra.mxu0 0.0
        %5079 = vmatpush.msra.mxu0 0.0
        %5080 = vmatpush.msra.mxu0 0.0
        %5081 = vmatpush.msra.mxu0 0.0
        %5082 = vmatpush.msra.mxu0 0.0
        %5083 = vmatpush.msra.mxu0 0.0
        %5084 = vmatpush.msra.mxu0 0.0
        %5085 = vmatpush.msra.mxu0 0.0
        %5086 = vmatpush.msra.mxu0 0.0
        %5087 = vmatpush.msra.mxu0 0.0
        %5088 = vmatpush.msra.mxu0 %v4975
        %5089 = vmatpush.msra.mxu0 %v4974
        %5090 = vmatpush.msra.mxu0 %v4973
        %5091 = vmatpush.msra.mxu0 %v4972
        %5092 = vmatmul.f32.gmra.mxu0 %v4981
        %v5093 = vpop.f32.mrf.mxu0
        %v5094 = vadd.f32 %v4978, %v5093
        %5095 = vmatmul.f32.gmra.mxu0 %v4984
        %v5096 = vpop.f32.mrf.mxu0
        %v5097 = vadd.f32 %v4978, %v5096
        %5098 = vmatmul.f32.gmra.mxu0 %v4987
        %v5099 = vpop.f32.mrf.mxu0
        %v5100 = vadd.f32 %v4978, %v5099
        %5101 = vmatmul.f32.gmra.mxu0 %v4990
        %v5102 = vpop.f32.mrf.mxu0
        %v5103 = vadd.f32 %v4978, %v5102
        %5104 = vmatmul.f32.gmra.mxu0 %v4993
        %v5105 = vpop.f32.mrf.mxu0
        %v5106 = vadd.f32 %v4978, %v5105
        %5107 = vmatmul.f32.gmra.mxu0 %v4996
        %v5108 = vpop.f32.mrf.mxu0
        %v5109 = vadd.f32 %v4978, %v5108
        %5110 = vmatmul.f32.gmra.mxu0 %v4999
        %v5111 = vpop.f32.mrf.mxu0
        %v5112 = vadd.f32 %v4978, %v5111
        %5113 = vmatmul.f32.gmra.mxu0 %v5002
        %v5114 = vpop.f32.mrf.mxu0
        %v5115 = vadd.f32 %v4978, %v5114
        %5116 = vmatmul.f32.gmra.mxu0 %v5005
        %v5117 = vpop.f32.mrf.mxu0
        %v5118 = vadd.f32 %v4978, %v5117
        %5119 = vmatmul.f32.gmra.mxu0 %v5008
        %v5120 = vpop.f32.mrf.mxu0
        %v5121 = vadd.f32 %v4978, %v5120
        %5122 = vmatmul.f32.gmra.mxu0 %v5011
        %v5123 = vpop.f32.mrf.mxu0
        %v5124 = vadd.f32 %v4978, %v5123
        %5125 = vmatmul.f32.gmra.mxu0 %v5014
        %v5126 = vpop.f32.mrf.mxu0
        %v5127 = vadd.f32 %v4978, %v5126
        %5128 = vmatmul.f32.gmra.mxu0 %v5017
        %v5129 = vpop.f32.mrf.mxu0
        %v5130 = vadd.f32 %v4978, %v5129
        %5131 = vmatmul.f32.gmra.mxu0 %v5020
        %v5132 = vpop.f32.mrf.mxu0
        %v5133 = vadd.f32 %v4978, %v5132
        %5134 = vmatmul.f32.gmra.mxu0 %v5023
        %v5135 = vpop.f32.mrf.mxu0
        %v5136 = vadd.f32 %v4978, %v5135
        %5137 = vmatmul.f32.gmra.mxu0 %v5026
        %v5138 = vpop.f32.mrf.mxu0
        %v5139 = vadd.f32 %v4978, %v5138
        %5140 = vmatmul.f32.gmra.mxu0 %v5029
        %v5141 = vpop.f32.mrf.mxu0
        %v5142 = vadd.f32 %v4978, %v5141
        %5143 = vmatmul.f32.gmra.mxu0 %v5032
        %v5144 = vpop.f32.mrf.mxu0
        %v5145 = vadd.f32 %v4978, %v5144
        %5146 = vmatmul.f32.gmra.mxu0 %v5035
        %v5147 = vpop.f32.mrf.mxu0
        %v5148 = vadd.f32 %v4978, %v5147
        %5149 = vmatmul.f32.gmra.mxu0 %v5038
        %v5150 = vpop.f32.mrf.mxu0
        %v5151 = vadd.f32 %v4978, %v5150
        %5152 = vmatmul.f32.gmra.mxu0 %v5041
        %v5153 = vpop.f32.mrf.mxu0
        %v5154 = vadd.f32 %v4978, %v5153
        %5155 = vmatmul.f32.gmra.mxu0 %v5044
        %v5156 = vpop.f32.mrf.mxu0
        %v5157 = vadd.f32 %v4978, %v5156
        %5158 = vmatmul.f32.gmra.mxu0 %v5047
        %v5159 = vpop.f32.mrf.mxu0
        %v5160 = vadd.f32 %v4978, %v5159
        %5161 = vmatmul.f32.gmra.mxu0 %v5050
        %v5162 = vpop.f32.mrf.mxu0
        %v5163 = vadd.f32 %v4978, %v5162
        %5164 = vmatmul.f32.gmra.mxu0 %v5053
        %v5165 = vpop.f32.mrf.mxu0
        %v5166 = vadd.f32 %v4978, %v5165
        %5167 = vmatmul.f32.gmra.mxu0 %v5056
        %v5168 = vpop.f32.mrf.mxu0
        %v5169 = vadd.f32 %v4978, %v5168
        %5170 = vmatmul.f32.gmra.mxu0 %v5059
        %v5171 = vpop.f32.mrf.mxu0
        %v5172 = vadd.f32 %v4978, %v5171
        %5173 = vmatmul.f32.gmra.mxu0 %v5062
        %v5174 = vpop.f32.mrf.mxu0
        %v5175 = vadd.f32 %v4978, %v5174
        %5176 = vmatmul.f32.gmra.mxu0 %v5065
        %v5177 = vpop.f32.mrf.mxu0
        %v5178 = vadd.f32 %v4978, %v5177
        %5179 = vmatmul.f32.gmra.mxu0 %v5068
        %v5180 = vpop.f32.mrf.mxu0
        %v5181 = vadd.f32 %v4978, %v5180
        %5182 = vmatmul.f32.gmra.mxu0 %v5071
        %v5183 = vpop.f32.mrf.mxu0
        %v5184 = vadd.f32 %v4978, %v5183
        %5185 = vmatmul.f32.gmra.mxu0 %v5074
        %v5186 = vpop.f32.mrf.mxu0
        %v5187 = vadd.f32 %v4978, %v5186
        %5188 = vdwg.mxu0
        %v5189 = vmul.f32 %v5094, 0.5
        %v5190 = vmul.f32 %v5097, 0.5
        %v5191 = vmul.f32 %v5100, 0.5
        %v5192 = vmul.f32 %v5103, 0.5
        %v5193 = vmul.f32 %v5106, 0.5
        %v5194 = vmul.f32 %v5109, 0.5
        %v5195 = vmul.f32 %v5112, 0.5
        %v5196 = vmul.f32 %v5115, 0.5
        %v5197 = vmul.f32 %v5118, 0.5
        %v5198 = vmul.f32 %v5121, 0.5
        %v5199 = vmul.f32 %v5124, 0.5
        %v5200 = vmul.f32 %v5127, 0.5
        %v5201 = vmul.f32 %v5130, 0.5
        %v5202 = vmul.f32 %v5133, 0.5
        %v5203 = vmul.f32 %v5136, 0.5
        %v5204 = vmul.f32 %v5139, 0.5
        %v5205 = vmul.f32 %v5142, 0.5
        %v5206 = vmul.f32 %v5145, 0.5
        %v5207 = vmul.f32 %v5148, 0.5
        %v5208 = vmul.f32 %v5151, 0.5
        %v5209 = vmul.f32 %v5154, 0.5
        %v5210 = vmul.f32 %v5157, 0.5
        %v5211 = vmul.f32 %v5160, 0.5
        %v5212 = vmul.f32 %v5163, 0.5
        %v5213 = vmul.f32 %v5166, 0.5
        %v5214 = vmul.f32 %v5169, 0.5
        %v5215 = vmul.f32 %v5172, 0.5
        %v5216 = vmul.f32 %v5175, 0.5
        %v5217 = vmul.f32 %v5178, 0.5
        %v5218 = vmul.f32 %v5181, 0.5
        %v5219 = vmul.f32 %v5184, 0.5
        %v5220 = vmul.f32 %v5187, 0.5
        %v5221 = vmul.f32 %v5094, 0.70710677
        %v5222 = vmul.f32 %v5097, 0.70710677
        %v5223 = vmul.f32 %v5100, 0.70710677
        %v5224 = vmul.f32 %v5103, 0.70710677
        %v5225 = vmul.f32 %v5106, 0.70710677
        %v5226 = vmul.f32 %v5109, 0.70710677
        %v5227 = vmul.f32 %v5112, 0.70710677
        %v5228 = vmul.f32 %v5115, 0.70710677
        %v5229 = vmul.f32 %v5118, 0.70710677
        %v5230 = vmul.f32 %v5121, 0.70710677
        %v5231 = vmul.f32 %v5124, 0.70710677
        %v5232 = vmul.f32 %v5127, 0.70710677
        %v5233 = vmul.f32 %v5130, 0.70710677
        %v5234 = vmul.f32 %v5133, 0.70710677
        %v5235 = vmul.f32 %v5136, 0.70710677
        %v5236 = vmul.f32 %v5139, 0.70710677
        %v5237 = vmul.f32 %v5142, 0.70710677
        %v5238 = vmul.f32 %v5145, 0.70710677
        %v5239 = vmul.f32 %v5148, 0.70710677
        %v5240 = vmul.f32 %v5151, 0.70710677
        %v5241 = vmul.f32 %v5154, 0.70710677
        %v5242 = vmul.f32 %v5157, 0.70710677
        %v5243 = vmul.f32 %v5160, 0.70710677
        %v5244 = vmul.f32 %v5163, 0.70710677
        %v5245 = vmul.f32 %v5166, 0.70710677
        %v5246 = vmul.f32 %v5169, 0.70710677
        %v5247 = vmul.f32 %v5172, 0.70710677
        %v5248 = vmul.f32 %v5175, 0.70710677
        %v5249 = vmul.f32 %v5178, 0.70710677
        %v5250 = vmul.f32 %v5181, 0.70710677
        %v5251 = vmul.f32 %v5184, 0.70710677
        %v5252 = vmul.f32 %v5187, 0.70710677
        %vm5253 = vcmp.ge.f32.partialorder %v5221, 0.0
        %vm5254 = vcmp.ge.f32.partialorder %v5222, 0.0
        %vm5255 = vcmp.ge.f32.partialorder %v5223, 0.0
        %vm5256 = vcmp.ge.f32.partialorder %v5224, 0.0
        %vm5257 = vcmp.ge.f32.partialorder %v5225, 0.0
        %vm5258 = vcmp.ge.f32.partialorder %v5226, 0.0
        %vm5259 = vcmp.ge.f32.partialorder %v5227, 0.0
        %vm5260 = vcmp.ge.f32.partialorder %v5228, 0.0
        %vm5261 = vcmp.ge.f32.partialorder %v5229, 0.0
        %vm5262 = vcmp.ge.f32.partialorder %v5230, 0.0
        %vm5263 = vcmp.ge.f32.partialorder %v5231, 0.0
        %vm5264 = vcmp.ge.f32.partialorder %v5232, 0.0
        %vm5265 = vcmp.ge.f32.partialorder %v5233, 0.0
        %vm5266 = vcmp.ge.f32.partialorder %v5234, 0.0
        %vm5267 = vcmp.ge.f32.partialorder %v5235, 0.0
        %vm5268 = vcmp.ge.f32.partialorder %v5236, 0.0
        %vm5269 = vcmp.ge.f32.partialorder %v5237, 0.0
        %vm5270 = vcmp.ge.f32.partialorder %v5238, 0.0
        %vm5271 = vcmp.ge.f32.partialorder %v5239, 0.0
        %vm5272 = vcmp.ge.f32.partialorder %v5240, 0.0
        %vm5273 = vcmp.ge.f32.partialorder %v5241, 0.0
        %vm5274 = vcmp.ge.f32.partialorder %v5242, 0.0
        %vm5275 = vcmp.ge.f32.partialorder %v5243, 0.0
        %vm5276 = vcmp.ge.f32.partialorder %v5244, 0.0
        %vm5277 = vcmp.ge.f32.partialorder %v5245, 0.0
        %vm5278 = vcmp.ge.f32.partialorder %v5246, 0.0
        %vm5279 = vcmp.ge.f32.partialorder %v5247, 0.0
        %vm5280 = vcmp.ge.f32.partialorder %v5248, 0.0
        %vm5281 = vcmp.ge.f32.partialorder %v5249, 0.0
        %vm5282 = vcmp.ge.f32.partialorder %v5250, 0.0
        %vm5283 = vcmp.ge.f32.partialorder %v5251, 0.0
        %vm5284 = vcmp.ge.f32.partialorder %v5252, 0.0
        %v5285 = vsel %vm5253, 1.0, -1.0
        %v5286 = vsel %vm5254, 1.0, -1.0
        %v5287 = vsel %vm5255, 1.0, -1.0
        %v5288 = vsel %vm5256, 1.0, -1.0
        %v5289 = vsel %vm5257, 1.0, -1.0
        %v5290 = vsel %vm5258, 1.0, -1.0
        %v5291 = vsel %vm5259, 1.0, -1.0
        %v5292 = vsel %vm5260, 1.0, -1.0
        %v5293 = vsel %vm5261, 1.0, -1.0
        %v5294 = vsel %vm5262, 1.0, -1.0
        %v5295 = vsel %vm5263, 1.0, -1.0
        %v5296 = vsel %vm5264, 1.0, -1.0
        %v5297 = vsel %vm5265, 1.0, -1.0
        %v5298 = vsel %vm5266, 1.0, -1.0
        %v5299 = vsel %vm5267, 1.0, -1.0
        %v5300 = vsel %vm5268, 1.0, -1.0
        %v5301 = vsel %vm5269, 1.0, -1.0
        %v5302 = vsel %vm5270, 1.0, -1.0
        %v5303 = vsel %vm5271, 1.0, -1.0
        %v5304 = vsel %vm5272, 1.0, -1.0
        %v5305 = vsel %vm5273, 1.0, -1.0
        %v5306 = vsel %vm5274, 1.0, -1.0
        %v5307 = vsel %vm5275, 1.0, -1.0
        %v5308 = vsel %vm5276, 1.0, -1.0
        %v5309 = vsel %vm5277, 1.0, -1.0
        %v5310 = vsel %vm5278, 1.0, -1.0
        %v5311 = vsel %vm5279, 1.0, -1.0
        %v5312 = vsel %vm5280, 1.0, -1.0
        %v5313 = vsel %vm5281, 1.0, -1.0
        %v5314 = vsel %vm5282, 1.0, -1.0
        %v5315 = vsel %vm5283, 1.0, -1.0
        %v5316 = vsel %vm5284, 1.0, -1.0
        %v5317 = vand.u32 2147483647, %v5221
        %v5318 = vand.u32 2147483647, %v5222
        %v5319 = vand.u32 2147483647, %v5223
        %v5320 = vand.u32 2147483647, %v5224
        %v5321 = vand.u32 2147483647, %v5225
        %v5322 = vand.u32 2147483647, %v5226
        %v5323 = vand.u32 2147483647, %v5227
        %v5324 = vand.u32 2147483647, %v5228
        %v5325 = vand.u32 2147483647, %v5229
        %v5326 = vand.u32 2147483647, %v5230
        %v5327 = vand.u32 2147483647, %v5231
        %v5328 = vand.u32 2147483647, %v5232
        %v5329 = vand.u32 2147483647, %v5233
        %v5330 = vand.u32 2147483647, %v5234
        %v5331 = vand.u32 2147483647, %v5235
        %v5332 = vand.u32 2147483647, %v5236
        %v5333 = vand.u32 2147483647, %v5237
        %v5334 = vand.u32 2147483647, %v5238
        %v5335 = vand.u32 2147483647, %v5239
        %v5336 = vand.u32 2147483647, %v5240
        %v5337 = vand.u32 2147483647, %v5241
        %v5338 = vand.u32 2147483647, %v5242
        %v5339 = vand.u32 2147483647, %v5243
        %v5340 = vand.u32 2147483647, %v5244
        %v5341 = vand.u32 2147483647, %v5245
        %v5342 = vand.u32 2147483647, %v5246
        %v5343 = vand.u32 2147483647, %v5247
        %v5344 = vand.u32 2147483647, %v5248
        %v5345 = vand.u32 2147483647, %v5249
        %v5346 = vand.u32 2147483647, %v5250
        %v5347 = vand.u32 2147483647, %v5251
        %v5348 = vand.u32 2147483647, %v5252
        %v5349 = vmul.f32 %v5317, 0.3275911
        %v5350 = vmul.f32 %v5318, 0.3275911
        %v5351 = vmul.f32 %v5319, 0.3275911
        %v5352 = vmul.f32 %v5320, 0.3275911
        %v5353 = vmul.f32 %v5321, 0.3275911
        %v5354 = vmul.f32 %v5322, 0.3275911
        %v5355 = vmul.f32 %v5323, 0.3275911
        %v5356 = vmul.f32 %v5324, 0.3275911
        %v5357 = vmul.f32 %v5325, 0.3275911
        %v5358 = vmul.f32 %v5326, 0.3275911
        %v5359 = vmul.f32 %v5327, 0.3275911
        %v5360 = vmul.f32 %v5328, 0.3275911
        %v5361 = vmul.f32 %v5329, 0.3275911
        %v5362 = vmul.f32 %v5330, 0.3275911
        %v5363 = vmul.f32 %v5331, 0.3275911
        %v5364 = vmul.f32 %v5332, 0.3275911
        %v5365 = vmul.f32 %v5333, 0.3275911
        %v5366 = vmul.f32 %v5334, 0.3275911
        %v5367 = vmul.f32 %v5335, 0.3275911
        %v5368 = vmul.f32 %v5336, 0.3275911
        %v5369 = vmul.f32 %v5337, 0.3275911
        %v5370 = vmul.f32 %v5338, 0.3275911
        %v5371 = vmul.f32 %v5339, 0.3275911
        %v5372 = vmul.f32 %v5340, 0.3275911
        %v5373 = vmul.f32 %v5341, 0.3275911
        %v5374 = vmul.f32 %v5342, 0.3275911
        %v5375 = vmul.f32 %v5343, 0.3275911
        %v5376 = vmul.f32 %v5344, 0.3275911
        %v5377 = vmul.f32 %v5345, 0.3275911
        %v5378 = vmul.f32 %v5346, 0.3275911
        %v5379 = vmul.f32 %v5347, 0.3275911
        %v5380 = vmul.f32 %v5348, 0.3275911
        %v5381 = vadd.f32 %v5349, 1.0
        %v5382 = vadd.f32 %v5350, 1.0
        %v5383 = vadd.f32 %v5351, 1.0
        %v5384 = vadd.f32 %v5352, 1.0
        %v5385 = vadd.f32 %v5353, 1.0
        %v5386 = vadd.f32 %v5354, 1.0
        %v5387 = vadd.f32 %v5355, 1.0
        %v5388 = vadd.f32 %v5356, 1.0
        %v5389 = vadd.f32 %v5357, 1.0
        %v5390 = vadd.f32 %v5358, 1.0
        %v5391 = vadd.f32 %v5359, 1.0
        %v5392 = vadd.f32 %v5360, 1.0
        %v5393 = vadd.f32 %v5361, 1.0
        %v5394 = vadd.f32 %v5362, 1.0
        %v5395 = vadd.f32 %v5363, 1.0
        %v5396 = vadd.f32 %v5364, 1.0
        %v5397 = vadd.f32 %v5365, 1.0
        %v5398 = vadd.f32 %v5366, 1.0
        %v5399 = vadd.f32 %v5367, 1.0
        %v5400 = vadd.f32 %v5368, 1.0
        %v5401 = vadd.f32 %v5369, 1.0
        %v5402 = vadd.f32 %v5370, 1.0
        %v5403 = vadd.f32 %v5371, 1.0
        %v5404 = vadd.f32 %v5372, 1.0
        %v5405 = vadd.f32 %v5373, 1.0
        %v5406 = vadd.f32 %v5374, 1.0
        %v5407 = vadd.f32 %v5375, 1.0
        %v5408 = vadd.f32 %v5376, 1.0
        %v5409 = vadd.f32 %v5377, 1.0
        %v5410 = vadd.f32 %v5378, 1.0
        %v5411 = vadd.f32 %v5379, 1.0
        %v5412 = vadd.f32 %v5380, 1.0
        %v5413 = vrcp.pop %v5381
        %v5414 = vmul.f32 %v5381, %v5413
        %v5415 = vsub.f32 1.0, %v5414
        %v5416 = vmul.f32 %v5413, %v5415
        %v5417 = vadd.f32 %v5413, %v5416
        %vm5418 = vweird.f32 %v5381
        %vm5419 = vweird.f32 %v5413
        %vm5420 = vmor %vm5418, %vm5419
        %v5421 = vsel %vm5420, %v5413, %v5417
        %v5422 = vand.u32 2147483647, %v5381
        %vm5423 = vcmp.eq.f32.partialorder %v5422, 8.507059e+37
        %v5424 = vand.u32 %v5381, 2147483648
        %v5425 = vor.u32 1.1754944e-38, %v5424
        %v5426 = vsel %vm5423, %v5425, %v5421
        %v5427 = vmul.f32 1.0, %v5426
        %v5428 = vrcp.pop %v5382
        %v5429 = vmul.f32 %v5382, %v5428
        %v5430 = vsub.f32 1.0, %v5429
        %v5431 = vmul.f32 %v5428, %v5430
        %v5432 = vadd.f32 %v5428, %v5431
        %vm5433 = vweird.f32 %v5382
        %vm5434 = vweird.f32 %v5428
        %vm5435 = vmor %vm5433, %vm5434
        %v5436 = vsel %vm5435, %v5428, %v5432
        %v5437 = vand.u32 2147483647, %v5382
        %vm5438 = vcmp.eq.f32.partialorder %v5437, 8.507059e+37
        %v5439 = vand.u32 %v5382, 2147483648
        %v5440 = vor.u32 1.1754944e-38, %v5439
        %v5441 = vsel %vm5438, %v5440, %v5436
        %v5442 = vmul.f32 1.0, %v5441
        %v5443 = vrcp.pop %v5383
        %v5444 = vmul.f32 %v5383, %v5443
        %v5445 = vsub.f32 1.0, %v5444
        %v5446 = vmul.f32 %v5443, %v5445
        %v5447 = vadd.f32 %v5443, %v5446
        %vm5448 = vweird.f32 %v5383
        %vm5449 = vweird.f32 %v5443
        %vm5450 = vmor %vm5448, %vm5449
        %v5451 = vsel %vm5450, %v5443, %v5447
        %v5452 = vand.u32 2147483647, %v5383
        %vm5453 = vcmp.eq.f32.partialorder %v5452, 8.507059e+37
        %v5454 = vand.u32 %v5383, 2147483648
        %v5455 = vor.u32 1.1754944e-38, %v5454
        %v5456 = vsel %vm5453, %v5455, %v5451
        %v5457 = vmul.f32 1.0, %v5456
        %v5458 = vrcp.pop %v5384
        %v5459 = vmul.f32 %v5384, %v5458
        %v5460 = vsub.f32 1.0, %v5459
        %v5461 = vmul.f32 %v5458, %v5460
        %v5462 = vadd.f32 %v5458, %v5461
        %vm5463 = vweird.f32 %v5384
        %vm5464 = vweird.f32 %v5458
        %vm5465 = vmor %vm5463, %vm5464
        %v5466 = vsel %vm5465, %v5458, %v5462
        %v5467 = vand.u32 2147483647, %v5384
        %vm5468 = vcmp.eq.f32.partialorder %v5467, 8.507059e+37
        %v5469 = vand.u32 %v5384, 2147483648
        %v5470 = vor.u32 1.1754944e-38, %v5469
        %v5471 = vsel %vm5468, %v5470, %v5466
        %v5472 = vmul.f32 1.0, %v5471
        %v5473 = vrcp.pop %v5385
        %v5474 = vmul.f32 %v5385, %v5473
        %v5475 = vsub.f32 1.0, %v5474
        %v5476 = vmul.f32 %v5473, %v5475
        %v5477 = vadd.f32 %v5473, %v5476
        %vm5478 = vweird.f32 %v5385
        %vm5479 = vweird.f32 %v5473
        %vm5480 = vmor %vm5478, %vm5479
        %v5481 = vsel %vm5480, %v5473, %v5477
        %v5482 = vand.u32 2147483647, %v5385
        %vm5483 = vcmp.eq.f32.partialorder %v5482, 8.507059e+37
        %v5484 = vand.u32 %v5385, 2147483648
        %v5485 = vor.u32 1.1754944e-38, %v5484
        %v5486 = vsel %vm5483, %v5485, %v5481
        %v5487 = vmul.f32 1.0, %v5486
        %v5488 = vrcp.pop %v5386
        %v5489 = vmul.f32 %v5386, %v5488
        %v5490 = vsub.f32 1.0, %v5489
        %v5491 = vmul.f32 %v5488, %v5490
        %v5492 = vadd.f32 %v5488, %v5491
        %vm5493 = vweird.f32 %v5386
        %vm5494 = vweird.f32 %v5488
        %vm5495 = vmor %vm5493, %vm5494
        %v5496 = vsel %vm5495, %v5488, %v5492
        %v5497 = vand.u32 2147483647, %v5386
        %vm5498 = vcmp.eq.f32.partialorder %v5497, 8.507059e+37
        %v5499 = vand.u32 %v5386, 2147483648
        %v5500 = vor.u32 1.1754944e-38, %v5499
        %v5501 = vsel %vm5498, %v5500, %v5496
        %v5502 = vmul.f32 1.0, %v5501
        %v5503 = vrcp.pop %v5387
        %v5504 = vmul.f32 %v5387, %v5503
        %v5505 = vsub.f32 1.0, %v5504
        %v5506 = vmul.f32 %v5503, %v5505
        %v5507 = vadd.f32 %v5503, %v5506
        %vm5508 = vweird.f32 %v5387
        %vm5509 = vweird.f32 %v5503
        %vm5510 = vmor %vm5508, %vm5509
        %v5511 = vsel %vm5510, %v5503, %v5507
        %v5512 = vand.u32 2147483647, %v5387
        %vm5513 = vcmp.eq.f32.partialorder %v5512, 8.507059e+37
        %v5514 = vand.u32 %v5387, 2147483648
        %v5515 = vor.u32 1.1754944e-38, %v5514
        %v5516 = vsel %vm5513, %v5515, %v5511
        %v5517 = vmul.f32 1.0, %v5516
        %v5518 = vrcp.pop %v5388
        %v5519 = vmul.f32 %v5388, %v5518
        %v5520 = vsub.f32 1.0, %v5519
        %v5521 = vmul.f32 %v5518, %v5520
        %v5522 = vadd.f32 %v5518, %v5521
        %vm5523 = vweird.f32 %v5388
        %vm5524 = vweird.f32 %v5518
        %vm5525 = vmor %vm5523, %vm5524
        %v5526 = vsel %vm5525, %v5518, %v5522
        %v5527 = vand.u32 2147483647, %v5388
        %vm5528 = vcmp.eq.f32.partialorder %v5527, 8.507059e+37
        %v5529 = vand.u32 %v5388, 2147483648
        %v5530 = vor.u32 1.1754944e-38, %v5529
        %v5531 = vsel %vm5528, %v5530, %v5526
        %v5532 = vmul.f32 1.0, %v5531
        %v5533 = vrcp.pop %v5389
        %v5534 = vmul.f32 %v5389, %v5533
        %v5535 = vsub.f32 1.0, %v5534
        %v5536 = vmul.f32 %v5533, %v5535
        %v5537 = vadd.f32 %v5533, %v5536
        %vm5538 = vweird.f32 %v5389
        %vm5539 = vweird.f32 %v5533
        %vm5540 = vmor %vm5538, %vm5539
        %v5541 = vsel %vm5540, %v5533, %v5537
        %v5542 = vand.u32 2147483647, %v5389
        %vm5543 = vcmp.eq.f32.partialorder %v5542, 8.507059e+37
        %v5544 = vand.u32 %v5389, 2147483648
        %v5545 = vor.u32 1.1754944e-38, %v5544
        %v5546 = vsel %vm5543, %v5545, %v5541
        %v5547 = vmul.f32 1.0, %v5546
        %v5548 = vrcp.pop %v5390
        %v5549 = vmul.f32 %v5390, %v5548
        %v5550 = vsub.f32 1.0, %v5549
        %v5551 = vmul.f32 %v5548, %v5550
        %v5552 = vadd.f32 %v5548, %v5551
        %vm5553 = vweird.f32 %v5390
        %vm5554 = vweird.f32 %v5548
        %vm5555 = vmor %vm5553, %vm5554
        %v5556 = vsel %vm5555, %v5548, %v5552
        %v5557 = vand.u32 2147483647, %v5390
        %vm5558 = vcmp.eq.f32.partialorder %v5557, 8.507059e+37
        %v5559 = vand.u32 %v5390, 2147483648
        %v5560 = vor.u32 1.1754944e-38, %v5559
        %v5561 = vsel %vm5558, %v5560, %v5556
        %v5562 = vmul.f32 1.0, %v5561
        %v5563 = vrcp.pop %v5391
        %v5564 = vmul.f32 %v5391, %v5563
        %v5565 = vsub.f32 1.0, %v5564
        %v5566 = vmul.f32 %v5563, %v5565
        %v5567 = vadd.f32 %v5563, %v5566
        %vm5568 = vweird.f32 %v5391
        %vm5569 = vweird.f32 %v5563
        %vm5570 = vmor %vm5568, %vm5569
        %v5571 = vsel %vm5570, %v5563, %v5567
        %v5572 = vand.u32 2147483647, %v5391
        %vm5573 = vcmp.eq.f32.partialorder %v5572, 8.507059e+37
        %v5574 = vand.u32 %v5391, 2147483648
        %v5575 = vor.u32 1.1754944e-38, %v5574
        %v5576 = vsel %vm5573, %v5575, %v5571
        %v5577 = vmul.f32 1.0, %v5576
        %v5578 = vrcp.pop %v5392
        %v5579 = vmul.f32 %v5392, %v5578
        %v5580 = vsub.f32 1.0, %v5579
        %v5581 = vmul.f32 %v5578, %v5580
        %v5582 = vadd.f32 %v5578, %v5581
        %vm5583 = vweird.f32 %v5392
        %vm5584 = vweird.f32 %v5578
        %vm5585 = vmor %vm5583, %vm5584
        %v5586 = vsel %vm5585, %v5578, %v5582
        %v5587 = vand.u32 2147483647, %v5392
        %vm5588 = vcmp.eq.f32.partialorder %v5587, 8.507059e+37
        %v5589 = vand.u32 %v5392, 2147483648
        %v5590 = vor.u32 1.1754944e-38, %v5589
        %v5591 = vsel %vm5588, %v5590, %v5586
        %v5592 = vmul.f32 1.0, %v5591
        %v5593 = vrcp.pop %v5393
        %v5594 = vmul.f32 %v5393, %v5593
        %v5595 = vsub.f32 1.0, %v5594
        %v5596 = vmul.f32 %v5593, %v5595
        %v5597 = vadd.f32 %v5593, %v5596
        %vm5598 = vweird.f32 %v5393
        %vm5599 = vweird.f32 %v5593
        %vm5600 = vmor %vm5598, %vm5599
        %v5601 = vsel %vm5600, %v5593, %v5597
        %v5602 = vand.u32 2147483647, %v5393
        %vm5603 = vcmp.eq.f32.partialorder %v5602, 8.507059e+37
        %v5604 = vand.u32 %v5393, 2147483648
        %v5605 = vor.u32 1.1754944e-38, %v5604
        %v5606 = vsel %vm5603, %v5605, %v5601
        %v5607 = vmul.f32 1.0, %v5606
        %v5608 = vrcp.pop %v5394
        %v5609 = vmul.f32 %v5394, %v5608
        %v5610 = vsub.f32 1.0, %v5609
        %v5611 = vmul.f32 %v5608, %v5610
        %v5612 = vadd.f32 %v5608, %v5611
        %vm5613 = vweird.f32 %v5394
        %vm5614 = vweird.f32 %v5608
        %vm5615 = vmor %vm5613, %vm5614
        %v5616 = vsel %vm5615, %v5608, %v5612
        %v5617 = vand.u32 2147483647, %v5394
        %vm5618 = vcmp.eq.f32.partialorder %v5617, 8.507059e+37
        %v5619 = vand.u32 %v5394, 2147483648
        %v5620 = vor.u32 1.1754944e-38, %v5619
        %v5621 = vsel %vm5618, %v5620, %v5616
        %v5622 = vmul.f32 1.0, %v5621
        %v5623 = vrcp.pop %v5395
        %v5624 = vmul.f32 %v5395, %v5623
        %v5625 = vsub.f32 1.0, %v5624
        %v5626 = vmul.f32 %v5623, %v5625
        %v5627 = vadd.f32 %v5623, %v5626
        %vm5628 = vweird.f32 %v5395
        %vm5629 = vweird.f32 %v5623
        %vm5630 = vmor %vm5628, %vm5629
        %v5631 = vsel %vm5630, %v5623, %v5627
        %v5632 = vand.u32 2147483647, %v5395
        %vm5633 = vcmp.eq.f32.partialorder %v5632, 8.507059e+37
        %v5634 = vand.u32 %v5395, 2147483648
        %v5635 = vor.u32 1.1754944e-38, %v5634
        %v5636 = vsel %vm5633, %v5635, %v5631
        %v5637 = vmul.f32 1.0, %v5636
        %v5638 = vrcp.pop %v5396
        %v5639 = vmul.f32 %v5396, %v5638
        %v5640 = vsub.f32 1.0, %v5639
        %v5641 = vmul.f32 %v5638, %v5640
        %v5642 = vadd.f32 %v5638, %v5641
        %vm5643 = vweird.f32 %v5396
        %vm5644 = vweird.f32 %v5638
        %vm5645 = vmor %vm5643, %vm5644
        %v5646 = vsel %vm5645, %v5638, %v5642
        %v5647 = vand.u32 2147483647, %v5396
        %vm5648 = vcmp.eq.f32.partialorder %v5647, 8.507059e+37
        %v5649 = vand.u32 %v5396, 2147483648
        %v5650 = vor.u32 1.1754944e-38, %v5649
        %v5651 = vsel %vm5648, %v5650, %v5646
        %v5652 = vmul.f32 1.0, %v5651
        %v5653 = vrcp.pop %v5397
        %v5654 = vmul.f32 %v5397, %v5653
        %v5655 = vsub.f32 1.0, %v5654
        %v5656 = vmul.f32 %v5653, %v5655
        %v5657 = vadd.f32 %v5653, %v5656
        %vm5658 = vweird.f32 %v5397
        %vm5659 = vweird.f32 %v5653
        %vm5660 = vmor %vm5658, %vm5659
        %v5661 = vsel %vm5660, %v5653, %v5657
        %v5662 = vand.u32 2147483647, %v5397
        %vm5663 = vcmp.eq.f32.partialorder %v5662, 8.507059e+37
        %v5664 = vand.u32 %v5397, 2147483648
        %v5665 = vor.u32 1.1754944e-38, %v5664
        %v5666 = vsel %vm5663, %v5665, %v5661
        %v5667 = vmul.f32 1.0, %v5666
        %v5668 = vrcp.pop %v5398
        %v5669 = vmul.f32 %v5398, %v5668
        %v5670 = vsub.f32 1.0, %v5669
        %v5671 = vmul.f32 %v5668, %v5670
        %v5672 = vadd.f32 %v5668, %v5671
        %vm5673 = vweird.f32 %v5398
        %vm5674 = vweird.f32 %v5668
        %vm5675 = vmor %vm5673, %vm5674
        %v5676 = vsel %vm5675, %v5668, %v5672
        %v5677 = vand.u32 2147483647, %v5398
        %vm5678 = vcmp.eq.f32.partialorder %v5677, 8.507059e+37
        %v5679 = vand.u32 %v5398, 2147483648
        %v5680 = vor.u32 1.1754944e-38, %v5679
        %v5681 = vsel %vm5678, %v5680, %v5676
        %v5682 = vmul.f32 1.0, %v5681
        %v5683 = vrcp.pop %v5399
        %v5684 = vmul.f32 %v5399, %v5683
        %v5685 = vsub.f32 1.0, %v5684
        %v5686 = vmul.f32 %v5683, %v5685
        %v5687 = vadd.f32 %v5683, %v5686
        %vm5688 = vweird.f32 %v5399
        %vm5689 = vweird.f32 %v5683
        %vm5690 = vmor %vm5688, %vm5689
        %v5691 = vsel %vm5690, %v5683, %v5687
        %v5692 = vand.u32 2147483647, %v5399
        %vm5693 = vcmp.eq.f32.partialorder %v5692, 8.507059e+37
        %v5694 = vand.u32 %v5399, 2147483648
        %v5695 = vor.u32 1.1754944e-38, %v5694
        %v5696 = vsel %vm5693, %v5695, %v5691
        %v5697 = vmul.f32 1.0, %v5696
        %v5698 = vrcp.pop %v5400
        %v5699 = vmul.f32 %v5400, %v5698
        %v5700 = vsub.f32 1.0, %v5699
        %v5701 = vmul.f32 %v5698, %v5700
        %v5702 = vadd.f32 %v5698, %v5701
        %vm5703 = vweird.f32 %v5400
        %vm5704 = vweird.f32 %v5698
        %vm5705 = vmor %vm5703, %vm5704
        %v5706 = vsel %vm5705, %v5698, %v5702
        %v5707 = vand.u32 2147483647, %v5400
        %vm5708 = vcmp.eq.f32.partialorder %v5707, 8.507059e+37
        %v5709 = vand.u32 %v5400, 2147483648
        %v5710 = vor.u32 1.1754944e-38, %v5709
        %v5711 = vsel %vm5708, %v5710, %v5706
        %v5712 = vmul.f32 1.0, %v5711
        %v5713 = vrcp.pop %v5401
        %v5714 = vmul.f32 %v5401, %v5713
        %v5715 = vsub.f32 1.0, %v5714
        %v5716 = vmul.f32 %v5713, %v5715
        %v5717 = vadd.f32 %v5713, %v5716
        %vm5718 = vweird.f32 %v5401
        %vm5719 = vweird.f32 %v5713
        %vm5720 = vmor %vm5718, %vm5719
        %v5721 = vsel %vm5720, %v5713, %v5717
        %v5722 = vand.u32 2147483647, %v5401
        %vm5723 = vcmp.eq.f32.partialorder %v5722, 8.507059e+37
        %v5724 = vand.u32 %v5401, 2147483648
        %v5725 = vor.u32 1.1754944e-38, %v5724
        %v5726 = vsel %vm5723, %v5725, %v5721
        %v5727 = vmul.f32 1.0, %v5726
        %v5728 = vrcp.pop %v5402
        %v5729 = vmul.f32 %v5402, %v5728
        %v5730 = vsub.f32 1.0, %v5729
        %v5731 = vmul.f32 %v5728, %v5730
        %v5732 = vadd.f32 %v5728, %v5731
        %vm5733 = vweird.f32 %v5402
        %vm5734 = vweird.f32 %v5728
        %vm5735 = vmor %vm5733, %vm5734
        %v5736 = vsel %vm5735, %v5728, %v5732
        %v5737 = vand.u32 2147483647, %v5402
        %vm5738 = vcmp.eq.f32.partialorder %v5737, 8.507059e+37
        %v5739 = vand.u32 %v5402, 2147483648
        %v5740 = vor.u32 1.1754944e-38, %v5739
        %v5741 = vsel %vm5738, %v5740, %v5736
        %v5742 = vmul.f32 1.0, %v5741
        %v5743 = vrcp.pop %v5403
        %v5744 = vmul.f32 %v5403, %v5743
        %v5745 = vsub.f32 1.0, %v5744
        %v5746 = vmul.f32 %v5743, %v5745
        %v5747 = vadd.f32 %v5743, %v5746
        %vm5748 = vweird.f32 %v5403
        %vm5749 = vweird.f32 %v5743
        %vm5750 = vmor %vm5748, %vm5749
        %v5751 = vsel %vm5750, %v5743, %v5747
        %v5752 = vand.u32 2147483647, %v5403
        %vm5753 = vcmp.eq.f32.partialorder %v5752, 8.507059e+37
        %v5754 = vand.u32 %v5403, 2147483648
        %v5755 = vor.u32 1.1754944e-38, %v5754
        %v5756 = vsel %vm5753, %v5755, %v5751
        %v5757 = vmul.f32 1.0, %v5756
        %v5758 = vrcp.pop %v5404
        %v5759 = vmul.f32 %v5404, %v5758
        %v5760 = vsub.f32 1.0, %v5759
        %v5761 = vmul.f32 %v5758, %v5760
        %v5762 = vadd.f32 %v5758, %v5761
        %vm5763 = vweird.f32 %v5404
        %vm5764 = vweird.f32 %v5758
        %vm5765 = vmor %vm5763, %vm5764
        %v5766 = vsel %vm5765, %v5758, %v5762
        %v5767 = vand.u32 2147483647, %v5404
        %vm5768 = vcmp.eq.f32.partialorder %v5767, 8.507059e+37
        %v5769 = vand.u32 %v5404, 2147483648
        %v5770 = vor.u32 1.1754944e-38, %v5769
        %v5771 = vsel %vm5768, %v5770, %v5766
        %v5772 = vmul.f32 1.0, %v5771
        %v5773 = vrcp.pop %v5405
        %v5774 = vmul.f32 %v5405, %v5773
        %v5775 = vsub.f32 1.0, %v5774
        %v5776 = vmul.f32 %v5773, %v5775
        %v5777 = vadd.f32 %v5773, %v5776
        %vm5778 = vweird.f32 %v5405
        %vm5779 = vweird.f32 %v5773
        %vm5780 = vmor %vm5778, %vm5779
        %v5781 = vsel %vm5780, %v5773, %v5777
        %v5782 = vand.u32 2147483647, %v5405
        %vm5783 = vcmp.eq.f32.partialorder %v5782, 8.507059e+37
        %v5784 = vand.u32 %v5405, 2147483648
        %v5785 = vor.u32 1.1754944e-38, %v5784
        %v5786 = vsel %vm5783, %v5785, %v5781
        %v5787 = vmul.f32 1.0, %v5786
        %v5788 = vrcp.pop %v5406
        %v5789 = vmul.f32 %v5406, %v5788
        %v5790 = vsub.f32 1.0, %v5789
        %v5791 = vmul.f32 %v5788, %v5790
        %v5792 = vadd.f32 %v5788, %v5791
        %vm5793 = vweird.f32 %v5406
        %vm5794 = vweird.f32 %v5788
        %vm5795 = vmor %vm5793, %vm5794
        %v5796 = vsel %vm5795, %v5788, %v5792
        %v5797 = vand.u32 2147483647, %v5406
        %vm5798 = vcmp.eq.f32.partialorder %v5797, 8.507059e+37
        %v5799 = vand.u32 %v5406, 2147483648
        %v5800 = vor.u32 1.1754944e-38, %v5799
        %v5801 = vsel %vm5798, %v5800, %v5796
        %v5802 = vmul.f32 1.0, %v5801
        %v5803 = vrcp.pop %v5407
        %v5804 = vmul.f32 %v5407, %v5803
        %v5805 = vsub.f32 1.0, %v5804
        %v5806 = vmul.f32 %v5803, %v5805
        %v5807 = vadd.f32 %v5803, %v5806
        %vm5808 = vweird.f32 %v5407
        %vm5809 = vweird.f32 %v5803
        %vm5810 = vmor %vm5808, %vm5809
        %v5811 = vsel %vm5810, %v5803, %v5807
        %v5812 = vand.u32 2147483647, %v5407
        %vm5813 = vcmp.eq.f32.partialorder %v5812, 8.507059e+37
        %v5814 = vand.u32 %v5407, 2147483648
        %v5815 = vor.u32 1.1754944e-38, %v5814
        %v5816 = vsel %vm5813, %v5815, %v5811
        %v5817 = vmul.f32 1.0, %v5816
        %v5818 = vrcp.pop %v5408
        %v5819 = vmul.f32 %v5408, %v5818
        %v5820 = vsub.f32 1.0, %v5819
        %v5821 = vmul.f32 %v5818, %v5820
        %v5822 = vadd.f32 %v5818, %v5821
        %vm5823 = vweird.f32 %v5408
        %vm5824 = vweird.f32 %v5818
        %vm5825 = vmor %vm5823, %vm5824
        %v5826 = vsel %vm5825, %v5818, %v5822
        %v5827 = vand.u32 2147483647, %v5408
        %vm5828 = vcmp.eq.f32.partialorder %v5827, 8.507059e+37
        %v5829 = vand.u32 %v5408, 2147483648
        %v5830 = vor.u32 1.1754944e-38, %v5829
        %v5831 = vsel %vm5828, %v5830, %v5826
        %v5832 = vmul.f32 1.0, %v5831
        %v5833 = vrcp.pop %v5409
        %v5834 = vmul.f32 %v5409, %v5833
        %v5835 = vsub.f32 1.0, %v5834
        %v5836 = vmul.f32 %v5833, %v5835
        %v5837 = vadd.f32 %v5833, %v5836
        %vm5838 = vweird.f32 %v5409
        %vm5839 = vweird.f32 %v5833
        %vm5840 = vmor %vm5838, %vm5839
        %v5841 = vsel %vm5840, %v5833, %v5837
        %v5842 = vand.u32 2147483647, %v5409
        %vm5843 = vcmp.eq.f32.partialorder %v5842, 8.507059e+37
        %v5844 = vand.u32 %v5409, 2147483648
        %v5845 = vor.u32 1.1754944e-38, %v5844
        %v5846 = vsel %vm5843, %v5845, %v5841
        %v5847 = vmul.f32 1.0, %v5846
        %v5848 = vrcp.pop %v5410
        %v5849 = vmul.f32 %v5410, %v5848
        %v5850 = vsub.f32 1.0, %v5849
        %v5851 = vmul.f32 %v5848, %v5850
        %v5852 = vadd.f32 %v5848, %v5851
        %vm5853 = vweird.f32 %v5410
        %vm5854 = vweird.f32 %v5848
        %vm5855 = vmor %vm5853, %vm5854
        %v5856 = vsel %vm5855, %v5848, %v5852
        %v5857 = vand.u32 2147483647, %v5410
        %vm5858 = vcmp.eq.f32.partialorder %v5857, 8.507059e+37
        %v5859 = vand.u32 %v5410, 2147483648
        %v5860 = vor.u32 1.1754944e-38, %v5859
        %v5861 = vsel %vm5858, %v5860, %v5856
        %v5862 = vmul.f32 1.0, %v5861
        %v5863 = vrcp.pop %v5411
        %v5864 = vmul.f32 %v5411, %v5863
        %v5865 = vsub.f32 1.0, %v5864
        %v5866 = vmul.f32 %v5863, %v5865
        %v5867 = vadd.f32 %v5863, %v5866
        %vm5868 = vweird.f32 %v5411
        %vm5869 = vweird.f32 %v5863
        %vm5870 = vmor %vm5868, %vm5869
        %v5871 = vsel %vm5870, %v5863, %v5867
        %v5872 = vand.u32 2147483647, %v5411
        %vm5873 = vcmp.eq.f32.partialorder %v5872, 8.507059e+37
        %v5874 = vand.u32 %v5411, 2147483648
        %v5875 = vor.u32 1.1754944e-38, %v5874
        %v5876 = vsel %vm5873, %v5875, %v5871
        %v5877 = vmul.f32 1.0, %v5876
        %v5878 = vrcp.pop %v5412
        %v5879 = vmul.f32 %v5412, %v5878
        %v5880 = vsub.f32 1.0, %v5879
        %v5881 = vmul.f32 %v5878, %v5880
        %v5882 = vadd.f32 %v5878, %v5881
        %vm5883 = vweird.f32 %v5412
        %vm5884 = vweird.f32 %v5878
        %vm5885 = vmor %vm5883, %vm5884
        %v5886 = vsel %vm5885, %v5878, %v5882
        %v5887 = vand.u32 2147483647, %v5412
        %vm5888 = vcmp.eq.f32.partialorder %v5887, 8.507059e+37
        %v5889 = vand.u32 %v5412, 2147483648
        %v5890 = vor.u32 1.1754944e-38, %v5889
        %v5891 = vsel %vm5888, %v5890, %v5886
        %v5892 = vmul.f32 1.0, %v5891
        %v5893 = vmul.f32 %v5427, 1.0614054
        %v5894 = vmul.f32 %v5442, 1.0614054
        %v5895 = vmul.f32 %v5457, 1.0614054
        %v5896 = vmul.f32 %v5472, 1.0614054
        %v5897 = vmul.f32 %v5487, 1.0614054
        %v5898 = vmul.f32 %v5502, 1.0614054
        %v5899 = vmul.f32 %v5517, 1.0614054
        %v5900 = vmul.f32 %v5532, 1.0614054
        %v5901 = vmul.f32 %v5547, 1.0614054
        %v5902 = vmul.f32 %v5562, 1.0614054
        %v5903 = vmul.f32 %v5577, 1.0614054
        %v5904 = vmul.f32 %v5592, 1.0614054
        %v5905 = vmul.f32 %v5607, 1.0614054
        %v5906 = vmul.f32 %v5622, 1.0614054
        %v5907 = vmul.f32 %v5637, 1.0614054
        %v5908 = vmul.f32 %v5652, 1.0614054
        %v5909 = vmul.f32 %v5667, 1.0614054
        %v5910 = vmul.f32 %v5682, 1.0614054
        %v5911 = vmul.f32 %v5697, 1.0614054
        %v5912 = vmul.f32 %v5712, 1.0614054
        %v5913 = vmul.f32 %v5727, 1.0614054
        %v5914 = vmul.f32 %v5742, 1.0614054
        %v5915 = vmul.f32 %v5757, 1.0614054
        %v5916 = vmul.f32 %v5772, 1.0614054
        %v5917 = vmul.f32 %v5787, 1.0614054
        %v5918 = vmul.f32 %v5802, 1.0614054
        %v5919 = vmul.f32 %v5817, 1.0614054
        %v5920 = vmul.f32 %v5832, 1.0614054
        %v5921 = vmul.f32 %v5847, 1.0614054
        %v5922 = vmul.f32 %v5862, 1.0614054
        %v5923 = vmul.f32 %v5877, 1.0614054
        %v5924 = vmul.f32 %v5892, 1.0614054
        %v5925 = vadd.f32 %v5893, -1.4531521
        %v5926 = vadd.f32 %v5894, -1.4531521
        %v5927 = vadd.f32 %v5895, -1.4531521
        %v5928 = vadd.f32 %v5896, -1.4531521
        %v5929 = vadd.f32 %v5897, -1.4531521
        %v5930 = vadd.f32 %v5898, -1.4531521
        %v5931 = vadd.f32 %v5899, -1.4531521
        %v5932 = vadd.f32 %v5900, -1.4531521
        %v5933 = vadd.f32 %v5901, -1.4531521
        %v5934 = vadd.f32 %v5902, -1.4531521
        %v5935 = vadd.f32 %v5903, -1.4531521
        %v5936 = vadd.f32 %v5904, -1.4531521
        %v5937 = vadd.f32 %v5905, -1.4531521
        %v5938 = vadd.f32 %v5906, -1.4531521
        %v5939 = vadd.f32 %v5907, -1.4531521
        %v5940 = vadd.f32 %v5908, -1.4531521
        %v5941 = vadd.f32 %v5909, -1.4531521
        %v5942 = vadd.f32 %v5910, -1.4531521
        %v5943 = vadd.f32 %v5911, -1.4531521
        %v5944 = vadd.f32 %v5912, -1.4531521
        %v5945 = vadd.f32 %v5913, -1.4531521
        %v5946 = vadd.f32 %v5914, -1.4531521
        %v5947 = vadd.f32 %v5915, -1.4531521
        %v5948 = vadd.f32 %v5916, -1.4531521
        %v5949 = vadd.f32 %v5917, -1.4531521
        %v5950 = vadd.f32 %v5918, -1.4531521
        %v5951 = vadd.f32 %v5919, -1.4531521
        %v5952 = vadd.f32 %v5920, -1.4531521
        %v5953 = vadd.f32 %v5921, -1.4531521
        %v5954 = vadd.f32 %v5922, -1.4531521
        %v5955 = vadd.f32 %v5923, -1.4531521
        %v5956 = vadd.f32 %v5924, -1.4531521
        %v5957 = vmul.f32 %v5925, %v5427
        %v5958 = vmul.f32 %v5926, %v5442
        %v5959 = vmul.f32 %v5927, %v5457
        %v5960 = vmul.f32 %v5928, %v5472
        %v5961 = vmul.f32 %v5929, %v5487
        %v5962 = vmul.f32 %v5930, %v5502
        %v5963 = vmul.f32 %v5931, %v5517
        %v5964 = vmul.f32 %v5932, %v5532
        %v5965 = vmul.f32 %v5933, %v5547
        %v5966 = vmul.f32 %v5934, %v5562
        %v5967 = vmul.f32 %v5935, %v5577
        %v5968 = vmul.f32 %v5936, %v5592
        %v5969 = vmul.f32 %v5937, %v5607
        %v5970 = vmul.f32 %v5938, %v5622
        %v5971 = vmul.f32 %v5939, %v5637
        %v5972 = vmul.f32 %v5940, %v5652
        %v5973 = vmul.f32 %v5941, %v5667
        %v5974 = vmul.f32 %v5942, %v5682
        %v5975 = vmul.f32 %v5943, %v5697
        %v5976 = vmul.f32 %v5944, %v5712
        %v5977 = vmul.f32 %v5945, %v5727
        %v5978 = vmul.f32 %v5946, %v5742
        %v5979 = vmul.f32 %v5947, %v5757
        %v5980 = vmul.f32 %v5948, %v5772
        %v5981 = vmul.f32 %v5949, %v5787
        %v5982 = vmul.f32 %v5950, %v5802
        %v5983 = vmul.f32 %v5951, %v5817
        %v5984 = vmul.f32 %v5952, %v5832
        %v5985 = vmul.f32 %v5953, %v5847
        %v5986 = vmul.f32 %v5954, %v5862
        %v5987 = vmul.f32 %v5955, %v5877
        %v5988 = vmul.f32 %v5956, %v5892
        %v5989 = vadd.f32 %v5957, 1.4214138
        %v5990 = vadd.f32 %v5958, 1.4214138
        %v5991 = vadd.f32 %v5959, 1.4214138
        %v5992 = vadd.f32 %v5960, 1.4214138
        %v5993 = vadd.f32 %v5961, 1.4214138
        %v5994 = vadd.f32 %v5962, 1.4214138
        %v5995 = vadd.f32 %v5963, 1.4214138
        %v5996 = vadd.f32 %v5964, 1.4214138
        %v5997 = vadd.f32 %v5965, 1.4214138
        %v5998 = vadd.f32 %v5966, 1.4214138
        %v5999 = vadd.f32 %v5967, 1.4214138
        %v6000 = vadd.f32 %v5968, 1.4214138
        %v6001 = vadd.f32 %v5969, 1.4214138
        %v6002 = vadd.f32 %v5970, 1.4214138
        %v6003 = vadd.f32 %v5971, 1.4214138
        %v6004 = vadd.f32 %v5972, 1.4214138
        %v6005 = vadd.f32 %v5973, 1.4214138
        %v6006 = vadd.f32 %v5974, 1.4214138
        %v6007 = vadd.f32 %v5975, 1.4214138
        %v6008 = vadd.f32 %v5976, 1.4214138
        %v6009 = vadd.f32 %v5977, 1.4214138
        %v6010 = vadd.f32 %v5978, 1.4214138
        %v6011 = vadd.f32 %v5979, 1.4214138
        %v6012 = vadd.f32 %v5980, 1.4214138
        %v6013 = vadd.f32 %v5981, 1.4214138
        %v6014 = vadd.f32 %v5982, 1.4214138
        %v6015 = vadd.f32 %v5983, 1.4214138
        %v6016 = vadd.f32 %v5984, 1.4214138
        %v6017 = vadd.f32 %v5985, 1.4214138
        %v6018 = vadd.f32 %v5986, 1.4214138
        %v6019 = vadd.f32 %v5987, 1.4214138
        %v6020 = vadd.f32 %v5988, 1.4214138
        %v6021 = vmul.f32 %v5989, %v5427
        %v6022 = vmul.f32 %v5990, %v5442
        %v6023 = vmul.f32 %v5991, %v5457
        %v6024 = vmul.f32 %v5992, %v5472
        %v6025 = vmul.f32 %v5993, %v5487
        %v6026 = vmul.f32 %v5994, %v5502
        %v6027 = vmul.f32 %v5995, %v5517
        %v6028 = vmul.f32 %v5996, %v5532
        %v6029 = vmul.f32 %v5997, %v5547
        %v6030 = vmul.f32 %v5998, %v5562
        %v6031 = vmul.f32 %v5999, %v5577
        %v6032 = vmul.f32 %v6000, %v5592
        %v6033 = vmul.f32 %v6001, %v5607
        %v6034 = vmul.f32 %v6002, %v5622
        %v6035 = vmul.f32 %v6003, %v5637
        %v6036 = vmul.f32 %v6004, %v5652
        %v6037 = vmul.f32 %v6005, %v5667
        %v6038 = vmul.f32 %v6006, %v5682
        %v6039 = vmul.f32 %v6007, %v5697
        %v6040 = vmul.f32 %v6008, %v5712
        %v6041 = vmul.f32 %v6009, %v5727
        %v6042 = vmul.f32 %v6010, %v5742
        %v6043 = vmul.f32 %v6011, %v5757
        %v6044 = vmul.f32 %v6012, %v5772
        %v6045 = vmul.f32 %v6013, %v5787
        %v6046 = vmul.f32 %v6014, %v5802
        %v6047 = vmul.f32 %v6015, %v5817
        %v6048 = vmul.f32 %v6016, %v5832
        %v6049 = vmul.f32 %v6017, %v5847
        %v6050 = vmul.f32 %v6018, %v5862
        %v6051 = vmul.f32 %v6019, %v5877
        %v6052 = vmul.f32 %v6020, %v5892
        %v6053 = vadd.f32 %v6021, -0.28449672
        %v6054 = vadd.f32 %v6022, -0.28449672
        %v6055 = vadd.f32 %v6023, -0.28449672
        %v6056 = vadd.f32 %v6024, -0.28449672
        %v6057 = vadd.f32 %v6025, -0.28449672
        %v6058 = vadd.f32 %v6026, -0.28449672
        %v6059 = vadd.f32 %v6027, -0.28449672
        %v6060 = vadd.f32 %v6028, -0.28449672
        %v6061 = vadd.f32 %v6029, -0.28449672
        %v6062 = vadd.f32 %v6030, -0.28449672
        %v6063 = vadd.f32 %v6031, -0.28449672
        %v6064 = vadd.f32 %v6032, -0.28449672
        %v6065 = vadd.f32 %v6033, -0.28449672
        %v6066 = vadd.f32 %v6034, -0.28449672
        %v6067 = vadd.f32 %v6035, -0.28449672
        %v6068 = vadd.f32 %v6036, -0.28449672
        %v6069 = vadd.f32 %v6037, -0.28449672
        %v6070 = vadd.f32 %v6038, -0.28449672
        %v6071 = vadd.f32 %v6039, -0.28449672
        %v6072 = vadd.f32 %v6040, -0.28449672
        %v6073 = vadd.f32 %v6041, -0.28449672
        %v6074 = vadd.f32 %v6042, -0.28449672
        %v6075 = vadd.f32 %v6043, -0.28449672
        %v6076 = vadd.f32 %v6044, -0.28449672
        %v6077 = vadd.f32 %v6045, -0.28449672
        %v6078 = vadd.f32 %v6046, -0.28449672
        %v6079 = vadd.f32 %v6047, -0.28449672
        %v6080 = vadd.f32 %v6048, -0.28449672
        %v6081 = vadd.f32 %v6049, -0.28449672
        %v6082 = vadd.f32 %v6050, -0.28449672
        %v6083 = vadd.f32 %v6051, -0.28449672
        %v6084 = vadd.f32 %v6052, -0.28449672
        %v6085 = vmul.f32 %v6053, %v5427
        %v6086 = vmul.f32 %v6054, %v5442
        %v6087 = vmul.f32 %v6055, %v5457
        %v6088 = vmul.f32 %v6056, %v5472
        %v6089 = vmul.f32 %v6057, %v5487
        %v6090 = vmul.f32 %v6058, %v5502
        %v6091 = vmul.f32 %v6059, %v5517
        %v6092 = vmul.f32 %v6060, %v5532
        %v6093 = vmul.f32 %v6061, %v5547
        %v6094 = vmul.f32 %v6062, %v5562
        %v6095 = vmul.f32 %v6063, %v5577
        %v6096 = vmul.f32 %v6064, %v5592
        %v6097 = vmul.f32 %v6065, %v5607
        %v6098 = vmul.f32 %v6066, %v5622
        %v6099 = vmul.f32 %v6067, %v5637
        %v6100 = vmul.f32 %v6068, %v5652
        %v6101 = vmul.f32 %v6069, %v5667
        %v6102 = vmul.f32 %v6070, %v5682
        %v6103 = vmul.f32 %v6071, %v5697
        %v6104 = vmul.f32 %v6072, %v5712
        %v6105 = vmul.f32 %v6073, %v5727
        %v6106 = vmul.f32 %v6074, %v5742
        %v6107 = vmul.f32 %v6075, %v5757
        %v6108 = vmul.f32 %v6076, %v5772
        %v6109 = vmul.f32 %v6077, %v5787
        %v6110 = vmul.f32 %v6078, %v5802
        %v6111 = vmul.f32 %v6079, %v5817
        %v6112 = vmul.f32 %v6080, %v5832
        %v6113 = vmul.f32 %v6081, %v5847
        %v6114 = vmul.f32 %v6082, %v5862
        %v6115 = vmul.f32 %v6083, %v5877
        %v6116 = vmul.f32 %v6084, %v5892
        %v6117 = vadd.f32 %v6085, 0.2548296
        %v6118 = vadd.f32 %v6086, 0.2548296
        %v6119 = vadd.f32 %v6087, 0.2548296
        %v6120 = vadd.f32 %v6088, 0.2548296
        %v6121 = vadd.f32 %v6089, 0.2548296
        %v6122 = vadd.f32 %v6090, 0.2548296
        %v6123 = vadd.f32 %v6091, 0.2548296
        %v6124 = vadd.f32 %v6092, 0.2548296
        %v6125 = vadd.f32 %v6093, 0.2548296
        %v6126 = vadd.f32 %v6094, 0.2548296
        %v6127 = vadd.f32 %v6095, 0.2548296
        %v6128 = vadd.f32 %v6096, 0.2548296
        %v6129 = vadd.f32 %v6097, 0.2548296
        %v6130 = vadd.f32 %v6098, 0.2548296
        %v6131 = vadd.f32 %v6099, 0.2548296
        %v6132 = vadd.f32 %v6100, 0.2548296
        %v6133 = vadd.f32 %v6101, 0.2548296
        %v6134 = vadd.f32 %v6102, 0.2548296
        %v6135 = vadd.f32 %v6103, 0.2548296
        %v6136 = vadd.f32 %v6104, 0.2548296
        %v6137 = vadd.f32 %v6105, 0.2548296
        %v6138 = vadd.f32 %v6106, 0.2548296
        %v6139 = vadd.f32 %v6107, 0.2548296
        %v6140 = vadd.f32 %v6108, 0.2548296
        %v6141 = vadd.f32 %v6109, 0.2548296
        %v6142 = vadd.f32 %v6110, 0.2548296
        %v6143 = vadd.f32 %v6111, 0.2548296
        %v6144 = vadd.f32 %v6112, 0.2548296
        %v6145 = vadd.f32 %v6113, 0.2548296
        %v6146 = vadd.f32 %v6114, 0.2548296
        %v6147 = vadd.f32 %v6115, 0.2548296
        %v6148 = vadd.f32 %v6116, 0.2548296
        %v6149 = vmul.f32 %v6117, %v5427
        %v6150 = vmul.f32 %v6118, %v5442
        %v6151 = vmul.f32 %v6119, %v5457
        %v6152 = vmul.f32 %v6120, %v5472
        %v6153 = vmul.f32 %v6121, %v5487
        %v6154 = vmul.f32 %v6122, %v5502
        %v6155 = vmul.f32 %v6123, %v5517
        %v6156 = vmul.f32 %v6124, %v5532
        %v6157 = vmul.f32 %v6125, %v5547
        %v6158 = vmul.f32 %v6126, %v5562
        %v6159 = vmul.f32 %v6127, %v5577
        %v6160 = vmul.f32 %v6128, %v5592
        %v6161 = vmul.f32 %v6129, %v5607
        %v6162 = vmul.f32 %v6130, %v5622
        %v6163 = vmul.f32 %v6131, %v5637
        %v6164 = vmul.f32 %v6132, %v5652
        %v6165 = vmul.f32 %v6133, %v5667
        %v6166 = vmul.f32 %v6134, %v5682
        %v6167 = vmul.f32 %v6135, %v5697
        %v6168 = vmul.f32 %v6136, %v5712
        %v6169 = vmul.f32 %v6137, %v5727
        %v6170 = vmul.f32 %v6138, %v5742
        %v6171 = vmul.f32 %v6139, %v5757
        %v6172 = vmul.f32 %v6140, %v5772
        %v6173 = vmul.f32 %v6141, %v5787
        %v6174 = vmul.f32 %v6142, %v5802
        %v6175 = vmul.f32 %v6143, %v5817
        %v6176 = vmul.f32 %v6144, %v5832
        %v6177 = vmul.f32 %v6145, %v5847
        %v6178 = vmul.f32 %v6146, %v5862
        %v6179 = vmul.f32 %v6147, %v5877
        %v6180 = vmul.f32 %v6148, %v5892
        %v6181 = vsub.f32 0.0, %v5317
        %v6182 = vsub.f32 0.0, %v5318
        %v6183 = vsub.f32 0.0, %v5319
        %v6184 = vsub.f32 0.0, %v5320
        %v6185 = vsub.f32 0.0, %v5321
        %v6186 = vsub.f32 0.0, %v5322
        %v6187 = vsub.f32 0.0, %v5323
        %v6188 = vsub.f32 0.0, %v5324
        %v6189 = vsub.f32 0.0, %v5325
        %v6190 = vsub.f32 0.0, %v5326
        %v6191 = vsub.f32 0.0, %v5327
        %v6192 = vsub.f32 0.0, %v5328
        %v6193 = vsub.f32 0.0, %v5329
        %v6194 = vsub.f32 0.0, %v5330
        %v6195 = vsub.f32 0.0, %v5331
        %v6196 = vsub.f32 0.0, %v5332
        %v6197 = vsub.f32 0.0, %v5333
        %v6198 = vsub.f32 0.0, %v5334
        %v6199 = vsub.f32 0.0, %v5335
        %v6200 = vsub.f32 0.0, %v5336
        %v6201 = vsub.f32 0.0, %v5337
        %v6202 = vsub.f32 0.0, %v5338
        %v6203 = vsub.f32 0.0, %v5339
        %v6204 = vsub.f32 0.0, %v5340
        %v6205 = vsub.f32 0.0, %v5341
        %v6206 = vsub.f32 0.0, %v5342
        %v6207 = vsub.f32 0.0, %v5343
        %v6208 = vsub.f32 0.0, %v5344
        %v6209 = vsub.f32 0.0, %v5345
        %v6210 = vsub.f32 0.0, %v5346
        %v6211 = vsub.f32 0.0, %v5347
        %v6212 = vsub.f32 0.0, %v5348
        %v6213 = vmul.f32 %v6181, %v5317
        %v6214 = vmul.f32 %v6182, %v5318
        %v6215 = vmul.f32 %v6183, %v5319
        %v6216 = vmul.f32 %v6184, %v5320
        %v6217 = vmul.f32 %v6185, %v5321
        %v6218 = vmul.f32 %v6186, %v5322
        %v6219 = vmul.f32 %v6187, %v5323
        %v6220 = vmul.f32 %v6188, %v5324
        %v6221 = vmul.f32 %v6189, %v5325
        %v6222 = vmul.f32 %v6190, %v5326
        %v6223 = vmul.f32 %v6191, %v5327
        %v6224 = vmul.f32 %v6192, %v5328
        %v6225 = vmul.f32 %v6193, %v5329
        %v6226 = vmul.f32 %v6194, %v5330
        %v6227 = vmul.f32 %v6195, %v5331
        %v6228 = vmul.f32 %v6196, %v5332
        %v6229 = vmul.f32 %v6197, %v5333
        %v6230 = vmul.f32 %v6198, %v5334
        %v6231 = vmul.f32 %v6199, %v5335
        %v6232 = vmul.f32 %v6200, %v5336
        %v6233 = vmul.f32 %v6201, %v5337
        %v6234 = vmul.f32 %v6202, %v5338
        %v6235 = vmul.f32 %v6203, %v5339
        %v6236 = vmul.f32 %v6204, %v5340
        %v6237 = vmul.f32 %v6205, %v5341
        %v6238 = vmul.f32 %v6206, %v5342
        %v6239 = vmul.f32 %v6207, %v5343
        %v6240 = vmul.f32 %v6208, %v5344
        %v6241 = vmul.f32 %v6209, %v5345
        %v6242 = vmul.f32 %v6210, %v5346
        %v6243 = vmul.f32 %v6211, %v5347
        %v6244 = vmul.f32 %v6212, %v5348
        %v6245 = vmul.f32 %v6213, 1.442695
        %v6246 = vpow.pop %v6245
        %v6247 = vmul.f32 %v6214, 1.442695
        %v6248 = vpow.pop %v6247
        %v6249 = vmul.f32 %v6215, 1.442695
        %v6250 = vpow.pop %v6249
        %v6251 = vmul.f32 %v6216, 1.442695
        %v6252 = vpow.pop %v6251
        %v6253 = vmul.f32 %v6217, 1.442695
        %v6254 = vpow.pop %v6253
        %v6255 = vmul.f32 %v6218, 1.442695
        %v6256 = vpow.pop %v6255
        %v6257 = vmul.f32 %v6219, 1.442695
        %v6258 = vpow.pop %v6257
        %v6259 = vmul.f32 %v6220, 1.442695
        %v6260 = vpow.pop %v6259
        %v6261 = vmul.f32 %v6221, 1.442695
        %v6262 = vpow.pop %v6261
        %v6263 = vmul.f32 %v6222, 1.442695
        %v6264 = vpow.pop %v6263
        %v6265 = vmul.f32 %v6223, 1.442695
        %v6266 = vpow.pop %v6265
        %v6267 = vmul.f32 %v6224, 1.442695
        %v6268 = vpow.pop %v6267
        %v6269 = vmul.f32 %v6225, 1.442695
        %v6270 = vpow.pop %v6269
        %v6271 = vmul.f32 %v6226, 1.442695
        %v6272 = vpow.pop %v6271
        %v6273 = vmul.f32 %v6227, 1.442695
        %v6274 = vpow.pop %v6273
        %v6275 = vmul.f32 %v6228, 1.442695
        %v6276 = vpow.pop %v6275
        %v6277 = vmul.f32 %v6229, 1.442695
        %v6278 = vpow.pop %v6277
        %v6279 = vmul.f32 %v6230, 1.442695
        %v6280 = vpow.pop %v6279
        %v6281 = vmul.f32 %v6231, 1.442695
        %v6282 = vpow.pop %v6281
        %v6283 = vmul.f32 %v6232, 1.442695
        %v6284 = vpow.pop %v6283
        %v6285 = vmul.f32 %v6233, 1.442695
        %v6286 = vpow.pop %v6285
        %v6287 = vmul.f32 %v6234, 1.442695
        %v6288 = vpow.pop %v6287
        %v6289 = vmul.f32 %v6235, 1.442695
        %v6290 = vpow.pop %v6289
        %v6291 = vmul.f32 %v6236, 1.442695
        %v6292 = vpow.pop %v6291
        %v6293 = vmul.f32 %v6237, 1.442695
        %v6294 = vpow.pop %v6293
        %v6295 = vmul.f32 %v6238, 1.442695
        %v6296 = vpow.pop %v6295
        %v6297 = vmul.f32 %v6239, 1.442695
        %v6298 = vpow.pop %v6297
        %v6299 = vmul.f32 %v6240, 1.442695
        %v6300 = vpow.pop %v6299
        %v6301 = vmul.f32 %v6241, 1.442695
        %v6302 = vpow.pop %v6301
        %v6303 = vmul.f32 %v6242, 1.442695
        %v6304 = vpow.pop %v6303
        %v6305 = vmul.f32 %v6243, 1.442695
        %v6306 = vpow.pop %v6305
        %v6307 = vmul.f32 %v6244, 1.442695
        %v6308 = vpow.pop %v6307
        %v6309 = vmul.f32 %v6149, %v6246
        %v6310 = vmul.f32 %v6150, %v6248
        %v6311 = vmul.f32 %v6151, %v6250
        %v6312 = vmul.f32 %v6152, %v6252
        %v6313 = vmul.f32 %v6153, %v6254
        %v6314 = vmul.f32 %v6154, %v6256
        %v6315 = vmul.f32 %v6155, %v6258
        %v6316 = vmul.f32 %v6156, %v6260
        %v6317 = vmul.f32 %v6157, %v6262
        %v6318 = vmul.f32 %v6158, %v6264
        %v6319 = vmul.f32 %v6159, %v6266
        %v6320 = vmul.f32 %v6160, %v6268
        %v6321 = vmul.f32 %v6161, %v6270
        %v6322 = vmul.f32 %v6162, %v6272
        %v6323 = vmul.f32 %v6163, %v6274
        %v6324 = vmul.f32 %v6164, %v6276
        %v6325 = vmul.f32 %v6165, %v6278
        %v6326 = vmul.f32 %v6166, %v6280
        %v6327 = vmul.f32 %v6167, %v6282
        %v6328 = vmul.f32 %v6168, %v6284
        %v6329 = vmul.f32 %v6169, %v6286
        %v6330 = vmul.f32 %v6170, %v6288
        %v6331 = vmul.f32 %v6171, %v6290
        %v6332 = vmul.f32 %v6172, %v6292
        %v6333 = vmul.f32 %v6173, %v6294
        %v6334 = vmul.f32 %v6174, %v6296
        %v6335 = vmul.f32 %v6175, %v6298
        %v6336 = vmul.f32 %v6176, %v6300
        %v6337 = vmul.f32 %v6177, %v6302
        %v6338 = vmul.f32 %v6178, %v6304
        %v6339 = vmul.f32 %v6179, %v6306
        %v6340 = vmul.f32 %v6180, %v6308
        %v6341 = vsub.f32 1.0, %v6309
        %v6342 = vsub.f32 1.0, %v6310
        %v6343 = vsub.f32 1.0, %v6311
        %v6344 = vsub.f32 1.0, %v6312
        %v6345 = vsub.f32 1.0, %v6313
        %v6346 = vsub.f32 1.0, %v6314
        %v6347 = vsub.f32 1.0, %v6315
        %v6348 = vsub.f32 1.0, %v6316
        %v6349 = vsub.f32 1.0, %v6317
        %v6350 = vsub.f32 1.0, %v6318
        %v6351 = vsub.f32 1.0, %v6319
        %v6352 = vsub.f32 1.0, %v6320
        %v6353 = vsub.f32 1.0, %v6321
        %v6354 = vsub.f32 1.0, %v6322
        %v6355 = vsub.f32 1.0, %v6323
        %v6356 = vsub.f32 1.0, %v6324
        %v6357 = vsub.f32 1.0, %v6325
        %v6358 = vsub.f32 1.0, %v6326
        %v6359 = vsub.f32 1.0, %v6327
        %v6360 = vsub.f32 1.0, %v6328
        %v6361 = vsub.f32 1.0, %v6329
        %v6362 = vsub.f32 1.0, %v6330
        %v6363 = vsub.f32 1.0, %v6331
        %v6364 = vsub.f32 1.0, %v6332
        %v6365 = vsub.f32 1.0, %v6333
        %v6366 = vsub.f32 1.0, %v6334
        %v6367 = vsub.f32 1.0, %v6335
        %v6368 = vsub.f32 1.0, %v6336
        %v6369 = vsub.f32 1.0, %v6337
        %v6370 = vsub.f32 1.0, %v6338
        %v6371 = vsub.f32 1.0, %v6339
        %v6372 = vsub.f32 1.0, %v6340
        %v6373 = vmul.f32 %v5285, %v6341
        %v6374 = vmul.f32 %v5286, %v6342
        %v6375 = vmul.f32 %v5287, %v6343
        %v6376 = vmul.f32 %v5288, %v6344
        %v6377 = vmul.f32 %v5289, %v6345
        %v6378 = vmul.f32 %v5290, %v6346
        %v6379 = vmul.f32 %v5291, %v6347
        %v6380 = vmul.f32 %v5292, %v6348
        %v6381 = vmul.f32 %v5293, %v6349
        %v6382 = vmul.f32 %v5294, %v6350
        %v6383 = vmul.f32 %v5295, %v6351
        %v6384 = vmul.f32 %v5296, %v6352
        %v6385 = vmul.f32 %v5297, %v6353
        %v6386 = vmul.f32 %v5298, %v6354
        %v6387 = vmul.f32 %v5299, %v6355
        %v6388 = vmul.f32 %v5300, %v6356
        %v6389 = vmul.f32 %v5301, %v6357
        %v6390 = vmul.f32 %v5302, %v6358
        %v6391 = vmul.f32 %v5303, %v6359
        %v6392 = vmul.f32 %v5304, %v6360
        %v6393 = vmul.f32 %v5305, %v6361
        %v6394 = vmul.f32 %v5306, %v6362
        %v6395 = vmul.f32 %v5307, %v6363
        %v6396 = vmul.f32 %v5308, %v6364
        %v6397 = vmul.f32 %v5309, %v6365
        %v6398 = vmul.f32 %v5310, %v6366
        %v6399 = vmul.f32 %v5311, %v6367
        %v6400 = vmul.f32 %v5312, %v6368
        %v6401 = vmul.f32 %v5313, %v6369
        %v6402 = vmul.f32 %v5314, %v6370
        %v6403 = vmul.f32 %v5315, %v6371
        %v6404 = vmul.f32 %v5316, %v6372
        %v6405 = vadd.f32 %v6373, 1.0
        %v6406 = vadd.f32 %v6374, 1.0
        %v6407 = vadd.f32 %v6375, 1.0
        %v6408 = vadd.f32 %v6376, 1.0
        %v6409 = vadd.f32 %v6377, 1.0
        %v6410 = vadd.f32 %v6378, 1.0
        %v6411 = vadd.f32 %v6379, 1.0
        %v6412 = vadd.f32 %v6380, 1.0
        %v6413 = vadd.f32 %v6381, 1.0
        %v6414 = vadd.f32 %v6382, 1.0
        %v6415 = vadd.f32 %v6383, 1.0
        %v6416 = vadd.f32 %v6384, 1.0
        %v6417 = vadd.f32 %v6385, 1.0
        %v6418 = vadd.f32 %v6386, 1.0
        %v6419 = vadd.f32 %v6387, 1.0
        %v6420 = vadd.f32 %v6388, 1.0
        %v6421 = vadd.f32 %v6389, 1.0
        %v6422 = vadd.f32 %v6390, 1.0
        %v6423 = vadd.f32 %v6391, 1.0
        %v6424 = vadd.f32 %v6392, 1.0
        %v6425 = vadd.f32 %v6393, 1.0
        %v6426 = vadd.f32 %v6394, 1.0
        %v6427 = vadd.f32 %v6395, 1.0
        %v6428 = vadd.f32 %v6396, 1.0
        %v6429 = vadd.f32 %v6397, 1.0
        %v6430 = vadd.f32 %v6398, 1.0
        %v6431 = vadd.f32 %v6399, 1.0
        %v6432 = vadd.f32 %v6400, 1.0
        %v6433 = vadd.f32 %v6401, 1.0
        %v6434 = vadd.f32 %v6402, 1.0
        %v6435 = vadd.f32 %v6403, 1.0
        %v6436 = vadd.f32 %v6404, 1.0
        %v6437 = vmul.f32 %v5189, %v6405
        %v6438 = vmul.f32 %v5190, %v6406
        %v6439 = vmul.f32 %v5191, %v6407
        %v6440 = vmul.f32 %v5192, %v6408
        %v6441 = vmul.f32 %v5193, %v6409
        %v6442 = vmul.f32 %v5194, %v6410
        %v6443 = vmul.f32 %v5195, %v6411
        %v6444 = vmul.f32 %v5196, %v6412
        %v6445 = vmul.f32 %v5197, %v6413
        %v6446 = vmul.f32 %v5198, %v6414
        %v6447 = vmul.f32 %v5199, %v6415
        %v6448 = vmul.f32 %v5200, %v6416
        %v6449 = vmul.f32 %v5201, %v6417
        %v6450 = vmul.f32 %v5202, %v6418
        %v6451 = vmul.f32 %v5203, %v6419
        %v6452 = vmul.f32 %v5204, %v6420
        %v6453 = vmul.f32 %v5205, %v6421
        %v6454 = vmul.f32 %v5206, %v6422
        %v6455 = vmul.f32 %v5207, %v6423
        %v6456 = vmul.f32 %v5208, %v6424
        %v6457 = vmul.f32 %v5209, %v6425
        %v6458 = vmul.f32 %v5210, %v6426
        %v6459 = vmul.f32 %v5211, %v6427
        %v6460 = vmul.f32 %v5212, %v6428
        %v6461 = vmul.f32 %v5213, %v6429
        %v6462 = vmul.f32 %v5214, %v6430
        %v6463 = vmul.f32 %v5215, %v6431
        %v6464 = vmul.f32 %v5216, %v6432
        %v6465 = vmul.f32 %v5217, %v6433
        %v6466 = vmul.f32 %v5218, %v6434
        %v6467 = vmul.f32 %v5219, %v6435
        %v6468 = vmul.f32 %v5220, %v6436
        %v6469 = vld [vmem:[%s18] sm:$0xff]
        %v6470 = vld [vmem:[%s18 + $0x8] sm:$0xff]
        %v6471 = vld [vmem:[%s18 + $0x10] sm:$0xff]
        %v6472 = vld [vmem:[%s18 + $0x18] sm:$0xff]
        %v6473 = vld [vmem:[%s18 + $0x20] sm:$0xff]
        %v6474 = vld [vmem:[%s18 + $0x28] sm:$0xff]
        %v6475 = vld [vmem:[%s18 + $0x30] sm:$0xff]
        %v6476 = vld [vmem:[%s18 + $0x38] sm:$0xff]
        %v6477 = vld [vmem:[%s18 + $0x40] sm:$0xff]
        %v6478 = vld [vmem:[%s18 + $0x48] sm:$0xff]
        %v6479 = vld [vmem:[%s18 + $0x50] sm:$0xff]
        %v6480 = vld [vmem:[%s18 + $0x58] sm:$0xff]
        %v6481 = vld [vmem:[%s18 + $0x60] sm:$0xff]
        %v6482 = vld [vmem:[%s18 + $0x68] sm:$0xff]
        %v6483 = vld [vmem:[%s18 + $0x70] sm:$0xff]
        %v6484 = vld [vmem:[%s18 + $0x78] sm:$0xff]
        %v6485 = vld [vmem:[%s19] sm:$0x1]
        %v6487 = vperm.slane %v6485, 0
        %6489 = vmatpush.msra.mxu0 %v6484
        %6490 = vmatpush.msra.mxu0 %v6483
        %6491 = vmatpush.msra.mxu0 %v6482
        %6492 = vmatpush.msra.mxu0 %v6481
        %6493 = vmatpush.msra.mxu0 %v6480
        %6494 = vmatpush.msra.mxu0 %v6479
        %6495 = vmatpush.msra.mxu0 %v6478
        %6496 = vmatpush.msra.mxu0 %v6477
        %6497 = vmatpush.msra.mxu0 %v6476
        %6498 = vmatpush.msra.mxu0 %v6475
        %6499 = vmatpush.msra.mxu0 %v6474
        %6500 = vmatpush.msra.mxu0 %v6473
        %6501 = vmatpush.msra.mxu0 %v6472
        %6502 = vmatpush.msra.mxu0 %v6471
        %6503 = vmatpush.msra.mxu0 %v6470
        %6504 = vmatpush.msra.mxu0 %v6469
        %6505 = vmatmul.f32.gmra.mxu0 %v6437
        %v6506 = vpop.f32.mrf.mxu0
        %v6507 = vadd.f32 %v6487, %v6506
        %6508 = vmatmul.f32.gmra.mxu0 %v6438
        %v6509 = vpop.f32.mrf.mxu0
        %v6510 = vadd.f32 %v6487, %v6509
        %6511 = vmatmul.f32.gmra.mxu0 %v6439
        %v6512 = vpop.f32.mrf.mxu0
        %v6513 = vadd.f32 %v6487, %v6512
        %6514 = vmatmul.f32.gmra.mxu0 %v6440
        %v6515 = vpop.f32.mrf.mxu0
        %v6516 = vadd.f32 %v6487, %v6515
        %6517 = vmatmul.f32.gmra.mxu0 %v6441
        %v6518 = vpop.f32.mrf.mxu0
        %v6519 = vadd.f32 %v6487, %v6518
        %6520 = vmatmul.f32.gmra.mxu0 %v6442
        %v6521 = vpop.f32.mrf.mxu0
        %v6522 = vadd.f32 %v6487, %v6521
        %6523 = vmatmul.f32.gmra.mxu0 %v6443
        %v6524 = vpop.f32.mrf.mxu0
        %v6525 = vadd.f32 %v6487, %v6524
        %6526 = vmatmul.f32.gmra.mxu0 %v6444
        %v6527 = vpop.f32.mrf.mxu0
        %v6528 = vadd.f32 %v6487, %v6527
        %6529 = vmatmul.f32.gmra.mxu0 %v6445
        %v6530 = vpop.f32.mrf.mxu0
        %v6531 = vadd.f32 %v6487, %v6530
        %6532 = vmatmul.f32.gmra.mxu0 %v6446
        %v6533 = vpop.f32.mrf.mxu0
        %v6534 = vadd.f32 %v6487, %v6533
        %6535 = vmatmul.f32.gmra.mxu0 %v6447
        %v6536 = vpop.f32.mrf.mxu0
        %v6537 = vadd.f32 %v6487, %v6536
        %6538 = vmatmul.f32.gmra.mxu0 %v6448
        %v6539 = vpop.f32.mrf.mxu0
        %v6540 = vadd.f32 %v6487, %v6539
        %6541 = vmatmul.f32.gmra.mxu0 %v6449
        %v6542 = vpop.f32.mrf.mxu0
        %v6543 = vadd.f32 %v6487, %v6542
        %6544 = vmatmul.f32.gmra.mxu0 %v6450
        %v6545 = vpop.f32.mrf.mxu0
        %v6546 = vadd.f32 %v6487, %v6545
        %6547 = vmatmul.f32.gmra.mxu0 %v6451
        %v6548 = vpop.f32.mrf.mxu0
        %v6549 = vadd.f32 %v6487, %v6548
        %6550 = vmatmul.f32.gmra.mxu0 %v6452
        %v6551 = vpop.f32.mrf.mxu0
        %v6552 = vadd.f32 %v6487, %v6551
        %6553 = vmatmul.f32.gmra.mxu0 %v6453
        %v6554 = vpop.f32.mrf.mxu0
        %v6555 = vadd.f32 %v6487, %v6554
        %6556 = vmatmul.f32.gmra.mxu0 %v6454
        %v6557 = vpop.f32.mrf.mxu0
        %v6558 = vadd.f32 %v6487, %v6557
        %6559 = vmatmul.f32.gmra.mxu0 %v6455
        %v6560 = vpop.f32.mrf.mxu0
        %v6561 = vadd.f32 %v6487, %v6560
        %6562 = vmatmul.f32.gmra.mxu0 %v6456
        %v6563 = vpop.f32.mrf.mxu0
        %v6564 = vadd.f32 %v6487, %v6563
        %6565 = vmatmul.f32.gmra.mxu0 %v6457
        %v6566 = vpop.f32.mrf.mxu0
        %v6567 = vadd.f32 %v6487, %v6566
        %6568 = vmatmul.f32.gmra.mxu0 %v6458
        %v6569 = vpop.f32.mrf.mxu0
        %v6570 = vadd.f32 %v6487, %v6569
        %6571 = vmatmul.f32.gmra.mxu0 %v6459
        %v6572 = vpop.f32.mrf.mxu0
        %v6573 = vadd.f32 %v6487, %v6572
        %6574 = vmatmul.f32.gmra.mxu0 %v6460
        %v6575 = vpop.f32.mrf.mxu0
        %v6576 = vadd.f32 %v6487, %v6575
        %6577 = vmatmul.f32.gmra.mxu0 %v6461
        %v6578 = vpop.f32.mrf.mxu0
        %v6579 = vadd.f32 %v6487, %v6578
        %6580 = vmatmul.f32.gmra.mxu0 %v6462
        %v6581 = vpop.f32.mrf.mxu0
        %v6582 = vadd.f32 %v6487, %v6581
        %6583 = vmatmul.f32.gmra.mxu0 %v6463
        %v6584 = vpop.f32.mrf.mxu0
        %v6585 = vadd.f32 %v6487, %v6584
        %6586 = vmatmul.f32.gmra.mxu0 %v6464
        %v6587 = vpop.f32.mrf.mxu0
        %v6588 = vadd.f32 %v6487, %v6587
        %6589 = vmatmul.f32.gmra.mxu0 %v6465
        %v6590 = vpop.f32.mrf.mxu0
        %v6591 = vadd.f32 %v6487, %v6590
        %6592 = vmatmul.f32.gmra.mxu0 %v6466
        %v6593 = vpop.f32.mrf.mxu0
        %v6594 = vadd.f32 %v6487, %v6593
        %6595 = vmatmul.f32.gmra.mxu0 %v6467
        %v6596 = vpop.f32.mrf.mxu0
        %v6597 = vadd.f32 %v6487, %v6596
        %6598 = vmatmul.f32.gmra.mxu0 %v6468
        %v6599 = vpop.f32.mrf.mxu0
        %v6600 = vadd.f32 %v6487, %v6599
        %6601 = vdwg.mxu0
        %v6602 = vld [vmem:[%s20] sm:$0x1]
        %v6604 = vperm.slane %v6602, 0
        %v6606 = vmul.f32 %v6604, %v6507
        %v6607 = vmul.f32 %v6604, %v6510
        %v6608 = vmul.f32 %v6604, %v6513
        %v6609 = vmul.f32 %v6604, %v6516
        %v6610 = vmul.f32 %v6604, %v6519
        %v6611 = vmul.f32 %v6604, %v6522
        %v6612 = vmul.f32 %v6604, %v6525
        %v6613 = vmul.f32 %v6604, %v6528
        %v6614 = vmul.f32 %v6604, %v6531
        %v6615 = vmul.f32 %v6604, %v6534
        %v6616 = vmul.f32 %v6604, %v6537
        %v6617 = vmul.f32 %v6604, %v6540
        %v6618 = vmul.f32 %v6604, %v6543
        %v6619 = vmul.f32 %v6604, %v6546
        %v6620 = vmul.f32 %v6604, %v6549
        %v6621 = vmul.f32 %v6604, %v6552
        %v6622 = vmul.f32 %v6604, %v6555
        %v6623 = vmul.f32 %v6604, %v6558
        %v6624 = vmul.f32 %v6604, %v6561
        %v6625 = vmul.f32 %v6604, %v6564
        %v6626 = vmul.f32 %v6604, %v6567
        %v6627 = vmul.f32 %v6604, %v6570
        %v6628 = vmul.f32 %v6604, %v6573
        %v6629 = vmul.f32 %v6604, %v6576
        %v6630 = vmul.f32 %v6604, %v6579
        %v6631 = vmul.f32 %v6604, %v6582
        %v6632 = vmul.f32 %v6604, %v6585
        %v6633 = vmul.f32 %v6604, %v6588
        %v6634 = vmul.f32 %v6604, %v6591
        %v6635 = vmul.f32 %v6604, %v6594
        %v6636 = vmul.f32 %v6604, %v6597
        %v6637 = vmul.f32 %v6604, %v6600
        %v6638 = vadd.f32 %v4613, %v6606
        %v6639 = vadd.f32 %v4614, %v6607
        %v6640 = vadd.f32 %v4615, %v6608
        %v6641 = vadd.f32 %v4616, %v6609
        %v6642 = vadd.f32 %v4617, %v6610
        %v6643 = vadd.f32 %v4618, %v6611
        %v6644 = vadd.f32 %v4619, %v6612
        %v6645 = vadd.f32 %v4620, %v6613
        %v6646 = vadd.f32 %v4621, %v6614
        %v6647 = vadd.f32 %v4622, %v6615
        %v6648 = vadd.f32 %v4623, %v6616
        %v6649 = vadd.f32 %v4624, %v6617
        %v6650 = vadd.f32 %v4625, %v6618
        %v6651 = vadd.f32 %v4626, %v6619
        %v6652 = vadd.f32 %v4627, %v6620
        %v6653 = vadd.f32 %v4628, %v6621
        %v6654 = vadd.f32 %v4629, %v6622
        %v6655 = vadd.f32 %v4630, %v6623
        %v6656 = vadd.f32 %v4631, %v6624
        %v6657 = vadd.f32 %v4632, %v6625
        %v6658 = vadd.f32 %v4633, %v6626
        %v6659 = vadd.f32 %v4634, %v6627
        %v6660 = vadd.f32 %v4635, %v6628
        %v6661 = vadd.f32 %v4636, %v6629
        %v6662 = vadd.f32 %v4637, %v6630
        %v6663 = vadd.f32 %v4638, %v6631
        %v6664 = vadd.f32 %v4639, %v6632
        %v6665 = vadd.f32 %v4640, %v6633
        %v6666 = vadd.f32 %v4641, %v6634
        %v6667 = vadd.f32 %v4642, %v6635
        %v6668 = vadd.f32 %v4643, %v6636
        %v6669 = vadd.f32 %v4644, %v6637
        %6670 = vst.msk [vmem:[%s678] sm:$0xff] %vm711, %v6638
        %6671 = vst.msk [vmem:[%s678 + $0x8] sm:$0xff] %vm711, %v6639
        %6672 = vst.msk [vmem:[%s678 + $0x10] sm:$0xff] %vm711, %v6640
        %6673 = vst.msk [vmem:[%s678 + $0x18] sm:$0xff] %vm711, %v6641
        %6674 = vst.msk [vmem:[%s678 + $0x20] sm:$0xff] %vm711, %v6642
        %6675 = vst.msk [vmem:[%s678 + $0x28] sm:$0xff] %vm711, %v6643
        %6676 = vst.msk [vmem:[%s678 + $0x30] sm:$0xff] %vm711, %v6644
        %6677 = vst.msk [vmem:[%s678 + $0x38] sm:$0xff] %vm711, %v6645
        %6678 = vst.msk [vmem:[%s678 + $0x40] sm:$0xff] %vm711, %v6646
        %6679 = vst.msk [vmem:[%s678 + $0x48] sm:$0xff] %vm711, %v6647
        %6680 = vst.msk [vmem:[%s678 + $0x50] sm:$0xff] %vm711, %v6648
        %6681 = vst.msk [vmem:[%s678 + $0x58] sm:$0xff] %vm711, %v6649
        %6682 = vst.msk [vmem:[%s678 + $0x60] sm:$0xff] %vm711, %v6650
        %6683 = vst.msk [vmem:[%s678 + $0x68] sm:$0xff] %vm711, %v6651
        %6684 = vst.msk [vmem:[%s678 + $0x70] sm:$0xff] %vm711, %v6652
        %6685 = vst.msk [vmem:[%s678 + $0x78] sm:$0xff] %vm711, %v6653
        %6686 = vst.msk [vmem:[%s678 + $0x80] sm:$0xff] %vm711, %v6654
        %6687 = vst.msk [vmem:[%s678 + $0x88] sm:$0xff] %vm711, %v6655
        %6688 = vst.msk [vmem:[%s678 + $0x90] sm:$0xff] %vm711, %v6656
        %6689 = vst.msk [vmem:[%s678 + $0x98] sm:$0xff] %vm711, %v6657
        %6690 = vst.msk [vmem:[%s678 + $0xa0] sm:$0xff] %vm711, %v6658
        %6691 = vst.msk [vmem:[%s678 + $0xa8] sm:$0xff] %vm711, %v6659
        %6692 = vst.msk [vmem:[%s678 + $0xb0] sm:$0xff] %vm711, %v6660
        %6693 = vst.msk [vmem:[%s678 + $0xb8] sm:$0xff] %vm711, %v6661
        %6694 = vst.msk [vmem:[%s678 + $0xc0] sm:$0xff] %vm711, %v6662
        %6695 = vst.msk [vmem:[%s678 + $0xc8] sm:$0xff] %vm711, %v6663
        %6696 = vst.msk [vmem:[%s678 + $0xd0] sm:$0xff] %vm711, %v6664
        %6697 = vst.msk [vmem:[%s678 + $0xd8] sm:$0xff] %vm711, %v6665
        %6698 = vst.msk [vmem:[%s678 + $0xe0] sm:$0xff] %vm711, %v6666
        %6699 = vst.msk [vmem:[%s678 + $0xe8] sm:$0xff] %vm711, %v6667
        %6700 = vst.msk [vmem:[%s678 + $0xf0] sm:$0xff] %vm711, %v6668
        %6701 = vst.msk [vmem:[%s678 + $0xf8] sm:$0xff] %vm711, %v6669
        %s6702 = sand.u32 %s494, 1
        %s6703 = scalar_lea.sflag [#allocation8], %s6702
        %s6704 = sand.u32 %s494, 1
        %s6705 = smul.addr %s6704, 256
        %s6706 = scalar_lea.vmem [#allocation9], %s6705
        // Predicated region
        $region109: #{cluster_block_forward.1} parent=103 // pred_check
          %p6707 = pneg %p504
        $region110: #{cluster_block_forward.1} parent=103 // pred_check_branch
          %6709 = sbr.rel (%p6707) target = $region112
        $region111: #{cluster_block_forward.1} parent=103 // pred_region
          %6711 = vsyncadd %s6703, 0
          %s6712 = smul.addr %s40, 32
          %s6713 = smul.addr %s6712, 8
          %s6714 = scalar_lea.hbm %s21, %s6713
          %s6715 = sshll.u32 %s6706, 4
          %s6716 = int_to_ptr.vmem [resolvable:$true] %s6715
          %s6717 = sshll.u32 %s6714, 4
          %s6718 = int_to_ptr.hbm [resolvable:$true] %s6717
          %6723 = dma.vmem_to_hbm [thread:$0]  %s6716, 4096, %s6718, %s6703, 128, 128, 8
        $region112: #{cluster_block_forward.1} parent=103 // pred_fallthru
          _
      $region104: #{cluster_block_forward.1} parent=5 // pred_fallthru
        _
      %p6724 = scmp.le.s32.totalorder 2, %s35
      // Predicated region
      $region113: #{cluster_block_forward.1} parent=5 // pred_check
        %p6725 = pneg %p6724
      $region114: #{cluster_block_forward.1} parent=5 // pred_check_branch
        %6727 = sbr.rel (%p6725) target = $region116
      $region115: #{cluster_block_forward.1} parent=5 // pred_region
        %s6728 = ssub.s32 %s35, 2
        // Predicated region
        $region117: #{cluster_block_forward.1} parent=115 // pred_check
          %p6729 = pneg %p510
        $region118: #{cluster_block_forward.1} parent=115 // pred_check_branch
          %6731 = sbr.rel (%p6729) target = $region120
        $region119: #{cluster_block_forward.1} parent=115 // pred_region
          %s6732 = sand.u32 %s495, 1
          %s6733 = scalar_lea.sflag [#allocation8], %s6732
          %s6734 = sand.u32 %s495, 1
          %s6735 = smul.addr %s6734, 256
          %s6736 = scalar_lea.vmem [#allocation9], %s6735
          %6738 = dma.done %s6733, 4096
        $region120: #{cluster_block_forward.1} parent=115 // pred_fallthru
          _
      $region116: #{cluster_block_forward.1} parent=5 // pred_fallthru
        _
    $region6: #{cluster_block_forward.1} parent=1 // loop_footer
      %s39 = sadd.s32 1, %s35
    $region7: #{cluster_block_forward.1} parent=1 // loop_footer_branch
      %34 = sbr.rel target = $region3
    $region8: #{cluster_block_forward.1} parent=1 // loop_exit
      _
    %6739 = vsyncpa [#allocation7], 1
    %s6740 = scalar_lea.sflag [#allocation7], 1
    %6741 = vsyncpa %s6740, 1
    %6742 = vsyncpa [#allocation8], 1
    %s6743 = scalar_lea.sflag [#allocation8], 1
    %6744 = vsyncpa %s6743, 1

</llo_original>
